<compile_context>
chip_gen: v7x
topology: tpu7x:2x2x1
jax: 0.10.0
libtpu: 0.0.40
codegen_flags: <defaults>
</compile_context>

<pallas_src>
import jax
import jax.numpy as jnp
from jax.experimental import pallas as pl
from jax.experimental.pallas import tpu as pltpu  # noqa: F401  (TPU backend)

EPS = 1e-3       # matches BatchNorm2d(..., eps=0.001)
_LANES = 128     # TPU vreg lane width


def bn_relu_kernel(x_ref, gamma_ref, beta_ref, o_ref):
    # x_ref / o_ref: (N, C, HW)  -- C on sublanes, HW on lanes (free NCHW view)
    # gamma_ref / beta_ref: (1, C) -- lane-dense per-channel params
    N, C, HW = x_ref.shape
    inv_n = jnp.float32(1.0 / (N * HW))

    # Channel chunking: 128 channels at a time so (a) all per-channel scalar
    # math fits in one lane-dense vreg, (b) the live activation slice is only
    # ~16 vregs, avoiding register-file spills.
    ct = _LANES if C % _LANES == 0 else C

    for c0 in range(0, C, ct):
        # Cast to f32 once; all math in f32, cast back only at the store
        # (keeps v5e happy if inputs ever arrive as bf16).
        xc = x_ref[:, c0:c0 + ct, :].astype(jnp.float32)     # (N, ct, HW)

        # ---- pass 1: per-channel mean (spatial lane reduce) -------------
        s_col = jnp.sum(xc, axis=2, keepdims=True)           # (N, ct, 1)
        s_col = jnp.sum(s_col, axis=0, keepdims=True)        # (1, ct, 1)
        mean_col = s_col * inv_n                              # column (broadcast form)
        mean_row = mean_col.reshape(1, ct)                    # lane-dense copy

        # ---- pass 2: shifted two-pass variance (cancellation-safe) ------
        d = xc - mean_col                                     # centered activations
        ss_col = jnp.sum(d * d, axis=2, keepdims=True)        # (N, ct, 1)
        ss_col = jnp.sum(ss_col, axis=0, keepdims=True)       # (1, ct, 1)
        ss_row = ss_col.reshape(1, ct)                        # lane-dense

        # ---- per-channel scalar math: all lane-dense (1 vreg / chunk) ----
        var_row = ss_row * inv_n                              # biased variance
        inv_std_row = jax.lax.rsqrt(var_row + EPS)
        scale_row = gamma_ref[:, c0:c0 + ct] * inv_std_row    # gamma * rsqrt(var+eps)
        shift_row = beta_ref[:, c0:c0 + ct] - mean_row * scale_row

        # Relayout back to channel columns only where the (N, ct, HW)
        # broadcast actually needs them (XLU work; VALU is the binding slot).
        scale_col = scale_row.reshape(1, ct, 1)
        shift_col = shift_row.reshape(1, ct, 1)

        # ---- pass 3: normalize + ReLU + store ----------------------------
        y = xc * scale_col + shift_col
        o_ref[:, c0:c0 + ct, :] = jnp.maximum(y, 0.0).astype(o_ref.dtype)


def batchnorm_relu(x_nchw, gamma, beta):
    """Training-mode BatchNorm2d(C, eps=1e-3) + ReLU.  x_nchw: (N, C, H, W)."""
    N, C, H, W = x_nchw.shape
    HW = H * W

    # Free views on contiguous NCHW data -- no HBM transposes, no extra kernels.
    x3d = x_nchw.reshape(N, C, HW)
    g2d = gamma.reshape(1, C).astype(jnp.float32)   # lane-dense params
    b2d = beta.reshape(1, C).astype(jnp.float32)

    out3d = pl.pallas_call(
        bn_relu_kernel,
        out_shape=jax.ShapeDtypeStruct((N, C, HW), x_nchw.dtype),
        in_specs=[
            pl.BlockSpec((N, C, HW), lambda: (0, 0, 0)),
            pl.BlockSpec((1, C), lambda: (0, 0)),
            pl.BlockSpec((1, C), lambda: (0, 0)),
        ],
        out_specs=pl.BlockSpec((N, C, HW), lambda: (0, 0, 0)),
    )(x3d, g2d, b2d)

    return out3d.reshape(N, C, H, W)


if __name__ == "__main__":
    key = jax.random.PRNGKey(0)
    kx, kg, kb = jax.random.split(key, 3)

    # Shapes implied by the module: x268 = randn(1, 384, 5, 5), BatchNorm2d(384)
    N, C, H, W = 1, 384, 5, 5
    x = jax.random.normal(kx, (N, C, H, W), dtype=jnp.float32)
    gamma = 1.0 + 0.1 * jax.random.normal(kg, (C,), dtype=jnp.float32)
    beta = 0.1 * jax.random.normal(kb, (C,), dtype=jnp.float32)

    out = jax.block_until_ready(batchnorm_relu(x, gamma, beta))

    # Pure-JAX reference (training-mode batchnorm, biased variance, + relu).
    mean = jnp.mean(x, axis=(0, 2, 3), keepdims=True)
    var = jnp.mean((x - mean) ** 2, axis=(0, 2, 3), keepdims=True)
    ref = (x - mean) / jnp.sqrt(var + EPS)
    ref = ref * gamma.reshape(1, C, 1, 1) + beta.reshape(1, C, 1, 1)
    ref = jnp.maximum(ref, 0.0)

    assert out.shape == (N, C, H, W)
    max_err = float(jnp.max(jnp.abs(out - ref)))
    assert jnp.allclose(out, ref, atol=1e-5, rtol=1e-5), max_err
    print("KERNEL_OK")
</pallas_src>

<mosaic_0001>
module attributes {stable_mosaic.version = 11 : i64} {
  func.func @bn_relu_kernel(%arg0: memref<1x384x25xf32, #tpu.memory_space<vmem>>, %arg1: memref<1x384xf32, #tpu.memory_space<vmem>>, %arg2: memref<1x384xf32, #tpu.memory_space<vmem>>, %arg3: memref<1x384x25xf32, #tpu.memory_space<vmem>>) attributes {dimension_semantics = [], scalar_prefetch = 0 : i64, scratch_operands = 0 : i64, tpu.core_type = #tpu.core_type<tc>} {
    %c0 = arith.constant 0 : index
    %c0_0 = arith.constant 0 : index
    %c0_1 = arith.constant 0 : index
    %0 = vector.load %arg0[%c0, %c0_0, %c0_1] : memref<1x384x25xf32, #tpu.memory_space<vmem>>, vector<1x128x25xf32>
    %cst = arith.constant dense<0.000000e+00> : vector<1x128xf32>
    %1 = vector.multi_reduction <add>, %0, %cst [2] : vector<1x128x25xf32> to vector<1x128xf32>
    %2 = vector.shape_cast %1 : vector<1x128xf32> to vector<1x128x1xf32>
    %cst_2 = arith.constant dense<0.000000e+00> : vector<128x1xf32>
    %3 = vector.multi_reduction <add>, %2, %cst_2 [0] : vector<1x128x1xf32> to vector<128x1xf32>
    %4 = vector.shape_cast %3 : vector<128x1xf32> to vector<1x128x1xf32>
    %cst_3 = arith.constant 4.000000e-02 : f32
    %5 = vector.broadcast %cst_3 : f32 to vector<1x128x1xf32>
    %6 = arith.mulf %4, %5 : vector<1x128x1xf32>
    %7 = vector.shape_cast %6 : vector<1x128x1xf32> to vector<1x128xf32>
    %8 = vector.broadcast %6 : vector<1x128x1xf32> to vector<1x128x25xf32>
    %9 = arith.subf %0, %8 : vector<1x128x25xf32>
    %10 = arith.mulf %9, %9 : vector<1x128x25xf32>
    %cst_4 = arith.constant dense<0.000000e+00> : vector<1x128xf32>
    %11 = vector.multi_reduction <add>, %10, %cst_4 [2] : vector<1x128x25xf32> to vector<1x128xf32>
    %12 = vector.shape_cast %11 : vector<1x128xf32> to vector<1x128x1xf32>
    %cst_5 = arith.constant dense<0.000000e+00> : vector<128x1xf32>
    %13 = vector.multi_reduction <add>, %12, %cst_5 [0] : vector<1x128x1xf32> to vector<128x1xf32>
    %14 = vector.shape_cast %13 : vector<128x1xf32> to vector<1x128x1xf32>
    %15 = vector.shape_cast %14 : vector<1x128x1xf32> to vector<1x128xf32>
    %cst_6 = arith.constant 4.000000e-02 : f32
    %16 = vector.broadcast %cst_6 : f32 to vector<1x128xf32>
    %17 = arith.mulf %15, %16 : vector<1x128xf32>
    %cst_7 = arith.constant 1.000000e-03 : f32
    %18 = vector.broadcast %cst_7 : f32 to vector<1x128xf32>
    %19 = arith.addf %17, %18 : vector<1x128xf32>
    %20 = math.rsqrt %19 : vector<1x128xf32>
    %c0_8 = arith.constant 0 : index
    %c0_9 = arith.constant 0 : index
    %21 = vector.load %arg1[%c0_8, %c0_9] : memref<1x384xf32, #tpu.memory_space<vmem>>, vector<1x128xf32>
    %22 = arith.mulf %21, %20 : vector<1x128xf32>
    %c0_10 = arith.constant 0 : index
    %c0_11 = arith.constant 0 : index
    %23 = vector.load %arg2[%c0_10, %c0_11] : memref<1x384xf32, #tpu.memory_space<vmem>>, vector<1x128xf32>
    %24 = arith.mulf %7, %22 : vector<1x128xf32>
    %25 = arith.subf %23, %24 : vector<1x128xf32>
    %26 = vector.shape_cast %22 : vector<1x128xf32> to vector<1x128x1xf32>
    %27 = vector.shape_cast %25 : vector<1x128xf32> to vector<1x128x1xf32>
    %28 = vector.broadcast %26 : vector<1x128x1xf32> to vector<1x128x25xf32>
    %29 = arith.mulf %0, %28 : vector<1x128x25xf32>
    %30 = vector.broadcast %27 : vector<1x128x1xf32> to vector<1x128x25xf32>
    %31 = arith.addf %29, %30 : vector<1x128x25xf32>
    %cst_12 = arith.constant 0.000000e+00 : f32
    %32 = vector.broadcast %cst_12 : f32 to vector<1x128x25xf32>
    %33 = arith.maximumf %31, %32 : vector<1x128x25xf32>
    %c0_13 = arith.constant 0 : index
    %c0_14 = arith.constant 0 : index
    %c0_15 = arith.constant 0 : index
    %34 = vector.load %arg3[%c0_13, %c0_14, %c0_15] : memref<1x384x25xf32, #tpu.memory_space<vmem>>, vector<1x128x25xf32>
    tpu.vector_store %arg3[%c0_13, %c0_14, %c0_15], %33 {strides = array<i32>} : memref<1x384x25xf32, #tpu.memory_space<vmem>>, vector<1x128x25xf32>,
    %c0_16 = arith.constant 0 : index
    %c128 = arith.constant 128 : index
    %c0_17 = arith.constant 0 : index
    %35 = vector.load %arg0[%c0_16, %c128, %c0_17] : memref<1x384x25xf32, #tpu.memory_space<vmem>>, vector<1x128x25xf32>
    %cst_18 = arith.constant dense<0.000000e+00> : vector<1x128xf32>
    %36 = vector.multi_reduction <add>, %35, %cst_18 [2] : vector<1x128x25xf32> to vector<1x128xf32>
    %37 = vector.shape_cast %36 : vector<1x128xf32> to vector<1x128x1xf32>
    %cst_19 = arith.constant dense<0.000000e+00> : vector<128x1xf32>
    %38 = vector.multi_reduction <add>, %37, %cst_19 [0] : vector<1x128x1xf32> to vector<128x1xf32>
    %39 = vector.shape_cast %38 : vector<128x1xf32> to vector<1x128x1xf32>
    %cst_20 = arith.constant 4.000000e-02 : f32
    %40 = vector.broadcast %cst_20 : f32 to vector<1x128x1xf32>
    %41 = arith.mulf %39, %40 : vector<1x128x1xf32>
    %42 = vector.shape_cast %41 : vector<1x128x1xf32> to vector<1x128xf32>
    %43 = vector.broadcast %41 : vector<1x128x1xf32> to vector<1x128x25xf32>
    %44 = arith.subf %35, %43 : vector<1x128x25xf32>
    %45 = arith.mulf %44, %44 : vector<1x128x25xf32>
    %cst_21 = arith.constant dense<0.000000e+00> : vector<1x128xf32>
    %46 = vector.multi_reduction <add>, %45, %cst_21 [2] : vector<1x128x25xf32> to vector<1x128xf32>
    %47 = vector.shape_cast %46 : vector<1x128xf32> to vector<1x128x1xf32>
    %cst_22 = arith.constant dense<0.000000e+00> : vector<128x1xf32>
    %48 = vector.multi_reduction <add>, %47, %cst_22 [0] : vector<1x128x1xf32> to vector<128x1xf32>
    %49 = vector.shape_cast %48 : vector<128x1xf32> to vector<1x128x1xf32>
    %50 = vector.shape_cast %49 : vector<1x128x1xf32> to vector<1x128xf32>
    %cst_23 = arith.constant 4.000000e-02 : f32
    %51 = vector.broadcast %cst_23 : f32 to vector<1x128xf32>
    %52 = arith.mulf %50, %51 : vector<1x128xf32>
    %cst_24 = arith.constant 1.000000e-03 : f32
    %53 = vector.broadcast %cst_24 : f32 to vector<1x128xf32>
    %54 = arith.addf %52, %53 : vector<1x128xf32>
    %55 = math.rsqrt %54 : vector<1x128xf32>
    %c0_25 = arith.constant 0 : index
    %c128_26 = arith.constant 128 : index
    %56 = vector.load %arg1[%c0_25, %c128_26] : memref<1x384xf32, #tpu.memory_space<vmem>>, vector<1x128xf32>
    %57 = arith.mulf %56, %55 : vector<1x128xf32>
    %c0_27 = arith.constant 0 : index
    %c128_28 = arith.constant 128 : index
    %58 = vector.load %arg2[%c0_27, %c128_28] : memref<1x384xf32, #tpu.memory_space<vmem>>, vector<1x128xf32>
    %59 = arith.mulf %42, %57 : vector<1x128xf32>
    %60 = arith.subf %58, %59 : vector<1x128xf32>
    %61 = vector.shape_cast %57 : vector<1x128xf32> to vector<1x128x1xf32>
    %62 = vector.shape_cast %60 : vector<1x128xf32> to vector<1x128x1xf32>
    %63 = vector.broadcast %61 : vector<1x128x1xf32> to vector<1x128x25xf32>
    %64 = arith.mulf %35, %63 : vector<1x128x25xf32>
    %65 = vector.broadcast %62 : vector<1x128x1xf32> to vector<1x128x25xf32>
    %66 = arith.addf %64, %65 : vector<1x128x25xf32>
    %cst_29 = arith.constant 0.000000e+00 : f32
    %67 = vector.broadcast %cst_29 : f32 to vector<1x128x25xf32>
    %68 = arith.maximumf %66, %67 : vector<1x128x25xf32>
    %c0_30 = arith.constant 0 : index
    %c128_31 = arith.constant 128 : index
    %c0_32 = arith.constant 0 : index
    %69 = vector.load %arg3[%c0_30, %c128_31, %c0_32] : memref<1x384x25xf32, #tpu.memory_space<vmem>>, vector<1x128x25xf32>
    tpu.vector_store %arg3[%c0_30, %c128_31, %c0_32], %68 {strides = array<i32>} : memref<1x384x25xf32, #tpu.memory_space<vmem>>, vector<1x128x25xf32>,
    %c0_33 = arith.constant 0 : index
    %c256 = arith.constant 256 : index
    %c0_34 = arith.constant 0 : index
    %70 = vector.load %arg0[%c0_33, %c256, %c0_34] : memref<1x384x25xf32, #tpu.memory_space<vmem>>, vector<1x128x25xf32>
    %cst_35 = arith.constant dense<0.000000e+00> : vector<1x128xf32>
    %71 = vector.multi_reduction <add>, %70, %cst_35 [2] : vector<1x128x25xf32> to vector<1x128xf32>
    %72 = vector.shape_cast %71 : vector<1x128xf32> to vector<1x128x1xf32>
    %cst_36 = arith.constant dense<0.000000e+00> : vector<128x1xf32>
    %73 = vector.multi_reduction <add>, %72, %cst_36 [0] : vector<1x128x1xf32> to vector<128x1xf32>
    %74 = vector.shape_cast %73 : vector<128x1xf32> to vector<1x128x1xf32>
    %cst_37 = arith.constant 4.000000e-02 : f32
    %75 = vector.broadcast %cst_37 : f32 to vector<1x128x1xf32>
    %76 = arith.mulf %74, %75 : vector<1x128x1xf32>
    %77 = vector.shape_cast %76 : vector<1x128x1xf32> to vector<1x128xf32>
    %78 = vector.broadcast %76 : vector<1x128x1xf32> to vector<1x128x25xf32>
    %79 = arith.subf %70, %78 : vector<1x128x25xf32>
    %80 = arith.mulf %79, %79 : vector<1x128x25xf32>
    %cst_38 = arith.constant dense<0.000000e+00> : vector<1x128xf32>
    %81 = vector.multi_reduction <add>, %80, %cst_38 [2] : vector<1x128x25xf32> to vector<1x128xf32>
    %82 = vector.shape_cast %81 : vector<1x128xf32> to vector<1x128x1xf32>
    %cst_39 = arith.constant dense<0.000000e+00> : vector<128x1xf32>
    %83 = vector.multi_reduction <add>, %82, %cst_39 [0] : vector<1x128x1xf32> to vector<128x1xf32>
    %84 = vector.shape_cast %83 : vector<128x1xf32> to vector<1x128x1xf32>
    %85 = vector.shape_cast %84 : vector<1x128x1xf32> to vector<1x128xf32>
    %cst_40 = arith.constant 4.000000e-02 : f32
    %86 = vector.broadcast %cst_40 : f32 to vector<1x128xf32>
    %87 = arith.mulf %85, %86 : vector<1x128xf32>
    %cst_41 = arith.constant 1.000000e-03 : f32
    %88 = vector.broadcast %cst_41 : f32 to vector<1x128xf32>
    %89 = arith.addf %87, %88 : vector<1x128xf32>
    %90 = math.rsqrt %89 : vector<1x128xf32>
    %c0_42 = arith.constant 0 : index
    %c256_43 = arith.constant 256 : index
    %91 = vector.load %arg1[%c0_42, %c256_43] : memref<1x384xf32, #tpu.memory_space<vmem>>, vector<1x128xf32>
    %92 = arith.mulf %91, %90 : vector<1x128xf32>
    %c0_44 = arith.constant 0 : index
    %c256_45 = arith.constant 256 : index
    %93 = vector.load %arg2[%c0_44, %c256_45] : memref<1x384xf32, #tpu.memory_space<vmem>>, vector<1x128xf32>
    %94 = arith.mulf %77, %92 : vector<1x128xf32>
    %95 = arith.subf %93, %94 : vector<1x128xf32>
    %96 = vector.shape_cast %92 : vector<1x128xf32> to vector<1x128x1xf32>
    %97 = vector.shape_cast %95 : vector<1x128xf32> to vector<1x128x1xf32>
    %98 = vector.broadcast %96 : vector<1x128x1xf32> to vector<1x128x25xf32>
    %99 = arith.mulf %70, %98 : vector<1x128x25xf32>
    %100 = vector.broadcast %97 : vector<1x128x1xf32> to vector<1x128x25xf32>
    %101 = arith.addf %99, %100 : vector<1x128x25xf32>
    %cst_46 = arith.constant 0.000000e+00 : f32
    %102 = vector.broadcast %cst_46 : f32 to vector<1x128x25xf32>
    %103 = arith.maximumf %101, %102 : vector<1x128x25xf32>
    %c0_47 = arith.constant 0 : index
    %c256_48 = arith.constant 256 : index
    %c0_49 = arith.constant 0 : index
    %104 = vector.load %arg3[%c0_47, %c256_48, %c0_49] : memref<1x384x25xf32, #tpu.memory_space<vmem>>, vector<1x128x25xf32>
    tpu.vector_store %arg3[%c0_47, %c256_48, %c0_49], %103 {strides = array<i32>} : memref<1x384x25xf32, #tpu.memory_space<vmem>>, vector<1x128x25xf32>,
    return
  }
}

</mosaic_0001>

<llo_original>
// kernel: tpu_custom_call.1
$region0: #{tpu_custom_call.1}
  #allocation0 [shape = 'u32[]', space=smem, size = 0x4, offset = 0x4, fixed_abs, tag = 'smem constant byte address 0x4 - core index']
  #allocation1 [shape = 'u32[144,128]{1,0:T(1,128)}', space=vmem, size = 0x12000, scoped, tag = 'internal scratch']
  %s0 = inlined_call_operand.vmem [shape: f32[1,384,25], index: 0, kind: input, shape index: {}]
  %s1 = inlined_call_operand.vmem [shape: f32[1,384], index: 1, kind: input, shape index: {}]
  %s2 = inlined_call_operand.vmem [shape: f32[1,384], index: 2, kind: input, shape index: {}]
  %s3 = inlined_call_operand.vmem [shape: f32[1,384,25], index: 3, kind: output, shape index: {}]
  %s4 = sld [smem:[#allocation0]]
  $region22: #{tpu_custom_call.1} parent=0
    _
  %s6 = ssub.s32 1, %s4
  %s7 = scalar_select 0, %s6, %s4
  // Predicated region
  $region2: #{tpu_custom_call.1} parent=0 // pred_check
    _
  $region3: #{tpu_custom_call.1} parent=0 // pred_check_branch
    %9 = sbr.rel (0) target = $region5
  $region4: #{tpu_custom_call.1} parent=0 // pred_region
    _
  $region5: #{tpu_custom_call.1} parent=0 // pred_fallthru
    _
  // Predicated region
  $region6: #{tpu_custom_call.1} parent=0 // pred_check
    _
  $region7: #{tpu_custom_call.1} parent=0 // pred_check_branch
    %11 = sbr.rel (0) target = $region9
  $region8: #{tpu_custom_call.1} parent=0 // pred_region
    _
  $region9: #{tpu_custom_call.1} parent=0 // pred_fallthru
    _
  // Predicated region
  $region10: #{tpu_custom_call.1} parent=0 // pred_check
    _
  $region11: #{tpu_custom_call.1} parent=0 // pred_check_branch
    %13 = sbr.rel (0) target = $region13
  $region12: #{tpu_custom_call.1} parent=0 // pred_region
    _
  $region13: #{tpu_custom_call.1} parent=0 // pred_fallthru
    _
  %v14 = vld [vmem:[%s0] sm:$0xff]
  %v15 = vld [vmem:[%s0 + $0x8] sm:$0xff]
  %v16 = vld [vmem:[%s0 + $0x10] sm:$0xff]
  %v17 = vld [vmem:[%s0 + $0x18] sm:$0xff]
  %v18 = vld [vmem:[%s0 + $0x20] sm:$0xff]
  %v19 = vld [vmem:[%s0 + $0x28] sm:$0xff]
  %v20 = vld [vmem:[%s0 + $0x30] sm:$0xff]
  %v21 = vld [vmem:[%s0 + $0x38] sm:$0xff]
  %v22 = vld [vmem:[%s0 + $0x40] sm:$0xff]
  %v23 = vld [vmem:[%s0 + $0x48] sm:$0xff]
  %v24 = vld [vmem:[%s0 + $0x50] sm:$0xff]
  %v25 = vld [vmem:[%s0 + $0x58] sm:$0xff]
  %v26 = vld [vmem:[%s0 + $0x60] sm:$0xff]
  %v27 = vld [vmem:[%s0 + $0x68] sm:$0xff]
  %v28 = vld [vmem:[%s0 + $0x70] sm:$0xff]
  %v29 = vld [vmem:[%s0 + $0x78] sm:$0xff]
  %vm30 = vcmask 203776
  %v31 = vsel %vm30, %v14, 0.0
  %32 = vadd.xlane.f32.xlu0 %v31
  %v33 = vpop.xlane.xlu0 %32
  %v34 = vsel %vm30, %v15, 0.0
  %35 = vadd.xlane.f32.xlu0 %v34
  %v36 = vpop.xlane.xlu0 %35
  %v37 = vsel %vm30, %v16, 0.0
  %38 = vadd.xlane.f32.xlu0 %v37
  %v39 = vpop.xlane.xlu0 %38
  %v40 = vsel %vm30, %v17, 0.0
  %41 = vadd.xlane.f32.xlu0 %v40
  %v42 = vpop.xlane.xlu0 %41
  %v43 = vsel %vm30, %v18, 0.0
  %44 = vadd.xlane.f32.xlu0 %v43
  %v45 = vpop.xlane.xlu0 %44
  %v46 = vsel %vm30, %v19, 0.0
  %47 = vadd.xlane.f32.xlu0 %v46
  %v48 = vpop.xlane.xlu0 %47
  %v49 = vsel %vm30, %v20, 0.0
  %50 = vadd.xlane.f32.xlu0 %v49
  %v51 = vpop.xlane.xlu0 %50
  %v52 = vsel %vm30, %v21, 0.0
  %53 = vadd.xlane.f32.xlu0 %v52
  %v54 = vpop.xlane.xlu0 %53
  %v55 = vsel %vm30, %v22, 0.0
  %56 = vadd.xlane.f32.xlu0 %v55
  %v57 = vpop.xlane.xlu0 %56
  %v58 = vsel %vm30, %v23, 0.0
  %59 = vadd.xlane.f32.xlu0 %v58
  %v60 = vpop.xlane.xlu0 %59
  %v61 = vsel %vm30, %v24, 0.0
  %62 = vadd.xlane.f32.xlu0 %v61
  %v63 = vpop.xlane.xlu0 %62
  %v64 = vsel %vm30, %v25, 0.0
  %65 = vadd.xlane.f32.xlu0 %v64
  %v66 = vpop.xlane.xlu0 %65
  %v67 = vsel %vm30, %v26, 0.0
  %68 = vadd.xlane.f32.xlu0 %v67
  %v69 = vpop.xlane.xlu0 %68
  %v70 = vsel %vm30, %v27, 0.0
  %71 = vadd.xlane.f32.xlu0 %v70
  %v72 = vpop.xlane.xlu0 %71
  %v73 = vsel %vm30, %v28, 0.0
  %74 = vadd.xlane.f32.xlu0 %v73
  %v75 = vpop.xlane.xlu0 %74
  %v76 = vsel %vm30, %v29, 0.0
  %77 = vadd.xlane.f32.xlu0 %v76
  %v78 = vpop.xlane.xlu0 %77
  %v79 = vadd.f32 %v33, 0.0
  %v80 = vadd.f32 %v36, 0.0
  %v81 = vadd.f32 %v39, 0.0
  %v82 = vadd.f32 %v42, 0.0
  %v83 = vadd.f32 %v45, 0.0
  %v84 = vadd.f32 %v48, 0.0
  %v85 = vadd.f32 %v51, 0.0
  %v86 = vadd.f32 %v54, 0.0
  %v87 = vadd.f32 %v57, 0.0
  %v88 = vadd.f32 %v60, 0.0
  %v89 = vadd.f32 %v63, 0.0
  %v90 = vadd.f32 %v66, 0.0
  %v91 = vadd.f32 %v69, 0.0
  %v92 = vadd.f32 %v72, 0.0
  %v93 = vadd.f32 %v75, 0.0
  %v94 = vadd.f32 %v78, 0.0
  %v95 = vmul.f32 %v79, 0.04
  %v96 = vmul.f32 %v80, 0.04
  %v97 = vmul.f32 %v81, 0.04
  %v98 = vmul.f32 %v82, 0.04
  %v99 = vmul.f32 %v83, 0.04
  %v100 = vmul.f32 %v84, 0.04
  %v101 = vmul.f32 %v85, 0.04
  %v102 = vmul.f32 %v86, 0.04
  %v103 = vmul.f32 %v87, 0.04
  %v104 = vmul.f32 %v88, 0.04
  %v105 = vmul.f32 %v89, 0.04
  %v106 = vmul.f32 %v90, 0.04
  %v107 = vmul.f32 %v91, 0.04
  %v108 = vmul.f32 %v92, 0.04
  %v109 = vmul.f32 %v93, 0.04
  %v110 = vmul.f32 %v94, 0.04
  %v111 = vsub.f32 %v14, %v95
  %v112 = vsub.f32 %v15, %v96
  %v113 = vsub.f32 %v16, %v97
  %v114 = vsub.f32 %v17, %v98
  %v115 = vsub.f32 %v18, %v99
  %v116 = vsub.f32 %v19, %v100
  %v117 = vsub.f32 %v20, %v101
  %v118 = vsub.f32 %v21, %v102
  %v119 = vsub.f32 %v22, %v103
  %v120 = vsub.f32 %v23, %v104
  %v121 = vsub.f32 %v24, %v105
  %v122 = vsub.f32 %v25, %v106
  %v123 = vsub.f32 %v26, %v107
  %v124 = vsub.f32 %v27, %v108
  %v125 = vsub.f32 %v28, %v109
  %v126 = vsub.f32 %v29, %v110
  %v127 = vmul.f32 %v111, %v111
  %v128 = vmul.f32 %v112, %v112
  %v129 = vmul.f32 %v113, %v113
  %v130 = vmul.f32 %v114, %v114
  %v131 = vmul.f32 %v115, %v115
  %v132 = vmul.f32 %v116, %v116
  %v133 = vmul.f32 %v117, %v117
  %v134 = vmul.f32 %v118, %v118
  %v135 = vmul.f32 %v119, %v119
  %v136 = vmul.f32 %v120, %v120
  %v137 = vmul.f32 %v121, %v121
  %v138 = vmul.f32 %v122, %v122
  %v139 = vmul.f32 %v123, %v123
  %v140 = vmul.f32 %v124, %v124
  %v141 = vmul.f32 %v125, %v125
  %v142 = vmul.f32 %v126, %v126
  %v143 = vsel %vm30, %v127, 0.0
  %144 = vadd.xlane.f32.xlu0 %v143
  %v145 = vpop.xlane.xlu0 %144
  %v146 = vsel %vm30, %v128, 0.0
  %147 = vadd.xlane.f32.xlu0 %v146
  %v148 = vpop.xlane.xlu0 %147
  %v149 = vsel %vm30, %v129, 0.0
  %150 = vadd.xlane.f32.xlu0 %v149
  %v151 = vpop.xlane.xlu0 %150
  %v152 = vsel %vm30, %v130, 0.0
  %153 = vadd.xlane.f32.xlu0 %v152
  %v154 = vpop.xlane.xlu0 %153
  %v155 = vsel %vm30, %v131, 0.0
  %156 = vadd.xlane.f32.xlu0 %v155
  %v157 = vpop.xlane.xlu0 %156
  %v158 = vsel %vm30, %v132, 0.0
  %159 = vadd.xlane.f32.xlu0 %v158
  %v160 = vpop.xlane.xlu0 %159
  %v161 = vsel %vm30, %v133, 0.0
  %162 = vadd.xlane.f32.xlu0 %v161
  %v163 = vpop.xlane.xlu0 %162
  %v164 = vsel %vm30, %v134, 0.0
  %165 = vadd.xlane.f32.xlu0 %v164
  %v166 = vpop.xlane.xlu0 %165
  %v167 = vsel %vm30, %v135, 0.0
  %168 = vadd.xlane.f32.xlu0 %v167
  %v169 = vpop.xlane.xlu0 %168
  %v170 = vsel %vm30, %v136, 0.0
  %171 = vadd.xlane.f32.xlu0 %v170
  %v172 = vpop.xlane.xlu0 %171
  %v173 = vsel %vm30, %v137, 0.0
  %174 = vadd.xlane.f32.xlu0 %v173
  %v175 = vpop.xlane.xlu0 %174
  %v176 = vsel %vm30, %v138, 0.0
  %177 = vadd.xlane.f32.xlu0 %v176
  %v178 = vpop.xlane.xlu0 %177
  %v179 = vsel %vm30, %v139, 0.0
  %180 = vadd.xlane.f32.xlu0 %v179
  %v181 = vpop.xlane.xlu0 %180
  %v182 = vsel %vm30, %v140, 0.0
  %183 = vadd.xlane.f32.xlu0 %v182
  %v184 = vpop.xlane.xlu0 %183
  %v185 = vsel %vm30, %v141, 0.0
  %186 = vadd.xlane.f32.xlu0 %v185
  %v187 = vpop.xlane.xlu0 %186
  %v188 = vsel %vm30, %v142, 0.0
  %189 = vadd.xlane.f32.xlu0 %v188
  %v190 = vpop.xlane.xlu0 %189
  %v191 = vadd.f32 %v145, 0.0
  %v192 = vadd.f32 %v148, 0.0
  %v193 = vadd.f32 %v151, 0.0
  %v194 = vadd.f32 %v154, 0.0
  %v195 = vadd.f32 %v157, 0.0
  %v196 = vadd.f32 %v160, 0.0
  %v197 = vadd.f32 %v163, 0.0
  %v198 = vadd.f32 %v166, 0.0
  %v199 = vadd.f32 %v169, 0.0
  %v200 = vadd.f32 %v172, 0.0
  %v201 = vadd.f32 %v175, 0.0
  %v202 = vadd.f32 %v178, 0.0
  %v203 = vadd.f32 %v181, 0.0
  %v204 = vadd.f32 %v184, 0.0
  %v205 = vadd.f32 %v187, 0.0
  %v206 = vadd.f32 %v190, 0.0
  %v207 = vmul.f32 %v191, 0.04
  %v208 = vmul.f32 %v192, 0.04
  %v209 = vmul.f32 %v193, 0.04
  %v210 = vmul.f32 %v194, 0.04
  %v211 = vmul.f32 %v195, 0.04
  %v212 = vmul.f32 %v196, 0.04
  %v213 = vmul.f32 %v197, 0.04
  %v214 = vmul.f32 %v198, 0.04
  %v215 = vmul.f32 %v199, 0.04
  %v216 = vmul.f32 %v200, 0.04
  %v217 = vmul.f32 %v201, 0.04
  %v218 = vmul.f32 %v202, 0.04
  %v219 = vmul.f32 %v203, 0.04
  %v220 = vmul.f32 %v204, 0.04
  %v221 = vmul.f32 %v205, 0.04
  %v222 = vmul.f32 %v206, 0.04
  %v223 = vadd.f32 %v207, 0.001
  %v224 = vadd.f32 %v208, 0.001
  %v225 = vadd.f32 %v209, 0.001
  %v226 = vadd.f32 %v210, 0.001
  %v227 = vadd.f32 %v211, 0.001
  %v228 = vadd.f32 %v212, 0.001
  %v229 = vadd.f32 %v213, 0.001
  %v230 = vadd.f32 %v214, 0.001
  %v231 = vadd.f32 %v215, 0.001
  %v232 = vadd.f32 %v216, 0.001
  %v233 = vadd.f32 %v217, 0.001
  %v234 = vadd.f32 %v218, 0.001
  %v235 = vadd.f32 %v219, 0.001
  %v236 = vadd.f32 %v220, 0.001
  %v237 = vadd.f32 %v221, 0.001
  %v238 = vadd.f32 %v222, 0.001
  %v239 = vrsqrt.pop %v223
  %v240 = vrsqrt.pop %v224
  %v241 = vrsqrt.pop %v225
  %v242 = vrsqrt.pop %v226
  %v243 = vrsqrt.pop %v227
  %v244 = vrsqrt.pop %v228
  %v245 = vrsqrt.pop %v229
  %v246 = vrsqrt.pop %v230
  %v247 = vrsqrt.pop %v231
  %v248 = vrsqrt.pop %v232
  %v249 = vrsqrt.pop %v233
  %v250 = vrsqrt.pop %v234
  %v251 = vrsqrt.pop %v235
  %v252 = vrsqrt.pop %v236
  %v253 = vrsqrt.pop %v237
  %v254 = vrsqrt.pop %v238
  %v255 = vld [vmem:[%s1] sm:$0x1]
  %v272 = vlaneseq
  %v273 = vshrl.u32 %v272, 7
  %v274 = vsub.s32 0, %v273
  %v275 = vrot.slane %v239, %v274
  %v276 = vlaneseq
  %v277 = vshrl.u32 %v276, 7
  %v278 = vsub.s32 1, %v277
  %v279 = vrot.slane %v239, %v278
  %v280 = vlaneseq
  %v281 = vshrl.u32 %v280, 7
  %v282 = vsub.s32 2, %v281
  %v283 = vrot.slane %v239, %v282
  %v284 = vlaneseq
  %v285 = vshrl.u32 %v284, 7
  %v286 = vsub.s32 3, %v285
  %v287 = vrot.slane %v239, %v286
  %v288 = vlaneseq
  %v289 = vshrl.u32 %v288, 7
  %v290 = vsub.s32 4, %v289
  %v291 = vrot.slane %v239, %v290
  %v292 = vlaneseq
  %v293 = vshrl.u32 %v292, 7
  %v294 = vsub.s32 5, %v293
  %v295 = vrot.slane %v239, %v294
  %v296 = vlaneseq
  %v297 = vshrl.u32 %v296, 7
  %v298 = vsub.s32 6, %v297
  %v299 = vrot.slane %v239, %v298
  %v300 = vlaneseq
  %v301 = vshrl.u32 %v300, 7
  %v302 = vsub.s32 7, %v301
  %v303 = vrot.slane %v239, %v302
  %v304 = vlaneseq
  %v305 = vshrl.u32 %v304, 7
  %v306 = vsub.s32 0, %v305
  %v307 = vrot.slane %v240, %v306
  %v308 = vlaneseq
  %v309 = vshrl.u32 %v308, 7
  %v310 = vsub.s32 1, %v309
  %v311 = vrot.slane %v240, %v310
  %v312 = vlaneseq
  %v313 = vshrl.u32 %v312, 7
  %v314 = vsub.s32 2, %v313
  %v315 = vrot.slane %v240, %v314
  %v316 = vlaneseq
  %v317 = vshrl.u32 %v316, 7
  %v318 = vsub.s32 3, %v317
  %v319 = vrot.slane %v240, %v318
  %v320 = vlaneseq
  %v321 = vshrl.u32 %v320, 7
  %v322 = vsub.s32 4, %v321
  %v323 = vrot.slane %v240, %v322
  %v324 = vlaneseq
  %v325 = vshrl.u32 %v324, 7
  %v326 = vsub.s32 5, %v325
  %v327 = vrot.slane %v240, %v326
  %v328 = vlaneseq
  %v329 = vshrl.u32 %v328, 7
  %v330 = vsub.s32 6, %v329
  %v331 = vrot.slane %v240, %v330
  %v332 = vlaneseq
  %v333 = vshrl.u32 %v332, 7
  %v334 = vsub.s32 7, %v333
  %v335 = vrot.slane %v240, %v334
  %v336 = vlaneseq
  %v337 = vshrl.u32 %v336, 7
  %v338 = vsub.s32 0, %v337
  %v339 = vrot.slane %v241, %v338
  %v340 = vlaneseq
  %v341 = vshrl.u32 %v340, 7
  %v342 = vsub.s32 1, %v341
  %v343 = vrot.slane %v241, %v342
  %v344 = vlaneseq
  %v345 = vshrl.u32 %v344, 7
  %v346 = vsub.s32 2, %v345
  %v347 = vrot.slane %v241, %v346
  %v348 = vlaneseq
  %v349 = vshrl.u32 %v348, 7
  %v350 = vsub.s32 3, %v349
  %v351 = vrot.slane %v241, %v350
  %v352 = vlaneseq
  %v353 = vshrl.u32 %v352, 7
  %v354 = vsub.s32 4, %v353
  %v355 = vrot.slane %v241, %v354
  %v356 = vlaneseq
  %v357 = vshrl.u32 %v356, 7
  %v358 = vsub.s32 5, %v357
  %v359 = vrot.slane %v241, %v358
  %v360 = vlaneseq
  %v361 = vshrl.u32 %v360, 7
  %v362 = vsub.s32 6, %v361
  %v363 = vrot.slane %v241, %v362
  %v364 = vlaneseq
  %v365 = vshrl.u32 %v364, 7
  %v366 = vsub.s32 7, %v365
  %v367 = vrot.slane %v241, %v366
  %v368 = vlaneseq
  %v369 = vshrl.u32 %v368, 7
  %v370 = vsub.s32 0, %v369
  %v371 = vrot.slane %v242, %v370
  %v372 = vlaneseq
  %v373 = vshrl.u32 %v372, 7
  %v374 = vsub.s32 1, %v373
  %v375 = vrot.slane %v242, %v374
  %v376 = vlaneseq
  %v377 = vshrl.u32 %v376, 7
  %v378 = vsub.s32 2, %v377
  %v379 = vrot.slane %v242, %v378
  %v380 = vlaneseq
  %v381 = vshrl.u32 %v380, 7
  %v382 = vsub.s32 3, %v381
  %v383 = vrot.slane %v242, %v382
  %v384 = vlaneseq
  %v385 = vshrl.u32 %v384, 7
  %v386 = vsub.s32 4, %v385
  %v387 = vrot.slane %v242, %v386
  %v388 = vlaneseq
  %v389 = vshrl.u32 %v388, 7
  %v390 = vsub.s32 5, %v389
  %v391 = vrot.slane %v242, %v390
  %v392 = vlaneseq
  %v393 = vshrl.u32 %v392, 7
  %v394 = vsub.s32 6, %v393
  %v395 = vrot.slane %v242, %v394
  %v396 = vlaneseq
  %v397 = vshrl.u32 %v396, 7
  %v398 = vsub.s32 7, %v397
  %v399 = vrot.slane %v242, %v398
  %v400 = vlaneseq
  %v401 = vshrl.u32 %v400, 7
  %v402 = vsub.s32 0, %v401
  %v403 = vrot.slane %v243, %v402
  %v404 = vlaneseq
  %v405 = vshrl.u32 %v404, 7
  %v406 = vsub.s32 1, %v405
  %v407 = vrot.slane %v243, %v406
  %v408 = vlaneseq
  %v409 = vshrl.u32 %v408, 7
  %v410 = vsub.s32 2, %v409
  %v411 = vrot.slane %v243, %v410
  %v412 = vlaneseq
  %v413 = vshrl.u32 %v412, 7
  %v414 = vsub.s32 3, %v413
  %v415 = vrot.slane %v243, %v414
  %v416 = vlaneseq
  %v417 = vshrl.u32 %v416, 7
  %v418 = vsub.s32 4, %v417
  %v419 = vrot.slane %v243, %v418
  %v420 = vlaneseq
  %v421 = vshrl.u32 %v420, 7
  %v422 = vsub.s32 5, %v421
  %v423 = vrot.slane %v243, %v422
  %v424 = vlaneseq
  %v425 = vshrl.u32 %v424, 7
  %v426 = vsub.s32 6, %v425
  %v427 = vrot.slane %v243, %v426
  %v428 = vlaneseq
  %v429 = vshrl.u32 %v428, 7
  %v430 = vsub.s32 7, %v429
  %v431 = vrot.slane %v243, %v430
  %v432 = vlaneseq
  %v433 = vshrl.u32 %v432, 7
  %v434 = vsub.s32 0, %v433
  %v435 = vrot.slane %v244, %v434
  %v436 = vlaneseq
  %v437 = vshrl.u32 %v436, 7
  %v438 = vsub.s32 1, %v437
  %v439 = vrot.slane %v244, %v438
  %v440 = vlaneseq
  %v441 = vshrl.u32 %v440, 7
  %v442 = vsub.s32 2, %v441
  %v443 = vrot.slane %v244, %v442
  %v444 = vlaneseq
  %v445 = vshrl.u32 %v444, 7
  %v446 = vsub.s32 3, %v445
  %v447 = vrot.slane %v244, %v446
  %v448 = vlaneseq
  %v449 = vshrl.u32 %v448, 7
  %v450 = vsub.s32 4, %v449
  %v451 = vrot.slane %v244, %v450
  %v452 = vlaneseq
  %v453 = vshrl.u32 %v452, 7
  %v454 = vsub.s32 5, %v453
  %v455 = vrot.slane %v244, %v454
  %v456 = vlaneseq
  %v457 = vshrl.u32 %v456, 7
  %v458 = vsub.s32 6, %v457
  %v459 = vrot.slane %v244, %v458
  %v460 = vlaneseq
  %v461 = vshrl.u32 %v460, 7
  %v462 = vsub.s32 7, %v461
  %v463 = vrot.slane %v244, %v462
  %v464 = vlaneseq
  %v465 = vshrl.u32 %v464, 7
  %v466 = vsub.s32 0, %v465
  %v467 = vrot.slane %v245, %v466
  %v468 = vlaneseq
  %v469 = vshrl.u32 %v468, 7
  %v470 = vsub.s32 1, %v469
  %v471 = vrot.slane %v245, %v470
  %v472 = vlaneseq
  %v473 = vshrl.u32 %v472, 7
  %v474 = vsub.s32 2, %v473
  %v475 = vrot.slane %v245, %v474
  %v476 = vlaneseq
  %v477 = vshrl.u32 %v476, 7
  %v478 = vsub.s32 3, %v477
  %v479 = vrot.slane %v245, %v478
  %v480 = vlaneseq
  %v481 = vshrl.u32 %v480, 7
  %v482 = vsub.s32 4, %v481
  %v483 = vrot.slane %v245, %v482
  %v484 = vlaneseq
  %v485 = vshrl.u32 %v484, 7
  %v486 = vsub.s32 5, %v485
  %v487 = vrot.slane %v245, %v486
  %v488 = vlaneseq
  %v489 = vshrl.u32 %v488, 7
  %v490 = vsub.s32 6, %v489
  %v491 = vrot.slane %v245, %v490
  %v492 = vlaneseq
  %v493 = vshrl.u32 %v492, 7
  %v494 = vsub.s32 7, %v493
  %v495 = vrot.slane %v245, %v494
  %v496 = vlaneseq
  %v497 = vshrl.u32 %v496, 7
  %v498 = vsub.s32 0, %v497
  %v499 = vrot.slane %v246, %v498
  %v500 = vlaneseq
  %v501 = vshrl.u32 %v500, 7
  %v502 = vsub.s32 1, %v501
  %v503 = vrot.slane %v246, %v502
  %v504 = vlaneseq
  %v505 = vshrl.u32 %v504, 7
  %v506 = vsub.s32 2, %v505
  %v507 = vrot.slane %v246, %v506
  %v508 = vlaneseq
  %v509 = vshrl.u32 %v508, 7
  %v510 = vsub.s32 3, %v509
  %v511 = vrot.slane %v246, %v510
  %v512 = vlaneseq
  %v513 = vshrl.u32 %v512, 7
  %v514 = vsub.s32 4, %v513
  %v515 = vrot.slane %v246, %v514
  %v516 = vlaneseq
  %v517 = vshrl.u32 %v516, 7
  %v518 = vsub.s32 5, %v517
  %v519 = vrot.slane %v246, %v518
  %v520 = vlaneseq
  %v521 = vshrl.u32 %v520, 7
  %v522 = vsub.s32 6, %v521
  %v523 = vrot.slane %v246, %v522
  %v524 = vlaneseq
  %v525 = vshrl.u32 %v524, 7
  %v526 = vsub.s32 7, %v525
  %v527 = vrot.slane %v246, %v526
  %v528 = vlaneseq
  %v529 = vshrl.u32 %v528, 7
  %v530 = vsub.s32 0, %v529
  %v531 = vrot.slane %v247, %v530
  %v532 = vlaneseq
  %v533 = vshrl.u32 %v532, 7
  %v534 = vsub.s32 1, %v533
  %v535 = vrot.slane %v247, %v534
  %v536 = vlaneseq
  %v537 = vshrl.u32 %v536, 7
  %v538 = vsub.s32 2, %v537
  %v539 = vrot.slane %v247, %v538
  %v540 = vlaneseq
  %v541 = vshrl.u32 %v540, 7
  %v542 = vsub.s32 3, %v541
  %v543 = vrot.slane %v247, %v542
  %v544 = vlaneseq
  %v545 = vshrl.u32 %v544, 7
  %v546 = vsub.s32 4, %v545
  %v547 = vrot.slane %v247, %v546
  %v548 = vlaneseq
  %v549 = vshrl.u32 %v548, 7
  %v550 = vsub.s32 5, %v549
  %v551 = vrot.slane %v247, %v550
  %v552 = vlaneseq
  %v553 = vshrl.u32 %v552, 7
  %v554 = vsub.s32 6, %v553
  %v555 = vrot.slane %v247, %v554
  %v556 = vlaneseq
  %v557 = vshrl.u32 %v556, 7
  %v558 = vsub.s32 7, %v557
  %v559 = vrot.slane %v247, %v558
  %v560 = vlaneseq
  %v561 = vshrl.u32 %v560, 7
  %v562 = vsub.s32 0, %v561
  %v563 = vrot.slane %v248, %v562
  %v564 = vlaneseq
  %v565 = vshrl.u32 %v564, 7
  %v566 = vsub.s32 1, %v565
  %v567 = vrot.slane %v248, %v566
  %v568 = vlaneseq
  %v569 = vshrl.u32 %v568, 7
  %v570 = vsub.s32 2, %v569
  %v571 = vrot.slane %v248, %v570
  %v572 = vlaneseq
  %v573 = vshrl.u32 %v572, 7
  %v574 = vsub.s32 3, %v573
  %v575 = vrot.slane %v248, %v574
  %v576 = vlaneseq
  %v577 = vshrl.u32 %v576, 7
  %v578 = vsub.s32 4, %v577
  %v579 = vrot.slane %v248, %v578
  %v580 = vlaneseq
  %v581 = vshrl.u32 %v580, 7
  %v582 = vsub.s32 5, %v581
  %v583 = vrot.slane %v248, %v582
  %v584 = vlaneseq
  %v585 = vshrl.u32 %v584, 7
  %v586 = vsub.s32 6, %v585
  %v587 = vrot.slane %v248, %v586
  %v588 = vlaneseq
  %v589 = vshrl.u32 %v588, 7
  %v590 = vsub.s32 7, %v589
  %v591 = vrot.slane %v248, %v590
  %v592 = vlaneseq
  %v593 = vshrl.u32 %v592, 7
  %v594 = vsub.s32 0, %v593
  %v595 = vrot.slane %v249, %v594
  %v596 = vlaneseq
  %v597 = vshrl.u32 %v596, 7
  %v598 = vsub.s32 1, %v597
  %v599 = vrot.slane %v249, %v598
  %v600 = vlaneseq
  %v601 = vshrl.u32 %v600, 7
  %v602 = vsub.s32 2, %v601
  %v603 = vrot.slane %v249, %v602
  %v604 = vlaneseq
  %v605 = vshrl.u32 %v604, 7
  %v606 = vsub.s32 3, %v605
  %v607 = vrot.slane %v249, %v606
  %v608 = vlaneseq
  %v609 = vshrl.u32 %v608, 7
  %v610 = vsub.s32 4, %v609
  %v611 = vrot.slane %v249, %v610
  %v612 = vlaneseq
  %v613 = vshrl.u32 %v612, 7
  %v614 = vsub.s32 5, %v613
  %v615 = vrot.slane %v249, %v614
  %v616 = vlaneseq
  %v617 = vshrl.u32 %v616, 7
  %v618 = vsub.s32 6, %v617
  %v619 = vrot.slane %v249, %v618
  %v620 = vlaneseq
  %v621 = vshrl.u32 %v620, 7
  %v622 = vsub.s32 7, %v621
  %v623 = vrot.slane %v249, %v622
  %v624 = vlaneseq
  %v625 = vshrl.u32 %v624, 7
  %v626 = vsub.s32 0, %v625
  %v627 = vrot.slane %v250, %v626
  %v628 = vlaneseq
  %v629 = vshrl.u32 %v628, 7
  %v630 = vsub.s32 1, %v629
  %v631 = vrot.slane %v250, %v630
  %v632 = vlaneseq
  %v633 = vshrl.u32 %v632, 7
  %v634 = vsub.s32 2, %v633
  %v635 = vrot.slane %v250, %v634
  %v636 = vlaneseq
  %v637 = vshrl.u32 %v636, 7
  %v638 = vsub.s32 3, %v637
  %v639 = vrot.slane %v250, %v638
  %v640 = vlaneseq
  %v641 = vshrl.u32 %v640, 7
  %v642 = vsub.s32 4, %v641
  %v643 = vrot.slane %v250, %v642
  %v644 = vlaneseq
  %v645 = vshrl.u32 %v644, 7
  %v646 = vsub.s32 5, %v645
  %v647 = vrot.slane %v250, %v646
  %v648 = vlaneseq
  %v649 = vshrl.u32 %v648, 7
  %v650 = vsub.s32 6, %v649
  %v651 = vrot.slane %v250, %v650
  %v652 = vlaneseq
  %v653 = vshrl.u32 %v652, 7
  %v654 = vsub.s32 7, %v653
  %v655 = vrot.slane %v250, %v654
  %v656 = vlaneseq
  %v657 = vshrl.u32 %v656, 7
  %v658 = vsub.s32 0, %v657
  %v659 = vrot.slane %v251, %v658
  %v660 = vlaneseq
  %v661 = vshrl.u32 %v660, 7
  %v662 = vsub.s32 1, %v661
  %v663 = vrot.slane %v251, %v662
  %v664 = vlaneseq
  %v665 = vshrl.u32 %v664, 7
  %v666 = vsub.s32 2, %v665
  %v667 = vrot.slane %v251, %v666
  %v668 = vlaneseq
  %v669 = vshrl.u32 %v668, 7
  %v670 = vsub.s32 3, %v669
  %v671 = vrot.slane %v251, %v670
  %v672 = vlaneseq
  %v673 = vshrl.u32 %v672, 7
  %v674 = vsub.s32 4, %v673
  %v675 = vrot.slane %v251, %v674
  %v676 = vlaneseq
  %v677 = vshrl.u32 %v676, 7
  %v678 = vsub.s32 5, %v677
  %v679 = vrot.slane %v251, %v678
  %v680 = vlaneseq
  %v681 = vshrl.u32 %v680, 7
  %v682 = vsub.s32 6, %v681
  %v683 = vrot.slane %v251, %v682
  %v684 = vlaneseq
  %v685 = vshrl.u32 %v684, 7
  %v686 = vsub.s32 7, %v685
  %v687 = vrot.slane %v251, %v686
  %v688 = vlaneseq
  %v689 = vshrl.u32 %v688, 7
  %v690 = vsub.s32 0, %v689
  %v691 = vrot.slane %v252, %v690
  %v692 = vlaneseq
  %v693 = vshrl.u32 %v692, 7
  %v694 = vsub.s32 1, %v693
  %v695 = vrot.slane %v252, %v694
  %v696 = vlaneseq
  %v697 = vshrl.u32 %v696, 7
  %v698 = vsub.s32 2, %v697
  %v699 = vrot.slane %v252, %v698
  %v700 = vlaneseq
  %v701 = vshrl.u32 %v700, 7
  %v702 = vsub.s32 3, %v701
  %v703 = vrot.slane %v252, %v702
  %v704 = vlaneseq
  %v705 = vshrl.u32 %v704, 7
  %v706 = vsub.s32 4, %v705
  %v707 = vrot.slane %v252, %v706
  %v708 = vlaneseq
  %v709 = vshrl.u32 %v708, 7
  %v710 = vsub.s32 5, %v709
  %v711 = vrot.slane %v252, %v710
  %v712 = vlaneseq
  %v713 = vshrl.u32 %v712, 7
  %v714 = vsub.s32 6, %v713
  %v715 = vrot.slane %v252, %v714
  %v716 = vlaneseq
  %v717 = vshrl.u32 %v716, 7
  %v718 = vsub.s32 7, %v717
  %v719 = vrot.slane %v252, %v718
  %v720 = vlaneseq
  %v721 = vshrl.u32 %v720, 7
  %v722 = vsub.s32 0, %v721
  %v723 = vrot.slane %v253, %v722
  %v724 = vlaneseq
  %v725 = vshrl.u32 %v724, 7
  %v726 = vsub.s32 1, %v725
  %v727 = vrot.slane %v253, %v726
  %v728 = vlaneseq
  %v729 = vshrl.u32 %v728, 7
  %v730 = vsub.s32 2, %v729
  %v731 = vrot.slane %v253, %v730
  %v732 = vlaneseq
  %v733 = vshrl.u32 %v732, 7
  %v734 = vsub.s32 3, %v733
  %v735 = vrot.slane %v253, %v734
  %v736 = vlaneseq
  %v737 = vshrl.u32 %v736, 7
  %v738 = vsub.s32 4, %v737
  %v739 = vrot.slane %v253, %v738
  %v740 = vlaneseq
  %v741 = vshrl.u32 %v740, 7
  %v742 = vsub.s32 5, %v741
  %v743 = vrot.slane %v253, %v742
  %v744 = vlaneseq
  %v745 = vshrl.u32 %v744, 7
  %v746 = vsub.s32 6, %v745
  %v747 = vrot.slane %v253, %v746
  %v748 = vlaneseq
  %v749 = vshrl.u32 %v748, 7
  %v750 = vsub.s32 7, %v749
  %v751 = vrot.slane %v253, %v750
  %v752 = vlaneseq
  %v753 = vshrl.u32 %v752, 7
  %v754 = vsub.s32 0, %v753
  %v755 = vrot.slane %v254, %v754
  %v756 = vlaneseq
  %v757 = vshrl.u32 %v756, 7
  %v758 = vsub.s32 1, %v757
  %v759 = vrot.slane %v254, %v758
  %v760 = vlaneseq
  %v761 = vshrl.u32 %v760, 7
  %v762 = vsub.s32 2, %v761
  %v763 = vrot.slane %v254, %v762
  %v764 = vlaneseq
  %v765 = vshrl.u32 %v764, 7
  %v766 = vsub.s32 3, %v765
  %v767 = vrot.slane %v254, %v766
  %v768 = vlaneseq
  %v769 = vshrl.u32 %v768, 7
  %v770 = vsub.s32 4, %v769
  %v771 = vrot.slane %v254, %v770
  %v772 = vlaneseq
  %v773 = vshrl.u32 %v772, 7
  %v774 = vsub.s32 5, %v773
  %v775 = vrot.slane %v254, %v774
  %v776 = vlaneseq
  %v777 = vshrl.u32 %v776, 7
  %v778 = vsub.s32 6, %v777
  %v779 = vrot.slane %v254, %v778
  %v780 = vlaneseq
  %v781 = vshrl.u32 %v780, 7
  %v782 = vsub.s32 7, %v781
  %v783 = vrot.slane %v254, %v782
  %v784 = vcombine.low %v275, %v279
  %v785 = vcombine.low %v283, %v287
  %v786 = vcombine.low %v291, %v295
  %v787 = vcombine.low %v299, %v303
  %v789 = vunpack.c.l.s4 1966171168
  %v790 = vunpack.c.0.s8 %v789
  %v791 = vlaneseq
  %v792 = vshrl.u32 %v791, 7
  %v793 = vsub.s32 %v790, %v792
  %v794 = vrot.slane %v784, %v793
  %v796 = vunpack.c.l.s4 1966171168
  %v797 = vunpack.c.0.s8 %v796
  %v798 = vlaneseq
  %v799 = vshrl.u32 %v798, 7
  %v800 = vsub.s32 %v797, %v799
  %v801 = vrot.slane %v785, %v800
  %v803 = vunpack.c.l.s4 1966171168
  %v804 = vunpack.c.0.s8 %v803
  %v805 = vlaneseq
  %v806 = vshrl.u32 %v805, 7
  %v807 = vsub.s32 %v804, %v806
  %v808 = vrot.slane %v786, %v807
  %v810 = vunpack.c.l.s4 1966171168
  %v811 = vunpack.c.0.s8 %v810
  %v812 = vlaneseq
  %v813 = vshrl.u32 %v812, 7
  %v814 = vsub.s32 %v811, %v813
  %v815 = vrot.slane %v787, %v814
  %v816 = vcombine.low %v794, %v801
  %v817 = vcombine.low %v808, %v815
  %v819 = vunpack.c.l.s4 1966171168
  %v820 = vunpack.c.0.s8 %v819
  %v821 = vlaneseq
  %v822 = vshrl.u32 %v821, 7
  %v823 = vsub.s32 %v820, %v822
  %v824 = vrot.slane %v816, %v823
  %v826 = vunpack.c.l.s4 1966171168
  %v827 = vunpack.c.0.s8 %v826
  %v828 = vlaneseq
  %v829 = vshrl.u32 %v828, 7
  %v830 = vsub.s32 %v827, %v829
  %v831 = vrot.slane %v817, %v830
  %v832 = vcombine.low %v824, %v831
  %v833 = vcombine.low %v307, %v311
  %v834 = vcombine.low %v315, %v319
  %v835 = vcombine.low %v323, %v327
  %v836 = vcombine.low %v331, %v335
  %v838 = vunpack.c.l.s4 1966171168
  %v839 = vunpack.c.0.s8 %v838
  %v840 = vlaneseq
  %v841 = vshrl.u32 %v840, 7
  %v842 = vsub.s32 %v839, %v841
  %v843 = vrot.slane %v833, %v842
  %v845 = vunpack.c.l.s4 1966171168
  %v846 = vunpack.c.0.s8 %v845
  %v847 = vlaneseq
  %v848 = vshrl.u32 %v847, 7
  %v849 = vsub.s32 %v846, %v848
  %v850 = vrot.slane %v834, %v849
  %v852 = vunpack.c.l.s4 1966171168
  %v853 = vunpack.c.0.s8 %v852
  %v854 = vlaneseq
  %v855 = vshrl.u32 %v854, 7
  %v856 = vsub.s32 %v853, %v855
  %v857 = vrot.slane %v835, %v856
  %v859 = vunpack.c.l.s4 1966171168
  %v860 = vunpack.c.0.s8 %v859
  %v861 = vlaneseq
  %v862 = vshrl.u32 %v861, 7
  %v863 = vsub.s32 %v860, %v862
  %v864 = vrot.slane %v836, %v863
  %v865 = vcombine.low %v843, %v850
  %v866 = vcombine.low %v857, %v864
  %v868 = vunpack.c.l.s4 1966171168
  %v869 = vunpack.c.0.s8 %v868
  %v870 = vlaneseq
  %v871 = vshrl.u32 %v870, 7
  %v872 = vsub.s32 %v869, %v871
  %v873 = vrot.slane %v865, %v872
  %v875 = vunpack.c.l.s4 1966171168
  %v876 = vunpack.c.0.s8 %v875
  %v877 = vlaneseq
  %v878 = vshrl.u32 %v877, 7
  %v879 = vsub.s32 %v876, %v878
  %v880 = vrot.slane %v866, %v879
  %v881 = vcombine.low %v873, %v880
  %v882 = vcombine.low %v339, %v343
  %v883 = vcombine.low %v347, %v351
  %v884 = vcombine.low %v355, %v359
  %v885 = vcombine.low %v363, %v367
  %v887 = vunpack.c.l.s4 1966171168
  %v888 = vunpack.c.0.s8 %v887
  %v889 = vlaneseq
  %v890 = vshrl.u32 %v889, 7
  %v891 = vsub.s32 %v888, %v890
  %v892 = vrot.slane %v882, %v891
  %v894 = vunpack.c.l.s4 1966171168
  %v895 = vunpack.c.0.s8 %v894
  %v896 = vlaneseq
  %v897 = vshrl.u32 %v896, 7
  %v898 = vsub.s32 %v895, %v897
  %v899 = vrot.slane %v883, %v898
  %v901 = vunpack.c.l.s4 1966171168
  %v902 = vunpack.c.0.s8 %v901
  %v903 = vlaneseq
  %v904 = vshrl.u32 %v903, 7
  %v905 = vsub.s32 %v902, %v904
  %v906 = vrot.slane %v884, %v905
  %v908 = vunpack.c.l.s4 1966171168
  %v909 = vunpack.c.0.s8 %v908
  %v910 = vlaneseq
  %v911 = vshrl.u32 %v910, 7
  %v912 = vsub.s32 %v909, %v911
  %v913 = vrot.slane %v885, %v912
  %v914 = vcombine.low %v892, %v899
  %v915 = vcombine.low %v906, %v913
  %v917 = vunpack.c.l.s4 1966171168
  %v918 = vunpack.c.0.s8 %v917
  %v919 = vlaneseq
  %v920 = vshrl.u32 %v919, 7
  %v921 = vsub.s32 %v918, %v920
  %v922 = vrot.slane %v914, %v921
  %v924 = vunpack.c.l.s4 1966171168
  %v925 = vunpack.c.0.s8 %v924
  %v926 = vlaneseq
  %v927 = vshrl.u32 %v926, 7
  %v928 = vsub.s32 %v925, %v927
  %v929 = vrot.slane %v915, %v928
  %v930 = vcombine.low %v922, %v929
  %v931 = vcombine.low %v371, %v375
  %v932 = vcombine.low %v379, %v383
  %v933 = vcombine.low %v387, %v391
  %v934 = vcombine.low %v395, %v399
  %v936 = vunpack.c.l.s4 1966171168
  %v937 = vunpack.c.0.s8 %v936
  %v938 = vlaneseq
  %v939 = vshrl.u32 %v938, 7
  %v940 = vsub.s32 %v937, %v939
  %v941 = vrot.slane %v931, %v940
  %v943 = vunpack.c.l.s4 1966171168
  %v944 = vunpack.c.0.s8 %v943
  %v945 = vlaneseq
  %v946 = vshrl.u32 %v945, 7
  %v947 = vsub.s32 %v944, %v946
  %v948 = vrot.slane %v932, %v947
  %v950 = vunpack.c.l.s4 1966171168
  %v951 = vunpack.c.0.s8 %v950
  %v952 = vlaneseq
  %v953 = vshrl.u32 %v952, 7
  %v954 = vsub.s32 %v951, %v953
  %v955 = vrot.slane %v933, %v954
  %v957 = vunpack.c.l.s4 1966171168
  %v958 = vunpack.c.0.s8 %v957
  %v959 = vlaneseq
  %v960 = vshrl.u32 %v959, 7
  %v961 = vsub.s32 %v958, %v960
  %v962 = vrot.slane %v934, %v961
  %v963 = vcombine.low %v941, %v948
  %v964 = vcombine.low %v955, %v962
  %v966 = vunpack.c.l.s4 1966171168
  %v967 = vunpack.c.0.s8 %v966
  %v968 = vlaneseq
  %v969 = vshrl.u32 %v968, 7
  %v970 = vsub.s32 %v967, %v969
  %v971 = vrot.slane %v963, %v970
  %v973 = vunpack.c.l.s4 1966171168
  %v974 = vunpack.c.0.s8 %v973
  %v975 = vlaneseq
  %v976 = vshrl.u32 %v975, 7
  %v977 = vsub.s32 %v974, %v976
  %v978 = vrot.slane %v964, %v977
  %v979 = vcombine.low %v971, %v978
  %v980 = vcombine.low %v403, %v407
  %v981 = vcombine.low %v411, %v415
  %v982 = vcombine.low %v419, %v423
  %v983 = vcombine.low %v427, %v431
  %v985 = vunpack.c.l.s4 1966171168
  %v986 = vunpack.c.0.s8 %v985
  %v987 = vlaneseq
  %v988 = vshrl.u32 %v987, 7
  %v989 = vsub.s32 %v986, %v988
  %v990 = vrot.slane %v980, %v989
  %v992 = vunpack.c.l.s4 1966171168
  %v993 = vunpack.c.0.s8 %v992
  %v994 = vlaneseq
  %v995 = vshrl.u32 %v994, 7
  %v996 = vsub.s32 %v993, %v995
  %v997 = vrot.slane %v981, %v996
  %v999 = vunpack.c.l.s4 1966171168
  %v1000 = vunpack.c.0.s8 %v999
  %v1001 = vlaneseq
  %v1002 = vshrl.u32 %v1001, 7
  %v1003 = vsub.s32 %v1000, %v1002
  %v1004 = vrot.slane %v982, %v1003
  %v1006 = vunpack.c.l.s4 1966171168
  %v1007 = vunpack.c.0.s8 %v1006
  %v1008 = vlaneseq
  %v1009 = vshrl.u32 %v1008, 7
  %v1010 = vsub.s32 %v1007, %v1009
  %v1011 = vrot.slane %v983, %v1010
  %v1012 = vcombine.low %v990, %v997
  %v1013 = vcombine.low %v1004, %v1011
  %v1015 = vunpack.c.l.s4 1966171168
  %v1016 = vunpack.c.0.s8 %v1015
  %v1017 = vlaneseq
  %v1018 = vshrl.u32 %v1017, 7
  %v1019 = vsub.s32 %v1016, %v1018
  %v1020 = vrot.slane %v1012, %v1019
  %v1022 = vunpack.c.l.s4 1966171168
  %v1023 = vunpack.c.0.s8 %v1022
  %v1024 = vlaneseq
  %v1025 = vshrl.u32 %v1024, 7
  %v1026 = vsub.s32 %v1023, %v1025
  %v1027 = vrot.slane %v1013, %v1026
  %v1028 = vcombine.low %v1020, %v1027
  %v1029 = vcombine.low %v435, %v439
  %v1030 = vcombine.low %v443, %v447
  %v1031 = vcombine.low %v451, %v455
  %v1032 = vcombine.low %v459, %v463
  %v1034 = vunpack.c.l.s4 1966171168
  %v1035 = vunpack.c.0.s8 %v1034
  %v1036 = vlaneseq
  %v1037 = vshrl.u32 %v1036, 7
  %v1038 = vsub.s32 %v1035, %v1037
  %v1039 = vrot.slane %v1029, %v1038
  %v1041 = vunpack.c.l.s4 1966171168
  %v1042 = vunpack.c.0.s8 %v1041
  %v1043 = vlaneseq
  %v1044 = vshrl.u32 %v1043, 7
  %v1045 = vsub.s32 %v1042, %v1044
  %v1046 = vrot.slane %v1030, %v1045
  %v1048 = vunpack.c.l.s4 1966171168
  %v1049 = vunpack.c.0.s8 %v1048
  %v1050 = vlaneseq
  %v1051 = vshrl.u32 %v1050, 7
  %v1052 = vsub.s32 %v1049, %v1051
  %v1053 = vrot.slane %v1031, %v1052
  %v1055 = vunpack.c.l.s4 1966171168
  %v1056 = vunpack.c.0.s8 %v1055
  %v1057 = vlaneseq
  %v1058 = vshrl.u32 %v1057, 7
  %v1059 = vsub.s32 %v1056, %v1058
  %v1060 = vrot.slane %v1032, %v1059
  %v1061 = vcombine.low %v1039, %v1046
  %v1062 = vcombine.low %v1053, %v1060
  %v1064 = vunpack.c.l.s4 1966171168
  %v1065 = vunpack.c.0.s8 %v1064
  %v1066 = vlaneseq
  %v1067 = vshrl.u32 %v1066, 7
  %v1068 = vsub.s32 %v1065, %v1067
  %v1069 = vrot.slane %v1061, %v1068
  %v1071 = vunpack.c.l.s4 1966171168
  %v1072 = vunpack.c.0.s8 %v1071
  %v1073 = vlaneseq
  %v1074 = vshrl.u32 %v1073, 7
  %v1075 = vsub.s32 %v1072, %v1074
  %v1076 = vrot.slane %v1062, %v1075
  %v1077 = vcombine.low %v1069, %v1076
  %v1078 = vcombine.low %v467, %v471
  %v1079 = vcombine.low %v475, %v479
  %v1080 = vcombine.low %v483, %v487
  %v1081 = vcombine.low %v491, %v495
  %v1083 = vunpack.c.l.s4 1966171168
  %v1084 = vunpack.c.0.s8 %v1083
  %v1085 = vlaneseq
  %v1086 = vshrl.u32 %v1085, 7
  %v1087 = vsub.s32 %v1084, %v1086
  %v1088 = vrot.slane %v1078, %v1087
  %v1090 = vunpack.c.l.s4 1966171168
  %v1091 = vunpack.c.0.s8 %v1090
  %v1092 = vlaneseq
  %v1093 = vshrl.u32 %v1092, 7
  %v1094 = vsub.s32 %v1091, %v1093
  %v1095 = vrot.slane %v1079, %v1094
  %v1097 = vunpack.c.l.s4 1966171168
  %v1098 = vunpack.c.0.s8 %v1097
  %v1099 = vlaneseq
  %v1100 = vshrl.u32 %v1099, 7
  %v1101 = vsub.s32 %v1098, %v1100
  %v1102 = vrot.slane %v1080, %v1101
  %v1104 = vunpack.c.l.s4 1966171168
  %v1105 = vunpack.c.0.s8 %v1104
  %v1106 = vlaneseq
  %v1107 = vshrl.u32 %v1106, 7
  %v1108 = vsub.s32 %v1105, %v1107
  %v1109 = vrot.slane %v1081, %v1108
  %v1110 = vcombine.low %v1088, %v1095
  %v1111 = vcombine.low %v1102, %v1109
  %v1113 = vunpack.c.l.s4 1966171168
  %v1114 = vunpack.c.0.s8 %v1113
  %v1115 = vlaneseq
  %v1116 = vshrl.u32 %v1115, 7
  %v1117 = vsub.s32 %v1114, %v1116
  %v1118 = vrot.slane %v1110, %v1117
  %v1120 = vunpack.c.l.s4 1966171168
  %v1121 = vunpack.c.0.s8 %v1120
  %v1122 = vlaneseq
  %v1123 = vshrl.u32 %v1122, 7
  %v1124 = vsub.s32 %v1121, %v1123
  %v1125 = vrot.slane %v1111, %v1124
  %v1126 = vcombine.low %v1118, %v1125
  %v1127 = vcombine.low %v499, %v503
  %v1128 = vcombine.low %v507, %v511
  %v1129 = vcombine.low %v515, %v519
  %v1130 = vcombine.low %v523, %v527
  %v1132 = vunpack.c.l.s4 1966171168
  %v1133 = vunpack.c.0.s8 %v1132
  %v1134 = vlaneseq
  %v1135 = vshrl.u32 %v1134, 7
  %v1136 = vsub.s32 %v1133, %v1135
  %v1137 = vrot.slane %v1127, %v1136
  %v1139 = vunpack.c.l.s4 1966171168
  %v1140 = vunpack.c.0.s8 %v1139
  %v1141 = vlaneseq
  %v1142 = vshrl.u32 %v1141, 7
  %v1143 = vsub.s32 %v1140, %v1142
  %v1144 = vrot.slane %v1128, %v1143
  %v1146 = vunpack.c.l.s4 1966171168
  %v1147 = vunpack.c.0.s8 %v1146
  %v1148 = vlaneseq
  %v1149 = vshrl.u32 %v1148, 7
  %v1150 = vsub.s32 %v1147, %v1149
  %v1151 = vrot.slane %v1129, %v1150
  %v1153 = vunpack.c.l.s4 1966171168
  %v1154 = vunpack.c.0.s8 %v1153
  %v1155 = vlaneseq
  %v1156 = vshrl.u32 %v1155, 7
  %v1157 = vsub.s32 %v1154, %v1156
  %v1158 = vrot.slane %v1130, %v1157
  %v1159 = vcombine.low %v1137, %v1144
  %v1160 = vcombine.low %v1151, %v1158
  %v1162 = vunpack.c.l.s4 1966171168
  %v1163 = vunpack.c.0.s8 %v1162
  %v1164 = vlaneseq
  %v1165 = vshrl.u32 %v1164, 7
  %v1166 = vsub.s32 %v1163, %v1165
  %v1167 = vrot.slane %v1159, %v1166
  %v1169 = vunpack.c.l.s4 1966171168
  %v1170 = vunpack.c.0.s8 %v1169
  %v1171 = vlaneseq
  %v1172 = vshrl.u32 %v1171, 7
  %v1173 = vsub.s32 %v1170, %v1172
  %v1174 = vrot.slane %v1160, %v1173
  %v1175 = vcombine.low %v1167, %v1174
  %v1176 = vcombine.low %v531, %v535
  %v1177 = vcombine.low %v539, %v543
  %v1178 = vcombine.low %v547, %v551
  %v1179 = vcombine.low %v555, %v559
  %v1181 = vunpack.c.l.s4 1966171168
  %v1182 = vunpack.c.0.s8 %v1181
  %v1183 = vlaneseq
  %v1184 = vshrl.u32 %v1183, 7
  %v1185 = vsub.s32 %v1182, %v1184
  %v1186 = vrot.slane %v1176, %v1185
  %v1188 = vunpack.c.l.s4 1966171168
  %v1189 = vunpack.c.0.s8 %v1188
  %v1190 = vlaneseq
  %v1191 = vshrl.u32 %v1190, 7
  %v1192 = vsub.s32 %v1189, %v1191
  %v1193 = vrot.slane %v1177, %v1192
  %v1195 = vunpack.c.l.s4 1966171168
  %v1196 = vunpack.c.0.s8 %v1195
  %v1197 = vlaneseq
  %v1198 = vshrl.u32 %v1197, 7
  %v1199 = vsub.s32 %v1196, %v1198
  %v1200 = vrot.slane %v1178, %v1199
  %v1202 = vunpack.c.l.s4 1966171168
  %v1203 = vunpack.c.0.s8 %v1202
  %v1204 = vlaneseq
  %v1205 = vshrl.u32 %v1204, 7
  %v1206 = vsub.s32 %v1203, %v1205
  %v1207 = vrot.slane %v1179, %v1206
  %v1208 = vcombine.low %v1186, %v1193
  %v1209 = vcombine.low %v1200, %v1207
  %v1211 = vunpack.c.l.s4 1966171168
  %v1212 = vunpack.c.0.s8 %v1211
  %v1213 = vlaneseq
  %v1214 = vshrl.u32 %v1213, 7
  %v1215 = vsub.s32 %v1212, %v1214
  %v1216 = vrot.slane %v1208, %v1215
  %v1218 = vunpack.c.l.s4 1966171168
  %v1219 = vunpack.c.0.s8 %v1218
  %v1220 = vlaneseq
  %v1221 = vshrl.u32 %v1220, 7
  %v1222 = vsub.s32 %v1219, %v1221
  %v1223 = vrot.slane %v1209, %v1222
  %v1224 = vcombine.low %v1216, %v1223
  %v1225 = vcombine.low %v563, %v567
  %v1226 = vcombine.low %v571, %v575
  %v1227 = vcombine.low %v579, %v583
  %v1228 = vcombine.low %v587, %v591
  %v1230 = vunpack.c.l.s4 1966171168
  %v1231 = vunpack.c.0.s8 %v1230
  %v1232 = vlaneseq
  %v1233 = vshrl.u32 %v1232, 7
  %v1234 = vsub.s32 %v1231, %v1233
  %v1235 = vrot.slane %v1225, %v1234
  %v1237 = vunpack.c.l.s4 1966171168
  %v1238 = vunpack.c.0.s8 %v1237
  %v1239 = vlaneseq
  %v1240 = vshrl.u32 %v1239, 7
  %v1241 = vsub.s32 %v1238, %v1240
  %v1242 = vrot.slane %v1226, %v1241
  %v1244 = vunpack.c.l.s4 1966171168
  %v1245 = vunpack.c.0.s8 %v1244
  %v1246 = vlaneseq
  %v1247 = vshrl.u32 %v1246, 7
  %v1248 = vsub.s32 %v1245, %v1247
  %v1249 = vrot.slane %v1227, %v1248
  %v1251 = vunpack.c.l.s4 1966171168
  %v1252 = vunpack.c.0.s8 %v1251
  %v1253 = vlaneseq
  %v1254 = vshrl.u32 %v1253, 7
  %v1255 = vsub.s32 %v1252, %v1254
  %v1256 = vrot.slane %v1228, %v1255
  %v1257 = vcombine.low %v1235, %v1242
  %v1258 = vcombine.low %v1249, %v1256
  %v1260 = vunpack.c.l.s4 1966171168
  %v1261 = vunpack.c.0.s8 %v1260
  %v1262 = vlaneseq
  %v1263 = vshrl.u32 %v1262, 7
  %v1264 = vsub.s32 %v1261, %v1263
  %v1265 = vrot.slane %v1257, %v1264
  %v1267 = vunpack.c.l.s4 1966171168
  %v1268 = vunpack.c.0.s8 %v1267
  %v1269 = vlaneseq
  %v1270 = vshrl.u32 %v1269, 7
  %v1271 = vsub.s32 %v1268, %v1270
  %v1272 = vrot.slane %v1258, %v1271
  %v1273 = vcombine.low %v1265, %v1272
  %v1274 = vcombine.low %v595, %v599
  %v1275 = vcombine.low %v603, %v607
  %v1276 = vcombine.low %v611, %v615
  %v1277 = vcombine.low %v619, %v623
  %v1279 = vunpack.c.l.s4 1966171168
  %v1280 = vunpack.c.0.s8 %v1279
  %v1281 = vlaneseq
  %v1282 = vshrl.u32 %v1281, 7
  %v1283 = vsub.s32 %v1280, %v1282
  %v1284 = vrot.slane %v1274, %v1283
  %v1286 = vunpack.c.l.s4 1966171168
  %v1287 = vunpack.c.0.s8 %v1286
  %v1288 = vlaneseq
  %v1289 = vshrl.u32 %v1288, 7
  %v1290 = vsub.s32 %v1287, %v1289
  %v1291 = vrot.slane %v1275, %v1290
  %v1293 = vunpack.c.l.s4 1966171168
  %v1294 = vunpack.c.0.s8 %v1293
  %v1295 = vlaneseq
  %v1296 = vshrl.u32 %v1295, 7
  %v1297 = vsub.s32 %v1294, %v1296
  %v1298 = vrot.slane %v1276, %v1297
  %v1300 = vunpack.c.l.s4 1966171168
  %v1301 = vunpack.c.0.s8 %v1300
  %v1302 = vlaneseq
  %v1303 = vshrl.u32 %v1302, 7
  %v1304 = vsub.s32 %v1301, %v1303
  %v1305 = vrot.slane %v1277, %v1304
  %v1306 = vcombine.low %v1284, %v1291
  %v1307 = vcombine.low %v1298, %v1305
  %v1309 = vunpack.c.l.s4 1966171168
  %v1310 = vunpack.c.0.s8 %v1309
  %v1311 = vlaneseq
  %v1312 = vshrl.u32 %v1311, 7
  %v1313 = vsub.s32 %v1310, %v1312
  %v1314 = vrot.slane %v1306, %v1313
  %v1316 = vunpack.c.l.s4 1966171168
  %v1317 = vunpack.c.0.s8 %v1316
  %v1318 = vlaneseq
  %v1319 = vshrl.u32 %v1318, 7
  %v1320 = vsub.s32 %v1317, %v1319
  %v1321 = vrot.slane %v1307, %v1320
  %v1322 = vcombine.low %v1314, %v1321
  %v1323 = vcombine.low %v627, %v631
  %v1324 = vcombine.low %v635, %v639
  %v1325 = vcombine.low %v643, %v647
  %v1326 = vcombine.low %v651, %v655
  %v1328 = vunpack.c.l.s4 1966171168
  %v1329 = vunpack.c.0.s8 %v1328
  %v1330 = vlaneseq
  %v1331 = vshrl.u32 %v1330, 7
  %v1332 = vsub.s32 %v1329, %v1331
  %v1333 = vrot.slane %v1323, %v1332
  %v1335 = vunpack.c.l.s4 1966171168
  %v1336 = vunpack.c.0.s8 %v1335
  %v1337 = vlaneseq
  %v1338 = vshrl.u32 %v1337, 7
  %v1339 = vsub.s32 %v1336, %v1338
  %v1340 = vrot.slane %v1324, %v1339
  %v1342 = vunpack.c.l.s4 1966171168
  %v1343 = vunpack.c.0.s8 %v1342
  %v1344 = vlaneseq
  %v1345 = vshrl.u32 %v1344, 7
  %v1346 = vsub.s32 %v1343, %v1345
  %v1347 = vrot.slane %v1325, %v1346
  %v1349 = vunpack.c.l.s4 1966171168
  %v1350 = vunpack.c.0.s8 %v1349
  %v1351 = vlaneseq
  %v1352 = vshrl.u32 %v1351, 7
  %v1353 = vsub.s32 %v1350, %v1352
  %v1354 = vrot.slane %v1326, %v1353
  %v1355 = vcombine.low %v1333, %v1340
  %v1356 = vcombine.low %v1347, %v1354
  %v1358 = vunpack.c.l.s4 1966171168
  %v1359 = vunpack.c.0.s8 %v1358
  %v1360 = vlaneseq
  %v1361 = vshrl.u32 %v1360, 7
  %v1362 = vsub.s32 %v1359, %v1361
  %v1363 = vrot.slane %v1355, %v1362
  %v1365 = vunpack.c.l.s4 1966171168
  %v1366 = vunpack.c.0.s8 %v1365
  %v1367 = vlaneseq
  %v1368 = vshrl.u32 %v1367, 7
  %v1369 = vsub.s32 %v1366, %v1368
  %v1370 = vrot.slane %v1356, %v1369
  %v1371 = vcombine.low %v1363, %v1370
  %v1372 = vcombine.low %v659, %v663
  %v1373 = vcombine.low %v667, %v671
  %v1374 = vcombine.low %v675, %v679
  %v1375 = vcombine.low %v683, %v687
  %v1377 = vunpack.c.l.s4 1966171168
  %v1378 = vunpack.c.0.s8 %v1377
  %v1379 = vlaneseq
  %v1380 = vshrl.u32 %v1379, 7
  %v1381 = vsub.s32 %v1378, %v1380
  %v1382 = vrot.slane %v1372, %v1381
  %v1384 = vunpack.c.l.s4 1966171168
  %v1385 = vunpack.c.0.s8 %v1384
  %v1386 = vlaneseq
  %v1387 = vshrl.u32 %v1386, 7
  %v1388 = vsub.s32 %v1385, %v1387
  %v1389 = vrot.slane %v1373, %v1388
  %v1391 = vunpack.c.l.s4 1966171168
  %v1392 = vunpack.c.0.s8 %v1391
  %v1393 = vlaneseq
  %v1394 = vshrl.u32 %v1393, 7
  %v1395 = vsub.s32 %v1392, %v1394
  %v1396 = vrot.slane %v1374, %v1395
  %v1398 = vunpack.c.l.s4 1966171168
  %v1399 = vunpack.c.0.s8 %v1398
  %v1400 = vlaneseq
  %v1401 = vshrl.u32 %v1400, 7
  %v1402 = vsub.s32 %v1399, %v1401
  %v1403 = vrot.slane %v1375, %v1402
  %v1404 = vcombine.low %v1382, %v1389
  %v1405 = vcombine.low %v1396, %v1403
  %v1407 = vunpack.c.l.s4 1966171168
  %v1408 = vunpack.c.0.s8 %v1407
  %v1409 = vlaneseq
  %v1410 = vshrl.u32 %v1409, 7
  %v1411 = vsub.s32 %v1408, %v1410
  %v1412 = vrot.slane %v1404, %v1411
  %v1414 = vunpack.c.l.s4 1966171168
  %v1415 = vunpack.c.0.s8 %v1414
  %v1416 = vlaneseq
  %v1417 = vshrl.u32 %v1416, 7
  %v1418 = vsub.s32 %v1415, %v1417
  %v1419 = vrot.slane %v1405, %v1418
  %v1420 = vcombine.low %v1412, %v1419
  %v1421 = vcombine.low %v691, %v695
  %v1422 = vcombine.low %v699, %v703
  %v1423 = vcombine.low %v707, %v711
  %v1424 = vcombine.low %v715, %v719
  %v1426 = vunpack.c.l.s4 1966171168
  %v1427 = vunpack.c.0.s8 %v1426
  %v1428 = vlaneseq
  %v1429 = vshrl.u32 %v1428, 7
  %v1430 = vsub.s32 %v1427, %v1429
  %v1431 = vrot.slane %v1421, %v1430
  %v1433 = vunpack.c.l.s4 1966171168
  %v1434 = vunpack.c.0.s8 %v1433
  %v1435 = vlaneseq
  %v1436 = vshrl.u32 %v1435, 7
  %v1437 = vsub.s32 %v1434, %v1436
  %v1438 = vrot.slane %v1422, %v1437
  %v1440 = vunpack.c.l.s4 1966171168
  %v1441 = vunpack.c.0.s8 %v1440
  %v1442 = vlaneseq
  %v1443 = vshrl.u32 %v1442, 7
  %v1444 = vsub.s32 %v1441, %v1443
  %v1445 = vrot.slane %v1423, %v1444
  %v1447 = vunpack.c.l.s4 1966171168
  %v1448 = vunpack.c.0.s8 %v1447
  %v1449 = vlaneseq
  %v1450 = vshrl.u32 %v1449, 7
  %v1451 = vsub.s32 %v1448, %v1450
  %v1452 = vrot.slane %v1424, %v1451
  %v1453 = vcombine.low %v1431, %v1438
  %v1454 = vcombine.low %v1445, %v1452
  %v1456 = vunpack.c.l.s4 1966171168
  %v1457 = vunpack.c.0.s8 %v1456
  %v1458 = vlaneseq
  %v1459 = vshrl.u32 %v1458, 7
  %v1460 = vsub.s32 %v1457, %v1459
  %v1461 = vrot.slane %v1453, %v1460
  %v1463 = vunpack.c.l.s4 1966171168
  %v1464 = vunpack.c.0.s8 %v1463
  %v1465 = vlaneseq
  %v1466 = vshrl.u32 %v1465, 7
  %v1467 = vsub.s32 %v1464, %v1466
  %v1468 = vrot.slane %v1454, %v1467
  %v1469 = vcombine.low %v1461, %v1468
  %v1470 = vcombine.low %v723, %v727
  %v1471 = vcombine.low %v731, %v735
  %v1472 = vcombine.low %v739, %v743
  %v1473 = vcombine.low %v747, %v751
  %v1475 = vunpack.c.l.s4 1966171168
  %v1476 = vunpack.c.0.s8 %v1475
  %v1477 = vlaneseq
  %v1478 = vshrl.u32 %v1477, 7
  %v1479 = vsub.s32 %v1476, %v1478
  %v1480 = vrot.slane %v1470, %v1479
  %v1482 = vunpack.c.l.s4 1966171168
  %v1483 = vunpack.c.0.s8 %v1482
  %v1484 = vlaneseq
  %v1485 = vshrl.u32 %v1484, 7
  %v1486 = vsub.s32 %v1483, %v1485
  %v1487 = vrot.slane %v1471, %v1486
  %v1489 = vunpack.c.l.s4 1966171168
  %v1490 = vunpack.c.0.s8 %v1489
  %v1491 = vlaneseq
  %v1492 = vshrl.u32 %v1491, 7
  %v1493 = vsub.s32 %v1490, %v1492
  %v1494 = vrot.slane %v1472, %v1493
  %v1496 = vunpack.c.l.s4 1966171168
  %v1497 = vunpack.c.0.s8 %v1496
  %v1498 = vlaneseq
  %v1499 = vshrl.u32 %v1498, 7
  %v1500 = vsub.s32 %v1497, %v1499
  %v1501 = vrot.slane %v1473, %v1500
  %v1502 = vcombine.low %v1480, %v1487
  %v1503 = vcombine.low %v1494, %v1501
  %v1505 = vunpack.c.l.s4 1966171168
  %v1506 = vunpack.c.0.s8 %v1505
  %v1507 = vlaneseq
  %v1508 = vshrl.u32 %v1507, 7
  %v1509 = vsub.s32 %v1506, %v1508
  %v1510 = vrot.slane %v1502, %v1509
  %v1512 = vunpack.c.l.s4 1966171168
  %v1513 = vunpack.c.0.s8 %v1512
  %v1514 = vlaneseq
  %v1515 = vshrl.u32 %v1514, 7
  %v1516 = vsub.s32 %v1513, %v1515
  %v1517 = vrot.slane %v1503, %v1516
  %v1518 = vcombine.low %v1510, %v1517
  %v1519 = vcombine.low %v755, %v759
  %v1520 = vcombine.low %v763, %v767
  %v1521 = vcombine.low %v771, %v775
  %v1522 = vcombine.low %v779, %v783
  %v1524 = vunpack.c.l.s4 1966171168
  %v1525 = vunpack.c.0.s8 %v1524
  %v1526 = vlaneseq
  %v1527 = vshrl.u32 %v1526, 7
  %v1528 = vsub.s32 %v1525, %v1527
  %v1529 = vrot.slane %v1519, %v1528
  %v1531 = vunpack.c.l.s4 1966171168
  %v1532 = vunpack.c.0.s8 %v1531
  %v1533 = vlaneseq
  %v1534 = vshrl.u32 %v1533, 7
  %v1535 = vsub.s32 %v1532, %v1534
  %v1536 = vrot.slane %v1520, %v1535
  %v1538 = vunpack.c.l.s4 1966171168
  %v1539 = vunpack.c.0.s8 %v1538
  %v1540 = vlaneseq
  %v1541 = vshrl.u32 %v1540, 7
  %v1542 = vsub.s32 %v1539, %v1541
  %v1543 = vrot.slane %v1521, %v1542
  %v1545 = vunpack.c.l.s4 1966171168
  %v1546 = vunpack.c.0.s8 %v1545
  %v1547 = vlaneseq
  %v1548 = vshrl.u32 %v1547, 7
  %v1549 = vsub.s32 %v1546, %v1548
  %v1550 = vrot.slane %v1522, %v1549
  %v1551 = vcombine.low %v1529, %v1536
  %v1552 = vcombine.low %v1543, %v1550
  %v1554 = vunpack.c.l.s4 1966171168
  %v1555 = vunpack.c.0.s8 %v1554
  %v1556 = vlaneseq
  %v1557 = vshrl.u32 %v1556, 7
  %v1558 = vsub.s32 %v1555, %v1557
  %v1559 = vrot.slane %v1551, %v1558
  %v1561 = vunpack.c.l.s4 1966171168
  %v1562 = vunpack.c.0.s8 %v1561
  %v1563 = vlaneseq
  %v1564 = vshrl.u32 %v1563, 7
  %v1565 = vsub.s32 %v1562, %v1564
  %v1566 = vrot.slane %v1552, %v1565
  %v1567 = vcombine.low %v1559, %v1566
  %1568 = vset.pattern.permute.xlu0 0
  %1569 = vperm.xlu0 %1568, %v832
  %v1570 = vpop.permute.xlu0 %1569
  %1571 = vset.pattern.permute.xlu0 0
  %1572 = vperm.xlu0 %1571, %v881
  %v1573 = vpop.permute.xlu0 %1572
  %1574 = vset.pattern.permute.xlu0 0
  %1575 = vperm.xlu0 %1574, %v930
  %v1576 = vpop.permute.xlu0 %1575
  %1577 = vset.pattern.permute.xlu0 0
  %1578 = vperm.xlu0 %1577, %v979
  %v1579 = vpop.permute.xlu0 %1578
  %1580 = vset.pattern.permute.xlu0 0
  %1581 = vperm.xlu0 %1580, %v1028
  %v1582 = vpop.permute.xlu0 %1581
  %1583 = vset.pattern.permute.xlu0 0
  %1584 = vperm.xlu0 %1583, %v1077
  %v1585 = vpop.permute.xlu0 %1584
  %1586 = vset.pattern.permute.xlu0 0
  %1587 = vperm.xlu0 %1586, %v1126
  %v1588 = vpop.permute.xlu0 %1587
  %1589 = vset.pattern.permute.xlu0 0
  %1590 = vperm.xlu0 %1589, %v1175
  %v1591 = vpop.permute.xlu0 %1590
  %1592 = vset.pattern.permute.xlu0 0
  %1593 = vperm.xlu0 %1592, %v1224
  %v1594 = vpop.permute.xlu0 %1593
  %1595 = vset.pattern.permute.xlu0 0
  %1596 = vperm.xlu0 %1595, %v1273
  %v1597 = vpop.permute.xlu0 %1596
  %1598 = vset.pattern.permute.xlu0 0
  %1599 = vperm.xlu0 %1598, %v1322
  %v1600 = vpop.permute.xlu0 %1599
  %1601 = vset.pattern.permute.xlu0 0
  %1602 = vperm.xlu0 %1601, %v1371
  %v1603 = vpop.permute.xlu0 %1602
  %1604 = vset.pattern.permute.xlu0 0
  %1605 = vperm.xlu0 %1604, %v1420
  %v1606 = vpop.permute.xlu0 %1605
  %1607 = vset.pattern.permute.xlu0 0
  %1608 = vperm.xlu0 %1607, %v1469
  %v1609 = vpop.permute.xlu0 %1608
  %1610 = vset.pattern.permute.xlu0 0
  %1611 = vperm.xlu0 %1610, %v1518
  %v1612 = vpop.permute.xlu0 %1611
  %1613 = vset.pattern.permute.xlu0 0
  %1614 = vperm.xlu0 %1613, %v1567
  %v1615 = vpop.permute.xlu0 %1614
  %v1616 = vlaneseq
  %v1617 = vand.u32 %v1616, 127
  %v1618 = vlaneseq
  %v1619 = vshrl.u32 %v1618, 7
  %v1620 = vsub.s32 %v1617, %v1619
  %v1621 = vrot.slane %v1570, %v1620
  %v1622 = vadd.s32 %v1617, 4294967288
  %v1623 = vlaneseq
  %v1624 = vshrl.u32 %v1623, 7
  %v1625 = vsub.s32 %v1622, %v1624
  %v1626 = vrot.slane %v1573, %v1625
  %vm1627 = vcmask 130112
  %v1628 = vsel %vm1627, %v1626, %v1621
  %v1629 = vadd.s32 %v1617, 4294967280
  %v1630 = vlaneseq
  %v1631 = vshrl.u32 %v1630, 7
  %v1632 = vsub.s32 %v1629, %v1631
  %v1633 = vrot.slane %v1576, %v1632
  %vm1634 = vcmask 195712
  %v1635 = vsel %vm1634, %v1633, %v1628
  %v1636 = vadd.s32 %v1617, 4294967272
  %v1637 = vlaneseq
  %v1638 = vshrl.u32 %v1637, 7
  %v1639 = vsub.s32 %v1636, %v1638
  %v1640 = vrot.slane %v1579, %v1639
  %vm1641 = vcmask 261312
  %v1642 = vsel %vm1641, %v1640, %v1635
  %v1643 = vadd.s32 %v1617, 4294967264
  %v1644 = vlaneseq
  %v1645 = vshrl.u32 %v1644, 7
  %v1646 = vsub.s32 %v1643, %v1645
  %v1647 = vrot.slane %v1582, %v1646
  %vm1648 = vcmask 326912
  %v1649 = vsel %vm1648, %v1647, %v1642
  %v1650 = vadd.s32 %v1617, 4294967256
  %v1651 = vlaneseq
  %v1652 = vshrl.u32 %v1651, 7
  %v1653 = vsub.s32 %v1650, %v1652
  %v1654 = vrot.slane %v1585, %v1653
  %vm1655 = vcmask 392512
  %v1656 = vsel %vm1655, %v1654, %v1649
  %v1657 = vadd.s32 %v1617, 4294967248
  %v1658 = vlaneseq
  %v1659 = vshrl.u32 %v1658, 7
  %v1660 = vsub.s32 %v1657, %v1659
  %v1661 = vrot.slane %v1588, %v1660
  %vm1662 = vcmask 458112
  %v1663 = vsel %vm1662, %v1661, %v1656
  %v1664 = vadd.s32 %v1617, 4294967240
  %v1665 = vlaneseq
  %v1666 = vshrl.u32 %v1665, 7
  %v1667 = vsub.s32 %v1664, %v1666
  %v1668 = vrot.slane %v1591, %v1667
  %vm1669 = vcmask 523712
  %v1670 = vsel %vm1669, %v1668, %v1663
  %v1671 = vadd.s32 %v1617, 4294967232
  %v1672 = vlaneseq
  %v1673 = vshrl.u32 %v1672, 7
  %v1674 = vsub.s32 %v1671, %v1673
  %v1675 = vrot.slane %v1594, %v1674
  %vm1676 = vcmask 589312
  %v1677 = vsel %vm1676, %v1675, %v1670
  %v1678 = vadd.s32 %v1617, 4294967224
  %v1679 = vlaneseq
  %v1680 = vshrl.u32 %v1679, 7
  %v1681 = vsub.s32 %v1678, %v1680
  %v1682 = vrot.slane %v1597, %v1681
  %vm1683 = vcmask 654912
  %v1684 = vsel %vm1683, %v1682, %v1677
  %v1685 = vadd.s32 %v1617, 4294967216
  %v1686 = vlaneseq
  %v1687 = vshrl.u32 %v1686, 7
  %v1688 = vsub.s32 %v1685, %v1687
  %v1689 = vrot.slane %v1600, %v1688
  %vm1690 = vcmask 720512
  %v1691 = vsel %vm1690, %v1689, %v1684
  %v1692 = vadd.s32 %v1617, 4294967208
  %v1693 = vlaneseq
  %v1694 = vshrl.u32 %v1693, 7
  %v1695 = vsub.s32 %v1692, %v1694
  %v1696 = vrot.slane %v1603, %v1695
  %vm1697 = vcmask 786112
  %v1698 = vsel %vm1697, %v1696, %v1691
  %v1699 = vadd.s32 %v1617, 4294967200
  %v1700 = vlaneseq
  %v1701 = vshrl.u32 %v1700, 7
  %v1702 = vsub.s32 %v1699, %v1701
  %v1703 = vrot.slane %v1606, %v1702
  %vm1704 = vcmask 851712
  %v1705 = vsel %vm1704, %v1703, %v1698
  %v1706 = vadd.s32 %v1617, 4294967192
  %v1707 = vlaneseq
  %v1708 = vshrl.u32 %v1707, 7
  %v1709 = vsub.s32 %v1706, %v1708
  %v1710 = vrot.slane %v1609, %v1709
  %vm1711 = vcmask 917312
  %v1712 = vsel %vm1711, %v1710, %v1705
  %v1713 = vadd.s32 %v1617, 4294967184
  %v1714 = vlaneseq
  %v1715 = vshrl.u32 %v1714, 7
  %v1716 = vsub.s32 %v1713, %v1715
  %v1717 = vrot.slane %v1612, %v1716
  %vm1718 = vcmask 982912
  %v1719 = vsel %vm1718, %v1717, %v1712
  %v1720 = vadd.s32 %v1617, 4294967176
  %v1721 = vlaneseq
  %v1722 = vshrl.u32 %v1721, 7
  %v1723 = vsub.s32 %v1720, %v1722
  %v1724 = vrot.slane %v1615, %v1723
  %vm1725 = vcmask 1048512
  %v1726 = vsel %vm1725, %v1724, %v1719
  %v1728 = vunpack.c.l.s4 1966171168
  %v1729 = vunpack.c.0.s8 %v1728
  %v1730 = vlaneseq
  %v1731 = vshrl.u32 %v1730, 7
  %v1732 = vsub.s32 %v1729, %v1731
  %v1733 = vrot.slane %v1726, %v1732
  %v1735 = vunpack.c.l.s4 1966171168
  %v1736 = vunpack.c.0.s8 %v1735
  %v1737 = vlaneseq
  %v1738 = vshrl.u32 %v1737, 7
  %v1739 = vsub.s32 %v1736, %v1738
  %v1740 = vrot.slane %v1733, %v1739
  %v1742 = vmul.f32 %v255, %v1740
  %v1743 = vld [vmem:[%s2] sm:$0x1]
  %v1745 = vlaneseq
  %v1746 = vshrl.u32 %v1745, 7
  %v1747 = vsub.s32 0, %v1746
  %v1748 = vrot.slane %v1742, %v1747
  %1750 = vbcast.lane.b32.xlu0 %v1748, 256
  %v1751 = vpop.permute.xlu0 %1750
  %s1753 = sor.u32 256, 8
  %1754 = vbcast.lane.b32.xlu0 %v1748, %s1753
  %v1755 = vpop.permute.xlu0 %1754
  %s1757 = sor.u32 256, 16
  %1758 = vbcast.lane.b32.xlu0 %v1748, %s1757
  %v1759 = vpop.permute.xlu0 %1758
  %s1761 = sor.u32 256, 24
  %1762 = vbcast.lane.b32.xlu0 %v1748, %s1761
  %v1763 = vpop.permute.xlu0 %1762
  %s1765 = sor.u32 256, 32
  %1766 = vbcast.lane.b32.xlu0 %v1748, %s1765
  %v1767 = vpop.permute.xlu0 %1766
  %s1769 = sor.u32 256, 40
  %1770 = vbcast.lane.b32.xlu0 %v1748, %s1769
  %v1771 = vpop.permute.xlu0 %1770
  %s1773 = sor.u32 256, 48
  %1774 = vbcast.lane.b32.xlu0 %v1748, %s1773
  %v1775 = vpop.permute.xlu0 %1774
  %s1777 = sor.u32 256, 56
  %1778 = vbcast.lane.b32.xlu0 %v1748, %s1777
  %v1779 = vpop.permute.xlu0 %1778
  %s1781 = sor.u32 256, 64
  %1782 = vbcast.lane.b32.xlu0 %v1748, %s1781
  %v1783 = vpop.permute.xlu0 %1782
  %s1785 = sor.u32 256, 72
  %1786 = vbcast.lane.b32.xlu0 %v1748, %s1785
  %v1787 = vpop.permute.xlu0 %1786
  %s1789 = sor.u32 256, 80
  %1790 = vbcast.lane.b32.xlu0 %v1748, %s1789
  %v1791 = vpop.permute.xlu0 %1790
  %s1793 = sor.u32 256, 88
  %1794 = vbcast.lane.b32.xlu0 %v1748, %s1793
  %v1795 = vpop.permute.xlu0 %1794
  %s1797 = sor.u32 256, 96
  %1798 = vbcast.lane.b32.xlu0 %v1748, %s1797
  %v1799 = vpop.permute.xlu0 %1798
  %s1801 = sor.u32 256, 104
  %1802 = vbcast.lane.b32.xlu0 %v1748, %s1801
  %v1803 = vpop.permute.xlu0 %1802
  %s1805 = sor.u32 256, 112
  %1806 = vbcast.lane.b32.xlu0 %v1748, %s1805
  %v1807 = vpop.permute.xlu0 %1806
  %s1809 = sor.u32 256, 120
  %1810 = vbcast.lane.b32.xlu0 %v1748, %s1809
  %v1811 = vpop.permute.xlu0 %1810
  %v1828 = vmul.f32 %v95, %v1751
  %v1829 = vmul.f32 %v96, %v1755
  %v1830 = vmul.f32 %v97, %v1759
  %v1831 = vmul.f32 %v98, %v1763
  %v1832 = vmul.f32 %v99, %v1767
  %v1833 = vmul.f32 %v100, %v1771
  %v1834 = vmul.f32 %v101, %v1775
  %v1835 = vmul.f32 %v102, %v1779
  %v1836 = vmul.f32 %v103, %v1783
  %v1837 = vmul.f32 %v104, %v1787
  %v1838 = vmul.f32 %v105, %v1791
  %v1839 = vmul.f32 %v106, %v1795
  %v1840 = vmul.f32 %v107, %v1799
  %v1841 = vmul.f32 %v108, %v1803
  %v1842 = vmul.f32 %v109, %v1807
  %v1843 = vmul.f32 %v110, %v1811
  %v1860 = vcombine.high %v1828, %v1828
  %v1862 = vunpack.c.l.s4 1966171168
  %v1863 = vunpack.c.0.s8 %v1862
  %v1864 = vlaneseq
  %v1865 = vshrl.u32 %v1864, 7
  %v1866 = vsub.s32 %v1863, %v1865
  %v1867 = vrot.slane %v1828, %v1866
  %v1869 = vunpack.c.l.s4 1966171168
  %v1870 = vunpack.c.0.s8 %v1869
  %v1871 = vlaneseq
  %v1872 = vshrl.u32 %v1871, 7
  %v1873 = vsub.s32 %v1870, %v1872
  %v1874 = vrot.slane %v1860, %v1873
  %v1875 = vcombine.high %v1867, %v1867
  %v1876 = vcombine.high %v1874, %v1874
  %v1878 = vunpack.c.l.s4 1966171168
  %v1879 = vunpack.c.0.s8 %v1878
  %v1880 = vlaneseq
  %v1881 = vshrl.u32 %v1880, 7
  %v1882 = vsub.s32 %v1879, %v1881
  %v1883 = vrot.slane %v1867, %v1882
  %v1885 = vunpack.c.l.s4 1966171168
  %v1886 = vunpack.c.0.s8 %v1885
  %v1887 = vlaneseq
  %v1888 = vshrl.u32 %v1887, 7
  %v1889 = vsub.s32 %v1886, %v1888
  %v1890 = vrot.slane %v1874, %v1889
  %v1892 = vunpack.c.l.s4 1966171168
  %v1893 = vunpack.c.0.s8 %v1892
  %v1894 = vlaneseq
  %v1895 = vshrl.u32 %v1894, 7
  %v1896 = vsub.s32 %v1893, %v1895
  %v1897 = vrot.slane %v1875, %v1896
  %v1899 = vunpack.c.l.s4 1966171168
  %v1900 = vunpack.c.0.s8 %v1899
  %v1901 = vlaneseq
  %v1902 = vshrl.u32 %v1901, 7
  %v1903 = vsub.s32 %v1900, %v1902
  %v1904 = vrot.slane %v1876, %v1903
  %v1905 = vcombine.high %v1883, %v1883
  %v1906 = vcombine.high %v1890, %v1890
  %v1907 = vcombine.high %v1897, %v1897
  %v1908 = vcombine.high %v1904, %v1904
  %v1909 = vcombine.high %v1829, %v1829
  %v1911 = vunpack.c.l.s4 1966171168
  %v1912 = vunpack.c.0.s8 %v1911
  %v1913 = vlaneseq
  %v1914 = vshrl.u32 %v1913, 7
  %v1915 = vsub.s32 %v1912, %v1914
  %v1916 = vrot.slane %v1829, %v1915
  %v1918 = vunpack.c.l.s4 1966171168
  %v1919 = vunpack.c.0.s8 %v1918
  %v1920 = vlaneseq
  %v1921 = vshrl.u32 %v1920, 7
  %v1922 = vsub.s32 %v1919, %v1921
  %v1923 = vrot.slane %v1909, %v1922
  %v1924 = vcombine.high %v1916, %v1916
  %v1925 = vcombine.high %v1923, %v1923
  %v1927 = vunpack.c.l.s4 1966171168
  %v1928 = vunpack.c.0.s8 %v1927
  %v1929 = vlaneseq
  %v1930 = vshrl.u32 %v1929, 7
  %v1931 = vsub.s32 %v1928, %v1930
  %v1932 = vrot.slane %v1916, %v1931
  %v1934 = vunpack.c.l.s4 1966171168
  %v1935 = vunpack.c.0.s8 %v1934
  %v1936 = vlaneseq
  %v1937 = vshrl.u32 %v1936, 7
  %v1938 = vsub.s32 %v1935, %v1937
  %v1939 = vrot.slane %v1923, %v1938
  %v1941 = vunpack.c.l.s4 1966171168
  %v1942 = vunpack.c.0.s8 %v1941
  %v1943 = vlaneseq
  %v1944 = vshrl.u32 %v1943, 7
  %v1945 = vsub.s32 %v1942, %v1944
  %v1946 = vrot.slane %v1924, %v1945
  %v1948 = vunpack.c.l.s4 1966171168
  %v1949 = vunpack.c.0.s8 %v1948
  %v1950 = vlaneseq
  %v1951 = vshrl.u32 %v1950, 7
  %v1952 = vsub.s32 %v1949, %v1951
  %v1953 = vrot.slane %v1925, %v1952
  %v1954 = vcombine.high %v1932, %v1932
  %v1955 = vcombine.high %v1939, %v1939
  %v1956 = vcombine.high %v1946, %v1946
  %v1957 = vcombine.high %v1953, %v1953
  %v1958 = vcombine.high %v1830, %v1830
  %v1960 = vunpack.c.l.s4 1966171168
  %v1961 = vunpack.c.0.s8 %v1960
  %v1962 = vlaneseq
  %v1963 = vshrl.u32 %v1962, 7
  %v1964 = vsub.s32 %v1961, %v1963
  %v1965 = vrot.slane %v1830, %v1964
  %v1967 = vunpack.c.l.s4 1966171168
  %v1968 = vunpack.c.0.s8 %v1967
  %v1969 = vlaneseq
  %v1970 = vshrl.u32 %v1969, 7
  %v1971 = vsub.s32 %v1968, %v1970
  %v1972 = vrot.slane %v1958, %v1971
  %v1973 = vcombine.high %v1965, %v1965
  %v1974 = vcombine.high %v1972, %v1972
  %v1976 = vunpack.c.l.s4 1966171168
  %v1977 = vunpack.c.0.s8 %v1976
  %v1978 = vlaneseq
  %v1979 = vshrl.u32 %v1978, 7
  %v1980 = vsub.s32 %v1977, %v1979
  %v1981 = vrot.slane %v1965, %v1980
  %v1983 = vunpack.c.l.s4 1966171168
  %v1984 = vunpack.c.0.s8 %v1983
  %v1985 = vlaneseq
  %v1986 = vshrl.u32 %v1985, 7
  %v1987 = vsub.s32 %v1984, %v1986
  %v1988 = vrot.slane %v1972, %v1987
  %v1990 = vunpack.c.l.s4 1966171168
  %v1991 = vunpack.c.0.s8 %v1990
  %v1992 = vlaneseq
  %v1993 = vshrl.u32 %v1992, 7
  %v1994 = vsub.s32 %v1991, %v1993
  %v1995 = vrot.slane %v1973, %v1994
  %v1997 = vunpack.c.l.s4 1966171168
  %v1998 = vunpack.c.0.s8 %v1997
  %v1999 = vlaneseq
  %v2000 = vshrl.u32 %v1999, 7
  %v2001 = vsub.s32 %v1998, %v2000
  %v2002 = vrot.slane %v1974, %v2001
  %v2003 = vcombine.high %v1981, %v1981
  %v2004 = vcombine.high %v1988, %v1988
  %v2005 = vcombine.high %v1995, %v1995
  %v2006 = vcombine.high %v2002, %v2002
  %v2007 = vcombine.high %v1831, %v1831
  %v2009 = vunpack.c.l.s4 1966171168
  %v2010 = vunpack.c.0.s8 %v2009
  %v2011 = vlaneseq
  %v2012 = vshrl.u32 %v2011, 7
  %v2013 = vsub.s32 %v2010, %v2012
  %v2014 = vrot.slane %v1831, %v2013
  %v2016 = vunpack.c.l.s4 1966171168
  %v2017 = vunpack.c.0.s8 %v2016
  %v2018 = vlaneseq
  %v2019 = vshrl.u32 %v2018, 7
  %v2020 = vsub.s32 %v2017, %v2019
  %v2021 = vrot.slane %v2007, %v2020
  %v2022 = vcombine.high %v2014, %v2014
  %v2023 = vcombine.high %v2021, %v2021
  %v2025 = vunpack.c.l.s4 1966171168
  %v2026 = vunpack.c.0.s8 %v2025
  %v2027 = vlaneseq
  %v2028 = vshrl.u32 %v2027, 7
  %v2029 = vsub.s32 %v2026, %v2028
  %v2030 = vrot.slane %v2014, %v2029
  %v2032 = vunpack.c.l.s4 1966171168
  %v2033 = vunpack.c.0.s8 %v2032
  %v2034 = vlaneseq
  %v2035 = vshrl.u32 %v2034, 7
  %v2036 = vsub.s32 %v2033, %v2035
  %v2037 = vrot.slane %v2021, %v2036
  %v2039 = vunpack.c.l.s4 1966171168
  %v2040 = vunpack.c.0.s8 %v2039
  %v2041 = vlaneseq
  %v2042 = vshrl.u32 %v2041, 7
  %v2043 = vsub.s32 %v2040, %v2042
  %v2044 = vrot.slane %v2022, %v2043
  %v2046 = vunpack.c.l.s4 1966171168
  %v2047 = vunpack.c.0.s8 %v2046
  %v2048 = vlaneseq
  %v2049 = vshrl.u32 %v2048, 7
  %v2050 = vsub.s32 %v2047, %v2049
  %v2051 = vrot.slane %v2023, %v2050
  %v2052 = vcombine.high %v2030, %v2030
  %v2053 = vcombine.high %v2037, %v2037
  %v2054 = vcombine.high %v2044, %v2044
  %v2055 = vcombine.high %v2051, %v2051
  %v2056 = vcombine.high %v1832, %v1832
  %v2058 = vunpack.c.l.s4 1966171168
  %v2059 = vunpack.c.0.s8 %v2058
  %v2060 = vlaneseq
  %v2061 = vshrl.u32 %v2060, 7
  %v2062 = vsub.s32 %v2059, %v2061
  %v2063 = vrot.slane %v1832, %v2062
  %v2065 = vunpack.c.l.s4 1966171168
  %v2066 = vunpack.c.0.s8 %v2065
  %v2067 = vlaneseq
  %v2068 = vshrl.u32 %v2067, 7
  %v2069 = vsub.s32 %v2066, %v2068
  %v2070 = vrot.slane %v2056, %v2069
  %v2071 = vcombine.high %v2063, %v2063
  %v2072 = vcombine.high %v2070, %v2070
  %v2074 = vunpack.c.l.s4 1966171168
  %v2075 = vunpack.c.0.s8 %v2074
  %v2076 = vlaneseq
  %v2077 = vshrl.u32 %v2076, 7
  %v2078 = vsub.s32 %v2075, %v2077
  %v2079 = vrot.slane %v2063, %v2078
  %v2081 = vunpack.c.l.s4 1966171168
  %v2082 = vunpack.c.0.s8 %v2081
  %v2083 = vlaneseq
  %v2084 = vshrl.u32 %v2083, 7
  %v2085 = vsub.s32 %v2082, %v2084
  %v2086 = vrot.slane %v2070, %v2085
  %v2088 = vunpack.c.l.s4 1966171168
  %v2089 = vunpack.c.0.s8 %v2088
  %v2090 = vlaneseq
  %v2091 = vshrl.u32 %v2090, 7
  %v2092 = vsub.s32 %v2089, %v2091
  %v2093 = vrot.slane %v2071, %v2092
  %v2095 = vunpack.c.l.s4 1966171168
  %v2096 = vunpack.c.0.s8 %v2095
  %v2097 = vlaneseq
  %v2098 = vshrl.u32 %v2097, 7
  %v2099 = vsub.s32 %v2096, %v2098
  %v2100 = vrot.slane %v2072, %v2099
  %v2101 = vcombine.high %v2079, %v2079
  %v2102 = vcombine.high %v2086, %v2086
  %v2103 = vcombine.high %v2093, %v2093
  %v2104 = vcombine.high %v2100, %v2100
  %v2105 = vcombine.high %v1833, %v1833
  %v2107 = vunpack.c.l.s4 1966171168
  %v2108 = vunpack.c.0.s8 %v2107
  %v2109 = vlaneseq
  %v2110 = vshrl.u32 %v2109, 7
  %v2111 = vsub.s32 %v2108, %v2110
  %v2112 = vrot.slane %v1833, %v2111
  %v2114 = vunpack.c.l.s4 1966171168
  %v2115 = vunpack.c.0.s8 %v2114
  %v2116 = vlaneseq
  %v2117 = vshrl.u32 %v2116, 7
  %v2118 = vsub.s32 %v2115, %v2117
  %v2119 = vrot.slane %v2105, %v2118
  %v2120 = vcombine.high %v2112, %v2112
  %v2121 = vcombine.high %v2119, %v2119
  %v2123 = vunpack.c.l.s4 1966171168
  %v2124 = vunpack.c.0.s8 %v2123
  %v2125 = vlaneseq
  %v2126 = vshrl.u32 %v2125, 7
  %v2127 = vsub.s32 %v2124, %v2126
  %v2128 = vrot.slane %v2112, %v2127
  %v2130 = vunpack.c.l.s4 1966171168
  %v2131 = vunpack.c.0.s8 %v2130
  %v2132 = vlaneseq
  %v2133 = vshrl.u32 %v2132, 7
  %v2134 = vsub.s32 %v2131, %v2133
  %v2135 = vrot.slane %v2119, %v2134
  %v2137 = vunpack.c.l.s4 1966171168
  %v2138 = vunpack.c.0.s8 %v2137
  %v2139 = vlaneseq
  %v2140 = vshrl.u32 %v2139, 7
  %v2141 = vsub.s32 %v2138, %v2140
  %v2142 = vrot.slane %v2120, %v2141
  %v2144 = vunpack.c.l.s4 1966171168
  %v2145 = vunpack.c.0.s8 %v2144
  %v2146 = vlaneseq
  %v2147 = vshrl.u32 %v2146, 7
  %v2148 = vsub.s32 %v2145, %v2147
  %v2149 = vrot.slane %v2121, %v2148
  %v2150 = vcombine.high %v2128, %v2128
  %v2151 = vcombine.high %v2135, %v2135
  %v2152 = vcombine.high %v2142, %v2142
  %v2153 = vcombine.high %v2149, %v2149
  %v2154 = vcombine.high %v1834, %v1834
  %v2156 = vunpack.c.l.s4 1966171168
  %v2157 = vunpack.c.0.s8 %v2156
  %v2158 = vlaneseq
  %v2159 = vshrl.u32 %v2158, 7
  %v2160 = vsub.s32 %v2157, %v2159
  %v2161 = vrot.slane %v1834, %v2160
  %v2163 = vunpack.c.l.s4 1966171168
  %v2164 = vunpack.c.0.s8 %v2163
  %v2165 = vlaneseq
  %v2166 = vshrl.u32 %v2165, 7
  %v2167 = vsub.s32 %v2164, %v2166
  %v2168 = vrot.slane %v2154, %v2167
  %v2169 = vcombine.high %v2161, %v2161
  %v2170 = vcombine.high %v2168, %v2168
  %v2172 = vunpack.c.l.s4 1966171168
  %v2173 = vunpack.c.0.s8 %v2172
  %v2174 = vlaneseq
  %v2175 = vshrl.u32 %v2174, 7
  %v2176 = vsub.s32 %v2173, %v2175
  %v2177 = vrot.slane %v2161, %v2176
  %v2179 = vunpack.c.l.s4 1966171168
  %v2180 = vunpack.c.0.s8 %v2179
  %v2181 = vlaneseq
  %v2182 = vshrl.u32 %v2181, 7
  %v2183 = vsub.s32 %v2180, %v2182
  %v2184 = vrot.slane %v2168, %v2183
  %v2186 = vunpack.c.l.s4 1966171168
  %v2187 = vunpack.c.0.s8 %v2186
  %v2188 = vlaneseq
  %v2189 = vshrl.u32 %v2188, 7
  %v2190 = vsub.s32 %v2187, %v2189
  %v2191 = vrot.slane %v2169, %v2190
  %v2193 = vunpack.c.l.s4 1966171168
  %v2194 = vunpack.c.0.s8 %v2193
  %v2195 = vlaneseq
  %v2196 = vshrl.u32 %v2195, 7
  %v2197 = vsub.s32 %v2194, %v2196
  %v2198 = vrot.slane %v2170, %v2197
  %v2199 = vcombine.high %v2177, %v2177
  %v2200 = vcombine.high %v2184, %v2184
  %v2201 = vcombine.high %v2191, %v2191
  %v2202 = vcombine.high %v2198, %v2198
  %v2203 = vcombine.high %v1835, %v1835
  %v2205 = vunpack.c.l.s4 1966171168
  %v2206 = vunpack.c.0.s8 %v2205
  %v2207 = vlaneseq
  %v2208 = vshrl.u32 %v2207, 7
  %v2209 = vsub.s32 %v2206, %v2208
  %v2210 = vrot.slane %v1835, %v2209
  %v2212 = vunpack.c.l.s4 1966171168
  %v2213 = vunpack.c.0.s8 %v2212
  %v2214 = vlaneseq
  %v2215 = vshrl.u32 %v2214, 7
  %v2216 = vsub.s32 %v2213, %v2215
  %v2217 = vrot.slane %v2203, %v2216
  %v2218 = vcombine.high %v2210, %v2210
  %v2219 = vcombine.high %v2217, %v2217
  %v2221 = vunpack.c.l.s4 1966171168
  %v2222 = vunpack.c.0.s8 %v2221
  %v2223 = vlaneseq
  %v2224 = vshrl.u32 %v2223, 7
  %v2225 = vsub.s32 %v2222, %v2224
  %v2226 = vrot.slane %v2210, %v2225
  %v2228 = vunpack.c.l.s4 1966171168
  %v2229 = vunpack.c.0.s8 %v2228
  %v2230 = vlaneseq
  %v2231 = vshrl.u32 %v2230, 7
  %v2232 = vsub.s32 %v2229, %v2231
  %v2233 = vrot.slane %v2217, %v2232
  %v2235 = vunpack.c.l.s4 1966171168
  %v2236 = vunpack.c.0.s8 %v2235
  %v2237 = vlaneseq
  %v2238 = vshrl.u32 %v2237, 7
  %v2239 = vsub.s32 %v2236, %v2238
  %v2240 = vrot.slane %v2218, %v2239
  %v2242 = vunpack.c.l.s4 1966171168
  %v2243 = vunpack.c.0.s8 %v2242
  %v2244 = vlaneseq
  %v2245 = vshrl.u32 %v2244, 7
  %v2246 = vsub.s32 %v2243, %v2245
  %v2247 = vrot.slane %v2219, %v2246
  %v2248 = vcombine.high %v2226, %v2226
  %v2249 = vcombine.high %v2233, %v2233
  %v2250 = vcombine.high %v2240, %v2240
  %v2251 = vcombine.high %v2247, %v2247
  %v2252 = vcombine.high %v1836, %v1836
  %v2254 = vunpack.c.l.s4 1966171168
  %v2255 = vunpack.c.0.s8 %v2254
  %v2256 = vlaneseq
  %v2257 = vshrl.u32 %v2256, 7
  %v2258 = vsub.s32 %v2255, %v2257
  %v2259 = vrot.slane %v1836, %v2258
  %v2261 = vunpack.c.l.s4 1966171168
  %v2262 = vunpack.c.0.s8 %v2261
  %v2263 = vlaneseq
  %v2264 = vshrl.u32 %v2263, 7
  %v2265 = vsub.s32 %v2262, %v2264
  %v2266 = vrot.slane %v2252, %v2265
  %v2267 = vcombine.high %v2259, %v2259
  %v2268 = vcombine.high %v2266, %v2266
  %v2270 = vunpack.c.l.s4 1966171168
  %v2271 = vunpack.c.0.s8 %v2270
  %v2272 = vlaneseq
  %v2273 = vshrl.u32 %v2272, 7
  %v2274 = vsub.s32 %v2271, %v2273
  %v2275 = vrot.slane %v2259, %v2274
  %v2277 = vunpack.c.l.s4 1966171168
  %v2278 = vunpack.c.0.s8 %v2277
  %v2279 = vlaneseq
  %v2280 = vshrl.u32 %v2279, 7
  %v2281 = vsub.s32 %v2278, %v2280
  %v2282 = vrot.slane %v2266, %v2281
  %v2284 = vunpack.c.l.s4 1966171168
  %v2285 = vunpack.c.0.s8 %v2284
  %v2286 = vlaneseq
  %v2287 = vshrl.u32 %v2286, 7
  %v2288 = vsub.s32 %v2285, %v2287
  %v2289 = vrot.slane %v2267, %v2288
  %v2291 = vunpack.c.l.s4 1966171168
  %v2292 = vunpack.c.0.s8 %v2291
  %v2293 = vlaneseq
  %v2294 = vshrl.u32 %v2293, 7
  %v2295 = vsub.s32 %v2292, %v2294
  %v2296 = vrot.slane %v2268, %v2295
  %v2297 = vcombine.high %v2275, %v2275
  %v2298 = vcombine.high %v2282, %v2282
  %v2299 = vcombine.high %v2289, %v2289
  %v2300 = vcombine.high %v2296, %v2296
  %v2301 = vcombine.high %v1837, %v1837
  %v2303 = vunpack.c.l.s4 1966171168
  %v2304 = vunpack.c.0.s8 %v2303
  %v2305 = vlaneseq
  %v2306 = vshrl.u32 %v2305, 7
  %v2307 = vsub.s32 %v2304, %v2306
  %v2308 = vrot.slane %v1837, %v2307
  %v2310 = vunpack.c.l.s4 1966171168
  %v2311 = vunpack.c.0.s8 %v2310
  %v2312 = vlaneseq
  %v2313 = vshrl.u32 %v2312, 7
  %v2314 = vsub.s32 %v2311, %v2313
  %v2315 = vrot.slane %v2301, %v2314
  %v2316 = vcombine.high %v2308, %v2308
  %v2317 = vcombine.high %v2315, %v2315
  %v2319 = vunpack.c.l.s4 1966171168
  %v2320 = vunpack.c.0.s8 %v2319
  %v2321 = vlaneseq
  %v2322 = vshrl.u32 %v2321, 7
  %v2323 = vsub.s32 %v2320, %v2322
  %v2324 = vrot.slane %v2308, %v2323
  %v2326 = vunpack.c.l.s4 1966171168
  %v2327 = vunpack.c.0.s8 %v2326
  %v2328 = vlaneseq
  %v2329 = vshrl.u32 %v2328, 7
  %v2330 = vsub.s32 %v2327, %v2329
  %v2331 = vrot.slane %v2315, %v2330
  %v2333 = vunpack.c.l.s4 1966171168
  %v2334 = vunpack.c.0.s8 %v2333
  %v2335 = vlaneseq
  %v2336 = vshrl.u32 %v2335, 7
  %v2337 = vsub.s32 %v2334, %v2336
  %v2338 = vrot.slane %v2316, %v2337
  %v2340 = vunpack.c.l.s4 1966171168
  %v2341 = vunpack.c.0.s8 %v2340
  %v2342 = vlaneseq
  %v2343 = vshrl.u32 %v2342, 7
  %v2344 = vsub.s32 %v2341, %v2343
  %v2345 = vrot.slane %v2317, %v2344
  %v2346 = vcombine.high %v2324, %v2324
  %v2347 = vcombine.high %v2331, %v2331
  %v2348 = vcombine.high %v2338, %v2338
  %v2349 = vcombine.high %v2345, %v2345
  %v2350 = vcombine.high %v1838, %v1838
  %v2352 = vunpack.c.l.s4 1966171168
  %v2353 = vunpack.c.0.s8 %v2352
  %v2354 = vlaneseq
  %v2355 = vshrl.u32 %v2354, 7
  %v2356 = vsub.s32 %v2353, %v2355
  %v2357 = vrot.slane %v1838, %v2356
  %v2359 = vunpack.c.l.s4 1966171168
  %v2360 = vunpack.c.0.s8 %v2359
  %v2361 = vlaneseq
  %v2362 = vshrl.u32 %v2361, 7
  %v2363 = vsub.s32 %v2360, %v2362
  %v2364 = vrot.slane %v2350, %v2363
  %v2365 = vcombine.high %v2357, %v2357
  %v2366 = vcombine.high %v2364, %v2364
  %v2368 = vunpack.c.l.s4 1966171168
  %v2369 = vunpack.c.0.s8 %v2368
  %v2370 = vlaneseq
  %v2371 = vshrl.u32 %v2370, 7
  %v2372 = vsub.s32 %v2369, %v2371
  %v2373 = vrot.slane %v2357, %v2372
  %v2375 = vunpack.c.l.s4 1966171168
  %v2376 = vunpack.c.0.s8 %v2375
  %v2377 = vlaneseq
  %v2378 = vshrl.u32 %v2377, 7
  %v2379 = vsub.s32 %v2376, %v2378
  %v2380 = vrot.slane %v2364, %v2379
  %v2382 = vunpack.c.l.s4 1966171168
  %v2383 = vunpack.c.0.s8 %v2382
  %v2384 = vlaneseq
  %v2385 = vshrl.u32 %v2384, 7
  %v2386 = vsub.s32 %v2383, %v2385
  %v2387 = vrot.slane %v2365, %v2386
  %v2389 = vunpack.c.l.s4 1966171168
  %v2390 = vunpack.c.0.s8 %v2389
  %v2391 = vlaneseq
  %v2392 = vshrl.u32 %v2391, 7
  %v2393 = vsub.s32 %v2390, %v2392
  %v2394 = vrot.slane %v2366, %v2393
  %v2395 = vcombine.high %v2373, %v2373
  %v2396 = vcombine.high %v2380, %v2380
  %v2397 = vcombine.high %v2387, %v2387
  %v2398 = vcombine.high %v2394, %v2394
  %v2399 = vcombine.high %v1839, %v1839
  %v2401 = vunpack.c.l.s4 1966171168
  %v2402 = vunpack.c.0.s8 %v2401
  %v2403 = vlaneseq
  %v2404 = vshrl.u32 %v2403, 7
  %v2405 = vsub.s32 %v2402, %v2404
  %v2406 = vrot.slane %v1839, %v2405
  %v2408 = vunpack.c.l.s4 1966171168
  %v2409 = vunpack.c.0.s8 %v2408
  %v2410 = vlaneseq
  %v2411 = vshrl.u32 %v2410, 7
  %v2412 = vsub.s32 %v2409, %v2411
  %v2413 = vrot.slane %v2399, %v2412
  %v2414 = vcombine.high %v2406, %v2406
  %v2415 = vcombine.high %v2413, %v2413
  %v2417 = vunpack.c.l.s4 1966171168
  %v2418 = vunpack.c.0.s8 %v2417
  %v2419 = vlaneseq
  %v2420 = vshrl.u32 %v2419, 7
  %v2421 = vsub.s32 %v2418, %v2420
  %v2422 = vrot.slane %v2406, %v2421
  %v2424 = vunpack.c.l.s4 1966171168
  %v2425 = vunpack.c.0.s8 %v2424
  %v2426 = vlaneseq
  %v2427 = vshrl.u32 %v2426, 7
  %v2428 = vsub.s32 %v2425, %v2427
  %v2429 = vrot.slane %v2413, %v2428
  %v2431 = vunpack.c.l.s4 1966171168
  %v2432 = vunpack.c.0.s8 %v2431
  %v2433 = vlaneseq
  %v2434 = vshrl.u32 %v2433, 7
  %v2435 = vsub.s32 %v2432, %v2434
  %v2436 = vrot.slane %v2414, %v2435
  %v2438 = vunpack.c.l.s4 1966171168
  %v2439 = vunpack.c.0.s8 %v2438
  %v2440 = vlaneseq
  %v2441 = vshrl.u32 %v2440, 7
  %v2442 = vsub.s32 %v2439, %v2441
  %v2443 = vrot.slane %v2415, %v2442
  %v2444 = vcombine.high %v2422, %v2422
  %v2445 = vcombine.high %v2429, %v2429
  %v2446 = vcombine.high %v2436, %v2436
  %v2447 = vcombine.high %v2443, %v2443
  %v2448 = vcombine.high %v1840, %v1840
  %v2450 = vunpack.c.l.s4 1966171168
  %v2451 = vunpack.c.0.s8 %v2450
  %v2452 = vlaneseq
  %v2453 = vshrl.u32 %v2452, 7
  %v2454 = vsub.s32 %v2451, %v2453
  %v2455 = vrot.slane %v1840, %v2454
  %v2457 = vunpack.c.l.s4 1966171168
  %v2458 = vunpack.c.0.s8 %v2457
  %v2459 = vlaneseq
  %v2460 = vshrl.u32 %v2459, 7
  %v2461 = vsub.s32 %v2458, %v2460
  %v2462 = vrot.slane %v2448, %v2461
  %v2463 = vcombine.high %v2455, %v2455
  %v2464 = vcombine.high %v2462, %v2462
  %v2466 = vunpack.c.l.s4 1966171168
  %v2467 = vunpack.c.0.s8 %v2466
  %v2468 = vlaneseq
  %v2469 = vshrl.u32 %v2468, 7
  %v2470 = vsub.s32 %v2467, %v2469
  %v2471 = vrot.slane %v2455, %v2470
  %v2473 = vunpack.c.l.s4 1966171168
  %v2474 = vunpack.c.0.s8 %v2473
  %v2475 = vlaneseq
  %v2476 = vshrl.u32 %v2475, 7
  %v2477 = vsub.s32 %v2474, %v2476
  %v2478 = vrot.slane %v2462, %v2477
  %v2480 = vunpack.c.l.s4 1966171168
  %v2481 = vunpack.c.0.s8 %v2480
  %v2482 = vlaneseq
  %v2483 = vshrl.u32 %v2482, 7
  %v2484 = vsub.s32 %v2481, %v2483
  %v2485 = vrot.slane %v2463, %v2484
  %v2487 = vunpack.c.l.s4 1966171168
  %v2488 = vunpack.c.0.s8 %v2487
  %v2489 = vlaneseq
  %v2490 = vshrl.u32 %v2489, 7
  %v2491 = vsub.s32 %v2488, %v2490
  %v2492 = vrot.slane %v2464, %v2491
  %v2493 = vcombine.high %v2471, %v2471
  %v2494 = vcombine.high %v2478, %v2478
  %v2495 = vcombine.high %v2485, %v2485
  %v2496 = vcombine.high %v2492, %v2492
  %v2497 = vcombine.high %v1841, %v1841
  %v2499 = vunpack.c.l.s4 1966171168
  %v2500 = vunpack.c.0.s8 %v2499
  %v2501 = vlaneseq
  %v2502 = vshrl.u32 %v2501, 7
  %v2503 = vsub.s32 %v2500, %v2502
  %v2504 = vrot.slane %v1841, %v2503
  %v2506 = vunpack.c.l.s4 1966171168
  %v2507 = vunpack.c.0.s8 %v2506
  %v2508 = vlaneseq
  %v2509 = vshrl.u32 %v2508, 7
  %v2510 = vsub.s32 %v2507, %v2509
  %v2511 = vrot.slane %v2497, %v2510
  %v2512 = vcombine.high %v2504, %v2504
  %v2513 = vcombine.high %v2511, %v2511
  %v2515 = vunpack.c.l.s4 1966171168
  %v2516 = vunpack.c.0.s8 %v2515
  %v2517 = vlaneseq
  %v2518 = vshrl.u32 %v2517, 7
  %v2519 = vsub.s32 %v2516, %v2518
  %v2520 = vrot.slane %v2504, %v2519
  %v2522 = vunpack.c.l.s4 1966171168
  %v2523 = vunpack.c.0.s8 %v2522
  %v2524 = vlaneseq
  %v2525 = vshrl.u32 %v2524, 7
  %v2526 = vsub.s32 %v2523, %v2525
  %v2527 = vrot.slane %v2511, %v2526
  %v2529 = vunpack.c.l.s4 1966171168
  %v2530 = vunpack.c.0.s8 %v2529
  %v2531 = vlaneseq
  %v2532 = vshrl.u32 %v2531, 7
  %v2533 = vsub.s32 %v2530, %v2532
  %v2534 = vrot.slane %v2512, %v2533
  %v2536 = vunpack.c.l.s4 1966171168
  %v2537 = vunpack.c.0.s8 %v2536
  %v2538 = vlaneseq
  %v2539 = vshrl.u32 %v2538, 7
  %v2540 = vsub.s32 %v2537, %v2539
  %v2541 = vrot.slane %v2513, %v2540
  %v2542 = vcombine.high %v2520, %v2520
  %v2543 = vcombine.high %v2527, %v2527
  %v2544 = vcombine.high %v2534, %v2534
  %v2545 = vcombine.high %v2541, %v2541
  %v2546 = vcombine.high %v1842, %v1842
  %v2548 = vunpack.c.l.s4 1966171168
  %v2549 = vunpack.c.0.s8 %v2548
  %v2550 = vlaneseq
  %v2551 = vshrl.u32 %v2550, 7
  %v2552 = vsub.s32 %v2549, %v2551
  %v2553 = vrot.slane %v1842, %v2552
  %v2555 = vunpack.c.l.s4 1966171168
  %v2556 = vunpack.c.0.s8 %v2555
  %v2557 = vlaneseq
  %v2558 = vshrl.u32 %v2557, 7
  %v2559 = vsub.s32 %v2556, %v2558
  %v2560 = vrot.slane %v2546, %v2559
  %v2561 = vcombine.high %v2553, %v2553
  %v2562 = vcombine.high %v2560, %v2560
  %v2564 = vunpack.c.l.s4 1966171168
  %v2565 = vunpack.c.0.s8 %v2564
  %v2566 = vlaneseq
  %v2567 = vshrl.u32 %v2566, 7
  %v2568 = vsub.s32 %v2565, %v2567
  %v2569 = vrot.slane %v2553, %v2568
  %v2571 = vunpack.c.l.s4 1966171168
  %v2572 = vunpack.c.0.s8 %v2571
  %v2573 = vlaneseq
  %v2574 = vshrl.u32 %v2573, 7
  %v2575 = vsub.s32 %v2572, %v2574
  %v2576 = vrot.slane %v2560, %v2575
  %v2578 = vunpack.c.l.s4 1966171168
  %v2579 = vunpack.c.0.s8 %v2578
  %v2580 = vlaneseq
  %v2581 = vshrl.u32 %v2580, 7
  %v2582 = vsub.s32 %v2579, %v2581
  %v2583 = vrot.slane %v2561, %v2582
  %v2585 = vunpack.c.l.s4 1966171168
  %v2586 = vunpack.c.0.s8 %v2585
  %v2587 = vlaneseq
  %v2588 = vshrl.u32 %v2587, 7
  %v2589 = vsub.s32 %v2586, %v2588
  %v2590 = vrot.slane %v2562, %v2589
  %v2591 = vcombine.high %v2569, %v2569
  %v2592 = vcombine.high %v2576, %v2576
  %v2593 = vcombine.high %v2583, %v2583
  %v2594 = vcombine.high %v2590, %v2590
  %v2595 = vcombine.high %v1843, %v1843
  %v2597 = vunpack.c.l.s4 1966171168
  %v2598 = vunpack.c.0.s8 %v2597
  %v2599 = vlaneseq
  %v2600 = vshrl.u32 %v2599, 7
  %v2601 = vsub.s32 %v2598, %v2600
  %v2602 = vrot.slane %v1843, %v2601
  %v2604 = vunpack.c.l.s4 1966171168
  %v2605 = vunpack.c.0.s8 %v2604
  %v2606 = vlaneseq
  %v2607 = vshrl.u32 %v2606, 7
  %v2608 = vsub.s32 %v2605, %v2607
  %v2609 = vrot.slane %v2595, %v2608
  %v2610 = vcombine.high %v2602, %v2602
  %v2611 = vcombine.high %v2609, %v2609
  %v2613 = vunpack.c.l.s4 1966171168
  %v2614 = vunpack.c.0.s8 %v2613
  %v2615 = vlaneseq
  %v2616 = vshrl.u32 %v2615, 7
  %v2617 = vsub.s32 %v2614, %v2616
  %v2618 = vrot.slane %v2602, %v2617
  %v2620 = vunpack.c.l.s4 1966171168
  %v2621 = vunpack.c.0.s8 %v2620
  %v2622 = vlaneseq
  %v2623 = vshrl.u32 %v2622, 7
  %v2624 = vsub.s32 %v2621, %v2623
  %v2625 = vrot.slane %v2609, %v2624
  %v2627 = vunpack.c.l.s4 1966171168
  %v2628 = vunpack.c.0.s8 %v2627
  %v2629 = vlaneseq
  %v2630 = vshrl.u32 %v2629, 7
  %v2631 = vsub.s32 %v2628, %v2630
  %v2632 = vrot.slane %v2610, %v2631
  %v2634 = vunpack.c.l.s4 1966171168
  %v2635 = vunpack.c.0.s8 %v2634
  %v2636 = vlaneseq
  %v2637 = vshrl.u32 %v2636, 7
  %v2638 = vsub.s32 %v2635, %v2637
  %v2639 = vrot.slane %v2611, %v2638
  %v2640 = vcombine.high %v2618, %v2618
  %v2641 = vcombine.high %v2625, %v2625
  %v2642 = vcombine.high %v2632, %v2632
  %v2643 = vcombine.high %v2639, %v2639
  %v2644 = vcombine.low %v1883, %v1897
  %v2645 = vcombine.low %v1905, %v1907
  %v2646 = vcombine.low %v1890, %v1904
  %v2647 = vcombine.low %v1906, %v1908
  %v2649 = vunpack.c.l.s4 1966171168
  %v2650 = vunpack.c.0.s8 %v2649
  %v2651 = vlaneseq
  %v2652 = vshrl.u32 %v2651, 7
  %v2653 = vsub.s32 %v2650, %v2652
  %v2654 = vrot.slane %v2644, %v2653
  %v2656 = vunpack.c.l.s4 1966171168
  %v2657 = vunpack.c.0.s8 %v2656
  %v2658 = vlaneseq
  %v2659 = vshrl.u32 %v2658, 7
  %v2660 = vsub.s32 %v2657, %v2659
  %v2661 = vrot.slane %v2645, %v2660
  %v2663 = vunpack.c.l.s4 1966171168
  %v2664 = vunpack.c.0.s8 %v2663
  %v2665 = vlaneseq
  %v2666 = vshrl.u32 %v2665, 7
  %v2667 = vsub.s32 %v2664, %v2666
  %v2668 = vrot.slane %v2646, %v2667
  %v2670 = vunpack.c.l.s4 1966171168
  %v2671 = vunpack.c.0.s8 %v2670
  %v2672 = vlaneseq
  %v2673 = vshrl.u32 %v2672, 7
  %v2674 = vsub.s32 %v2671, %v2673
  %v2675 = vrot.slane %v2647, %v2674
  %v2676 = vcombine.low %v2654, %v2661
  %v2677 = vcombine.low %v2668, %v2675
  %v2679 = vunpack.c.l.s4 1966171168
  %v2680 = vunpack.c.0.s8 %v2679
  %v2681 = vlaneseq
  %v2682 = vshrl.u32 %v2681, 7
  %v2683 = vsub.s32 %v2680, %v2682
  %v2684 = vrot.slane %v2676, %v2683
  %v2686 = vunpack.c.l.s4 1966171168
  %v2687 = vunpack.c.0.s8 %v2686
  %v2688 = vlaneseq
  %v2689 = vshrl.u32 %v2688, 7
  %v2690 = vsub.s32 %v2687, %v2689
  %v2691 = vrot.slane %v2677, %v2690
  %v2692 = vcombine.low %v2684, %v2691
  %v2693 = vcombine.low %v1932, %v1946
  %v2694 = vcombine.low %v1954, %v1956
  %v2695 = vcombine.low %v1939, %v1953
  %v2696 = vcombine.low %v1955, %v1957
  %v2698 = vunpack.c.l.s4 1966171168
  %v2699 = vunpack.c.0.s8 %v2698
  %v2700 = vlaneseq
  %v2701 = vshrl.u32 %v2700, 7
  %v2702 = vsub.s32 %v2699, %v2701
  %v2703 = vrot.slane %v2693, %v2702
  %v2705 = vunpack.c.l.s4 1966171168
  %v2706 = vunpack.c.0.s8 %v2705
  %v2707 = vlaneseq
  %v2708 = vshrl.u32 %v2707, 7
  %v2709 = vsub.s32 %v2706, %v2708
  %v2710 = vrot.slane %v2694, %v2709
  %v2712 = vunpack.c.l.s4 1966171168
  %v2713 = vunpack.c.0.s8 %v2712
  %v2714 = vlaneseq
  %v2715 = vshrl.u32 %v2714, 7
  %v2716 = vsub.s32 %v2713, %v2715
  %v2717 = vrot.slane %v2695, %v2716
  %v2719 = vunpack.c.l.s4 1966171168
  %v2720 = vunpack.c.0.s8 %v2719
  %v2721 = vlaneseq
  %v2722 = vshrl.u32 %v2721, 7
  %v2723 = vsub.s32 %v2720, %v2722
  %v2724 = vrot.slane %v2696, %v2723
  %v2725 = vcombine.low %v2703, %v2710
  %v2726 = vcombine.low %v2717, %v2724
  %v2728 = vunpack.c.l.s4 1966171168
  %v2729 = vunpack.c.0.s8 %v2728
  %v2730 = vlaneseq
  %v2731 = vshrl.u32 %v2730, 7
  %v2732 = vsub.s32 %v2729, %v2731
  %v2733 = vrot.slane %v2725, %v2732
  %v2735 = vunpack.c.l.s4 1966171168
  %v2736 = vunpack.c.0.s8 %v2735
  %v2737 = vlaneseq
  %v2738 = vshrl.u32 %v2737, 7
  %v2739 = vsub.s32 %v2736, %v2738
  %v2740 = vrot.slane %v2726, %v2739
  %v2741 = vcombine.low %v2733, %v2740
  %v2742 = vcombine.low %v1981, %v1995
  %v2743 = vcombine.low %v2003, %v2005
  %v2744 = vcombine.low %v1988, %v2002
  %v2745 = vcombine.low %v2004, %v2006
  %v2747 = vunpack.c.l.s4 1966171168
  %v2748 = vunpack.c.0.s8 %v2747
  %v2749 = vlaneseq
  %v2750 = vshrl.u32 %v2749, 7
  %v2751 = vsub.s32 %v2748, %v2750
  %v2752 = vrot.slane %v2742, %v2751
  %v2754 = vunpack.c.l.s4 1966171168
  %v2755 = vunpack.c.0.s8 %v2754
  %v2756 = vlaneseq
  %v2757 = vshrl.u32 %v2756, 7
  %v2758 = vsub.s32 %v2755, %v2757
  %v2759 = vrot.slane %v2743, %v2758
  %v2761 = vunpack.c.l.s4 1966171168
  %v2762 = vunpack.c.0.s8 %v2761
  %v2763 = vlaneseq
  %v2764 = vshrl.u32 %v2763, 7
  %v2765 = vsub.s32 %v2762, %v2764
  %v2766 = vrot.slane %v2744, %v2765
  %v2768 = vunpack.c.l.s4 1966171168
  %v2769 = vunpack.c.0.s8 %v2768
  %v2770 = vlaneseq
  %v2771 = vshrl.u32 %v2770, 7
  %v2772 = vsub.s32 %v2769, %v2771
  %v2773 = vrot.slane %v2745, %v2772
  %v2774 = vcombine.low %v2752, %v2759
  %v2775 = vcombine.low %v2766, %v2773
  %v2777 = vunpack.c.l.s4 1966171168
  %v2778 = vunpack.c.0.s8 %v2777
  %v2779 = vlaneseq
  %v2780 = vshrl.u32 %v2779, 7
  %v2781 = vsub.s32 %v2778, %v2780
  %v2782 = vrot.slane %v2774, %v2781
  %v2784 = vunpack.c.l.s4 1966171168
  %v2785 = vunpack.c.0.s8 %v2784
  %v2786 = vlaneseq
  %v2787 = vshrl.u32 %v2786, 7
  %v2788 = vsub.s32 %v2785, %v2787
  %v2789 = vrot.slane %v2775, %v2788
  %v2790 = vcombine.low %v2782, %v2789
  %v2791 = vcombine.low %v2030, %v2044
  %v2792 = vcombine.low %v2052, %v2054
  %v2793 = vcombine.low %v2037, %v2051
  %v2794 = vcombine.low %v2053, %v2055
  %v2796 = vunpack.c.l.s4 1966171168
  %v2797 = vunpack.c.0.s8 %v2796
  %v2798 = vlaneseq
  %v2799 = vshrl.u32 %v2798, 7
  %v2800 = vsub.s32 %v2797, %v2799
  %v2801 = vrot.slane %v2791, %v2800
  %v2803 = vunpack.c.l.s4 1966171168
  %v2804 = vunpack.c.0.s8 %v2803
  %v2805 = vlaneseq
  %v2806 = vshrl.u32 %v2805, 7
  %v2807 = vsub.s32 %v2804, %v2806
  %v2808 = vrot.slane %v2792, %v2807
  %v2810 = vunpack.c.l.s4 1966171168
  %v2811 = vunpack.c.0.s8 %v2810
  %v2812 = vlaneseq
  %v2813 = vshrl.u32 %v2812, 7
  %v2814 = vsub.s32 %v2811, %v2813
  %v2815 = vrot.slane %v2793, %v2814
  %v2817 = vunpack.c.l.s4 1966171168
  %v2818 = vunpack.c.0.s8 %v2817
  %v2819 = vlaneseq
  %v2820 = vshrl.u32 %v2819, 7
  %v2821 = vsub.s32 %v2818, %v2820
  %v2822 = vrot.slane %v2794, %v2821
  %v2823 = vcombine.low %v2801, %v2808
  %v2824 = vcombine.low %v2815, %v2822
  %v2826 = vunpack.c.l.s4 1966171168
  %v2827 = vunpack.c.0.s8 %v2826
  %v2828 = vlaneseq
  %v2829 = vshrl.u32 %v2828, 7
  %v2830 = vsub.s32 %v2827, %v2829
  %v2831 = vrot.slane %v2823, %v2830
  %v2833 = vunpack.c.l.s4 1966171168
  %v2834 = vunpack.c.0.s8 %v2833
  %v2835 = vlaneseq
  %v2836 = vshrl.u32 %v2835, 7
  %v2837 = vsub.s32 %v2834, %v2836
  %v2838 = vrot.slane %v2824, %v2837
  %v2839 = vcombine.low %v2831, %v2838
  %v2840 = vcombine.low %v2079, %v2093
  %v2841 = vcombine.low %v2101, %v2103
  %v2842 = vcombine.low %v2086, %v2100
  %v2843 = vcombine.low %v2102, %v2104
  %v2845 = vunpack.c.l.s4 1966171168
  %v2846 = vunpack.c.0.s8 %v2845
  %v2847 = vlaneseq
  %v2848 = vshrl.u32 %v2847, 7
  %v2849 = vsub.s32 %v2846, %v2848
  %v2850 = vrot.slane %v2840, %v2849
  %v2852 = vunpack.c.l.s4 1966171168
  %v2853 = vunpack.c.0.s8 %v2852
  %v2854 = vlaneseq
  %v2855 = vshrl.u32 %v2854, 7
  %v2856 = vsub.s32 %v2853, %v2855
  %v2857 = vrot.slane %v2841, %v2856
  %v2859 = vunpack.c.l.s4 1966171168
  %v2860 = vunpack.c.0.s8 %v2859
  %v2861 = vlaneseq
  %v2862 = vshrl.u32 %v2861, 7
  %v2863 = vsub.s32 %v2860, %v2862
  %v2864 = vrot.slane %v2842, %v2863
  %v2866 = vunpack.c.l.s4 1966171168
  %v2867 = vunpack.c.0.s8 %v2866
  %v2868 = vlaneseq
  %v2869 = vshrl.u32 %v2868, 7
  %v2870 = vsub.s32 %v2867, %v2869
  %v2871 = vrot.slane %v2843, %v2870
  %v2872 = vcombine.low %v2850, %v2857
  %v2873 = vcombine.low %v2864, %v2871
  %v2875 = vunpack.c.l.s4 1966171168
  %v2876 = vunpack.c.0.s8 %v2875
  %v2877 = vlaneseq
  %v2878 = vshrl.u32 %v2877, 7
  %v2879 = vsub.s32 %v2876, %v2878
  %v2880 = vrot.slane %v2872, %v2879
  %v2882 = vunpack.c.l.s4 1966171168
  %v2883 = vunpack.c.0.s8 %v2882
  %v2884 = vlaneseq
  %v2885 = vshrl.u32 %v2884, 7
  %v2886 = vsub.s32 %v2883, %v2885
  %v2887 = vrot.slane %v2873, %v2886
  %v2888 = vcombine.low %v2880, %v2887
  %v2889 = vcombine.low %v2128, %v2142
  %v2890 = vcombine.low %v2150, %v2152
  %v2891 = vcombine.low %v2135, %v2149
  %v2892 = vcombine.low %v2151, %v2153
  %v2894 = vunpack.c.l.s4 1966171168
  %v2895 = vunpack.c.0.s8 %v2894
  %v2896 = vlaneseq
  %v2897 = vshrl.u32 %v2896, 7
  %v2898 = vsub.s32 %v2895, %v2897
  %v2899 = vrot.slane %v2889, %v2898
  %v2901 = vunpack.c.l.s4 1966171168
  %v2902 = vunpack.c.0.s8 %v2901
  %v2903 = vlaneseq
  %v2904 = vshrl.u32 %v2903, 7
  %v2905 = vsub.s32 %v2902, %v2904
  %v2906 = vrot.slane %v2890, %v2905
  %v2908 = vunpack.c.l.s4 1966171168
  %v2909 = vunpack.c.0.s8 %v2908
  %v2910 = vlaneseq
  %v2911 = vshrl.u32 %v2910, 7
  %v2912 = vsub.s32 %v2909, %v2911
  %v2913 = vrot.slane %v2891, %v2912
  %v2915 = vunpack.c.l.s4 1966171168
  %v2916 = vunpack.c.0.s8 %v2915
  %v2917 = vlaneseq
  %v2918 = vshrl.u32 %v2917, 7
  %v2919 = vsub.s32 %v2916, %v2918
  %v2920 = vrot.slane %v2892, %v2919
  %v2921 = vcombine.low %v2899, %v2906
  %v2922 = vcombine.low %v2913, %v2920
  %v2924 = vunpack.c.l.s4 1966171168
  %v2925 = vunpack.c.0.s8 %v2924
  %v2926 = vlaneseq
  %v2927 = vshrl.u32 %v2926, 7
  %v2928 = vsub.s32 %v2925, %v2927
  %v2929 = vrot.slane %v2921, %v2928
  %v2931 = vunpack.c.l.s4 1966171168
  %v2932 = vunpack.c.0.s8 %v2931
  %v2933 = vlaneseq
  %v2934 = vshrl.u32 %v2933, 7
  %v2935 = vsub.s32 %v2932, %v2934
  %v2936 = vrot.slane %v2922, %v2935
  %v2937 = vcombine.low %v2929, %v2936
  %v2938 = vcombine.low %v2177, %v2191
  %v2939 = vcombine.low %v2199, %v2201
  %v2940 = vcombine.low %v2184, %v2198
  %v2941 = vcombine.low %v2200, %v2202
  %v2943 = vunpack.c.l.s4 1966171168
  %v2944 = vunpack.c.0.s8 %v2943
  %v2945 = vlaneseq
  %v2946 = vshrl.u32 %v2945, 7
  %v2947 = vsub.s32 %v2944, %v2946
  %v2948 = vrot.slane %v2938, %v2947
  %v2950 = vunpack.c.l.s4 1966171168
  %v2951 = vunpack.c.0.s8 %v2950
  %v2952 = vlaneseq
  %v2953 = vshrl.u32 %v2952, 7
  %v2954 = vsub.s32 %v2951, %v2953
  %v2955 = vrot.slane %v2939, %v2954
  %v2957 = vunpack.c.l.s4 1966171168
  %v2958 = vunpack.c.0.s8 %v2957
  %v2959 = vlaneseq
  %v2960 = vshrl.u32 %v2959, 7
  %v2961 = vsub.s32 %v2958, %v2960
  %v2962 = vrot.slane %v2940, %v2961
  %v2964 = vunpack.c.l.s4 1966171168
  %v2965 = vunpack.c.0.s8 %v2964
  %v2966 = vlaneseq
  %v2967 = vshrl.u32 %v2966, 7
  %v2968 = vsub.s32 %v2965, %v2967
  %v2969 = vrot.slane %v2941, %v2968
  %v2970 = vcombine.low %v2948, %v2955
  %v2971 = vcombine.low %v2962, %v2969
  %v2973 = vunpack.c.l.s4 1966171168
  %v2974 = vunpack.c.0.s8 %v2973
  %v2975 = vlaneseq
  %v2976 = vshrl.u32 %v2975, 7
  %v2977 = vsub.s32 %v2974, %v2976
  %v2978 = vrot.slane %v2970, %v2977
  %v2980 = vunpack.c.l.s4 1966171168
  %v2981 = vunpack.c.0.s8 %v2980
  %v2982 = vlaneseq
  %v2983 = vshrl.u32 %v2982, 7
  %v2984 = vsub.s32 %v2981, %v2983
  %v2985 = vrot.slane %v2971, %v2984
  %v2986 = vcombine.low %v2978, %v2985
  %v2987 = vcombine.low %v2226, %v2240
  %v2988 = vcombine.low %v2248, %v2250
  %v2989 = vcombine.low %v2233, %v2247
  %v2990 = vcombine.low %v2249, %v2251
  %v2992 = vunpack.c.l.s4 1966171168
  %v2993 = vunpack.c.0.s8 %v2992
  %v2994 = vlaneseq
  %v2995 = vshrl.u32 %v2994, 7
  %v2996 = vsub.s32 %v2993, %v2995
  %v2997 = vrot.slane %v2987, %v2996
  %v2999 = vunpack.c.l.s4 1966171168
  %v3000 = vunpack.c.0.s8 %v2999
  %v3001 = vlaneseq
  %v3002 = vshrl.u32 %v3001, 7
  %v3003 = vsub.s32 %v3000, %v3002
  %v3004 = vrot.slane %v2988, %v3003
  %v3006 = vunpack.c.l.s4 1966171168
  %v3007 = vunpack.c.0.s8 %v3006
  %v3008 = vlaneseq
  %v3009 = vshrl.u32 %v3008, 7
  %v3010 = vsub.s32 %v3007, %v3009
  %v3011 = vrot.slane %v2989, %v3010
  %v3013 = vunpack.c.l.s4 1966171168
  %v3014 = vunpack.c.0.s8 %v3013
  %v3015 = vlaneseq
  %v3016 = vshrl.u32 %v3015, 7
  %v3017 = vsub.s32 %v3014, %v3016
  %v3018 = vrot.slane %v2990, %v3017
  %v3019 = vcombine.low %v2997, %v3004
  %v3020 = vcombine.low %v3011, %v3018
  %v3022 = vunpack.c.l.s4 1966171168
  %v3023 = vunpack.c.0.s8 %v3022
  %v3024 = vlaneseq
  %v3025 = vshrl.u32 %v3024, 7
  %v3026 = vsub.s32 %v3023, %v3025
  %v3027 = vrot.slane %v3019, %v3026
  %v3029 = vunpack.c.l.s4 1966171168
  %v3030 = vunpack.c.0.s8 %v3029
  %v3031 = vlaneseq
  %v3032 = vshrl.u32 %v3031, 7
  %v3033 = vsub.s32 %v3030, %v3032
  %v3034 = vrot.slane %v3020, %v3033
  %v3035 = vcombine.low %v3027, %v3034
  %v3036 = vcombine.low %v2275, %v2289
  %v3037 = vcombine.low %v2297, %v2299
  %v3038 = vcombine.low %v2282, %v2296
  %v3039 = vcombine.low %v2298, %v2300
  %v3041 = vunpack.c.l.s4 1966171168
  %v3042 = vunpack.c.0.s8 %v3041
  %v3043 = vlaneseq
  %v3044 = vshrl.u32 %v3043, 7
  %v3045 = vsub.s32 %v3042, %v3044
  %v3046 = vrot.slane %v3036, %v3045
  %v3048 = vunpack.c.l.s4 1966171168
  %v3049 = vunpack.c.0.s8 %v3048
  %v3050 = vlaneseq
  %v3051 = vshrl.u32 %v3050, 7
  %v3052 = vsub.s32 %v3049, %v3051
  %v3053 = vrot.slane %v3037, %v3052
  %v3055 = vunpack.c.l.s4 1966171168
  %v3056 = vunpack.c.0.s8 %v3055
  %v3057 = vlaneseq
  %v3058 = vshrl.u32 %v3057, 7
  %v3059 = vsub.s32 %v3056, %v3058
  %v3060 = vrot.slane %v3038, %v3059
  %v3062 = vunpack.c.l.s4 1966171168
  %v3063 = vunpack.c.0.s8 %v3062
  %v3064 = vlaneseq
  %v3065 = vshrl.u32 %v3064, 7
  %v3066 = vsub.s32 %v3063, %v3065
  %v3067 = vrot.slane %v3039, %v3066
  %v3068 = vcombine.low %v3046, %v3053
  %v3069 = vcombine.low %v3060, %v3067
  %v3071 = vunpack.c.l.s4 1966171168
  %v3072 = vunpack.c.0.s8 %v3071
  %v3073 = vlaneseq
  %v3074 = vshrl.u32 %v3073, 7
  %v3075 = vsub.s32 %v3072, %v3074
  %v3076 = vrot.slane %v3068, %v3075
  %v3078 = vunpack.c.l.s4 1966171168
  %v3079 = vunpack.c.0.s8 %v3078
  %v3080 = vlaneseq
  %v3081 = vshrl.u32 %v3080, 7
  %v3082 = vsub.s32 %v3079, %v3081
  %v3083 = vrot.slane %v3069, %v3082
  %v3084 = vcombine.low %v3076, %v3083
  %v3085 = vcombine.low %v2324, %v2338
  %v3086 = vcombine.low %v2346, %v2348
  %v3087 = vcombine.low %v2331, %v2345
  %v3088 = vcombine.low %v2347, %v2349
  %v3090 = vunpack.c.l.s4 1966171168
  %v3091 = vunpack.c.0.s8 %v3090
  %v3092 = vlaneseq
  %v3093 = vshrl.u32 %v3092, 7
  %v3094 = vsub.s32 %v3091, %v3093
  %v3095 = vrot.slane %v3085, %v3094
  %v3097 = vunpack.c.l.s4 1966171168
  %v3098 = vunpack.c.0.s8 %v3097
  %v3099 = vlaneseq
  %v3100 = vshrl.u32 %v3099, 7
  %v3101 = vsub.s32 %v3098, %v3100
  %v3102 = vrot.slane %v3086, %v3101
  %v3104 = vunpack.c.l.s4 1966171168
  %v3105 = vunpack.c.0.s8 %v3104
  %v3106 = vlaneseq
  %v3107 = vshrl.u32 %v3106, 7
  %v3108 = vsub.s32 %v3105, %v3107
  %v3109 = vrot.slane %v3087, %v3108
  %v3111 = vunpack.c.l.s4 1966171168
  %v3112 = vunpack.c.0.s8 %v3111
  %v3113 = vlaneseq
  %v3114 = vshrl.u32 %v3113, 7
  %v3115 = vsub.s32 %v3112, %v3114
  %v3116 = vrot.slane %v3088, %v3115
  %v3117 = vcombine.low %v3095, %v3102
  %v3118 = vcombine.low %v3109, %v3116
  %v3120 = vunpack.c.l.s4 1966171168
  %v3121 = vunpack.c.0.s8 %v3120
  %v3122 = vlaneseq
  %v3123 = vshrl.u32 %v3122, 7
  %v3124 = vsub.s32 %v3121, %v3123
  %v3125 = vrot.slane %v3117, %v3124
  %v3127 = vunpack.c.l.s4 1966171168
  %v3128 = vunpack.c.0.s8 %v3127
  %v3129 = vlaneseq
  %v3130 = vshrl.u32 %v3129, 7
  %v3131 = vsub.s32 %v3128, %v3130
  %v3132 = vrot.slane %v3118, %v3131
  %v3133 = vcombine.low %v3125, %v3132
  %v3134 = vcombine.low %v2373, %v2387
  %v3135 = vcombine.low %v2395, %v2397
  %v3136 = vcombine.low %v2380, %v2394
  %v3137 = vcombine.low %v2396, %v2398
  %v3139 = vunpack.c.l.s4 1966171168
  %v3140 = vunpack.c.0.s8 %v3139
  %v3141 = vlaneseq
  %v3142 = vshrl.u32 %v3141, 7
  %v3143 = vsub.s32 %v3140, %v3142
  %v3144 = vrot.slane %v3134, %v3143
  %v3146 = vunpack.c.l.s4 1966171168
  %v3147 = vunpack.c.0.s8 %v3146
  %v3148 = vlaneseq
  %v3149 = vshrl.u32 %v3148, 7
  %v3150 = vsub.s32 %v3147, %v3149
  %v3151 = vrot.slane %v3135, %v3150
  %v3153 = vunpack.c.l.s4 1966171168
  %v3154 = vunpack.c.0.s8 %v3153
  %v3155 = vlaneseq
  %v3156 = vshrl.u32 %v3155, 7
  %v3157 = vsub.s32 %v3154, %v3156
  %v3158 = vrot.slane %v3136, %v3157
  %v3160 = vunpack.c.l.s4 1966171168
  %v3161 = vunpack.c.0.s8 %v3160
  %v3162 = vlaneseq
  %v3163 = vshrl.u32 %v3162, 7
  %v3164 = vsub.s32 %v3161, %v3163
  %v3165 = vrot.slane %v3137, %v3164
  %v3166 = vcombine.low %v3144, %v3151
  %v3167 = vcombine.low %v3158, %v3165
  %v3169 = vunpack.c.l.s4 1966171168
  %v3170 = vunpack.c.0.s8 %v3169
  %v3171 = vlaneseq
  %v3172 = vshrl.u32 %v3171, 7
  %v3173 = vsub.s32 %v3170, %v3172
  %v3174 = vrot.slane %v3166, %v3173
  %v3176 = vunpack.c.l.s4 1966171168
  %v3177 = vunpack.c.0.s8 %v3176
  %v3178 = vlaneseq
  %v3179 = vshrl.u32 %v3178, 7
  %v3180 = vsub.s32 %v3177, %v3179
  %v3181 = vrot.slane %v3167, %v3180
  %v3182 = vcombine.low %v3174, %v3181
  %v3183 = vcombine.low %v2422, %v2436
  %v3184 = vcombine.low %v2444, %v2446
  %v3185 = vcombine.low %v2429, %v2443
  %v3186 = vcombine.low %v2445, %v2447
  %v3188 = vunpack.c.l.s4 1966171168
  %v3189 = vunpack.c.0.s8 %v3188
  %v3190 = vlaneseq
  %v3191 = vshrl.u32 %v3190, 7
  %v3192 = vsub.s32 %v3189, %v3191
  %v3193 = vrot.slane %v3183, %v3192
  %v3195 = vunpack.c.l.s4 1966171168
  %v3196 = vunpack.c.0.s8 %v3195
  %v3197 = vlaneseq
  %v3198 = vshrl.u32 %v3197, 7
  %v3199 = vsub.s32 %v3196, %v3198
  %v3200 = vrot.slane %v3184, %v3199
  %v3202 = vunpack.c.l.s4 1966171168
  %v3203 = vunpack.c.0.s8 %v3202
  %v3204 = vlaneseq
  %v3205 = vshrl.u32 %v3204, 7
  %v3206 = vsub.s32 %v3203, %v3205
  %v3207 = vrot.slane %v3185, %v3206
  %v3209 = vunpack.c.l.s4 1966171168
  %v3210 = vunpack.c.0.s8 %v3209
  %v3211 = vlaneseq
  %v3212 = vshrl.u32 %v3211, 7
  %v3213 = vsub.s32 %v3210, %v3212
  %v3214 = vrot.slane %v3186, %v3213
  %v3215 = vcombine.low %v3193, %v3200
  %v3216 = vcombine.low %v3207, %v3214
  %v3218 = vunpack.c.l.s4 1966171168
  %v3219 = vunpack.c.0.s8 %v3218
  %v3220 = vlaneseq
  %v3221 = vshrl.u32 %v3220, 7
  %v3222 = vsub.s32 %v3219, %v3221
  %v3223 = vrot.slane %v3215, %v3222
  %v3225 = vunpack.c.l.s4 1966171168
  %v3226 = vunpack.c.0.s8 %v3225
  %v3227 = vlaneseq
  %v3228 = vshrl.u32 %v3227, 7
  %v3229 = vsub.s32 %v3226, %v3228
  %v3230 = vrot.slane %v3216, %v3229
  %v3231 = vcombine.low %v3223, %v3230
  %v3232 = vcombine.low %v2471, %v2485
  %v3233 = vcombine.low %v2493, %v2495
  %v3234 = vcombine.low %v2478, %v2492
  %v3235 = vcombine.low %v2494, %v2496
  %v3237 = vunpack.c.l.s4 1966171168
  %v3238 = vunpack.c.0.s8 %v3237
  %v3239 = vlaneseq
  %v3240 = vshrl.u32 %v3239, 7
  %v3241 = vsub.s32 %v3238, %v3240
  %v3242 = vrot.slane %v3232, %v3241
  %v3244 = vunpack.c.l.s4 1966171168
  %v3245 = vunpack.c.0.s8 %v3244
  %v3246 = vlaneseq
  %v3247 = vshrl.u32 %v3246, 7
  %v3248 = vsub.s32 %v3245, %v3247
  %v3249 = vrot.slane %v3233, %v3248
  %v3251 = vunpack.c.l.s4 1966171168
  %v3252 = vunpack.c.0.s8 %v3251
  %v3253 = vlaneseq
  %v3254 = vshrl.u32 %v3253, 7
  %v3255 = vsub.s32 %v3252, %v3254
  %v3256 = vrot.slane %v3234, %v3255
  %v3258 = vunpack.c.l.s4 1966171168
  %v3259 = vunpack.c.0.s8 %v3258
  %v3260 = vlaneseq
  %v3261 = vshrl.u32 %v3260, 7
  %v3262 = vsub.s32 %v3259, %v3261
  %v3263 = vrot.slane %v3235, %v3262
  %v3264 = vcombine.low %v3242, %v3249
  %v3265 = vcombine.low %v3256, %v3263
  %v3267 = vunpack.c.l.s4 1966171168
  %v3268 = vunpack.c.0.s8 %v3267
  %v3269 = vlaneseq
  %v3270 = vshrl.u32 %v3269, 7
  %v3271 = vsub.s32 %v3268, %v3270
  %v3272 = vrot.slane %v3264, %v3271
  %v3274 = vunpack.c.l.s4 1966171168
  %v3275 = vunpack.c.0.s8 %v3274
  %v3276 = vlaneseq
  %v3277 = vshrl.u32 %v3276, 7
  %v3278 = vsub.s32 %v3275, %v3277
  %v3279 = vrot.slane %v3265, %v3278
  %v3280 = vcombine.low %v3272, %v3279
  %v3281 = vcombine.low %v2520, %v2534
  %v3282 = vcombine.low %v2542, %v2544
  %v3283 = vcombine.low %v2527, %v2541
  %v3284 = vcombine.low %v2543, %v2545
  %v3286 = vunpack.c.l.s4 1966171168
  %v3287 = vunpack.c.0.s8 %v3286
  %v3288 = vlaneseq
  %v3289 = vshrl.u32 %v3288, 7
  %v3290 = vsub.s32 %v3287, %v3289
  %v3291 = vrot.slane %v3281, %v3290
  %v3293 = vunpack.c.l.s4 1966171168
  %v3294 = vunpack.c.0.s8 %v3293
  %v3295 = vlaneseq
  %v3296 = vshrl.u32 %v3295, 7
  %v3297 = vsub.s32 %v3294, %v3296
  %v3298 = vrot.slane %v3282, %v3297
  %v3300 = vunpack.c.l.s4 1966171168
  %v3301 = vunpack.c.0.s8 %v3300
  %v3302 = vlaneseq
  %v3303 = vshrl.u32 %v3302, 7
  %v3304 = vsub.s32 %v3301, %v3303
  %v3305 = vrot.slane %v3283, %v3304
  %v3307 = vunpack.c.l.s4 1966171168
  %v3308 = vunpack.c.0.s8 %v3307
  %v3309 = vlaneseq
  %v3310 = vshrl.u32 %v3309, 7
  %v3311 = vsub.s32 %v3308, %v3310
  %v3312 = vrot.slane %v3284, %v3311
  %v3313 = vcombine.low %v3291, %v3298
  %v3314 = vcombine.low %v3305, %v3312
  %v3316 = vunpack.c.l.s4 1966171168
  %v3317 = vunpack.c.0.s8 %v3316
  %v3318 = vlaneseq
  %v3319 = vshrl.u32 %v3318, 7
  %v3320 = vsub.s32 %v3317, %v3319
  %v3321 = vrot.slane %v3313, %v3320
  %v3323 = vunpack.c.l.s4 1966171168
  %v3324 = vunpack.c.0.s8 %v3323
  %v3325 = vlaneseq
  %v3326 = vshrl.u32 %v3325, 7
  %v3327 = vsub.s32 %v3324, %v3326
  %v3328 = vrot.slane %v3314, %v3327
  %v3329 = vcombine.low %v3321, %v3328
  %v3330 = vcombine.low %v2569, %v2583
  %v3331 = vcombine.low %v2591, %v2593
  %v3332 = vcombine.low %v2576, %v2590
  %v3333 = vcombine.low %v2592, %v2594
  %v3335 = vunpack.c.l.s4 1966171168
  %v3336 = vunpack.c.0.s8 %v3335
  %v3337 = vlaneseq
  %v3338 = vshrl.u32 %v3337, 7
  %v3339 = vsub.s32 %v3336, %v3338
  %v3340 = vrot.slane %v3330, %v3339
  %v3342 = vunpack.c.l.s4 1966171168
  %v3343 = vunpack.c.0.s8 %v3342
  %v3344 = vlaneseq
  %v3345 = vshrl.u32 %v3344, 7
  %v3346 = vsub.s32 %v3343, %v3345
  %v3347 = vrot.slane %v3331, %v3346
  %v3349 = vunpack.c.l.s4 1966171168
  %v3350 = vunpack.c.0.s8 %v3349
  %v3351 = vlaneseq
  %v3352 = vshrl.u32 %v3351, 7
  %v3353 = vsub.s32 %v3350, %v3352
  %v3354 = vrot.slane %v3332, %v3353
  %v3356 = vunpack.c.l.s4 1966171168
  %v3357 = vunpack.c.0.s8 %v3356
  %v3358 = vlaneseq
  %v3359 = vshrl.u32 %v3358, 7
  %v3360 = vsub.s32 %v3357, %v3359
  %v3361 = vrot.slane %v3333, %v3360
  %v3362 = vcombine.low %v3340, %v3347
  %v3363 = vcombine.low %v3354, %v3361
  %v3365 = vunpack.c.l.s4 1966171168
  %v3366 = vunpack.c.0.s8 %v3365
  %v3367 = vlaneseq
  %v3368 = vshrl.u32 %v3367, 7
  %v3369 = vsub.s32 %v3366, %v3368
  %v3370 = vrot.slane %v3362, %v3369
  %v3372 = vunpack.c.l.s4 1966171168
  %v3373 = vunpack.c.0.s8 %v3372
  %v3374 = vlaneseq
  %v3375 = vshrl.u32 %v3374, 7
  %v3376 = vsub.s32 %v3373, %v3375
  %v3377 = vrot.slane %v3363, %v3376
  %v3378 = vcombine.low %v3370, %v3377
  %v3379 = vcombine.low %v2618, %v2632
  %v3380 = vcombine.low %v2640, %v2642
  %v3381 = vcombine.low %v2625, %v2639
  %v3382 = vcombine.low %v2641, %v2643
  %v3384 = vunpack.c.l.s4 1966171168
  %v3385 = vunpack.c.0.s8 %v3384
  %v3386 = vlaneseq
  %v3387 = vshrl.u32 %v3386, 7
  %v3388 = vsub.s32 %v3385, %v3387
  %v3389 = vrot.slane %v3379, %v3388
  %v3391 = vunpack.c.l.s4 1966171168
  %v3392 = vunpack.c.0.s8 %v3391
  %v3393 = vlaneseq
  %v3394 = vshrl.u32 %v3393, 7
  %v3395 = vsub.s32 %v3392, %v3394
  %v3396 = vrot.slane %v3380, %v3395
  %v3398 = vunpack.c.l.s4 1966171168
  %v3399 = vunpack.c.0.s8 %v3398
  %v3400 = vlaneseq
  %v3401 = vshrl.u32 %v3400, 7
  %v3402 = vsub.s32 %v3399, %v3401
  %v3403 = vrot.slane %v3381, %v3402
  %v3405 = vunpack.c.l.s4 1966171168
  %v3406 = vunpack.c.0.s8 %v3405
  %v3407 = vlaneseq
  %v3408 = vshrl.u32 %v3407, 7
  %v3409 = vsub.s32 %v3406, %v3408
  %v3410 = vrot.slane %v3382, %v3409
  %v3411 = vcombine.low %v3389, %v3396
  %v3412 = vcombine.low %v3403, %v3410
  %v3414 = vunpack.c.l.s4 1966171168
  %v3415 = vunpack.c.0.s8 %v3414
  %v3416 = vlaneseq
  %v3417 = vshrl.u32 %v3416, 7
  %v3418 = vsub.s32 %v3415, %v3417
  %v3419 = vrot.slane %v3411, %v3418
  %v3421 = vunpack.c.l.s4 1966171168
  %v3422 = vunpack.c.0.s8 %v3421
  %v3423 = vlaneseq
  %v3424 = vshrl.u32 %v3423, 7
  %v3425 = vsub.s32 %v3422, %v3424
  %v3426 = vrot.slane %v3412, %v3425
  %v3427 = vcombine.low %v3419, %v3426
  %3428 = vset.pattern.permute.xlu0 0
  %3429 = vperm.xlu0 %3428, %v2692
  %v3430 = vpop.permute.xlu0 %3429
  %3431 = vset.pattern.permute.xlu0 0
  %3432 = vperm.xlu0 %3431, %v2741
  %v3433 = vpop.permute.xlu0 %3432
  %3434 = vset.pattern.permute.xlu0 0
  %3435 = vperm.xlu0 %3434, %v2790
  %v3436 = vpop.permute.xlu0 %3435
  %3437 = vset.pattern.permute.xlu0 0
  %3438 = vperm.xlu0 %3437, %v2839
  %v3439 = vpop.permute.xlu0 %3438
  %3440 = vset.pattern.permute.xlu0 0
  %3441 = vperm.xlu0 %3440, %v2888
  %v3442 = vpop.permute.xlu0 %3441
  %3443 = vset.pattern.permute.xlu0 0
  %3444 = vperm.xlu0 %3443, %v2937
  %v3445 = vpop.permute.xlu0 %3444
  %3446 = vset.pattern.permute.xlu0 0
  %3447 = vperm.xlu0 %3446, %v2986
  %v3448 = vpop.permute.xlu0 %3447
  %3449 = vset.pattern.permute.xlu0 0
  %3450 = vperm.xlu0 %3449, %v3035
  %v3451 = vpop.permute.xlu0 %3450
  %3452 = vset.pattern.permute.xlu0 0
  %3453 = vperm.xlu0 %3452, %v3084
  %v3454 = vpop.permute.xlu0 %3453
  %3455 = vset.pattern.permute.xlu0 0
  %3456 = vperm.xlu0 %3455, %v3133
  %v3457 = vpop.permute.xlu0 %3456
  %3458 = vset.pattern.permute.xlu0 0
  %3459 = vperm.xlu0 %3458, %v3182
  %v3460 = vpop.permute.xlu0 %3459
  %3461 = vset.pattern.permute.xlu0 0
  %3462 = vperm.xlu0 %3461, %v3231
  %v3463 = vpop.permute.xlu0 %3462
  %3464 = vset.pattern.permute.xlu0 0
  %3465 = vperm.xlu0 %3464, %v3280
  %v3466 = vpop.permute.xlu0 %3465
  %3467 = vset.pattern.permute.xlu0 0
  %3468 = vperm.xlu0 %3467, %v3329
  %v3469 = vpop.permute.xlu0 %3468
  %3470 = vset.pattern.permute.xlu0 0
  %3471 = vperm.xlu0 %3470, %v3378
  %v3472 = vpop.permute.xlu0 %3471
  %3473 = vset.pattern.permute.xlu0 0
  %3474 = vperm.xlu0 %3473, %v3427
  %v3475 = vpop.permute.xlu0 %3474
  %v3476 = vlaneseq
  %v3477 = vshrl.u32 %v3476, 7
  %v3478 = vsub.s32 %v1617, %v3477
  %v3479 = vrot.slane %v3430, %v3478
  %v3480 = vlaneseq
  %v3481 = vshrl.u32 %v3480, 7
  %v3482 = vsub.s32 %v1622, %v3481
  %v3483 = vrot.slane %v3433, %v3482
  %v3484 = vsel %vm1627, %v3483, %v3479
  %v3485 = vlaneseq
  %v3486 = vshrl.u32 %v3485, 7
  %v3487 = vsub.s32 %v1629, %v3486
  %v3488 = vrot.slane %v3436, %v3487
  %v3489 = vsel %vm1634, %v3488, %v3484
  %v3490 = vlaneseq
  %v3491 = vshrl.u32 %v3490, 7
  %v3492 = vsub.s32 %v1636, %v3491
  %v3493 = vrot.slane %v3439, %v3492
  %v3494 = vsel %vm1641, %v3493, %v3489
  %v3495 = vlaneseq
  %v3496 = vshrl.u32 %v3495, 7
  %v3497 = vsub.s32 %v1643, %v3496
  %v3498 = vrot.slane %v3442, %v3497
  %v3499 = vsel %vm1648, %v3498, %v3494
  %v3500 = vlaneseq
  %v3501 = vshrl.u32 %v3500, 7
  %v3502 = vsub.s32 %v1650, %v3501
  %v3503 = vrot.slane %v3445, %v3502
  %v3504 = vsel %vm1655, %v3503, %v3499
  %v3505 = vlaneseq
  %v3506 = vshrl.u32 %v3505, 7
  %v3507 = vsub.s32 %v1657, %v3506
  %v3508 = vrot.slane %v3448, %v3507
  %v3509 = vsel %vm1662, %v3508, %v3504
  %v3510 = vlaneseq
  %v3511 = vshrl.u32 %v3510, 7
  %v3512 = vsub.s32 %v1664, %v3511
  %v3513 = vrot.slane %v3451, %v3512
  %v3514 = vsel %vm1669, %v3513, %v3509
  %v3515 = vlaneseq
  %v3516 = vshrl.u32 %v3515, 7
  %v3517 = vsub.s32 %v1671, %v3516
  %v3518 = vrot.slane %v3454, %v3517
  %v3519 = vsel %vm1676, %v3518, %v3514
  %v3520 = vlaneseq
  %v3521 = vshrl.u32 %v3520, 7
  %v3522 = vsub.s32 %v1678, %v3521
  %v3523 = vrot.slane %v3457, %v3522
  %v3524 = vsel %vm1683, %v3523, %v3519
  %v3525 = vlaneseq
  %v3526 = vshrl.u32 %v3525, 7
  %v3527 = vsub.s32 %v1685, %v3526
  %v3528 = vrot.slane %v3460, %v3527
  %v3529 = vsel %vm1690, %v3528, %v3524
  %v3530 = vlaneseq
  %v3531 = vshrl.u32 %v3530, 7
  %v3532 = vsub.s32 %v1692, %v3531
  %v3533 = vrot.slane %v3463, %v3532
  %v3534 = vsel %vm1697, %v3533, %v3529
  %v3535 = vlaneseq
  %v3536 = vshrl.u32 %v3535, 7
  %v3537 = vsub.s32 %v1699, %v3536
  %v3538 = vrot.slane %v3466, %v3537
  %v3539 = vsel %vm1704, %v3538, %v3534
  %v3540 = vlaneseq
  %v3541 = vshrl.u32 %v3540, 7
  %v3542 = vsub.s32 %v1706, %v3541
  %v3543 = vrot.slane %v3469, %v3542
  %v3544 = vsel %vm1711, %v3543, %v3539
  %v3545 = vlaneseq
  %v3546 = vshrl.u32 %v3545, 7
  %v3547 = vsub.s32 %v1713, %v3546
  %v3548 = vrot.slane %v3472, %v3547
  %v3549 = vsel %vm1718, %v3548, %v3544
  %v3550 = vlaneseq
  %v3551 = vshrl.u32 %v3550, 7
  %v3552 = vsub.s32 %v1720, %v3551
  %v3553 = vrot.slane %v3475, %v3552
  %v3554 = vsel %vm1725, %v3553, %v3549
  %v3556 = vunpack.c.l.s4 1966171168
  %v3557 = vunpack.c.0.s8 %v3556
  %v3558 = vlaneseq
  %v3559 = vshrl.u32 %v3558, 7
  %v3560 = vsub.s32 %v3557, %v3559
  %v3561 = vrot.slane %v3554, %v3560
  %v3563 = vunpack.c.l.s4 1966171168
  %v3564 = vunpack.c.0.s8 %v3563
  %v3565 = vlaneseq
  %v3566 = vshrl.u32 %v3565, 7
  %v3567 = vsub.s32 %v3564, %v3566
  %v3568 = vrot.slane %v3561, %v3567
  %v3570 = vsub.f32 %v1743, %v3568
  %v3571 = vlaneseq
  %v3572 = vshrl.u32 %v3571, 7
  %v3573 = vsub.s32 0, %v3572
  %v3574 = vrot.slane %v1742, %v3573
  %3576 = vbcast.lane.b32.xlu0 %v3574, 256
  %v3577 = vpop.permute.xlu0 %3576
  %s3579 = sor.u32 256, 8
  %3580 = vbcast.lane.b32.xlu0 %v3574, %s3579
  %v3581 = vpop.permute.xlu0 %3580
  %s3583 = sor.u32 256, 16
  %3584 = vbcast.lane.b32.xlu0 %v3574, %s3583
  %v3585 = vpop.permute.xlu0 %3584
  %s3587 = sor.u32 256, 24
  %3588 = vbcast.lane.b32.xlu0 %v3574, %s3587
  %v3589 = vpop.permute.xlu0 %3588
  %s3591 = sor.u32 256, 32
  %3592 = vbcast.lane.b32.xlu0 %v3574, %s3591
  %v3593 = vpop.permute.xlu0 %3592
  %s3595 = sor.u32 256, 40
  %3596 = vbcast.lane.b32.xlu0 %v3574, %s3595
  %v3597 = vpop.permute.xlu0 %3596
  %s3599 = sor.u32 256, 48
  %3600 = vbcast.lane.b32.xlu0 %v3574, %s3599
  %v3601 = vpop.permute.xlu0 %3600
  %s3603 = sor.u32 256, 56
  %3604 = vbcast.lane.b32.xlu0 %v3574, %s3603
  %v3605 = vpop.permute.xlu0 %3604
  %s3607 = sor.u32 256, 64
  %3608 = vbcast.lane.b32.xlu0 %v3574, %s3607
  %v3609 = vpop.permute.xlu0 %3608
  %s3611 = sor.u32 256, 72
  %3612 = vbcast.lane.b32.xlu0 %v3574, %s3611
  %v3613 = vpop.permute.xlu0 %3612
  %s3615 = sor.u32 256, 80
  %3616 = vbcast.lane.b32.xlu0 %v3574, %s3615
  %v3617 = vpop.permute.xlu0 %3616
  %s3619 = sor.u32 256, 88
  %3620 = vbcast.lane.b32.xlu0 %v3574, %s3619
  %v3621 = vpop.permute.xlu0 %3620
  %s3623 = sor.u32 256, 96
  %3624 = vbcast.lane.b32.xlu0 %v3574, %s3623
  %v3625 = vpop.permute.xlu0 %3624
  %s3627 = sor.u32 256, 104
  %3628 = vbcast.lane.b32.xlu0 %v3574, %s3627
  %v3629 = vpop.permute.xlu0 %3628
  %s3631 = sor.u32 256, 112
  %3632 = vbcast.lane.b32.xlu0 %v3574, %s3631
  %v3633 = vpop.permute.xlu0 %3632
  %s3635 = sor.u32 256, 120
  %3636 = vbcast.lane.b32.xlu0 %v3574, %s3635
  %v3637 = vpop.permute.xlu0 %3636
  %v3638 = vlaneseq
  %v3639 = vshrl.u32 %v3638, 7
  %v3640 = vsub.s32 0, %v3639
  %v3641 = vrot.slane %v3570, %v3640
  %3643 = vbcast.lane.b32.xlu0 %v3641, 256
  %v3644 = vpop.permute.xlu0 %3643
  %s3646 = sor.u32 256, 8
  %3647 = vbcast.lane.b32.xlu0 %v3641, %s3646
  %v3648 = vpop.permute.xlu0 %3647
  %s3650 = sor.u32 256, 16
  %3651 = vbcast.lane.b32.xlu0 %v3641, %s3650
  %v3652 = vpop.permute.xlu0 %3651
  %s3654 = sor.u32 256, 24
  %3655 = vbcast.lane.b32.xlu0 %v3641, %s3654
  %v3656 = vpop.permute.xlu0 %3655
  %s3658 = sor.u32 256, 32
  %3659 = vbcast.lane.b32.xlu0 %v3641, %s3658
  %v3660 = vpop.permute.xlu0 %3659
  %s3662 = sor.u32 256, 40
  %3663 = vbcast.lane.b32.xlu0 %v3641, %s3662
  %v3664 = vpop.permute.xlu0 %3663
  %s3666 = sor.u32 256, 48
  %3667 = vbcast.lane.b32.xlu0 %v3641, %s3666
  %v3668 = vpop.permute.xlu0 %3667
  %s3670 = sor.u32 256, 56
  %3671 = vbcast.lane.b32.xlu0 %v3641, %s3670
  %v3672 = vpop.permute.xlu0 %3671
  %s3674 = sor.u32 256, 64
  %3675 = vbcast.lane.b32.xlu0 %v3641, %s3674
  %v3676 = vpop.permute.xlu0 %3675
  %s3678 = sor.u32 256, 72
  %3679 = vbcast.lane.b32.xlu0 %v3641, %s3678
  %v3680 = vpop.permute.xlu0 %3679
  %s3682 = sor.u32 256, 80
  %3683 = vbcast.lane.b32.xlu0 %v3641, %s3682
  %v3684 = vpop.permute.xlu0 %3683
  %s3686 = sor.u32 256, 88
  %3687 = vbcast.lane.b32.xlu0 %v3641, %s3686
  %v3688 = vpop.permute.xlu0 %3687
  %s3690 = sor.u32 256, 96
  %3691 = vbcast.lane.b32.xlu0 %v3641, %s3690
  %v3692 = vpop.permute.xlu0 %3691
  %s3694 = sor.u32 256, 104
  %3695 = vbcast.lane.b32.xlu0 %v3641, %s3694
  %v3696 = vpop.permute.xlu0 %3695
  %s3698 = sor.u32 256, 112
  %3699 = vbcast.lane.b32.xlu0 %v3641, %s3698
  %v3700 = vpop.permute.xlu0 %3699
  %s3702 = sor.u32 256, 120
  %3703 = vbcast.lane.b32.xlu0 %v3641, %s3702
  %v3704 = vpop.permute.xlu0 %3703
  %v3705 = vmul.f32 %v14, %v3577
  %v3706 = vmul.f32 %v15, %v3581
  %v3707 = vmul.f32 %v16, %v3585
  %v3708 = vmul.f32 %v17, %v3589
  %v3709 = vmul.f32 %v18, %v3593
  %v3710 = vmul.f32 %v19, %v3597
  %v3711 = vmul.f32 %v20, %v3601
  %v3712 = vmul.f32 %v21, %v3605
  %v3713 = vmul.f32 %v22, %v3609
  %v3714 = vmul.f32 %v23, %v3613
  %v3715 = vmul.f32 %v24, %v3617
  %v3716 = vmul.f32 %v25, %v3621
  %v3717 = vmul.f32 %v26, %v3625
  %v3718 = vmul.f32 %v27, %v3629
  %v3719 = vmul.f32 %v28, %v3633
  %v3720 = vmul.f32 %v29, %v3637
  %v3721 = vadd.f32 %v3705, %v3644
  %v3722 = vadd.f32 %v3706, %v3648
  %v3723 = vadd.f32 %v3707, %v3652
  %v3724 = vadd.f32 %v3708, %v3656
  %v3725 = vadd.f32 %v3709, %v3660
  %v3726 = vadd.f32 %v3710, %v3664
  %v3727 = vadd.f32 %v3711, %v3668
  %v3728 = vadd.f32 %v3712, %v3672
  %v3729 = vadd.f32 %v3713, %v3676
  %v3730 = vadd.f32 %v3714, %v3680
  %v3731 = vadd.f32 %v3715, %v3684
  %v3732 = vadd.f32 %v3716, %v3688
  %v3733 = vadd.f32 %v3717, %v3692
  %v3734 = vadd.f32 %v3718, %v3696
  %v3735 = vadd.f32 %v3719, %v3700
  %v3736 = vadd.f32 %v3720, %v3704
  %v3737 = vmax.f32 %v3721, 0.0
  %v3738 = vmax.f32 %v3722, 0.0
  %v3739 = vmax.f32 %v3723, 0.0
  %v3740 = vmax.f32 %v3724, 0.0
  %v3741 = vmax.f32 %v3725, 0.0
  %v3742 = vmax.f32 %v3726, 0.0
  %v3743 = vmax.f32 %v3727, 0.0
  %v3744 = vmax.f32 %v3728, 0.0
  %v3745 = vmax.f32 %v3729, 0.0
  %v3746 = vmax.f32 %v3730, 0.0
  %v3747 = vmax.f32 %v3731, 0.0
  %v3748 = vmax.f32 %v3732, 0.0
  %v3749 = vmax.f32 %v3733, 0.0
  %v3750 = vmax.f32 %v3734, 0.0
  %v3751 = vmax.f32 %v3735, 0.0
  %v3752 = vmax.f32 %v3736, 0.0
  %3753 = vst.msk [vmem:[%s3] sm:$0xff] %vm30, %v3737
  %3754 = vst.msk [vmem:[%s3 + $0x8] sm:$0xff] %vm30, %v3738
  %3755 = vst.msk [vmem:[%s3 + $0x10] sm:$0xff] %vm30, %v3739
  %3756 = vst.msk [vmem:[%s3 + $0x18] sm:$0xff] %vm30, %v3740
  %3757 = vst.msk [vmem:[%s3 + $0x20] sm:$0xff] %vm30, %v3741
  %3758 = vst.msk [vmem:[%s3 + $0x28] sm:$0xff] %vm30, %v3742
  %3759 = vst.msk [vmem:[%s3 + $0x30] sm:$0xff] %vm30, %v3743
  %3760 = vst.msk [vmem:[%s3 + $0x38] sm:$0xff] %vm30, %v3744
  %3761 = vst.msk [vmem:[%s3 + $0x40] sm:$0xff] %vm30, %v3745
  %3762 = vst.msk [vmem:[%s3 + $0x48] sm:$0xff] %vm30, %v3746
  %3763 = vst.msk [vmem:[%s3 + $0x50] sm:$0xff] %vm30, %v3747
  %3764 = vst.msk [vmem:[%s3 + $0x58] sm:$0xff] %vm30, %v3748
  %3765 = vst.msk [vmem:[%s3 + $0x60] sm:$0xff] %vm30, %v3749
  %3766 = vst.msk [vmem:[%s3 + $0x68] sm:$0xff] %vm30, %v3750
  %3767 = vst.msk [vmem:[%s3 + $0x70] sm:$0xff] %vm30, %v3751
  %3768 = vst.msk [vmem:[%s3 + $0x78] sm:$0xff] %vm30, %v3752
  %v3769 = vld [vmem:[%s0 + $0x80] sm:$0xff]
  %v3770 = vld [vmem:[%s0 + $0x88] sm:$0xff]
  %v3771 = vld [vmem:[%s0 + $0x90] sm:$0xff]
  %v3772 = vld [vmem:[%s0 + $0x98] sm:$0xff]
  %v3773 = vld [vmem:[%s0 + $0xa0] sm:$0xff]
  %v3774 = vld [vmem:[%s0 + $0xa8] sm:$0xff]
  %v3775 = vld [vmem:[%s0 + $0xb0] sm:$0xff]
  %v3776 = vld [vmem:[%s0 + $0xb8] sm:$0xff]
  %v3777 = vld [vmem:[%s0 + $0xc0] sm:$0xff]
  %v3778 = vld [vmem:[%s0 + $0xc8] sm:$0xff]
  %v3779 = vld [vmem:[%s0 + $0xd0] sm:$0xff]
  %v3780 = vld [vmem:[%s0 + $0xd8] sm:$0xff]
  %v3781 = vld [vmem:[%s0 + $0xe0] sm:$0xff]
  %v3782 = vld [vmem:[%s0 + $0xe8] sm:$0xff]
  %v3783 = vld [vmem:[%s0 + $0xf0] sm:$0xff]
  %v3784 = vld [vmem:[%s0 + $0xf8] sm:$0xff]
  %v3785 = vsel %vm30, %v3769, 0.0
  %3786 = vadd.xlane.f32.xlu0 %v3785
  %v3787 = vpop.xlane.xlu0 %3786
  %v3788 = vsel %vm30, %v3770, 0.0
  %3789 = vadd.xlane.f32.xlu0 %v3788
  %v3790 = vpop.xlane.xlu0 %3789
  %v3791 = vsel %vm30, %v3771, 0.0
  %3792 = vadd.xlane.f32.xlu0 %v3791
  %v3793 = vpop.xlane.xlu0 %3792
  %v3794 = vsel %vm30, %v3772, 0.0
  %3795 = vadd.xlane.f32.xlu0 %v3794
  %v3796 = vpop.xlane.xlu0 %3795
  %v3797 = vsel %vm30, %v3773, 0.0
  %3798 = vadd.xlane.f32.xlu0 %v3797
  %v3799 = vpop.xlane.xlu0 %3798
  %v3800 = vsel %vm30, %v3774, 0.0
  %3801 = vadd.xlane.f32.xlu0 %v3800
  %v3802 = vpop.xlane.xlu0 %3801
  %v3803 = vsel %vm30, %v3775, 0.0
  %3804 = vadd.xlane.f32.xlu0 %v3803
  %v3805 = vpop.xlane.xlu0 %3804
  %v3806 = vsel %vm30, %v3776, 0.0
  %3807 = vadd.xlane.f32.xlu0 %v3806
  %v3808 = vpop.xlane.xlu0 %3807
  %v3809 = vsel %vm30, %v3777, 0.0
  %3810 = vadd.xlane.f32.xlu0 %v3809
  %v3811 = vpop.xlane.xlu0 %3810
  %v3812 = vsel %vm30, %v3778, 0.0
  %3813 = vadd.xlane.f32.xlu0 %v3812
  %v3814 = vpop.xlane.xlu0 %3813
  %v3815 = vsel %vm30, %v3779, 0.0
  %3816 = vadd.xlane.f32.xlu0 %v3815
  %v3817 = vpop.xlane.xlu0 %3816
  %v3818 = vsel %vm30, %v3780, 0.0
  %3819 = vadd.xlane.f32.xlu0 %v3818
  %v3820 = vpop.xlane.xlu0 %3819
  %v3821 = vsel %vm30, %v3781, 0.0
  %3822 = vadd.xlane.f32.xlu0 %v3821
  %v3823 = vpop.xlane.xlu0 %3822
  %v3824 = vsel %vm30, %v3782, 0.0
  %3825 = vadd.xlane.f32.xlu0 %v3824
  %v3826 = vpop.xlane.xlu0 %3825
  %v3827 = vsel %vm30, %v3783, 0.0
  %3828 = vadd.xlane.f32.xlu0 %v3827
  %v3829 = vpop.xlane.xlu0 %3828
  %v3830 = vsel %vm30, %v3784, 0.0
  %3831 = vadd.xlane.f32.xlu0 %v3830
  %v3832 = vpop.xlane.xlu0 %3831
  %v3833 = vadd.f32 %v3787, 0.0
  %v3834 = vadd.f32 %v3790, 0.0
  %v3835 = vadd.f32 %v3793, 0.0
  %v3836 = vadd.f32 %v3796, 0.0
  %v3837 = vadd.f32 %v3799, 0.0
  %v3838 = vadd.f32 %v3802, 0.0
  %v3839 = vadd.f32 %v3805, 0.0
  %v3840 = vadd.f32 %v3808, 0.0
  %v3841 = vadd.f32 %v3811, 0.0
  %v3842 = vadd.f32 %v3814, 0.0
  %v3843 = vadd.f32 %v3817, 0.0
  %v3844 = vadd.f32 %v3820, 0.0
  %v3845 = vadd.f32 %v3823, 0.0
  %v3846 = vadd.f32 %v3826, 0.0
  %v3847 = vadd.f32 %v3829, 0.0
  %v3848 = vadd.f32 %v3832, 0.0
  %v3849 = vmul.f32 %v3833, 0.04
  %v3850 = vmul.f32 %v3834, 0.04
  %v3851 = vmul.f32 %v3835, 0.04
  %v3852 = vmul.f32 %v3836, 0.04
  %v3853 = vmul.f32 %v3837, 0.04
  %v3854 = vmul.f32 %v3838, 0.04
  %v3855 = vmul.f32 %v3839, 0.04
  %v3856 = vmul.f32 %v3840, 0.04
  %v3857 = vmul.f32 %v3841, 0.04
  %v3858 = vmul.f32 %v3842, 0.04
  %v3859 = vmul.f32 %v3843, 0.04
  %v3860 = vmul.f32 %v3844, 0.04
  %v3861 = vmul.f32 %v3845, 0.04
  %v3862 = vmul.f32 %v3846, 0.04
  %v3863 = vmul.f32 %v3847, 0.04
  %v3864 = vmul.f32 %v3848, 0.04
  %v3865 = vsub.f32 %v3769, %v3849
  %v3866 = vsub.f32 %v3770, %v3850
  %v3867 = vsub.f32 %v3771, %v3851
  %v3868 = vsub.f32 %v3772, %v3852
  %v3869 = vsub.f32 %v3773, %v3853
  %v3870 = vsub.f32 %v3774, %v3854
  %v3871 = vsub.f32 %v3775, %v3855
  %v3872 = vsub.f32 %v3776, %v3856
  %v3873 = vsub.f32 %v3777, %v3857
  %v3874 = vsub.f32 %v3778, %v3858
  %v3875 = vsub.f32 %v3779, %v3859
  %v3876 = vsub.f32 %v3780, %v3860
  %v3877 = vsub.f32 %v3781, %v3861
  %v3878 = vsub.f32 %v3782, %v3862
  %v3879 = vsub.f32 %v3783, %v3863
  %v3880 = vsub.f32 %v3784, %v3864
  %v3881 = vmul.f32 %v3865, %v3865
  %v3882 = vmul.f32 %v3866, %v3866
  %v3883 = vmul.f32 %v3867, %v3867
  %v3884 = vmul.f32 %v3868, %v3868
  %v3885 = vmul.f32 %v3869, %v3869
  %v3886 = vmul.f32 %v3870, %v3870
  %v3887 = vmul.f32 %v3871, %v3871
  %v3888 = vmul.f32 %v3872, %v3872
  %v3889 = vmul.f32 %v3873, %v3873
  %v3890 = vmul.f32 %v3874, %v3874
  %v3891 = vmul.f32 %v3875, %v3875
  %v3892 = vmul.f32 %v3876, %v3876
  %v3893 = vmul.f32 %v3877, %v3877
  %v3894 = vmul.f32 %v3878, %v3878
  %v3895 = vmul.f32 %v3879, %v3879
  %v3896 = vmul.f32 %v3880, %v3880
  %v3897 = vsel %vm30, %v3881, 0.0
  %3898 = vadd.xlane.f32.xlu0 %v3897
  %v3899 = vpop.xlane.xlu0 %3898
  %v3900 = vsel %vm30, %v3882, 0.0
  %3901 = vadd.xlane.f32.xlu0 %v3900
  %v3902 = vpop.xlane.xlu0 %3901
  %v3903 = vsel %vm30, %v3883, 0.0
  %3904 = vadd.xlane.f32.xlu0 %v3903
  %v3905 = vpop.xlane.xlu0 %3904
  %v3906 = vsel %vm30, %v3884, 0.0
  %3907 = vadd.xlane.f32.xlu0 %v3906
  %v3908 = vpop.xlane.xlu0 %3907
  %v3909 = vsel %vm30, %v3885, 0.0
  %3910 = vadd.xlane.f32.xlu0 %v3909
  %v3911 = vpop.xlane.xlu0 %3910
  %v3912 = vsel %vm30, %v3886, 0.0
  %3913 = vadd.xlane.f32.xlu0 %v3912
  %v3914 = vpop.xlane.xlu0 %3913
  %v3915 = vsel %vm30, %v3887, 0.0
  %3916 = vadd.xlane.f32.xlu0 %v3915
  %v3917 = vpop.xlane.xlu0 %3916
  %v3918 = vsel %vm30, %v3888, 0.0
  %3919 = vadd.xlane.f32.xlu0 %v3918
  %v3920 = vpop.xlane.xlu0 %3919
  %v3921 = vsel %vm30, %v3889, 0.0
  %3922 = vadd.xlane.f32.xlu0 %v3921
  %v3923 = vpop.xlane.xlu0 %3922
  %v3924 = vsel %vm30, %v3890, 0.0
  %3925 = vadd.xlane.f32.xlu0 %v3924
  %v3926 = vpop.xlane.xlu0 %3925
  %v3927 = vsel %vm30, %v3891, 0.0
  %3928 = vadd.xlane.f32.xlu0 %v3927
  %v3929 = vpop.xlane.xlu0 %3928
  %v3930 = vsel %vm30, %v3892, 0.0
  %3931 = vadd.xlane.f32.xlu0 %v3930
  %v3932 = vpop.xlane.xlu0 %3931
  %v3933 = vsel %vm30, %v3893, 0.0
  %3934 = vadd.xlane.f32.xlu0 %v3933
  %v3935 = vpop.xlane.xlu0 %3934
  %v3936 = vsel %vm30, %v3894, 0.0
  %3937 = vadd.xlane.f32.xlu0 %v3936
  %v3938 = vpop.xlane.xlu0 %3937
  %v3939 = vsel %vm30, %v3895, 0.0
  %3940 = vadd.xlane.f32.xlu0 %v3939
  %v3941 = vpop.xlane.xlu0 %3940
  %v3942 = vsel %vm30, %v3896, 0.0
  %3943 = vadd.xlane.f32.xlu0 %v3942
  %v3944 = vpop.xlane.xlu0 %3943
  %v3945 = vadd.f32 %v3899, 0.0
  %v3946 = vadd.f32 %v3902, 0.0
  %v3947 = vadd.f32 %v3905, 0.0
  %v3948 = vadd.f32 %v3908, 0.0
  %v3949 = vadd.f32 %v3911, 0.0
  %v3950 = vadd.f32 %v3914, 0.0
  %v3951 = vadd.f32 %v3917, 0.0
  %v3952 = vadd.f32 %v3920, 0.0
  %v3953 = vadd.f32 %v3923, 0.0
  %v3954 = vadd.f32 %v3926, 0.0
  %v3955 = vadd.f32 %v3929, 0.0
  %v3956 = vadd.f32 %v3932, 0.0
  %v3957 = vadd.f32 %v3935, 0.0
  %v3958 = vadd.f32 %v3938, 0.0
  %v3959 = vadd.f32 %v3941, 0.0
  %v3960 = vadd.f32 %v3944, 0.0
  %v3961 = vmul.f32 %v3945, 0.04
  %v3962 = vmul.f32 %v3946, 0.04
  %v3963 = vmul.f32 %v3947, 0.04
  %v3964 = vmul.f32 %v3948, 0.04
  %v3965 = vmul.f32 %v3949, 0.04
  %v3966 = vmul.f32 %v3950, 0.04
  %v3967 = vmul.f32 %v3951, 0.04
  %v3968 = vmul.f32 %v3952, 0.04
  %v3969 = vmul.f32 %v3953, 0.04
  %v3970 = vmul.f32 %v3954, 0.04
  %v3971 = vmul.f32 %v3955, 0.04
  %v3972 = vmul.f32 %v3956, 0.04
  %v3973 = vmul.f32 %v3957, 0.04
  %v3974 = vmul.f32 %v3958, 0.04
  %v3975 = vmul.f32 %v3959, 0.04
  %v3976 = vmul.f32 %v3960, 0.04
  %v3977 = vadd.f32 %v3961, 0.001
  %v3978 = vadd.f32 %v3962, 0.001
  %v3979 = vadd.f32 %v3963, 0.001
  %v3980 = vadd.f32 %v3964, 0.001
  %v3981 = vadd.f32 %v3965, 0.001
  %v3982 = vadd.f32 %v3966, 0.001
  %v3983 = vadd.f32 %v3967, 0.001
  %v3984 = vadd.f32 %v3968, 0.001
  %v3985 = vadd.f32 %v3969, 0.001
  %v3986 = vadd.f32 %v3970, 0.001
  %v3987 = vadd.f32 %v3971, 0.001
  %v3988 = vadd.f32 %v3972, 0.001
  %v3989 = vadd.f32 %v3973, 0.001
  %v3990 = vadd.f32 %v3974, 0.001
  %v3991 = vadd.f32 %v3975, 0.001
  %v3992 = vadd.f32 %v3976, 0.001
  %v3993 = vrsqrt.pop %v3977
  %v3994 = vrsqrt.pop %v3978
  %v3995 = vrsqrt.pop %v3979
  %v3996 = vrsqrt.pop %v3980
  %v3997 = vrsqrt.pop %v3981
  %v3998 = vrsqrt.pop %v3982
  %v3999 = vrsqrt.pop %v3983
  %v4000 = vrsqrt.pop %v3984
  %v4001 = vrsqrt.pop %v3985
  %v4002 = vrsqrt.pop %v3986
  %v4003 = vrsqrt.pop %v3987
  %v4004 = vrsqrt.pop %v3988
  %v4005 = vrsqrt.pop %v3989
  %v4006 = vrsqrt.pop %v3990
  %v4007 = vrsqrt.pop %v3991
  %v4008 = vrsqrt.pop %v3992
  %v4009 = vld [vmem:[%s1 + $0x1] sm:$0x1]
  %v4026 = vlaneseq
  %v4027 = vshrl.u32 %v4026, 7
  %v4028 = vsub.s32 0, %v4027
  %v4029 = vrot.slane %v3993, %v4028
  %v4030 = vlaneseq
  %v4031 = vshrl.u32 %v4030, 7
  %v4032 = vsub.s32 1, %v4031
  %v4033 = vrot.slane %v3993, %v4032
  %v4034 = vlaneseq
  %v4035 = vshrl.u32 %v4034, 7
  %v4036 = vsub.s32 2, %v4035
  %v4037 = vrot.slane %v3993, %v4036
  %v4038 = vlaneseq
  %v4039 = vshrl.u32 %v4038, 7
  %v4040 = vsub.s32 3, %v4039
  %v4041 = vrot.slane %v3993, %v4040
  %v4042 = vlaneseq
  %v4043 = vshrl.u32 %v4042, 7
  %v4044 = vsub.s32 4, %v4043
  %v4045 = vrot.slane %v3993, %v4044
  %v4046 = vlaneseq
  %v4047 = vshrl.u32 %v4046, 7
  %v4048 = vsub.s32 5, %v4047
  %v4049 = vrot.slane %v3993, %v4048
  %v4050 = vlaneseq
  %v4051 = vshrl.u32 %v4050, 7
  %v4052 = vsub.s32 6, %v4051
  %v4053 = vrot.slane %v3993, %v4052
  %v4054 = vlaneseq
  %v4055 = vshrl.u32 %v4054, 7
  %v4056 = vsub.s32 7, %v4055
  %v4057 = vrot.slane %v3993, %v4056
  %v4058 = vlaneseq
  %v4059 = vshrl.u32 %v4058, 7
  %v4060 = vsub.s32 0, %v4059
  %v4061 = vrot.slane %v3994, %v4060
  %v4062 = vlaneseq
  %v4063 = vshrl.u32 %v4062, 7
  %v4064 = vsub.s32 1, %v4063
  %v4065 = vrot.slane %v3994, %v4064
  %v4066 = vlaneseq
  %v4067 = vshrl.u32 %v4066, 7
  %v4068 = vsub.s32 2, %v4067
  %v4069 = vrot.slane %v3994, %v4068
  %v4070 = vlaneseq
  %v4071 = vshrl.u32 %v4070, 7
  %v4072 = vsub.s32 3, %v4071
  %v4073 = vrot.slane %v3994, %v4072
  %v4074 = vlaneseq
  %v4075 = vshrl.u32 %v4074, 7
  %v4076 = vsub.s32 4, %v4075
  %v4077 = vrot.slane %v3994, %v4076
  %v4078 = vlaneseq
  %v4079 = vshrl.u32 %v4078, 7
  %v4080 = vsub.s32 5, %v4079
  %v4081 = vrot.slane %v3994, %v4080
  %v4082 = vlaneseq
  %v4083 = vshrl.u32 %v4082, 7
  %v4084 = vsub.s32 6, %v4083
  %v4085 = vrot.slane %v3994, %v4084
  %v4086 = vlaneseq
  %v4087 = vshrl.u32 %v4086, 7
  %v4088 = vsub.s32 7, %v4087
  %v4089 = vrot.slane %v3994, %v4088
  %v4090 = vlaneseq
  %v4091 = vshrl.u32 %v4090, 7
  %v4092 = vsub.s32 0, %v4091
  %v4093 = vrot.slane %v3995, %v4092
  %v4094 = vlaneseq
  %v4095 = vshrl.u32 %v4094, 7
  %v4096 = vsub.s32 1, %v4095
  %v4097 = vrot.slane %v3995, %v4096
  %v4098 = vlaneseq
  %v4099 = vshrl.u32 %v4098, 7
  %v4100 = vsub.s32 2, %v4099
  %v4101 = vrot.slane %v3995, %v4100
  %v4102 = vlaneseq
  %v4103 = vshrl.u32 %v4102, 7
  %v4104 = vsub.s32 3, %v4103
  %v4105 = vrot.slane %v3995, %v4104
  %v4106 = vlaneseq
  %v4107 = vshrl.u32 %v4106, 7
  %v4108 = vsub.s32 4, %v4107
  %v4109 = vrot.slane %v3995, %v4108
  %v4110 = vlaneseq
  %v4111 = vshrl.u32 %v4110, 7
  %v4112 = vsub.s32 5, %v4111
  %v4113 = vrot.slane %v3995, %v4112
  %v4114 = vlaneseq
  %v4115 = vshrl.u32 %v4114, 7
  %v4116 = vsub.s32 6, %v4115
  %v4117 = vrot.slane %v3995, %v4116
  %v4118 = vlaneseq
  %v4119 = vshrl.u32 %v4118, 7
  %v4120 = vsub.s32 7, %v4119
  %v4121 = vrot.slane %v3995, %v4120
  %v4122 = vlaneseq
  %v4123 = vshrl.u32 %v4122, 7
  %v4124 = vsub.s32 0, %v4123
  %v4125 = vrot.slane %v3996, %v4124
  %v4126 = vlaneseq
  %v4127 = vshrl.u32 %v4126, 7
  %v4128 = vsub.s32 1, %v4127
  %v4129 = vrot.slane %v3996, %v4128
  %v4130 = vlaneseq
  %v4131 = vshrl.u32 %v4130, 7
  %v4132 = vsub.s32 2, %v4131
  %v4133 = vrot.slane %v3996, %v4132
  %v4134 = vlaneseq
  %v4135 = vshrl.u32 %v4134, 7
  %v4136 = vsub.s32 3, %v4135
  %v4137 = vrot.slane %v3996, %v4136
  %v4138 = vlaneseq
  %v4139 = vshrl.u32 %v4138, 7
  %v4140 = vsub.s32 4, %v4139
  %v4141 = vrot.slane %v3996, %v4140
  %v4142 = vlaneseq
  %v4143 = vshrl.u32 %v4142, 7
  %v4144 = vsub.s32 5, %v4143
  %v4145 = vrot.slane %v3996, %v4144
  %v4146 = vlaneseq
  %v4147 = vshrl.u32 %v4146, 7
  %v4148 = vsub.s32 6, %v4147
  %v4149 = vrot.slane %v3996, %v4148
  %v4150 = vlaneseq
  %v4151 = vshrl.u32 %v4150, 7
  %v4152 = vsub.s32 7, %v4151
  %v4153 = vrot.slane %v3996, %v4152
  %v4154 = vlaneseq
  %v4155 = vshrl.u32 %v4154, 7
  %v4156 = vsub.s32 0, %v4155
  %v4157 = vrot.slane %v3997, %v4156
  %v4158 = vlaneseq
  %v4159 = vshrl.u32 %v4158, 7
  %v4160 = vsub.s32 1, %v4159
  %v4161 = vrot.slane %v3997, %v4160
  %v4162 = vlaneseq
  %v4163 = vshrl.u32 %v4162, 7
  %v4164 = vsub.s32 2, %v4163
  %v4165 = vrot.slane %v3997, %v4164
  %v4166 = vlaneseq
  %v4167 = vshrl.u32 %v4166, 7
  %v4168 = vsub.s32 3, %v4167
  %v4169 = vrot.slane %v3997, %v4168
  %v4170 = vlaneseq
  %v4171 = vshrl.u32 %v4170, 7
  %v4172 = vsub.s32 4, %v4171
  %v4173 = vrot.slane %v3997, %v4172
  %v4174 = vlaneseq
  %v4175 = vshrl.u32 %v4174, 7
  %v4176 = vsub.s32 5, %v4175
  %v4177 = vrot.slane %v3997, %v4176
  %v4178 = vlaneseq
  %v4179 = vshrl.u32 %v4178, 7
  %v4180 = vsub.s32 6, %v4179
  %v4181 = vrot.slane %v3997, %v4180
  %v4182 = vlaneseq
  %v4183 = vshrl.u32 %v4182, 7
  %v4184 = vsub.s32 7, %v4183
  %v4185 = vrot.slane %v3997, %v4184
  %v4186 = vlaneseq
  %v4187 = vshrl.u32 %v4186, 7
  %v4188 = vsub.s32 0, %v4187
  %v4189 = vrot.slane %v3998, %v4188
  %v4190 = vlaneseq
  %v4191 = vshrl.u32 %v4190, 7
  %v4192 = vsub.s32 1, %v4191
  %v4193 = vrot.slane %v3998, %v4192
  %v4194 = vlaneseq
  %v4195 = vshrl.u32 %v4194, 7
  %v4196 = vsub.s32 2, %v4195
  %v4197 = vrot.slane %v3998, %v4196
  %v4198 = vlaneseq
  %v4199 = vshrl.u32 %v4198, 7
  %v4200 = vsub.s32 3, %v4199
  %v4201 = vrot.slane %v3998, %v4200
  %v4202 = vlaneseq
  %v4203 = vshrl.u32 %v4202, 7
  %v4204 = vsub.s32 4, %v4203
  %v4205 = vrot.slane %v3998, %v4204
  %v4206 = vlaneseq
  %v4207 = vshrl.u32 %v4206, 7
  %v4208 = vsub.s32 5, %v4207
  %v4209 = vrot.slane %v3998, %v4208
  %v4210 = vlaneseq
  %v4211 = vshrl.u32 %v4210, 7
  %v4212 = vsub.s32 6, %v4211
  %v4213 = vrot.slane %v3998, %v4212
  %v4214 = vlaneseq
  %v4215 = vshrl.u32 %v4214, 7
  %v4216 = vsub.s32 7, %v4215
  %v4217 = vrot.slane %v3998, %v4216
  %v4218 = vlaneseq
  %v4219 = vshrl.u32 %v4218, 7
  %v4220 = vsub.s32 0, %v4219
  %v4221 = vrot.slane %v3999, %v4220
  %v4222 = vlaneseq
  %v4223 = vshrl.u32 %v4222, 7
  %v4224 = vsub.s32 1, %v4223
  %v4225 = vrot.slane %v3999, %v4224
  %v4226 = vlaneseq
  %v4227 = vshrl.u32 %v4226, 7
  %v4228 = vsub.s32 2, %v4227
  %v4229 = vrot.slane %v3999, %v4228
  %v4230 = vlaneseq
  %v4231 = vshrl.u32 %v4230, 7
  %v4232 = vsub.s32 3, %v4231
  %v4233 = vrot.slane %v3999, %v4232
  %v4234 = vlaneseq
  %v4235 = vshrl.u32 %v4234, 7
  %v4236 = vsub.s32 4, %v4235
  %v4237 = vrot.slane %v3999, %v4236
  %v4238 = vlaneseq
  %v4239 = vshrl.u32 %v4238, 7
  %v4240 = vsub.s32 5, %v4239
  %v4241 = vrot.slane %v3999, %v4240
  %v4242 = vlaneseq
  %v4243 = vshrl.u32 %v4242, 7
  %v4244 = vsub.s32 6, %v4243
  %v4245 = vrot.slane %v3999, %v4244
  %v4246 = vlaneseq
  %v4247 = vshrl.u32 %v4246, 7
  %v4248 = vsub.s32 7, %v4247
  %v4249 = vrot.slane %v3999, %v4248
  %v4250 = vlaneseq
  %v4251 = vshrl.u32 %v4250, 7
  %v4252 = vsub.s32 0, %v4251
  %v4253 = vrot.slane %v4000, %v4252
  %v4254 = vlaneseq
  %v4255 = vshrl.u32 %v4254, 7
  %v4256 = vsub.s32 1, %v4255
  %v4257 = vrot.slane %v4000, %v4256
  %v4258 = vlaneseq
  %v4259 = vshrl.u32 %v4258, 7
  %v4260 = vsub.s32 2, %v4259
  %v4261 = vrot.slane %v4000, %v4260
  %v4262 = vlaneseq
  %v4263 = vshrl.u32 %v4262, 7
  %v4264 = vsub.s32 3, %v4263
  %v4265 = vrot.slane %v4000, %v4264
  %v4266 = vlaneseq
  %v4267 = vshrl.u32 %v4266, 7
  %v4268 = vsub.s32 4, %v4267
  %v4269 = vrot.slane %v4000, %v4268
  %v4270 = vlaneseq
  %v4271 = vshrl.u32 %v4270, 7
  %v4272 = vsub.s32 5, %v4271
  %v4273 = vrot.slane %v4000, %v4272
  %v4274 = vlaneseq
  %v4275 = vshrl.u32 %v4274, 7
  %v4276 = vsub.s32 6, %v4275
  %v4277 = vrot.slane %v4000, %v4276
  %v4278 = vlaneseq
  %v4279 = vshrl.u32 %v4278, 7
  %v4280 = vsub.s32 7, %v4279
  %v4281 = vrot.slane %v4000, %v4280
  %v4282 = vlaneseq
  %v4283 = vshrl.u32 %v4282, 7
  %v4284 = vsub.s32 0, %v4283
  %v4285 = vrot.slane %v4001, %v4284
  %v4286 = vlaneseq
  %v4287 = vshrl.u32 %v4286, 7
  %v4288 = vsub.s32 1, %v4287
  %v4289 = vrot.slane %v4001, %v4288
  %v4290 = vlaneseq
  %v4291 = vshrl.u32 %v4290, 7
  %v4292 = vsub.s32 2, %v4291
  %v4293 = vrot.slane %v4001, %v4292
  %v4294 = vlaneseq
  %v4295 = vshrl.u32 %v4294, 7
  %v4296 = vsub.s32 3, %v4295
  %v4297 = vrot.slane %v4001, %v4296
  %v4298 = vlaneseq
  %v4299 = vshrl.u32 %v4298, 7
  %v4300 = vsub.s32 4, %v4299
  %v4301 = vrot.slane %v4001, %v4300
  %v4302 = vlaneseq
  %v4303 = vshrl.u32 %v4302, 7
  %v4304 = vsub.s32 5, %v4303
  %v4305 = vrot.slane %v4001, %v4304
  %v4306 = vlaneseq
  %v4307 = vshrl.u32 %v4306, 7
  %v4308 = vsub.s32 6, %v4307
  %v4309 = vrot.slane %v4001, %v4308
  %v4310 = vlaneseq
  %v4311 = vshrl.u32 %v4310, 7
  %v4312 = vsub.s32 7, %v4311
  %v4313 = vrot.slane %v4001, %v4312
  %v4314 = vlaneseq
  %v4315 = vshrl.u32 %v4314, 7
  %v4316 = vsub.s32 0, %v4315
  %v4317 = vrot.slane %v4002, %v4316
  %v4318 = vlaneseq
  %v4319 = vshrl.u32 %v4318, 7
  %v4320 = vsub.s32 1, %v4319
  %v4321 = vrot.slane %v4002, %v4320
  %v4322 = vlaneseq
  %v4323 = vshrl.u32 %v4322, 7
  %v4324 = vsub.s32 2, %v4323
  %v4325 = vrot.slane %v4002, %v4324
  %v4326 = vlaneseq
  %v4327 = vshrl.u32 %v4326, 7
  %v4328 = vsub.s32 3, %v4327
  %v4329 = vrot.slane %v4002, %v4328
  %v4330 = vlaneseq
  %v4331 = vshrl.u32 %v4330, 7
  %v4332 = vsub.s32 4, %v4331
  %v4333 = vrot.slane %v4002, %v4332
  %v4334 = vlaneseq
  %v4335 = vshrl.u32 %v4334, 7
  %v4336 = vsub.s32 5, %v4335
  %v4337 = vrot.slane %v4002, %v4336
  %v4338 = vlaneseq
  %v4339 = vshrl.u32 %v4338, 7
  %v4340 = vsub.s32 6, %v4339
  %v4341 = vrot.slane %v4002, %v4340
  %v4342 = vlaneseq
  %v4343 = vshrl.u32 %v4342, 7
  %v4344 = vsub.s32 7, %v4343
  %v4345 = vrot.slane %v4002, %v4344
  %v4346 = vlaneseq
  %v4347 = vshrl.u32 %v4346, 7
  %v4348 = vsub.s32 0, %v4347
  %v4349 = vrot.slane %v4003, %v4348
  %v4350 = vlaneseq
  %v4351 = vshrl.u32 %v4350, 7
  %v4352 = vsub.s32 1, %v4351
  %v4353 = vrot.slane %v4003, %v4352
  %v4354 = vlaneseq
  %v4355 = vshrl.u32 %v4354, 7
  %v4356 = vsub.s32 2, %v4355
  %v4357 = vrot.slane %v4003, %v4356
  %v4358 = vlaneseq
  %v4359 = vshrl.u32 %v4358, 7
  %v4360 = vsub.s32 3, %v4359
  %v4361 = vrot.slane %v4003, %v4360
  %v4362 = vlaneseq
  %v4363 = vshrl.u32 %v4362, 7
  %v4364 = vsub.s32 4, %v4363
  %v4365 = vrot.slane %v4003, %v4364
  %v4366 = vlaneseq
  %v4367 = vshrl.u32 %v4366, 7
  %v4368 = vsub.s32 5, %v4367
  %v4369 = vrot.slane %v4003, %v4368
  %v4370 = vlaneseq
  %v4371 = vshrl.u32 %v4370, 7
  %v4372 = vsub.s32 6, %v4371
  %v4373 = vrot.slane %v4003, %v4372
  %v4374 = vlaneseq
  %v4375 = vshrl.u32 %v4374, 7
  %v4376 = vsub.s32 7, %v4375
  %v4377 = vrot.slane %v4003, %v4376
  %v4378 = vlaneseq
  %v4379 = vshrl.u32 %v4378, 7
  %v4380 = vsub.s32 0, %v4379
  %v4381 = vrot.slane %v4004, %v4380
  %v4382 = vlaneseq
  %v4383 = vshrl.u32 %v4382, 7
  %v4384 = vsub.s32 1, %v4383
  %v4385 = vrot.slane %v4004, %v4384
  %v4386 = vlaneseq
  %v4387 = vshrl.u32 %v4386, 7
  %v4388 = vsub.s32 2, %v4387
  %v4389 = vrot.slane %v4004, %v4388
  %v4390 = vlaneseq
  %v4391 = vshrl.u32 %v4390, 7
  %v4392 = vsub.s32 3, %v4391
  %v4393 = vrot.slane %v4004, %v4392
  %v4394 = vlaneseq
  %v4395 = vshrl.u32 %v4394, 7
  %v4396 = vsub.s32 4, %v4395
  %v4397 = vrot.slane %v4004, %v4396
  %v4398 = vlaneseq
  %v4399 = vshrl.u32 %v4398, 7
  %v4400 = vsub.s32 5, %v4399
  %v4401 = vrot.slane %v4004, %v4400
  %v4402 = vlaneseq
  %v4403 = vshrl.u32 %v4402, 7
  %v4404 = vsub.s32 6, %v4403
  %v4405 = vrot.slane %v4004, %v4404
  %v4406 = vlaneseq
  %v4407 = vshrl.u32 %v4406, 7
  %v4408 = vsub.s32 7, %v4407
  %v4409 = vrot.slane %v4004, %v4408
  %v4410 = vlaneseq
  %v4411 = vshrl.u32 %v4410, 7
  %v4412 = vsub.s32 0, %v4411
  %v4413 = vrot.slane %v4005, %v4412
  %v4414 = vlaneseq
  %v4415 = vshrl.u32 %v4414, 7
  %v4416 = vsub.s32 1, %v4415
  %v4417 = vrot.slane %v4005, %v4416
  %v4418 = vlaneseq
  %v4419 = vshrl.u32 %v4418, 7
  %v4420 = vsub.s32 2, %v4419
  %v4421 = vrot.slane %v4005, %v4420
  %v4422 = vlaneseq
  %v4423 = vshrl.u32 %v4422, 7
  %v4424 = vsub.s32 3, %v4423
  %v4425 = vrot.slane %v4005, %v4424
  %v4426 = vlaneseq
  %v4427 = vshrl.u32 %v4426, 7
  %v4428 = vsub.s32 4, %v4427
  %v4429 = vrot.slane %v4005, %v4428
  %v4430 = vlaneseq
  %v4431 = vshrl.u32 %v4430, 7
  %v4432 = vsub.s32 5, %v4431
  %v4433 = vrot.slane %v4005, %v4432
  %v4434 = vlaneseq
  %v4435 = vshrl.u32 %v4434, 7
  %v4436 = vsub.s32 6, %v4435
  %v4437 = vrot.slane %v4005, %v4436
  %v4438 = vlaneseq
  %v4439 = vshrl.u32 %v4438, 7
  %v4440 = vsub.s32 7, %v4439
  %v4441 = vrot.slane %v4005, %v4440
  %v4442 = vlaneseq
  %v4443 = vshrl.u32 %v4442, 7
  %v4444 = vsub.s32 0, %v4443
  %v4445 = vrot.slane %v4006, %v4444
  %v4446 = vlaneseq
  %v4447 = vshrl.u32 %v4446, 7
  %v4448 = vsub.s32 1, %v4447
  %v4449 = vrot.slane %v4006, %v4448
  %v4450 = vlaneseq
  %v4451 = vshrl.u32 %v4450, 7
  %v4452 = vsub.s32 2, %v4451
  %v4453 = vrot.slane %v4006, %v4452
  %v4454 = vlaneseq
  %v4455 = vshrl.u32 %v4454, 7
  %v4456 = vsub.s32 3, %v4455
  %v4457 = vrot.slane %v4006, %v4456
  %v4458 = vlaneseq
  %v4459 = vshrl.u32 %v4458, 7
  %v4460 = vsub.s32 4, %v4459
  %v4461 = vrot.slane %v4006, %v4460
  %v4462 = vlaneseq
  %v4463 = vshrl.u32 %v4462, 7
  %v4464 = vsub.s32 5, %v4463
  %v4465 = vrot.slane %v4006, %v4464
  %v4466 = vlaneseq
  %v4467 = vshrl.u32 %v4466, 7
  %v4468 = vsub.s32 6, %v4467
  %v4469 = vrot.slane %v4006, %v4468
  %v4470 = vlaneseq
  %v4471 = vshrl.u32 %v4470, 7
  %v4472 = vsub.s32 7, %v4471
  %v4473 = vrot.slane %v4006, %v4472
  %v4474 = vlaneseq
  %v4475 = vshrl.u32 %v4474, 7
  %v4476 = vsub.s32 0, %v4475
  %v4477 = vrot.slane %v4007, %v4476
  %v4478 = vlaneseq
  %v4479 = vshrl.u32 %v4478, 7
  %v4480 = vsub.s32 1, %v4479
  %v4481 = vrot.slane %v4007, %v4480
  %v4482 = vlaneseq
  %v4483 = vshrl.u32 %v4482, 7
  %v4484 = vsub.s32 2, %v4483
  %v4485 = vrot.slane %v4007, %v4484
  %v4486 = vlaneseq
  %v4487 = vshrl.u32 %v4486, 7
  %v4488 = vsub.s32 3, %v4487
  %v4489 = vrot.slane %v4007, %v4488
  %v4490 = vlaneseq
  %v4491 = vshrl.u32 %v4490, 7
  %v4492 = vsub.s32 4, %v4491
  %v4493 = vrot.slane %v4007, %v4492
  %v4494 = vlaneseq
  %v4495 = vshrl.u32 %v4494, 7
  %v4496 = vsub.s32 5, %v4495
  %v4497 = vrot.slane %v4007, %v4496
  %v4498 = vlaneseq
  %v4499 = vshrl.u32 %v4498, 7
  %v4500 = vsub.s32 6, %v4499
  %v4501 = vrot.slane %v4007, %v4500
  %v4502 = vlaneseq
  %v4503 = vshrl.u32 %v4502, 7
  %v4504 = vsub.s32 7, %v4503
  %v4505 = vrot.slane %v4007, %v4504
  %v4506 = vlaneseq
  %v4507 = vshrl.u32 %v4506, 7
  %v4508 = vsub.s32 0, %v4507
  %v4509 = vrot.slane %v4008, %v4508
  %v4510 = vlaneseq
  %v4511 = vshrl.u32 %v4510, 7
  %v4512 = vsub.s32 1, %v4511
  %v4513 = vrot.slane %v4008, %v4512
  %v4514 = vlaneseq
  %v4515 = vshrl.u32 %v4514, 7
  %v4516 = vsub.s32 2, %v4515
  %v4517 = vrot.slane %v4008, %v4516
  %v4518 = vlaneseq
  %v4519 = vshrl.u32 %v4518, 7
  %v4520 = vsub.s32 3, %v4519
  %v4521 = vrot.slane %v4008, %v4520
  %v4522 = vlaneseq
  %v4523 = vshrl.u32 %v4522, 7
  %v4524 = vsub.s32 4, %v4523
  %v4525 = vrot.slane %v4008, %v4524
  %v4526 = vlaneseq
  %v4527 = vshrl.u32 %v4526, 7
  %v4528 = vsub.s32 5, %v4527
  %v4529 = vrot.slane %v4008, %v4528
  %v4530 = vlaneseq
  %v4531 = vshrl.u32 %v4530, 7
  %v4532 = vsub.s32 6, %v4531
  %v4533 = vrot.slane %v4008, %v4532
  %v4534 = vlaneseq
  %v4535 = vshrl.u32 %v4534, 7
  %v4536 = vsub.s32 7, %v4535
  %v4537 = vrot.slane %v4008, %v4536
  %v4538 = vcombine.low %v4029, %v4033
  %v4539 = vcombine.low %v4037, %v4041
  %v4540 = vcombine.low %v4045, %v4049
  %v4541 = vcombine.low %v4053, %v4057
  %v4543 = vunpack.c.l.s4 1966171168
  %v4544 = vunpack.c.0.s8 %v4543
  %v4545 = vlaneseq
  %v4546 = vshrl.u32 %v4545, 7
  %v4547 = vsub.s32 %v4544, %v4546
  %v4548 = vrot.slane %v4538, %v4547
  %v4550 = vunpack.c.l.s4 1966171168
  %v4551 = vunpack.c.0.s8 %v4550
  %v4552 = vlaneseq
  %v4553 = vshrl.u32 %v4552, 7
  %v4554 = vsub.s32 %v4551, %v4553
  %v4555 = vrot.slane %v4539, %v4554
  %v4557 = vunpack.c.l.s4 1966171168
  %v4558 = vunpack.c.0.s8 %v4557
  %v4559 = vlaneseq
  %v4560 = vshrl.u32 %v4559, 7
  %v4561 = vsub.s32 %v4558, %v4560
  %v4562 = vrot.slane %v4540, %v4561
  %v4564 = vunpack.c.l.s4 1966171168
  %v4565 = vunpack.c.0.s8 %v4564
  %v4566 = vlaneseq
  %v4567 = vshrl.u32 %v4566, 7
  %v4568 = vsub.s32 %v4565, %v4567
  %v4569 = vrot.slane %v4541, %v4568
  %v4570 = vcombine.low %v4548, %v4555
  %v4571 = vcombine.low %v4562, %v4569
  %v4573 = vunpack.c.l.s4 1966171168
  %v4574 = vunpack.c.0.s8 %v4573
  %v4575 = vlaneseq
  %v4576 = vshrl.u32 %v4575, 7
  %v4577 = vsub.s32 %v4574, %v4576
  %v4578 = vrot.slane %v4570, %v4577
  %v4580 = vunpack.c.l.s4 1966171168
  %v4581 = vunpack.c.0.s8 %v4580
  %v4582 = vlaneseq
  %v4583 = vshrl.u32 %v4582, 7
  %v4584 = vsub.s32 %v4581, %v4583
  %v4585 = vrot.slane %v4571, %v4584
  %v4586 = vcombine.low %v4578, %v4585
  %v4587 = vcombine.low %v4061, %v4065
  %v4588 = vcombine.low %v4069, %v4073
  %v4589 = vcombine.low %v4077, %v4081
  %v4590 = vcombine.low %v4085, %v4089
  %v4592 = vunpack.c.l.s4 1966171168
  %v4593 = vunpack.c.0.s8 %v4592
  %v4594 = vlaneseq
  %v4595 = vshrl.u32 %v4594, 7
  %v4596 = vsub.s32 %v4593, %v4595
  %v4597 = vrot.slane %v4587, %v4596
  %v4599 = vunpack.c.l.s4 1966171168
  %v4600 = vunpack.c.0.s8 %v4599
  %v4601 = vlaneseq
  %v4602 = vshrl.u32 %v4601, 7
  %v4603 = vsub.s32 %v4600, %v4602
  %v4604 = vrot.slane %v4588, %v4603
  %v4606 = vunpack.c.l.s4 1966171168
  %v4607 = vunpack.c.0.s8 %v4606
  %v4608 = vlaneseq
  %v4609 = vshrl.u32 %v4608, 7
  %v4610 = vsub.s32 %v4607, %v4609
  %v4611 = vrot.slane %v4589, %v4610
  %v4613 = vunpack.c.l.s4 1966171168
  %v4614 = vunpack.c.0.s8 %v4613
  %v4615 = vlaneseq
  %v4616 = vshrl.u32 %v4615, 7
  %v4617 = vsub.s32 %v4614, %v4616
  %v4618 = vrot.slane %v4590, %v4617
  %v4619 = vcombine.low %v4597, %v4604
  %v4620 = vcombine.low %v4611, %v4618
  %v4622 = vunpack.c.l.s4 1966171168
  %v4623 = vunpack.c.0.s8 %v4622
  %v4624 = vlaneseq
  %v4625 = vshrl.u32 %v4624, 7
  %v4626 = vsub.s32 %v4623, %v4625
  %v4627 = vrot.slane %v4619, %v4626
  %v4629 = vunpack.c.l.s4 1966171168
  %v4630 = vunpack.c.0.s8 %v4629
  %v4631 = vlaneseq
  %v4632 = vshrl.u32 %v4631, 7
  %v4633 = vsub.s32 %v4630, %v4632
  %v4634 = vrot.slane %v4620, %v4633
  %v4635 = vcombine.low %v4627, %v4634
  %v4636 = vcombine.low %v4093, %v4097
  %v4637 = vcombine.low %v4101, %v4105
  %v4638 = vcombine.low %v4109, %v4113
  %v4639 = vcombine.low %v4117, %v4121
  %v4641 = vunpack.c.l.s4 1966171168
  %v4642 = vunpack.c.0.s8 %v4641
  %v4643 = vlaneseq
  %v4644 = vshrl.u32 %v4643, 7
  %v4645 = vsub.s32 %v4642, %v4644
  %v4646 = vrot.slane %v4636, %v4645
  %v4648 = vunpack.c.l.s4 1966171168
  %v4649 = vunpack.c.0.s8 %v4648
  %v4650 = vlaneseq
  %v4651 = vshrl.u32 %v4650, 7
  %v4652 = vsub.s32 %v4649, %v4651
  %v4653 = vrot.slane %v4637, %v4652
  %v4655 = vunpack.c.l.s4 1966171168
  %v4656 = vunpack.c.0.s8 %v4655
  %v4657 = vlaneseq
  %v4658 = vshrl.u32 %v4657, 7
  %v4659 = vsub.s32 %v4656, %v4658
  %v4660 = vrot.slane %v4638, %v4659
  %v4662 = vunpack.c.l.s4 1966171168
  %v4663 = vunpack.c.0.s8 %v4662
  %v4664 = vlaneseq
  %v4665 = vshrl.u32 %v4664, 7
  %v4666 = vsub.s32 %v4663, %v4665
  %v4667 = vrot.slane %v4639, %v4666
  %v4668 = vcombine.low %v4646, %v4653
  %v4669 = vcombine.low %v4660, %v4667
  %v4671 = vunpack.c.l.s4 1966171168
  %v4672 = vunpack.c.0.s8 %v4671
  %v4673 = vlaneseq
  %v4674 = vshrl.u32 %v4673, 7
  %v4675 = vsub.s32 %v4672, %v4674
  %v4676 = vrot.slane %v4668, %v4675
  %v4678 = vunpack.c.l.s4 1966171168
  %v4679 = vunpack.c.0.s8 %v4678
  %v4680 = vlaneseq
  %v4681 = vshrl.u32 %v4680, 7
  %v4682 = vsub.s32 %v4679, %v4681
  %v4683 = vrot.slane %v4669, %v4682
  %v4684 = vcombine.low %v4676, %v4683
  %v4685 = vcombine.low %v4125, %v4129
  %v4686 = vcombine.low %v4133, %v4137
  %v4687 = vcombine.low %v4141, %v4145
  %v4688 = vcombine.low %v4149, %v4153
  %v4690 = vunpack.c.l.s4 1966171168
  %v4691 = vunpack.c.0.s8 %v4690
  %v4692 = vlaneseq
  %v4693 = vshrl.u32 %v4692, 7
  %v4694 = vsub.s32 %v4691, %v4693
  %v4695 = vrot.slane %v4685, %v4694
  %v4697 = vunpack.c.l.s4 1966171168
  %v4698 = vunpack.c.0.s8 %v4697
  %v4699 = vlaneseq
  %v4700 = vshrl.u32 %v4699, 7
  %v4701 = vsub.s32 %v4698, %v4700
  %v4702 = vrot.slane %v4686, %v4701
  %v4704 = vunpack.c.l.s4 1966171168
  %v4705 = vunpack.c.0.s8 %v4704
  %v4706 = vlaneseq
  %v4707 = vshrl.u32 %v4706, 7
  %v4708 = vsub.s32 %v4705, %v4707
  %v4709 = vrot.slane %v4687, %v4708
  %v4711 = vunpack.c.l.s4 1966171168
  %v4712 = vunpack.c.0.s8 %v4711
  %v4713 = vlaneseq
  %v4714 = vshrl.u32 %v4713, 7
  %v4715 = vsub.s32 %v4712, %v4714
  %v4716 = vrot.slane %v4688, %v4715
  %v4717 = vcombine.low %v4695, %v4702
  %v4718 = vcombine.low %v4709, %v4716
  %v4720 = vunpack.c.l.s4 1966171168
  %v4721 = vunpack.c.0.s8 %v4720
  %v4722 = vlaneseq
  %v4723 = vshrl.u32 %v4722, 7
  %v4724 = vsub.s32 %v4721, %v4723
  %v4725 = vrot.slane %v4717, %v4724
  %v4727 = vunpack.c.l.s4 1966171168
  %v4728 = vunpack.c.0.s8 %v4727
  %v4729 = vlaneseq
  %v4730 = vshrl.u32 %v4729, 7
  %v4731 = vsub.s32 %v4728, %v4730
  %v4732 = vrot.slane %v4718, %v4731
  %v4733 = vcombine.low %v4725, %v4732
  %v4734 = vcombine.low %v4157, %v4161
  %v4735 = vcombine.low %v4165, %v4169
  %v4736 = vcombine.low %v4173, %v4177
  %v4737 = vcombine.low %v4181, %v4185
  %v4739 = vunpack.c.l.s4 1966171168
  %v4740 = vunpack.c.0.s8 %v4739
  %v4741 = vlaneseq
  %v4742 = vshrl.u32 %v4741, 7
  %v4743 = vsub.s32 %v4740, %v4742
  %v4744 = vrot.slane %v4734, %v4743
  %v4746 = vunpack.c.l.s4 1966171168
  %v4747 = vunpack.c.0.s8 %v4746
  %v4748 = vlaneseq
  %v4749 = vshrl.u32 %v4748, 7
  %v4750 = vsub.s32 %v4747, %v4749
  %v4751 = vrot.slane %v4735, %v4750
  %v4753 = vunpack.c.l.s4 1966171168
  %v4754 = vunpack.c.0.s8 %v4753
  %v4755 = vlaneseq
  %v4756 = vshrl.u32 %v4755, 7
  %v4757 = vsub.s32 %v4754, %v4756
  %v4758 = vrot.slane %v4736, %v4757
  %v4760 = vunpack.c.l.s4 1966171168
  %v4761 = vunpack.c.0.s8 %v4760
  %v4762 = vlaneseq
  %v4763 = vshrl.u32 %v4762, 7
  %v4764 = vsub.s32 %v4761, %v4763
  %v4765 = vrot.slane %v4737, %v4764
  %v4766 = vcombine.low %v4744, %v4751
  %v4767 = vcombine.low %v4758, %v4765
  %v4769 = vunpack.c.l.s4 1966171168
  %v4770 = vunpack.c.0.s8 %v4769
  %v4771 = vlaneseq
  %v4772 = vshrl.u32 %v4771, 7
  %v4773 = vsub.s32 %v4770, %v4772
  %v4774 = vrot.slane %v4766, %v4773
  %v4776 = vunpack.c.l.s4 1966171168
  %v4777 = vunpack.c.0.s8 %v4776
  %v4778 = vlaneseq
  %v4779 = vshrl.u32 %v4778, 7
  %v4780 = vsub.s32 %v4777, %v4779
  %v4781 = vrot.slane %v4767, %v4780
  %v4782 = vcombine.low %v4774, %v4781
  %v4783 = vcombine.low %v4189, %v4193
  %v4784 = vcombine.low %v4197, %v4201
  %v4785 = vcombine.low %v4205, %v4209
  %v4786 = vcombine.low %v4213, %v4217
  %v4788 = vunpack.c.l.s4 1966171168
  %v4789 = vunpack.c.0.s8 %v4788
  %v4790 = vlaneseq
  %v4791 = vshrl.u32 %v4790, 7
  %v4792 = vsub.s32 %v4789, %v4791
  %v4793 = vrot.slane %v4783, %v4792
  %v4795 = vunpack.c.l.s4 1966171168
  %v4796 = vunpack.c.0.s8 %v4795
  %v4797 = vlaneseq
  %v4798 = vshrl.u32 %v4797, 7
  %v4799 = vsub.s32 %v4796, %v4798
  %v4800 = vrot.slane %v4784, %v4799
  %v4802 = vunpack.c.l.s4 1966171168
  %v4803 = vunpack.c.0.s8 %v4802
  %v4804 = vlaneseq
  %v4805 = vshrl.u32 %v4804, 7
  %v4806 = vsub.s32 %v4803, %v4805
  %v4807 = vrot.slane %v4785, %v4806
  %v4809 = vunpack.c.l.s4 1966171168
  %v4810 = vunpack.c.0.s8 %v4809
  %v4811 = vlaneseq
  %v4812 = vshrl.u32 %v4811, 7
  %v4813 = vsub.s32 %v4810, %v4812
  %v4814 = vrot.slane %v4786, %v4813
  %v4815 = vcombine.low %v4793, %v4800
  %v4816 = vcombine.low %v4807, %v4814
  %v4818 = vunpack.c.l.s4 1966171168
  %v4819 = vunpack.c.0.s8 %v4818
  %v4820 = vlaneseq
  %v4821 = vshrl.u32 %v4820, 7
  %v4822 = vsub.s32 %v4819, %v4821
  %v4823 = vrot.slane %v4815, %v4822
  %v4825 = vunpack.c.l.s4 1966171168
  %v4826 = vunpack.c.0.s8 %v4825
  %v4827 = vlaneseq
  %v4828 = vshrl.u32 %v4827, 7
  %v4829 = vsub.s32 %v4826, %v4828
  %v4830 = vrot.slane %v4816, %v4829
  %v4831 = vcombine.low %v4823, %v4830
  %v4832 = vcombine.low %v4221, %v4225
  %v4833 = vcombine.low %v4229, %v4233
  %v4834 = vcombine.low %v4237, %v4241
  %v4835 = vcombine.low %v4245, %v4249
  %v4837 = vunpack.c.l.s4 1966171168
  %v4838 = vunpack.c.0.s8 %v4837
  %v4839 = vlaneseq
  %v4840 = vshrl.u32 %v4839, 7
  %v4841 = vsub.s32 %v4838, %v4840
  %v4842 = vrot.slane %v4832, %v4841
  %v4844 = vunpack.c.l.s4 1966171168
  %v4845 = vunpack.c.0.s8 %v4844
  %v4846 = vlaneseq
  %v4847 = vshrl.u32 %v4846, 7
  %v4848 = vsub.s32 %v4845, %v4847
  %v4849 = vrot.slane %v4833, %v4848
  %v4851 = vunpack.c.l.s4 1966171168
  %v4852 = vunpack.c.0.s8 %v4851
  %v4853 = vlaneseq
  %v4854 = vshrl.u32 %v4853, 7
  %v4855 = vsub.s32 %v4852, %v4854
  %v4856 = vrot.slane %v4834, %v4855
  %v4858 = vunpack.c.l.s4 1966171168
  %v4859 = vunpack.c.0.s8 %v4858
  %v4860 = vlaneseq
  %v4861 = vshrl.u32 %v4860, 7
  %v4862 = vsub.s32 %v4859, %v4861
  %v4863 = vrot.slane %v4835, %v4862
  %v4864 = vcombine.low %v4842, %v4849
  %v4865 = vcombine.low %v4856, %v4863
  %v4867 = vunpack.c.l.s4 1966171168
  %v4868 = vunpack.c.0.s8 %v4867
  %v4869 = vlaneseq
  %v4870 = vshrl.u32 %v4869, 7
  %v4871 = vsub.s32 %v4868, %v4870
  %v4872 = vrot.slane %v4864, %v4871
  %v4874 = vunpack.c.l.s4 1966171168
  %v4875 = vunpack.c.0.s8 %v4874
  %v4876 = vlaneseq
  %v4877 = vshrl.u32 %v4876, 7
  %v4878 = vsub.s32 %v4875, %v4877
  %v4879 = vrot.slane %v4865, %v4878
  %v4880 = vcombine.low %v4872, %v4879
  %v4881 = vcombine.low %v4253, %v4257
  %v4882 = vcombine.low %v4261, %v4265
  %v4883 = vcombine.low %v4269, %v4273
  %v4884 = vcombine.low %v4277, %v4281
  %v4886 = vunpack.c.l.s4 1966171168
  %v4887 = vunpack.c.0.s8 %v4886
  %v4888 = vlaneseq
  %v4889 = vshrl.u32 %v4888, 7
  %v4890 = vsub.s32 %v4887, %v4889
  %v4891 = vrot.slane %v4881, %v4890
  %v4893 = vunpack.c.l.s4 1966171168
  %v4894 = vunpack.c.0.s8 %v4893
  %v4895 = vlaneseq
  %v4896 = vshrl.u32 %v4895, 7
  %v4897 = vsub.s32 %v4894, %v4896
  %v4898 = vrot.slane %v4882, %v4897
  %v4900 = vunpack.c.l.s4 1966171168
  %v4901 = vunpack.c.0.s8 %v4900
  %v4902 = vlaneseq
  %v4903 = vshrl.u32 %v4902, 7
  %v4904 = vsub.s32 %v4901, %v4903
  %v4905 = vrot.slane %v4883, %v4904
  %v4907 = vunpack.c.l.s4 1966171168
  %v4908 = vunpack.c.0.s8 %v4907
  %v4909 = vlaneseq
  %v4910 = vshrl.u32 %v4909, 7
  %v4911 = vsub.s32 %v4908, %v4910
  %v4912 = vrot.slane %v4884, %v4911
  %v4913 = vcombine.low %v4891, %v4898
  %v4914 = vcombine.low %v4905, %v4912
  %v4916 = vunpack.c.l.s4 1966171168
  %v4917 = vunpack.c.0.s8 %v4916
  %v4918 = vlaneseq
  %v4919 = vshrl.u32 %v4918, 7
  %v4920 = vsub.s32 %v4917, %v4919
  %v4921 = vrot.slane %v4913, %v4920
  %v4923 = vunpack.c.l.s4 1966171168
  %v4924 = vunpack.c.0.s8 %v4923
  %v4925 = vlaneseq
  %v4926 = vshrl.u32 %v4925, 7
  %v4927 = vsub.s32 %v4924, %v4926
  %v4928 = vrot.slane %v4914, %v4927
  %v4929 = vcombine.low %v4921, %v4928
  %v4930 = vcombine.low %v4285, %v4289
  %v4931 = vcombine.low %v4293, %v4297
  %v4932 = vcombine.low %v4301, %v4305
  %v4933 = vcombine.low %v4309, %v4313
  %v4935 = vunpack.c.l.s4 1966171168
  %v4936 = vunpack.c.0.s8 %v4935
  %v4937 = vlaneseq
  %v4938 = vshrl.u32 %v4937, 7
  %v4939 = vsub.s32 %v4936, %v4938
  %v4940 = vrot.slane %v4930, %v4939
  %v4942 = vunpack.c.l.s4 1966171168
  %v4943 = vunpack.c.0.s8 %v4942
  %v4944 = vlaneseq
  %v4945 = vshrl.u32 %v4944, 7
  %v4946 = vsub.s32 %v4943, %v4945
  %v4947 = vrot.slane %v4931, %v4946
  %v4949 = vunpack.c.l.s4 1966171168
  %v4950 = vunpack.c.0.s8 %v4949
  %v4951 = vlaneseq
  %v4952 = vshrl.u32 %v4951, 7
  %v4953 = vsub.s32 %v4950, %v4952
  %v4954 = vrot.slane %v4932, %v4953
  %v4956 = vunpack.c.l.s4 1966171168
  %v4957 = vunpack.c.0.s8 %v4956
  %v4958 = vlaneseq
  %v4959 = vshrl.u32 %v4958, 7
  %v4960 = vsub.s32 %v4957, %v4959
  %v4961 = vrot.slane %v4933, %v4960
  %v4962 = vcombine.low %v4940, %v4947
  %v4963 = vcombine.low %v4954, %v4961
  %v4965 = vunpack.c.l.s4 1966171168
  %v4966 = vunpack.c.0.s8 %v4965
  %v4967 = vlaneseq
  %v4968 = vshrl.u32 %v4967, 7
  %v4969 = vsub.s32 %v4966, %v4968
  %v4970 = vrot.slane %v4962, %v4969
  %v4972 = vunpack.c.l.s4 1966171168
  %v4973 = vunpack.c.0.s8 %v4972
  %v4974 = vlaneseq
  %v4975 = vshrl.u32 %v4974, 7
  %v4976 = vsub.s32 %v4973, %v4975
  %v4977 = vrot.slane %v4963, %v4976
  %v4978 = vcombine.low %v4970, %v4977
  %v4979 = vcombine.low %v4317, %v4321
  %v4980 = vcombine.low %v4325, %v4329
  %v4981 = vcombine.low %v4333, %v4337
  %v4982 = vcombine.low %v4341, %v4345
  %v4984 = vunpack.c.l.s4 1966171168
  %v4985 = vunpack.c.0.s8 %v4984
  %v4986 = vlaneseq
  %v4987 = vshrl.u32 %v4986, 7
  %v4988 = vsub.s32 %v4985, %v4987
  %v4989 = vrot.slane %v4979, %v4988
  %v4991 = vunpack.c.l.s4 1966171168
  %v4992 = vunpack.c.0.s8 %v4991
  %v4993 = vlaneseq
  %v4994 = vshrl.u32 %v4993, 7
  %v4995 = vsub.s32 %v4992, %v4994
  %v4996 = vrot.slane %v4980, %v4995
  %v4998 = vunpack.c.l.s4 1966171168
  %v4999 = vunpack.c.0.s8 %v4998
  %v5000 = vlaneseq
  %v5001 = vshrl.u32 %v5000, 7
  %v5002 = vsub.s32 %v4999, %v5001
  %v5003 = vrot.slane %v4981, %v5002
  %v5005 = vunpack.c.l.s4 1966171168
  %v5006 = vunpack.c.0.s8 %v5005
  %v5007 = vlaneseq
  %v5008 = vshrl.u32 %v5007, 7
  %v5009 = vsub.s32 %v5006, %v5008
  %v5010 = vrot.slane %v4982, %v5009
  %v5011 = vcombine.low %v4989, %v4996
  %v5012 = vcombine.low %v5003, %v5010
  %v5014 = vunpack.c.l.s4 1966171168
  %v5015 = vunpack.c.0.s8 %v5014
  %v5016 = vlaneseq
  %v5017 = vshrl.u32 %v5016, 7
  %v5018 = vsub.s32 %v5015, %v5017
  %v5019 = vrot.slane %v5011, %v5018
  %v5021 = vunpack.c.l.s4 1966171168
  %v5022 = vunpack.c.0.s8 %v5021
  %v5023 = vlaneseq
  %v5024 = vshrl.u32 %v5023, 7
  %v5025 = vsub.s32 %v5022, %v5024
  %v5026 = vrot.slane %v5012, %v5025
  %v5027 = vcombine.low %v5019, %v5026
  %v5028 = vcombine.low %v4349, %v4353
  %v5029 = vcombine.low %v4357, %v4361
  %v5030 = vcombine.low %v4365, %v4369
  %v5031 = vcombine.low %v4373, %v4377
  %v5033 = vunpack.c.l.s4 1966171168
  %v5034 = vunpack.c.0.s8 %v5033
  %v5035 = vlaneseq
  %v5036 = vshrl.u32 %v5035, 7
  %v5037 = vsub.s32 %v5034, %v5036
  %v5038 = vrot.slane %v5028, %v5037
  %v5040 = vunpack.c.l.s4 1966171168
  %v5041 = vunpack.c.0.s8 %v5040
  %v5042 = vlaneseq
  %v5043 = vshrl.u32 %v5042, 7
  %v5044 = vsub.s32 %v5041, %v5043
  %v5045 = vrot.slane %v5029, %v5044
  %v5047 = vunpack.c.l.s4 1966171168
  %v5048 = vunpack.c.0.s8 %v5047
  %v5049 = vlaneseq
  %v5050 = vshrl.u32 %v5049, 7
  %v5051 = vsub.s32 %v5048, %v5050
  %v5052 = vrot.slane %v5030, %v5051
  %v5054 = vunpack.c.l.s4 1966171168
  %v5055 = vunpack.c.0.s8 %v5054
  %v5056 = vlaneseq
  %v5057 = vshrl.u32 %v5056, 7
  %v5058 = vsub.s32 %v5055, %v5057
  %v5059 = vrot.slane %v5031, %v5058
  %v5060 = vcombine.low %v5038, %v5045
  %v5061 = vcombine.low %v5052, %v5059
  %v5063 = vunpack.c.l.s4 1966171168
  %v5064 = vunpack.c.0.s8 %v5063
  %v5065 = vlaneseq
  %v5066 = vshrl.u32 %v5065, 7
  %v5067 = vsub.s32 %v5064, %v5066
  %v5068 = vrot.slane %v5060, %v5067
  %v5070 = vunpack.c.l.s4 1966171168
  %v5071 = vunpack.c.0.s8 %v5070
  %v5072 = vlaneseq
  %v5073 = vshrl.u32 %v5072, 7
  %v5074 = vsub.s32 %v5071, %v5073
  %v5075 = vrot.slane %v5061, %v5074
  %v5076 = vcombine.low %v5068, %v5075
  %v5077 = vcombine.low %v4381, %v4385
  %v5078 = vcombine.low %v4389, %v4393
  %v5079 = vcombine.low %v4397, %v4401
  %v5080 = vcombine.low %v4405, %v4409
  %v5082 = vunpack.c.l.s4 1966171168
  %v5083 = vunpack.c.0.s8 %v5082
  %v5084 = vlaneseq
  %v5085 = vshrl.u32 %v5084, 7
  %v5086 = vsub.s32 %v5083, %v5085
  %v5087 = vrot.slane %v5077, %v5086
  %v5089 = vunpack.c.l.s4 1966171168
  %v5090 = vunpack.c.0.s8 %v5089
  %v5091 = vlaneseq
  %v5092 = vshrl.u32 %v5091, 7
  %v5093 = vsub.s32 %v5090, %v5092
  %v5094 = vrot.slane %v5078, %v5093
  %v5096 = vunpack.c.l.s4 1966171168
  %v5097 = vunpack.c.0.s8 %v5096
  %v5098 = vlaneseq
  %v5099 = vshrl.u32 %v5098, 7
  %v5100 = vsub.s32 %v5097, %v5099
  %v5101 = vrot.slane %v5079, %v5100
  %v5103 = vunpack.c.l.s4 1966171168
  %v5104 = vunpack.c.0.s8 %v5103
  %v5105 = vlaneseq
  %v5106 = vshrl.u32 %v5105, 7
  %v5107 = vsub.s32 %v5104, %v5106
  %v5108 = vrot.slane %v5080, %v5107
  %v5109 = vcombine.low %v5087, %v5094
  %v5110 = vcombine.low %v5101, %v5108
  %v5112 = vunpack.c.l.s4 1966171168
  %v5113 = vunpack.c.0.s8 %v5112
  %v5114 = vlaneseq
  %v5115 = vshrl.u32 %v5114, 7
  %v5116 = vsub.s32 %v5113, %v5115
  %v5117 = vrot.slane %v5109, %v5116
  %v5119 = vunpack.c.l.s4 1966171168
  %v5120 = vunpack.c.0.s8 %v5119
  %v5121 = vlaneseq
  %v5122 = vshrl.u32 %v5121, 7
  %v5123 = vsub.s32 %v5120, %v5122
  %v5124 = vrot.slane %v5110, %v5123
  %v5125 = vcombine.low %v5117, %v5124
  %v5126 = vcombine.low %v4413, %v4417
  %v5127 = vcombine.low %v4421, %v4425
  %v5128 = vcombine.low %v4429, %v4433
  %v5129 = vcombine.low %v4437, %v4441
  %v5131 = vunpack.c.l.s4 1966171168
  %v5132 = vunpack.c.0.s8 %v5131
  %v5133 = vlaneseq
  %v5134 = vshrl.u32 %v5133, 7
  %v5135 = vsub.s32 %v5132, %v5134
  %v5136 = vrot.slane %v5126, %v5135
  %v5138 = vunpack.c.l.s4 1966171168
  %v5139 = vunpack.c.0.s8 %v5138
  %v5140 = vlaneseq
  %v5141 = vshrl.u32 %v5140, 7
  %v5142 = vsub.s32 %v5139, %v5141
  %v5143 = vrot.slane %v5127, %v5142
  %v5145 = vunpack.c.l.s4 1966171168
  %v5146 = vunpack.c.0.s8 %v5145
  %v5147 = vlaneseq
  %v5148 = vshrl.u32 %v5147, 7
  %v5149 = vsub.s32 %v5146, %v5148
  %v5150 = vrot.slane %v5128, %v5149
  %v5152 = vunpack.c.l.s4 1966171168
  %v5153 = vunpack.c.0.s8 %v5152
  %v5154 = vlaneseq
  %v5155 = vshrl.u32 %v5154, 7
  %v5156 = vsub.s32 %v5153, %v5155
  %v5157 = vrot.slane %v5129, %v5156
  %v5158 = vcombine.low %v5136, %v5143
  %v5159 = vcombine.low %v5150, %v5157
  %v5161 = vunpack.c.l.s4 1966171168
  %v5162 = vunpack.c.0.s8 %v5161
  %v5163 = vlaneseq
  %v5164 = vshrl.u32 %v5163, 7
  %v5165 = vsub.s32 %v5162, %v5164
  %v5166 = vrot.slane %v5158, %v5165
  %v5168 = vunpack.c.l.s4 1966171168
  %v5169 = vunpack.c.0.s8 %v5168
  %v5170 = vlaneseq
  %v5171 = vshrl.u32 %v5170, 7
  %v5172 = vsub.s32 %v5169, %v5171
  %v5173 = vrot.slane %v5159, %v5172
  %v5174 = vcombine.low %v5166, %v5173
  %v5175 = vcombine.low %v4445, %v4449
  %v5176 = vcombine.low %v4453, %v4457
  %v5177 = vcombine.low %v4461, %v4465
  %v5178 = vcombine.low %v4469, %v4473
  %v5180 = vunpack.c.l.s4 1966171168
  %v5181 = vunpack.c.0.s8 %v5180
  %v5182 = vlaneseq
  %v5183 = vshrl.u32 %v5182, 7
  %v5184 = vsub.s32 %v5181, %v5183
  %v5185 = vrot.slane %v5175, %v5184
  %v5187 = vunpack.c.l.s4 1966171168
  %v5188 = vunpack.c.0.s8 %v5187
  %v5189 = vlaneseq
  %v5190 = vshrl.u32 %v5189, 7
  %v5191 = vsub.s32 %v5188, %v5190
  %v5192 = vrot.slane %v5176, %v5191
  %v5194 = vunpack.c.l.s4 1966171168
  %v5195 = vunpack.c.0.s8 %v5194
  %v5196 = vlaneseq
  %v5197 = vshrl.u32 %v5196, 7
  %v5198 = vsub.s32 %v5195, %v5197
  %v5199 = vrot.slane %v5177, %v5198
  %v5201 = vunpack.c.l.s4 1966171168
  %v5202 = vunpack.c.0.s8 %v5201
  %v5203 = vlaneseq
  %v5204 = vshrl.u32 %v5203, 7
  %v5205 = vsub.s32 %v5202, %v5204
  %v5206 = vrot.slane %v5178, %v5205
  %v5207 = vcombine.low %v5185, %v5192
  %v5208 = vcombine.low %v5199, %v5206
  %v5210 = vunpack.c.l.s4 1966171168
  %v5211 = vunpack.c.0.s8 %v5210
  %v5212 = vlaneseq
  %v5213 = vshrl.u32 %v5212, 7
  %v5214 = vsub.s32 %v5211, %v5213
  %v5215 = vrot.slane %v5207, %v5214
  %v5217 = vunpack.c.l.s4 1966171168
  %v5218 = vunpack.c.0.s8 %v5217
  %v5219 = vlaneseq
  %v5220 = vshrl.u32 %v5219, 7
  %v5221 = vsub.s32 %v5218, %v5220
  %v5222 = vrot.slane %v5208, %v5221
  %v5223 = vcombine.low %v5215, %v5222
  %v5224 = vcombine.low %v4477, %v4481
  %v5225 = vcombine.low %v4485, %v4489
  %v5226 = vcombine.low %v4493, %v4497
  %v5227 = vcombine.low %v4501, %v4505
  %v5229 = vunpack.c.l.s4 1966171168
  %v5230 = vunpack.c.0.s8 %v5229
  %v5231 = vlaneseq
  %v5232 = vshrl.u32 %v5231, 7
  %v5233 = vsub.s32 %v5230, %v5232
  %v5234 = vrot.slane %v5224, %v5233
  %v5236 = vunpack.c.l.s4 1966171168
  %v5237 = vunpack.c.0.s8 %v5236
  %v5238 = vlaneseq
  %v5239 = vshrl.u32 %v5238, 7
  %v5240 = vsub.s32 %v5237, %v5239
  %v5241 = vrot.slane %v5225, %v5240
  %v5243 = vunpack.c.l.s4 1966171168
  %v5244 = vunpack.c.0.s8 %v5243
  %v5245 = vlaneseq
  %v5246 = vshrl.u32 %v5245, 7
  %v5247 = vsub.s32 %v5244, %v5246
  %v5248 = vrot.slane %v5226, %v5247
  %v5250 = vunpack.c.l.s4 1966171168
  %v5251 = vunpack.c.0.s8 %v5250
  %v5252 = vlaneseq
  %v5253 = vshrl.u32 %v5252, 7
  %v5254 = vsub.s32 %v5251, %v5253
  %v5255 = vrot.slane %v5227, %v5254
  %v5256 = vcombine.low %v5234, %v5241
  %v5257 = vcombine.low %v5248, %v5255
  %v5259 = vunpack.c.l.s4 1966171168
  %v5260 = vunpack.c.0.s8 %v5259
  %v5261 = vlaneseq
  %v5262 = vshrl.u32 %v5261, 7
  %v5263 = vsub.s32 %v5260, %v5262
  %v5264 = vrot.slane %v5256, %v5263
  %v5266 = vunpack.c.l.s4 1966171168
  %v5267 = vunpack.c.0.s8 %v5266
  %v5268 = vlaneseq
  %v5269 = vshrl.u32 %v5268, 7
  %v5270 = vsub.s32 %v5267, %v5269
  %v5271 = vrot.slane %v5257, %v5270
  %v5272 = vcombine.low %v5264, %v5271
  %v5273 = vcombine.low %v4509, %v4513
  %v5274 = vcombine.low %v4517, %v4521
  %v5275 = vcombine.low %v4525, %v4529
  %v5276 = vcombine.low %v4533, %v4537
  %v5278 = vunpack.c.l.s4 1966171168
  %v5279 = vunpack.c.0.s8 %v5278
  %v5280 = vlaneseq
  %v5281 = vshrl.u32 %v5280, 7
  %v5282 = vsub.s32 %v5279, %v5281
  %v5283 = vrot.slane %v5273, %v5282
  %v5285 = vunpack.c.l.s4 1966171168
  %v5286 = vunpack.c.0.s8 %v5285
  %v5287 = vlaneseq
  %v5288 = vshrl.u32 %v5287, 7
  %v5289 = vsub.s32 %v5286, %v5288
  %v5290 = vrot.slane %v5274, %v5289
  %v5292 = vunpack.c.l.s4 1966171168
  %v5293 = vunpack.c.0.s8 %v5292
  %v5294 = vlaneseq
  %v5295 = vshrl.u32 %v5294, 7
  %v5296 = vsub.s32 %v5293, %v5295
  %v5297 = vrot.slane %v5275, %v5296
  %v5299 = vunpack.c.l.s4 1966171168
  %v5300 = vunpack.c.0.s8 %v5299
  %v5301 = vlaneseq
  %v5302 = vshrl.u32 %v5301, 7
  %v5303 = vsub.s32 %v5300, %v5302
  %v5304 = vrot.slane %v5276, %v5303
  %v5305 = vcombine.low %v5283, %v5290
  %v5306 = vcombine.low %v5297, %v5304
  %v5308 = vunpack.c.l.s4 1966171168
  %v5309 = vunpack.c.0.s8 %v5308
  %v5310 = vlaneseq
  %v5311 = vshrl.u32 %v5310, 7
  %v5312 = vsub.s32 %v5309, %v5311
  %v5313 = vrot.slane %v5305, %v5312
  %v5315 = vunpack.c.l.s4 1966171168
  %v5316 = vunpack.c.0.s8 %v5315
  %v5317 = vlaneseq
  %v5318 = vshrl.u32 %v5317, 7
  %v5319 = vsub.s32 %v5316, %v5318
  %v5320 = vrot.slane %v5306, %v5319
  %v5321 = vcombine.low %v5313, %v5320
  %5322 = vset.pattern.permute.xlu0 0
  %5323 = vperm.xlu0 %5322, %v4586
  %v5324 = vpop.permute.xlu0 %5323
  %5325 = vset.pattern.permute.xlu0 0
  %5326 = vperm.xlu0 %5325, %v4635
  %v5327 = vpop.permute.xlu0 %5326
  %5328 = vset.pattern.permute.xlu0 0
  %5329 = vperm.xlu0 %5328, %v4684
  %v5330 = vpop.permute.xlu0 %5329
  %5331 = vset.pattern.permute.xlu0 0
  %5332 = vperm.xlu0 %5331, %v4733
  %v5333 = vpop.permute.xlu0 %5332
  %5334 = vset.pattern.permute.xlu0 0
  %5335 = vperm.xlu0 %5334, %v4782
  %v5336 = vpop.permute.xlu0 %5335
  %5337 = vset.pattern.permute.xlu0 0
  %5338 = vperm.xlu0 %5337, %v4831
  %v5339 = vpop.permute.xlu0 %5338
  %5340 = vset.pattern.permute.xlu0 0
  %5341 = vperm.xlu0 %5340, %v4880
  %v5342 = vpop.permute.xlu0 %5341
  %5343 = vset.pattern.permute.xlu0 0
  %5344 = vperm.xlu0 %5343, %v4929
  %v5345 = vpop.permute.xlu0 %5344
  %5346 = vset.pattern.permute.xlu0 0
  %5347 = vperm.xlu0 %5346, %v4978
  %v5348 = vpop.permute.xlu0 %5347
  %5349 = vset.pattern.permute.xlu0 0
  %5350 = vperm.xlu0 %5349, %v5027
  %v5351 = vpop.permute.xlu0 %5350
  %5352 = vset.pattern.permute.xlu0 0
  %5353 = vperm.xlu0 %5352, %v5076
  %v5354 = vpop.permute.xlu0 %5353
  %5355 = vset.pattern.permute.xlu0 0
  %5356 = vperm.xlu0 %5355, %v5125
  %v5357 = vpop.permute.xlu0 %5356
  %5358 = vset.pattern.permute.xlu0 0
  %5359 = vperm.xlu0 %5358, %v5174
  %v5360 = vpop.permute.xlu0 %5359
  %5361 = vset.pattern.permute.xlu0 0
  %5362 = vperm.xlu0 %5361, %v5223
  %v5363 = vpop.permute.xlu0 %5362
  %5364 = vset.pattern.permute.xlu0 0
  %5365 = vperm.xlu0 %5364, %v5272
  %v5366 = vpop.permute.xlu0 %5365
  %5367 = vset.pattern.permute.xlu0 0
  %5368 = vperm.xlu0 %5367, %v5321
  %v5369 = vpop.permute.xlu0 %5368
  %v5370 = vlaneseq
  %v5371 = vshrl.u32 %v5370, 7
  %v5372 = vsub.s32 %v1617, %v5371
  %v5373 = vrot.slane %v5324, %v5372
  %v5374 = vlaneseq
  %v5375 = vshrl.u32 %v5374, 7
  %v5376 = vsub.s32 %v1622, %v5375
  %v5377 = vrot.slane %v5327, %v5376
  %v5378 = vsel %vm1627, %v5377, %v5373
  %v5379 = vlaneseq
  %v5380 = vshrl.u32 %v5379, 7
  %v5381 = vsub.s32 %v1629, %v5380
  %v5382 = vrot.slane %v5330, %v5381
  %v5383 = vsel %vm1634, %v5382, %v5378
  %v5384 = vlaneseq
  %v5385 = vshrl.u32 %v5384, 7
  %v5386 = vsub.s32 %v1636, %v5385
  %v5387 = vrot.slane %v5333, %v5386
  %v5388 = vsel %vm1641, %v5387, %v5383
  %v5389 = vlaneseq
  %v5390 = vshrl.u32 %v5389, 7
  %v5391 = vsub.s32 %v1643, %v5390
  %v5392 = vrot.slane %v5336, %v5391
  %v5393 = vsel %vm1648, %v5392, %v5388
  %v5394 = vlaneseq
  %v5395 = vshrl.u32 %v5394, 7
  %v5396 = vsub.s32 %v1650, %v5395
  %v5397 = vrot.slane %v5339, %v5396
  %v5398 = vsel %vm1655, %v5397, %v5393
  %v5399 = vlaneseq
  %v5400 = vshrl.u32 %v5399, 7
  %v5401 = vsub.s32 %v1657, %v5400
  %v5402 = vrot.slane %v5342, %v5401
  %v5403 = vsel %vm1662, %v5402, %v5398
  %v5404 = vlaneseq
  %v5405 = vshrl.u32 %v5404, 7
  %v5406 = vsub.s32 %v1664, %v5405
  %v5407 = vrot.slane %v5345, %v5406
  %v5408 = vsel %vm1669, %v5407, %v5403
  %v5409 = vlaneseq
  %v5410 = vshrl.u32 %v5409, 7
  %v5411 = vsub.s32 %v1671, %v5410
  %v5412 = vrot.slane %v5348, %v5411
  %v5413 = vsel %vm1676, %v5412, %v5408
  %v5414 = vlaneseq
  %v5415 = vshrl.u32 %v5414, 7
  %v5416 = vsub.s32 %v1678, %v5415
  %v5417 = vrot.slane %v5351, %v5416
  %v5418 = vsel %vm1683, %v5417, %v5413
  %v5419 = vlaneseq
  %v5420 = vshrl.u32 %v5419, 7
  %v5421 = vsub.s32 %v1685, %v5420
  %v5422 = vrot.slane %v5354, %v5421
  %v5423 = vsel %vm1690, %v5422, %v5418
  %v5424 = vlaneseq
  %v5425 = vshrl.u32 %v5424, 7
  %v5426 = vsub.s32 %v1692, %v5425
  %v5427 = vrot.slane %v5357, %v5426
  %v5428 = vsel %vm1697, %v5427, %v5423
  %v5429 = vlaneseq
  %v5430 = vshrl.u32 %v5429, 7
  %v5431 = vsub.s32 %v1699, %v5430
  %v5432 = vrot.slane %v5360, %v5431
  %v5433 = vsel %vm1704, %v5432, %v5428
  %v5434 = vlaneseq
  %v5435 = vshrl.u32 %v5434, 7
  %v5436 = vsub.s32 %v1706, %v5435
  %v5437 = vrot.slane %v5363, %v5436
  %v5438 = vsel %vm1711, %v5437, %v5433
  %v5439 = vlaneseq
  %v5440 = vshrl.u32 %v5439, 7
  %v5441 = vsub.s32 %v1713, %v5440
  %v5442 = vrot.slane %v5366, %v5441
  %v5443 = vsel %vm1718, %v5442, %v5438
  %v5444 = vlaneseq
  %v5445 = vshrl.u32 %v5444, 7
  %v5446 = vsub.s32 %v1720, %v5445
  %v5447 = vrot.slane %v5369, %v5446
  %v5448 = vsel %vm1725, %v5447, %v5443
  %v5450 = vunpack.c.l.s4 1966171168
  %v5451 = vunpack.c.0.s8 %v5450
  %v5452 = vlaneseq
  %v5453 = vshrl.u32 %v5452, 7
  %v5454 = vsub.s32 %v5451, %v5453
  %v5455 = vrot.slane %v5448, %v5454
  %v5457 = vunpack.c.l.s4 1966171168
  %v5458 = vunpack.c.0.s8 %v5457
  %v5459 = vlaneseq
  %v5460 = vshrl.u32 %v5459, 7
  %v5461 = vsub.s32 %v5458, %v5460
  %v5462 = vrot.slane %v5455, %v5461
  %v5464 = vmul.f32 %v4009, %v5462
  %v5465 = vld [vmem:[%s2 + $0x1] sm:$0x1]
  %v5467 = vlaneseq
  %v5468 = vshrl.u32 %v5467, 7
  %v5469 = vsub.s32 0, %v5468
  %v5470 = vrot.slane %v5464, %v5469
  %5472 = vbcast.lane.b32.xlu0 %v5470, 256
  %v5473 = vpop.permute.xlu0 %5472
  %s5475 = sor.u32 256, 8
  %5476 = vbcast.lane.b32.xlu0 %v5470, %s5475
  %v5477 = vpop.permute.xlu0 %5476
  %s5479 = sor.u32 256, 16
  %5480 = vbcast.lane.b32.xlu0 %v5470, %s5479
  %v5481 = vpop.permute.xlu0 %5480
  %s5483 = sor.u32 256, 24
  %5484 = vbcast.lane.b32.xlu0 %v5470, %s5483
  %v5485 = vpop.permute.xlu0 %5484
  %s5487 = sor.u32 256, 32
  %5488 = vbcast.lane.b32.xlu0 %v5470, %s5487
  %v5489 = vpop.permute.xlu0 %5488
  %s5491 = sor.u32 256, 40
  %5492 = vbcast.lane.b32.xlu0 %v5470, %s5491
  %v5493 = vpop.permute.xlu0 %5492
  %s5495 = sor.u32 256, 48
  %5496 = vbcast.lane.b32.xlu0 %v5470, %s5495
  %v5497 = vpop.permute.xlu0 %5496
  %s5499 = sor.u32 256, 56
  %5500 = vbcast.lane.b32.xlu0 %v5470, %s5499
  %v5501 = vpop.permute.xlu0 %5500
  %s5503 = sor.u32 256, 64
  %5504 = vbcast.lane.b32.xlu0 %v5470, %s5503
  %v5505 = vpop.permute.xlu0 %5504
  %s5507 = sor.u32 256, 72
  %5508 = vbcast.lane.b32.xlu0 %v5470, %s5507
  %v5509 = vpop.permute.xlu0 %5508
  %s5511 = sor.u32 256, 80
  %5512 = vbcast.lane.b32.xlu0 %v5470, %s5511
  %v5513 = vpop.permute.xlu0 %5512
  %s5515 = sor.u32 256, 88
  %5516 = vbcast.lane.b32.xlu0 %v5470, %s5515
  %v5517 = vpop.permute.xlu0 %5516
  %s5519 = sor.u32 256, 96
  %5520 = vbcast.lane.b32.xlu0 %v5470, %s5519
  %v5521 = vpop.permute.xlu0 %5520
  %s5523 = sor.u32 256, 104
  %5524 = vbcast.lane.b32.xlu0 %v5470, %s5523
  %v5525 = vpop.permute.xlu0 %5524
  %s5527 = sor.u32 256, 112
  %5528 = vbcast.lane.b32.xlu0 %v5470, %s5527
  %v5529 = vpop.permute.xlu0 %5528
  %s5531 = sor.u32 256, 120
  %5532 = vbcast.lane.b32.xlu0 %v5470, %s5531
  %v5533 = vpop.permute.xlu0 %5532
  %v5550 = vmul.f32 %v3849, %v5473
  %v5551 = vmul.f32 %v3850, %v5477
  %v5552 = vmul.f32 %v3851, %v5481
  %v5553 = vmul.f32 %v3852, %v5485
  %v5554 = vmul.f32 %v3853, %v5489
  %v5555 = vmul.f32 %v3854, %v5493
  %v5556 = vmul.f32 %v3855, %v5497
  %v5557 = vmul.f32 %v3856, %v5501
  %v5558 = vmul.f32 %v3857, %v5505
  %v5559 = vmul.f32 %v3858, %v5509
  %v5560 = vmul.f32 %v3859, %v5513
  %v5561 = vmul.f32 %v3860, %v5517
  %v5562 = vmul.f32 %v3861, %v5521
  %v5563 = vmul.f32 %v3862, %v5525
  %v5564 = vmul.f32 %v3863, %v5529
  %v5565 = vmul.f32 %v3864, %v5533
  %v5582 = vcombine.high %v5550, %v5550
  %v5584 = vunpack.c.l.s4 1966171168
  %v5585 = vunpack.c.0.s8 %v5584
  %v5586 = vlaneseq
  %v5587 = vshrl.u32 %v5586, 7
  %v5588 = vsub.s32 %v5585, %v5587
  %v5589 = vrot.slane %v5550, %v5588
  %v5591 = vunpack.c.l.s4 1966171168
  %v5592 = vunpack.c.0.s8 %v5591
  %v5593 = vlaneseq
  %v5594 = vshrl.u32 %v5593, 7
  %v5595 = vsub.s32 %v5592, %v5594
  %v5596 = vrot.slane %v5582, %v5595
  %v5597 = vcombine.high %v5589, %v5589
  %v5598 = vcombine.high %v5596, %v5596
  %v5600 = vunpack.c.l.s4 1966171168
  %v5601 = vunpack.c.0.s8 %v5600
  %v5602 = vlaneseq
  %v5603 = vshrl.u32 %v5602, 7
  %v5604 = vsub.s32 %v5601, %v5603
  %v5605 = vrot.slane %v5589, %v5604
  %v5607 = vunpack.c.l.s4 1966171168
  %v5608 = vunpack.c.0.s8 %v5607
  %v5609 = vlaneseq
  %v5610 = vshrl.u32 %v5609, 7
  %v5611 = vsub.s32 %v5608, %v5610
  %v5612 = vrot.slane %v5596, %v5611
  %v5614 = vunpack.c.l.s4 1966171168
  %v5615 = vunpack.c.0.s8 %v5614
  %v5616 = vlaneseq
  %v5617 = vshrl.u32 %v5616, 7
  %v5618 = vsub.s32 %v5615, %v5617
  %v5619 = vrot.slane %v5597, %v5618
  %v5621 = vunpack.c.l.s4 1966171168
  %v5622 = vunpack.c.0.s8 %v5621
  %v5623 = vlaneseq
  %v5624 = vshrl.u32 %v5623, 7
  %v5625 = vsub.s32 %v5622, %v5624
  %v5626 = vrot.slane %v5598, %v5625
  %v5627 = vcombine.high %v5605, %v5605
  %v5628 = vcombine.high %v5612, %v5612
  %v5629 = vcombine.high %v5619, %v5619
  %v5630 = vcombine.high %v5626, %v5626
  %v5631 = vcombine.high %v5551, %v5551
  %v5633 = vunpack.c.l.s4 1966171168
  %v5634 = vunpack.c.0.s8 %v5633
  %v5635 = vlaneseq
  %v5636 = vshrl.u32 %v5635, 7
  %v5637 = vsub.s32 %v5634, %v5636
  %v5638 = vrot.slane %v5551, %v5637
  %v5640 = vunpack.c.l.s4 1966171168
  %v5641 = vunpack.c.0.s8 %v5640
  %v5642 = vlaneseq
  %v5643 = vshrl.u32 %v5642, 7
  %v5644 = vsub.s32 %v5641, %v5643
  %v5645 = vrot.slane %v5631, %v5644
  %v5646 = vcombine.high %v5638, %v5638
  %v5647 = vcombine.high %v5645, %v5645
  %v5649 = vunpack.c.l.s4 1966171168
  %v5650 = vunpack.c.0.s8 %v5649
  %v5651 = vlaneseq
  %v5652 = vshrl.u32 %v5651, 7
  %v5653 = vsub.s32 %v5650, %v5652
  %v5654 = vrot.slane %v5638, %v5653
  %v5656 = vunpack.c.l.s4 1966171168
  %v5657 = vunpack.c.0.s8 %v5656
  %v5658 = vlaneseq
  %v5659 = vshrl.u32 %v5658, 7
  %v5660 = vsub.s32 %v5657, %v5659
  %v5661 = vrot.slane %v5645, %v5660
  %v5663 = vunpack.c.l.s4 1966171168
  %v5664 = vunpack.c.0.s8 %v5663
  %v5665 = vlaneseq
  %v5666 = vshrl.u32 %v5665, 7
  %v5667 = vsub.s32 %v5664, %v5666
  %v5668 = vrot.slane %v5646, %v5667
  %v5670 = vunpack.c.l.s4 1966171168
  %v5671 = vunpack.c.0.s8 %v5670
  %v5672 = vlaneseq
  %v5673 = vshrl.u32 %v5672, 7
  %v5674 = vsub.s32 %v5671, %v5673
  %v5675 = vrot.slane %v5647, %v5674
  %v5676 = vcombine.high %v5654, %v5654
  %v5677 = vcombine.high %v5661, %v5661
  %v5678 = vcombine.high %v5668, %v5668
  %v5679 = vcombine.high %v5675, %v5675
  %v5680 = vcombine.high %v5552, %v5552
  %v5682 = vunpack.c.l.s4 1966171168
  %v5683 = vunpack.c.0.s8 %v5682
  %v5684 = vlaneseq
  %v5685 = vshrl.u32 %v5684, 7
  %v5686 = vsub.s32 %v5683, %v5685
  %v5687 = vrot.slane %v5552, %v5686
  %v5689 = vunpack.c.l.s4 1966171168
  %v5690 = vunpack.c.0.s8 %v5689
  %v5691 = vlaneseq
  %v5692 = vshrl.u32 %v5691, 7
  %v5693 = vsub.s32 %v5690, %v5692
  %v5694 = vrot.slane %v5680, %v5693
  %v5695 = vcombine.high %v5687, %v5687
  %v5696 = vcombine.high %v5694, %v5694
  %v5698 = vunpack.c.l.s4 1966171168
  %v5699 = vunpack.c.0.s8 %v5698
  %v5700 = vlaneseq
  %v5701 = vshrl.u32 %v5700, 7
  %v5702 = vsub.s32 %v5699, %v5701
  %v5703 = vrot.slane %v5687, %v5702
  %v5705 = vunpack.c.l.s4 1966171168
  %v5706 = vunpack.c.0.s8 %v5705
  %v5707 = vlaneseq
  %v5708 = vshrl.u32 %v5707, 7
  %v5709 = vsub.s32 %v5706, %v5708
  %v5710 = vrot.slane %v5694, %v5709
  %v5712 = vunpack.c.l.s4 1966171168
  %v5713 = vunpack.c.0.s8 %v5712
  %v5714 = vlaneseq
  %v5715 = vshrl.u32 %v5714, 7
  %v5716 = vsub.s32 %v5713, %v5715
  %v5717 = vrot.slane %v5695, %v5716
  %v5719 = vunpack.c.l.s4 1966171168
  %v5720 = vunpack.c.0.s8 %v5719
  %v5721 = vlaneseq
  %v5722 = vshrl.u32 %v5721, 7
  %v5723 = vsub.s32 %v5720, %v5722
  %v5724 = vrot.slane %v5696, %v5723
  %v5725 = vcombine.high %v5703, %v5703
  %v5726 = vcombine.high %v5710, %v5710
  %v5727 = vcombine.high %v5717, %v5717
  %v5728 = vcombine.high %v5724, %v5724
  %v5729 = vcombine.high %v5553, %v5553
  %v5731 = vunpack.c.l.s4 1966171168
  %v5732 = vunpack.c.0.s8 %v5731
  %v5733 = vlaneseq
  %v5734 = vshrl.u32 %v5733, 7
  %v5735 = vsub.s32 %v5732, %v5734
  %v5736 = vrot.slane %v5553, %v5735
  %v5738 = vunpack.c.l.s4 1966171168
  %v5739 = vunpack.c.0.s8 %v5738
  %v5740 = vlaneseq
  %v5741 = vshrl.u32 %v5740, 7
  %v5742 = vsub.s32 %v5739, %v5741
  %v5743 = vrot.slane %v5729, %v5742
  %v5744 = vcombine.high %v5736, %v5736
  %v5745 = vcombine.high %v5743, %v5743
  %v5747 = vunpack.c.l.s4 1966171168
  %v5748 = vunpack.c.0.s8 %v5747
  %v5749 = vlaneseq
  %v5750 = vshrl.u32 %v5749, 7
  %v5751 = vsub.s32 %v5748, %v5750
  %v5752 = vrot.slane %v5736, %v5751
  %v5754 = vunpack.c.l.s4 1966171168
  %v5755 = vunpack.c.0.s8 %v5754
  %v5756 = vlaneseq
  %v5757 = vshrl.u32 %v5756, 7
  %v5758 = vsub.s32 %v5755, %v5757
  %v5759 = vrot.slane %v5743, %v5758
  %v5761 = vunpack.c.l.s4 1966171168
  %v5762 = vunpack.c.0.s8 %v5761
  %v5763 = vlaneseq
  %v5764 = vshrl.u32 %v5763, 7
  %v5765 = vsub.s32 %v5762, %v5764
  %v5766 = vrot.slane %v5744, %v5765
  %v5768 = vunpack.c.l.s4 1966171168
  %v5769 = vunpack.c.0.s8 %v5768
  %v5770 = vlaneseq
  %v5771 = vshrl.u32 %v5770, 7
  %v5772 = vsub.s32 %v5769, %v5771
  %v5773 = vrot.slane %v5745, %v5772
  %v5774 = vcombine.high %v5752, %v5752
  %v5775 = vcombine.high %v5759, %v5759
  %v5776 = vcombine.high %v5766, %v5766
  %v5777 = vcombine.high %v5773, %v5773
  %v5778 = vcombine.high %v5554, %v5554
  %v5780 = vunpack.c.l.s4 1966171168
  %v5781 = vunpack.c.0.s8 %v5780
  %v5782 = vlaneseq
  %v5783 = vshrl.u32 %v5782, 7
  %v5784 = vsub.s32 %v5781, %v5783
  %v5785 = vrot.slane %v5554, %v5784
  %v5787 = vunpack.c.l.s4 1966171168
  %v5788 = vunpack.c.0.s8 %v5787
  %v5789 = vlaneseq
  %v5790 = vshrl.u32 %v5789, 7
  %v5791 = vsub.s32 %v5788, %v5790
  %v5792 = vrot.slane %v5778, %v5791
  %v5793 = vcombine.high %v5785, %v5785
  %v5794 = vcombine.high %v5792, %v5792
  %v5796 = vunpack.c.l.s4 1966171168
  %v5797 = vunpack.c.0.s8 %v5796
  %v5798 = vlaneseq
  %v5799 = vshrl.u32 %v5798, 7
  %v5800 = vsub.s32 %v5797, %v5799
  %v5801 = vrot.slane %v5785, %v5800
  %v5803 = vunpack.c.l.s4 1966171168
  %v5804 = vunpack.c.0.s8 %v5803
  %v5805 = vlaneseq
  %v5806 = vshrl.u32 %v5805, 7
  %v5807 = vsub.s32 %v5804, %v5806
  %v5808 = vrot.slane %v5792, %v5807
  %v5810 = vunpack.c.l.s4 1966171168
  %v5811 = vunpack.c.0.s8 %v5810
  %v5812 = vlaneseq
  %v5813 = vshrl.u32 %v5812, 7
  %v5814 = vsub.s32 %v5811, %v5813
  %v5815 = vrot.slane %v5793, %v5814
  %v5817 = vunpack.c.l.s4 1966171168
  %v5818 = vunpack.c.0.s8 %v5817
  %v5819 = vlaneseq
  %v5820 = vshrl.u32 %v5819, 7
  %v5821 = vsub.s32 %v5818, %v5820
  %v5822 = vrot.slane %v5794, %v5821
  %v5823 = vcombine.high %v5801, %v5801
  %v5824 = vcombine.high %v5808, %v5808
  %v5825 = vcombine.high %v5815, %v5815
  %v5826 = vcombine.high %v5822, %v5822
  %v5827 = vcombine.high %v5555, %v5555
  %v5829 = vunpack.c.l.s4 1966171168
  %v5830 = vunpack.c.0.s8 %v5829
  %v5831 = vlaneseq
  %v5832 = vshrl.u32 %v5831, 7
  %v5833 = vsub.s32 %v5830, %v5832
  %v5834 = vrot.slane %v5555, %v5833
  %v5836 = vunpack.c.l.s4 1966171168
  %v5837 = vunpack.c.0.s8 %v5836
  %v5838 = vlaneseq
  %v5839 = vshrl.u32 %v5838, 7
  %v5840 = vsub.s32 %v5837, %v5839
  %v5841 = vrot.slane %v5827, %v5840
  %v5842 = vcombine.high %v5834, %v5834
  %v5843 = vcombine.high %v5841, %v5841
  %v5845 = vunpack.c.l.s4 1966171168
  %v5846 = vunpack.c.0.s8 %v5845
  %v5847 = vlaneseq
  %v5848 = vshrl.u32 %v5847, 7
  %v5849 = vsub.s32 %v5846, %v5848
  %v5850 = vrot.slane %v5834, %v5849
  %v5852 = vunpack.c.l.s4 1966171168
  %v5853 = vunpack.c.0.s8 %v5852
  %v5854 = vlaneseq
  %v5855 = vshrl.u32 %v5854, 7
  %v5856 = vsub.s32 %v5853, %v5855
  %v5857 = vrot.slane %v5841, %v5856
  %v5859 = vunpack.c.l.s4 1966171168
  %v5860 = vunpack.c.0.s8 %v5859
  %v5861 = vlaneseq
  %v5862 = vshrl.u32 %v5861, 7
  %v5863 = vsub.s32 %v5860, %v5862
  %v5864 = vrot.slane %v5842, %v5863
  %v5866 = vunpack.c.l.s4 1966171168
  %v5867 = vunpack.c.0.s8 %v5866
  %v5868 = vlaneseq
  %v5869 = vshrl.u32 %v5868, 7
  %v5870 = vsub.s32 %v5867, %v5869
  %v5871 = vrot.slane %v5843, %v5870
  %v5872 = vcombine.high %v5850, %v5850
  %v5873 = vcombine.high %v5857, %v5857
  %v5874 = vcombine.high %v5864, %v5864
  %v5875 = vcombine.high %v5871, %v5871
  %v5876 = vcombine.high %v5556, %v5556
  %v5878 = vunpack.c.l.s4 1966171168
  %v5879 = vunpack.c.0.s8 %v5878
  %v5880 = vlaneseq
  %v5881 = vshrl.u32 %v5880, 7
  %v5882 = vsub.s32 %v5879, %v5881
  %v5883 = vrot.slane %v5556, %v5882
  %v5885 = vunpack.c.l.s4 1966171168
  %v5886 = vunpack.c.0.s8 %v5885
  %v5887 = vlaneseq
  %v5888 = vshrl.u32 %v5887, 7
  %v5889 = vsub.s32 %v5886, %v5888
  %v5890 = vrot.slane %v5876, %v5889
  %v5891 = vcombine.high %v5883, %v5883
  %v5892 = vcombine.high %v5890, %v5890
  %v5894 = vunpack.c.l.s4 1966171168
  %v5895 = vunpack.c.0.s8 %v5894
  %v5896 = vlaneseq
  %v5897 = vshrl.u32 %v5896, 7
  %v5898 = vsub.s32 %v5895, %v5897
  %v5899 = vrot.slane %v5883, %v5898
  %v5901 = vunpack.c.l.s4 1966171168
  %v5902 = vunpack.c.0.s8 %v5901
  %v5903 = vlaneseq
  %v5904 = vshrl.u32 %v5903, 7
  %v5905 = vsub.s32 %v5902, %v5904
  %v5906 = vrot.slane %v5890, %v5905
  %v5908 = vunpack.c.l.s4 1966171168
  %v5909 = vunpack.c.0.s8 %v5908
  %v5910 = vlaneseq
  %v5911 = vshrl.u32 %v5910, 7
  %v5912 = vsub.s32 %v5909, %v5911
  %v5913 = vrot.slane %v5891, %v5912
  %v5915 = vunpack.c.l.s4 1966171168
  %v5916 = vunpack.c.0.s8 %v5915
  %v5917 = vlaneseq
  %v5918 = vshrl.u32 %v5917, 7
  %v5919 = vsub.s32 %v5916, %v5918
  %v5920 = vrot.slane %v5892, %v5919
  %v5921 = vcombine.high %v5899, %v5899
  %v5922 = vcombine.high %v5906, %v5906
  %v5923 = vcombine.high %v5913, %v5913
  %v5924 = vcombine.high %v5920, %v5920
  %v5925 = vcombine.high %v5557, %v5557
  %v5927 = vunpack.c.l.s4 1966171168
  %v5928 = vunpack.c.0.s8 %v5927
  %v5929 = vlaneseq
  %v5930 = vshrl.u32 %v5929, 7
  %v5931 = vsub.s32 %v5928, %v5930
  %v5932 = vrot.slane %v5557, %v5931
  %v5934 = vunpack.c.l.s4 1966171168
  %v5935 = vunpack.c.0.s8 %v5934
  %v5936 = vlaneseq
  %v5937 = vshrl.u32 %v5936, 7
  %v5938 = vsub.s32 %v5935, %v5937
  %v5939 = vrot.slane %v5925, %v5938
  %v5940 = vcombine.high %v5932, %v5932
  %v5941 = vcombine.high %v5939, %v5939
  %v5943 = vunpack.c.l.s4 1966171168
  %v5944 = vunpack.c.0.s8 %v5943
  %v5945 = vlaneseq
  %v5946 = vshrl.u32 %v5945, 7
  %v5947 = vsub.s32 %v5944, %v5946
  %v5948 = vrot.slane %v5932, %v5947
  %v5950 = vunpack.c.l.s4 1966171168
  %v5951 = vunpack.c.0.s8 %v5950
  %v5952 = vlaneseq
  %v5953 = vshrl.u32 %v5952, 7
  %v5954 = vsub.s32 %v5951, %v5953
  %v5955 = vrot.slane %v5939, %v5954
  %v5957 = vunpack.c.l.s4 1966171168
  %v5958 = vunpack.c.0.s8 %v5957
  %v5959 = vlaneseq
  %v5960 = vshrl.u32 %v5959, 7
  %v5961 = vsub.s32 %v5958, %v5960
  %v5962 = vrot.slane %v5940, %v5961
  %v5964 = vunpack.c.l.s4 1966171168
  %v5965 = vunpack.c.0.s8 %v5964
  %v5966 = vlaneseq
  %v5967 = vshrl.u32 %v5966, 7
  %v5968 = vsub.s32 %v5965, %v5967
  %v5969 = vrot.slane %v5941, %v5968
  %v5970 = vcombine.high %v5948, %v5948
  %v5971 = vcombine.high %v5955, %v5955
  %v5972 = vcombine.high %v5962, %v5962
  %v5973 = vcombine.high %v5969, %v5969
  %v5974 = vcombine.high %v5558, %v5558
  %v5976 = vunpack.c.l.s4 1966171168
  %v5977 = vunpack.c.0.s8 %v5976
  %v5978 = vlaneseq
  %v5979 = vshrl.u32 %v5978, 7
  %v5980 = vsub.s32 %v5977, %v5979
  %v5981 = vrot.slane %v5558, %v5980
  %v5983 = vunpack.c.l.s4 1966171168
  %v5984 = vunpack.c.0.s8 %v5983
  %v5985 = vlaneseq
  %v5986 = vshrl.u32 %v5985, 7
  %v5987 = vsub.s32 %v5984, %v5986
  %v5988 = vrot.slane %v5974, %v5987
  %v5989 = vcombine.high %v5981, %v5981
  %v5990 = vcombine.high %v5988, %v5988
  %v5992 = vunpack.c.l.s4 1966171168
  %v5993 = vunpack.c.0.s8 %v5992
  %v5994 = vlaneseq
  %v5995 = vshrl.u32 %v5994, 7
  %v5996 = vsub.s32 %v5993, %v5995
  %v5997 = vrot.slane %v5981, %v5996
  %v5999 = vunpack.c.l.s4 1966171168
  %v6000 = vunpack.c.0.s8 %v5999
  %v6001 = vlaneseq
  %v6002 = vshrl.u32 %v6001, 7
  %v6003 = vsub.s32 %v6000, %v6002
  %v6004 = vrot.slane %v5988, %v6003
  %v6006 = vunpack.c.l.s4 1966171168
  %v6007 = vunpack.c.0.s8 %v6006
  %v6008 = vlaneseq
  %v6009 = vshrl.u32 %v6008, 7
  %v6010 = vsub.s32 %v6007, %v6009
  %v6011 = vrot.slane %v5989, %v6010
  %v6013 = vunpack.c.l.s4 1966171168
  %v6014 = vunpack.c.0.s8 %v6013
  %v6015 = vlaneseq
  %v6016 = vshrl.u32 %v6015, 7
  %v6017 = vsub.s32 %v6014, %v6016
  %v6018 = vrot.slane %v5990, %v6017
  %v6019 = vcombine.high %v5997, %v5997
  %v6020 = vcombine.high %v6004, %v6004
  %v6021 = vcombine.high %v6011, %v6011
  %v6022 = vcombine.high %v6018, %v6018
  %v6023 = vcombine.high %v5559, %v5559
  %v6025 = vunpack.c.l.s4 1966171168
  %v6026 = vunpack.c.0.s8 %v6025
  %v6027 = vlaneseq
  %v6028 = vshrl.u32 %v6027, 7
  %v6029 = vsub.s32 %v6026, %v6028
  %v6030 = vrot.slane %v5559, %v6029
  %v6032 = vunpack.c.l.s4 1966171168
  %v6033 = vunpack.c.0.s8 %v6032
  %v6034 = vlaneseq
  %v6035 = vshrl.u32 %v6034, 7
  %v6036 = vsub.s32 %v6033, %v6035
  %v6037 = vrot.slane %v6023, %v6036
  %v6038 = vcombine.high %v6030, %v6030
  %v6039 = vcombine.high %v6037, %v6037
  %v6041 = vunpack.c.l.s4 1966171168
  %v6042 = vunpack.c.0.s8 %v6041
  %v6043 = vlaneseq
  %v6044 = vshrl.u32 %v6043, 7
  %v6045 = vsub.s32 %v6042, %v6044
  %v6046 = vrot.slane %v6030, %v6045
  %v6048 = vunpack.c.l.s4 1966171168
  %v6049 = vunpack.c.0.s8 %v6048
  %v6050 = vlaneseq
  %v6051 = vshrl.u32 %v6050, 7
  %v6052 = vsub.s32 %v6049, %v6051
  %v6053 = vrot.slane %v6037, %v6052
  %v6055 = vunpack.c.l.s4 1966171168
  %v6056 = vunpack.c.0.s8 %v6055
  %v6057 = vlaneseq
  %v6058 = vshrl.u32 %v6057, 7
  %v6059 = vsub.s32 %v6056, %v6058
  %v6060 = vrot.slane %v6038, %v6059
  %v6062 = vunpack.c.l.s4 1966171168
  %v6063 = vunpack.c.0.s8 %v6062
  %v6064 = vlaneseq
  %v6065 = vshrl.u32 %v6064, 7
  %v6066 = vsub.s32 %v6063, %v6065
  %v6067 = vrot.slane %v6039, %v6066
  %v6068 = vcombine.high %v6046, %v6046
  %v6069 = vcombine.high %v6053, %v6053
  %v6070 = vcombine.high %v6060, %v6060
  %v6071 = vcombine.high %v6067, %v6067
  %v6072 = vcombine.high %v5560, %v5560
  %v6074 = vunpack.c.l.s4 1966171168
  %v6075 = vunpack.c.0.s8 %v6074
  %v6076 = vlaneseq
  %v6077 = vshrl.u32 %v6076, 7
  %v6078 = vsub.s32 %v6075, %v6077
  %v6079 = vrot.slane %v5560, %v6078
  %v6081 = vunpack.c.l.s4 1966171168
  %v6082 = vunpack.c.0.s8 %v6081
  %v6083 = vlaneseq
  %v6084 = vshrl.u32 %v6083, 7
  %v6085 = vsub.s32 %v6082, %v6084
  %v6086 = vrot.slane %v6072, %v6085
  %v6087 = vcombine.high %v6079, %v6079
  %v6088 = vcombine.high %v6086, %v6086
  %v6090 = vunpack.c.l.s4 1966171168
  %v6091 = vunpack.c.0.s8 %v6090
  %v6092 = vlaneseq
  %v6093 = vshrl.u32 %v6092, 7
  %v6094 = vsub.s32 %v6091, %v6093
  %v6095 = vrot.slane %v6079, %v6094
  %v6097 = vunpack.c.l.s4 1966171168
  %v6098 = vunpack.c.0.s8 %v6097
  %v6099 = vlaneseq
  %v6100 = vshrl.u32 %v6099, 7
  %v6101 = vsub.s32 %v6098, %v6100
  %v6102 = vrot.slane %v6086, %v6101
  %v6104 = vunpack.c.l.s4 1966171168
  %v6105 = vunpack.c.0.s8 %v6104
  %v6106 = vlaneseq
  %v6107 = vshrl.u32 %v6106, 7
  %v6108 = vsub.s32 %v6105, %v6107
  %v6109 = vrot.slane %v6087, %v6108
  %v6111 = vunpack.c.l.s4 1966171168
  %v6112 = vunpack.c.0.s8 %v6111
  %v6113 = vlaneseq
  %v6114 = vshrl.u32 %v6113, 7
  %v6115 = vsub.s32 %v6112, %v6114
  %v6116 = vrot.slane %v6088, %v6115
  %v6117 = vcombine.high %v6095, %v6095
  %v6118 = vcombine.high %v6102, %v6102
  %v6119 = vcombine.high %v6109, %v6109
  %v6120 = vcombine.high %v6116, %v6116
  %v6121 = vcombine.high %v5561, %v5561
  %v6123 = vunpack.c.l.s4 1966171168
  %v6124 = vunpack.c.0.s8 %v6123
  %v6125 = vlaneseq
  %v6126 = vshrl.u32 %v6125, 7
  %v6127 = vsub.s32 %v6124, %v6126
  %v6128 = vrot.slane %v5561, %v6127
  %v6130 = vunpack.c.l.s4 1966171168
  %v6131 = vunpack.c.0.s8 %v6130
  %v6132 = vlaneseq
  %v6133 = vshrl.u32 %v6132, 7
  %v6134 = vsub.s32 %v6131, %v6133
  %v6135 = vrot.slane %v6121, %v6134
  %v6136 = vcombine.high %v6128, %v6128
  %v6137 = vcombine.high %v6135, %v6135
  %v6139 = vunpack.c.l.s4 1966171168
  %v6140 = vunpack.c.0.s8 %v6139
  %v6141 = vlaneseq
  %v6142 = vshrl.u32 %v6141, 7
  %v6143 = vsub.s32 %v6140, %v6142
  %v6144 = vrot.slane %v6128, %v6143
  %v6146 = vunpack.c.l.s4 1966171168
  %v6147 = vunpack.c.0.s8 %v6146
  %v6148 = vlaneseq
  %v6149 = vshrl.u32 %v6148, 7
  %v6150 = vsub.s32 %v6147, %v6149
  %v6151 = vrot.slane %v6135, %v6150
  %v6153 = vunpack.c.l.s4 1966171168
  %v6154 = vunpack.c.0.s8 %v6153
  %v6155 = vlaneseq
  %v6156 = vshrl.u32 %v6155, 7
  %v6157 = vsub.s32 %v6154, %v6156
  %v6158 = vrot.slane %v6136, %v6157
  %v6160 = vunpack.c.l.s4 1966171168
  %v6161 = vunpack.c.0.s8 %v6160
  %v6162 = vlaneseq
  %v6163 = vshrl.u32 %v6162, 7
  %v6164 = vsub.s32 %v6161, %v6163
  %v6165 = vrot.slane %v6137, %v6164
  %v6166 = vcombine.high %v6144, %v6144
  %v6167 = vcombine.high %v6151, %v6151
  %v6168 = vcombine.high %v6158, %v6158
  %v6169 = vcombine.high %v6165, %v6165
  %v6170 = vcombine.high %v5562, %v5562
  %v6172 = vunpack.c.l.s4 1966171168
  %v6173 = vunpack.c.0.s8 %v6172
  %v6174 = vlaneseq
  %v6175 = vshrl.u32 %v6174, 7
  %v6176 = vsub.s32 %v6173, %v6175
  %v6177 = vrot.slane %v5562, %v6176
  %v6179 = vunpack.c.l.s4 1966171168
  %v6180 = vunpack.c.0.s8 %v6179
  %v6181 = vlaneseq
  %v6182 = vshrl.u32 %v6181, 7
  %v6183 = vsub.s32 %v6180, %v6182
  %v6184 = vrot.slane %v6170, %v6183
  %v6185 = vcombine.high %v6177, %v6177
  %v6186 = vcombine.high %v6184, %v6184
  %v6188 = vunpack.c.l.s4 1966171168
  %v6189 = vunpack.c.0.s8 %v6188
  %v6190 = vlaneseq
  %v6191 = vshrl.u32 %v6190, 7
  %v6192 = vsub.s32 %v6189, %v6191
  %v6193 = vrot.slane %v6177, %v6192
  %v6195 = vunpack.c.l.s4 1966171168
  %v6196 = vunpack.c.0.s8 %v6195
  %v6197 = vlaneseq
  %v6198 = vshrl.u32 %v6197, 7
  %v6199 = vsub.s32 %v6196, %v6198
  %v6200 = vrot.slane %v6184, %v6199
  %v6202 = vunpack.c.l.s4 1966171168
  %v6203 = vunpack.c.0.s8 %v6202
  %v6204 = vlaneseq
  %v6205 = vshrl.u32 %v6204, 7
  %v6206 = vsub.s32 %v6203, %v6205
  %v6207 = vrot.slane %v6185, %v6206
  %v6209 = vunpack.c.l.s4 1966171168
  %v6210 = vunpack.c.0.s8 %v6209
  %v6211 = vlaneseq
  %v6212 = vshrl.u32 %v6211, 7
  %v6213 = vsub.s32 %v6210, %v6212
  %v6214 = vrot.slane %v6186, %v6213
  %v6215 = vcombine.high %v6193, %v6193
  %v6216 = vcombine.high %v6200, %v6200
  %v6217 = vcombine.high %v6207, %v6207
  %v6218 = vcombine.high %v6214, %v6214
  %v6219 = vcombine.high %v5563, %v5563
  %v6221 = vunpack.c.l.s4 1966171168
  %v6222 = vunpack.c.0.s8 %v6221
  %v6223 = vlaneseq
  %v6224 = vshrl.u32 %v6223, 7
  %v6225 = vsub.s32 %v6222, %v6224
  %v6226 = vrot.slane %v5563, %v6225
  %v6228 = vunpack.c.l.s4 1966171168
  %v6229 = vunpack.c.0.s8 %v6228
  %v6230 = vlaneseq
  %v6231 = vshrl.u32 %v6230, 7
  %v6232 = vsub.s32 %v6229, %v6231
  %v6233 = vrot.slane %v6219, %v6232
  %v6234 = vcombine.high %v6226, %v6226
  %v6235 = vcombine.high %v6233, %v6233
  %v6237 = vunpack.c.l.s4 1966171168
  %v6238 = vunpack.c.0.s8 %v6237
  %v6239 = vlaneseq
  %v6240 = vshrl.u32 %v6239, 7
  %v6241 = vsub.s32 %v6238, %v6240
  %v6242 = vrot.slane %v6226, %v6241
  %v6244 = vunpack.c.l.s4 1966171168
  %v6245 = vunpack.c.0.s8 %v6244
  %v6246 = vlaneseq
  %v6247 = vshrl.u32 %v6246, 7
  %v6248 = vsub.s32 %v6245, %v6247
  %v6249 = vrot.slane %v6233, %v6248
  %v6251 = vunpack.c.l.s4 1966171168
  %v6252 = vunpack.c.0.s8 %v6251
  %v6253 = vlaneseq
  %v6254 = vshrl.u32 %v6253, 7
  %v6255 = vsub.s32 %v6252, %v6254
  %v6256 = vrot.slane %v6234, %v6255
  %v6258 = vunpack.c.l.s4 1966171168
  %v6259 = vunpack.c.0.s8 %v6258
  %v6260 = vlaneseq
  %v6261 = vshrl.u32 %v6260, 7
  %v6262 = vsub.s32 %v6259, %v6261
  %v6263 = vrot.slane %v6235, %v6262
  %v6264 = vcombine.high %v6242, %v6242
  %v6265 = vcombine.high %v6249, %v6249
  %v6266 = vcombine.high %v6256, %v6256
  %v6267 = vcombine.high %v6263, %v6263
  %v6268 = vcombine.high %v5564, %v5564
  %v6270 = vunpack.c.l.s4 1966171168
  %v6271 = vunpack.c.0.s8 %v6270
  %v6272 = vlaneseq
  %v6273 = vshrl.u32 %v6272, 7
  %v6274 = vsub.s32 %v6271, %v6273
  %v6275 = vrot.slane %v5564, %v6274
  %v6277 = vunpack.c.l.s4 1966171168
  %v6278 = vunpack.c.0.s8 %v6277
  %v6279 = vlaneseq
  %v6280 = vshrl.u32 %v6279, 7
  %v6281 = vsub.s32 %v6278, %v6280
  %v6282 = vrot.slane %v6268, %v6281
  %v6283 = vcombine.high %v6275, %v6275
  %v6284 = vcombine.high %v6282, %v6282
  %v6286 = vunpack.c.l.s4 1966171168
  %v6287 = vunpack.c.0.s8 %v6286
  %v6288 = vlaneseq
  %v6289 = vshrl.u32 %v6288, 7
  %v6290 = vsub.s32 %v6287, %v6289
  %v6291 = vrot.slane %v6275, %v6290
  %v6293 = vunpack.c.l.s4 1966171168
  %v6294 = vunpack.c.0.s8 %v6293
  %v6295 = vlaneseq
  %v6296 = vshrl.u32 %v6295, 7
  %v6297 = vsub.s32 %v6294, %v6296
  %v6298 = vrot.slane %v6282, %v6297
  %v6300 = vunpack.c.l.s4 1966171168
  %v6301 = vunpack.c.0.s8 %v6300
  %v6302 = vlaneseq
  %v6303 = vshrl.u32 %v6302, 7
  %v6304 = vsub.s32 %v6301, %v6303
  %v6305 = vrot.slane %v6283, %v6304
  %v6307 = vunpack.c.l.s4 1966171168
  %v6308 = vunpack.c.0.s8 %v6307
  %v6309 = vlaneseq
  %v6310 = vshrl.u32 %v6309, 7
  %v6311 = vsub.s32 %v6308, %v6310
  %v6312 = vrot.slane %v6284, %v6311
  %v6313 = vcombine.high %v6291, %v6291
  %v6314 = vcombine.high %v6298, %v6298
  %v6315 = vcombine.high %v6305, %v6305
  %v6316 = vcombine.high %v6312, %v6312
  %v6317 = vcombine.high %v5565, %v5565
  %v6319 = vunpack.c.l.s4 1966171168
  %v6320 = vunpack.c.0.s8 %v6319
  %v6321 = vlaneseq
  %v6322 = vshrl.u32 %v6321, 7
  %v6323 = vsub.s32 %v6320, %v6322
  %v6324 = vrot.slane %v5565, %v6323
  %v6326 = vunpack.c.l.s4 1966171168
  %v6327 = vunpack.c.0.s8 %v6326
  %v6328 = vlaneseq
  %v6329 = vshrl.u32 %v6328, 7
  %v6330 = vsub.s32 %v6327, %v6329
  %v6331 = vrot.slane %v6317, %v6330
  %v6332 = vcombine.high %v6324, %v6324
  %v6333 = vcombine.high %v6331, %v6331
  %v6335 = vunpack.c.l.s4 1966171168
  %v6336 = vunpack.c.0.s8 %v6335
  %v6337 = vlaneseq
  %v6338 = vshrl.u32 %v6337, 7
  %v6339 = vsub.s32 %v6336, %v6338
  %v6340 = vrot.slane %v6324, %v6339
  %v6342 = vunpack.c.l.s4 1966171168
  %v6343 = vunpack.c.0.s8 %v6342
  %v6344 = vlaneseq
  %v6345 = vshrl.u32 %v6344, 7
  %v6346 = vsub.s32 %v6343, %v6345
  %v6347 = vrot.slane %v6331, %v6346
  %v6349 = vunpack.c.l.s4 1966171168
  %v6350 = vunpack.c.0.s8 %v6349
  %v6351 = vlaneseq
  %v6352 = vshrl.u32 %v6351, 7
  %v6353 = vsub.s32 %v6350, %v6352
  %v6354 = vrot.slane %v6332, %v6353
  %v6356 = vunpack.c.l.s4 1966171168
  %v6357 = vunpack.c.0.s8 %v6356
  %v6358 = vlaneseq
  %v6359 = vshrl.u32 %v6358, 7
  %v6360 = vsub.s32 %v6357, %v6359
  %v6361 = vrot.slane %v6333, %v6360
  %v6362 = vcombine.high %v6340, %v6340
  %v6363 = vcombine.high %v6347, %v6347
  %v6364 = vcombine.high %v6354, %v6354
  %v6365 = vcombine.high %v6361, %v6361
  %v6366 = vcombine.low %v5605, %v5619
  %v6367 = vcombine.low %v5627, %v5629
  %v6368 = vcombine.low %v5612, %v5626
  %v6369 = vcombine.low %v5628, %v5630
  %v6371 = vunpack.c.l.s4 1966171168
  %v6372 = vunpack.c.0.s8 %v6371
  %v6373 = vlaneseq
  %v6374 = vshrl.u32 %v6373, 7
  %v6375 = vsub.s32 %v6372, %v6374
  %v6376 = vrot.slane %v6366, %v6375
  %v6378 = vunpack.c.l.s4 1966171168
  %v6379 = vunpack.c.0.s8 %v6378
  %v6380 = vlaneseq
  %v6381 = vshrl.u32 %v6380, 7
  %v6382 = vsub.s32 %v6379, %v6381
  %v6383 = vrot.slane %v6367, %v6382
  %v6385 = vunpack.c.l.s4 1966171168
  %v6386 = vunpack.c.0.s8 %v6385
  %v6387 = vlaneseq
  %v6388 = vshrl.u32 %v6387, 7
  %v6389 = vsub.s32 %v6386, %v6388
  %v6390 = vrot.slane %v6368, %v6389
  %v6392 = vunpack.c.l.s4 1966171168
  %v6393 = vunpack.c.0.s8 %v6392
  %v6394 = vlaneseq
  %v6395 = vshrl.u32 %v6394, 7
  %v6396 = vsub.s32 %v6393, %v6395
  %v6397 = vrot.slane %v6369, %v6396
  %v6398 = vcombine.low %v6376, %v6383
  %v6399 = vcombine.low %v6390, %v6397
  %v6401 = vunpack.c.l.s4 1966171168
  %v6402 = vunpack.c.0.s8 %v6401
  %v6403 = vlaneseq
  %v6404 = vshrl.u32 %v6403, 7
  %v6405 = vsub.s32 %v6402, %v6404
  %v6406 = vrot.slane %v6398, %v6405
  %v6408 = vunpack.c.l.s4 1966171168
  %v6409 = vunpack.c.0.s8 %v6408
  %v6410 = vlaneseq
  %v6411 = vshrl.u32 %v6410, 7
  %v6412 = vsub.s32 %v6409, %v6411
  %v6413 = vrot.slane %v6399, %v6412
  %v6414 = vcombine.low %v6406, %v6413
  %v6415 = vcombine.low %v5654, %v5668
  %v6416 = vcombine.low %v5676, %v5678
  %v6417 = vcombine.low %v5661, %v5675
  %v6418 = vcombine.low %v5677, %v5679
  %v6420 = vunpack.c.l.s4 1966171168
  %v6421 = vunpack.c.0.s8 %v6420
  %v6422 = vlaneseq
  %v6423 = vshrl.u32 %v6422, 7
  %v6424 = vsub.s32 %v6421, %v6423
  %v6425 = vrot.slane %v6415, %v6424
  %v6427 = vunpack.c.l.s4 1966171168
  %v6428 = vunpack.c.0.s8 %v6427
  %v6429 = vlaneseq
  %v6430 = vshrl.u32 %v6429, 7
  %v6431 = vsub.s32 %v6428, %v6430
  %v6432 = vrot.slane %v6416, %v6431
  %v6434 = vunpack.c.l.s4 1966171168
  %v6435 = vunpack.c.0.s8 %v6434
  %v6436 = vlaneseq
  %v6437 = vshrl.u32 %v6436, 7
  %v6438 = vsub.s32 %v6435, %v6437
  %v6439 = vrot.slane %v6417, %v6438
  %v6441 = vunpack.c.l.s4 1966171168
  %v6442 = vunpack.c.0.s8 %v6441
  %v6443 = vlaneseq
  %v6444 = vshrl.u32 %v6443, 7
  %v6445 = vsub.s32 %v6442, %v6444
  %v6446 = vrot.slane %v6418, %v6445
  %v6447 = vcombine.low %v6425, %v6432
  %v6448 = vcombine.low %v6439, %v6446
  %v6450 = vunpack.c.l.s4 1966171168
  %v6451 = vunpack.c.0.s8 %v6450
  %v6452 = vlaneseq
  %v6453 = vshrl.u32 %v6452, 7
  %v6454 = vsub.s32 %v6451, %v6453
  %v6455 = vrot.slane %v6447, %v6454
  %v6457 = vunpack.c.l.s4 1966171168
  %v6458 = vunpack.c.0.s8 %v6457
  %v6459 = vlaneseq
  %v6460 = vshrl.u32 %v6459, 7
  %v6461 = vsub.s32 %v6458, %v6460
  %v6462 = vrot.slane %v6448, %v6461
  %v6463 = vcombine.low %v6455, %v6462
  %v6464 = vcombine.low %v5703, %v5717
  %v6465 = vcombine.low %v5725, %v5727
  %v6466 = vcombine.low %v5710, %v5724
  %v6467 = vcombine.low %v5726, %v5728
  %v6469 = vunpack.c.l.s4 1966171168
  %v6470 = vunpack.c.0.s8 %v6469
  %v6471 = vlaneseq
  %v6472 = vshrl.u32 %v6471, 7
  %v6473 = vsub.s32 %v6470, %v6472
  %v6474 = vrot.slane %v6464, %v6473
  %v6476 = vunpack.c.l.s4 1966171168
  %v6477 = vunpack.c.0.s8 %v6476
  %v6478 = vlaneseq
  %v6479 = vshrl.u32 %v6478, 7
  %v6480 = vsub.s32 %v6477, %v6479
  %v6481 = vrot.slane %v6465, %v6480
  %v6483 = vunpack.c.l.s4 1966171168
  %v6484 = vunpack.c.0.s8 %v6483
  %v6485 = vlaneseq
  %v6486 = vshrl.u32 %v6485, 7
  %v6487 = vsub.s32 %v6484, %v6486
  %v6488 = vrot.slane %v6466, %v6487
  %v6490 = vunpack.c.l.s4 1966171168
  %v6491 = vunpack.c.0.s8 %v6490
  %v6492 = vlaneseq
  %v6493 = vshrl.u32 %v6492, 7
  %v6494 = vsub.s32 %v6491, %v6493
  %v6495 = vrot.slane %v6467, %v6494
  %v6496 = vcombine.low %v6474, %v6481
  %v6497 = vcombine.low %v6488, %v6495
  %v6499 = vunpack.c.l.s4 1966171168
  %v6500 = vunpack.c.0.s8 %v6499
  %v6501 = vlaneseq
  %v6502 = vshrl.u32 %v6501, 7
  %v6503 = vsub.s32 %v6500, %v6502
  %v6504 = vrot.slane %v6496, %v6503
  %v6506 = vunpack.c.l.s4 1966171168
  %v6507 = vunpack.c.0.s8 %v6506
  %v6508 = vlaneseq
  %v6509 = vshrl.u32 %v6508, 7
  %v6510 = vsub.s32 %v6507, %v6509
  %v6511 = vrot.slane %v6497, %v6510
  %v6512 = vcombine.low %v6504, %v6511
  %v6513 = vcombine.low %v5752, %v5766
  %v6514 = vcombine.low %v5774, %v5776
  %v6515 = vcombine.low %v5759, %v5773
  %v6516 = vcombine.low %v5775, %v5777
  %v6518 = vunpack.c.l.s4 1966171168
  %v6519 = vunpack.c.0.s8 %v6518
  %v6520 = vlaneseq
  %v6521 = vshrl.u32 %v6520, 7
  %v6522 = vsub.s32 %v6519, %v6521
  %v6523 = vrot.slane %v6513, %v6522
  %v6525 = vunpack.c.l.s4 1966171168
  %v6526 = vunpack.c.0.s8 %v6525
  %v6527 = vlaneseq
  %v6528 = vshrl.u32 %v6527, 7
  %v6529 = vsub.s32 %v6526, %v6528
  %v6530 = vrot.slane %v6514, %v6529
  %v6532 = vunpack.c.l.s4 1966171168
  %v6533 = vunpack.c.0.s8 %v6532
  %v6534 = vlaneseq
  %v6535 = vshrl.u32 %v6534, 7
  %v6536 = vsub.s32 %v6533, %v6535
  %v6537 = vrot.slane %v6515, %v6536
  %v6539 = vunpack.c.l.s4 1966171168
  %v6540 = vunpack.c.0.s8 %v6539
  %v6541 = vlaneseq
  %v6542 = vshrl.u32 %v6541, 7
  %v6543 = vsub.s32 %v6540, %v6542
  %v6544 = vrot.slane %v6516, %v6543
  %v6545 = vcombine.low %v6523, %v6530
  %v6546 = vcombine.low %v6537, %v6544
  %v6548 = vunpack.c.l.s4 1966171168
  %v6549 = vunpack.c.0.s8 %v6548
  %v6550 = vlaneseq
  %v6551 = vshrl.u32 %v6550, 7
  %v6552 = vsub.s32 %v6549, %v6551
  %v6553 = vrot.slane %v6545, %v6552
  %v6555 = vunpack.c.l.s4 1966171168
  %v6556 = vunpack.c.0.s8 %v6555
  %v6557 = vlaneseq
  %v6558 = vshrl.u32 %v6557, 7
  %v6559 = vsub.s32 %v6556, %v6558
  %v6560 = vrot.slane %v6546, %v6559
  %v6561 = vcombine.low %v6553, %v6560
  %v6562 = vcombine.low %v5801, %v5815
  %v6563 = vcombine.low %v5823, %v5825
  %v6564 = vcombine.low %v5808, %v5822
  %v6565 = vcombine.low %v5824, %v5826
  %v6567 = vunpack.c.l.s4 1966171168
  %v6568 = vunpack.c.0.s8 %v6567
  %v6569 = vlaneseq
  %v6570 = vshrl.u32 %v6569, 7
  %v6571 = vsub.s32 %v6568, %v6570
  %v6572 = vrot.slane %v6562, %v6571
  %v6574 = vunpack.c.l.s4 1966171168
  %v6575 = vunpack.c.0.s8 %v6574
  %v6576 = vlaneseq
  %v6577 = vshrl.u32 %v6576, 7
  %v6578 = vsub.s32 %v6575, %v6577
  %v6579 = vrot.slane %v6563, %v6578
  %v6581 = vunpack.c.l.s4 1966171168
  %v6582 = vunpack.c.0.s8 %v6581
  %v6583 = vlaneseq
  %v6584 = vshrl.u32 %v6583, 7
  %v6585 = vsub.s32 %v6582, %v6584
  %v6586 = vrot.slane %v6564, %v6585
  %v6588 = vunpack.c.l.s4 1966171168
  %v6589 = vunpack.c.0.s8 %v6588
  %v6590 = vlaneseq
  %v6591 = vshrl.u32 %v6590, 7
  %v6592 = vsub.s32 %v6589, %v6591
  %v6593 = vrot.slane %v6565, %v6592
  %v6594 = vcombine.low %v6572, %v6579
  %v6595 = vcombine.low %v6586, %v6593
  %v6597 = vunpack.c.l.s4 1966171168
  %v6598 = vunpack.c.0.s8 %v6597
  %v6599 = vlaneseq
  %v6600 = vshrl.u32 %v6599, 7
  %v6601 = vsub.s32 %v6598, %v6600
  %v6602 = vrot.slane %v6594, %v6601
  %v6604 = vunpack.c.l.s4 1966171168
  %v6605 = vunpack.c.0.s8 %v6604
  %v6606 = vlaneseq
  %v6607 = vshrl.u32 %v6606, 7
  %v6608 = vsub.s32 %v6605, %v6607
  %v6609 = vrot.slane %v6595, %v6608
  %v6610 = vcombine.low %v6602, %v6609
  %v6611 = vcombine.low %v5850, %v5864
  %v6612 = vcombine.low %v5872, %v5874
  %v6613 = vcombine.low %v5857, %v5871
  %v6614 = vcombine.low %v5873, %v5875
  %v6616 = vunpack.c.l.s4 1966171168
  %v6617 = vunpack.c.0.s8 %v6616
  %v6618 = vlaneseq
  %v6619 = vshrl.u32 %v6618, 7
  %v6620 = vsub.s32 %v6617, %v6619
  %v6621 = vrot.slane %v6611, %v6620
  %v6623 = vunpack.c.l.s4 1966171168
  %v6624 = vunpack.c.0.s8 %v6623
  %v6625 = vlaneseq
  %v6626 = vshrl.u32 %v6625, 7
  %v6627 = vsub.s32 %v6624, %v6626
  %v6628 = vrot.slane %v6612, %v6627
  %v6630 = vunpack.c.l.s4 1966171168
  %v6631 = vunpack.c.0.s8 %v6630
  %v6632 = vlaneseq
  %v6633 = vshrl.u32 %v6632, 7
  %v6634 = vsub.s32 %v6631, %v6633
  %v6635 = vrot.slane %v6613, %v6634
  %v6637 = vunpack.c.l.s4 1966171168
  %v6638 = vunpack.c.0.s8 %v6637
  %v6639 = vlaneseq
  %v6640 = vshrl.u32 %v6639, 7
  %v6641 = vsub.s32 %v6638, %v6640
  %v6642 = vrot.slane %v6614, %v6641
  %v6643 = vcombine.low %v6621, %v6628
  %v6644 = vcombine.low %v6635, %v6642
  %v6646 = vunpack.c.l.s4 1966171168
  %v6647 = vunpack.c.0.s8 %v6646
  %v6648 = vlaneseq
  %v6649 = vshrl.u32 %v6648, 7
  %v6650 = vsub.s32 %v6647, %v6649
  %v6651 = vrot.slane %v6643, %v6650
  %v6653 = vunpack.c.l.s4 1966171168
  %v6654 = vunpack.c.0.s8 %v6653
  %v6655 = vlaneseq
  %v6656 = vshrl.u32 %v6655, 7
  %v6657 = vsub.s32 %v6654, %v6656
  %v6658 = vrot.slane %v6644, %v6657
  %v6659 = vcombine.low %v6651, %v6658
  %v6660 = vcombine.low %v5899, %v5913
  %v6661 = vcombine.low %v5921, %v5923
  %v6662 = vcombine.low %v5906, %v5920
  %v6663 = vcombine.low %v5922, %v5924
  %v6665 = vunpack.c.l.s4 1966171168
  %v6666 = vunpack.c.0.s8 %v6665
  %v6667 = vlaneseq
  %v6668 = vshrl.u32 %v6667, 7
  %v6669 = vsub.s32 %v6666, %v6668
  %v6670 = vrot.slane %v6660, %v6669
  %v6672 = vunpack.c.l.s4 1966171168
  %v6673 = vunpack.c.0.s8 %v6672
  %v6674 = vlaneseq
  %v6675 = vshrl.u32 %v6674, 7
  %v6676 = vsub.s32 %v6673, %v6675
  %v6677 = vrot.slane %v6661, %v6676
  %v6679 = vunpack.c.l.s4 1966171168
  %v6680 = vunpack.c.0.s8 %v6679
  %v6681 = vlaneseq
  %v6682 = vshrl.u32 %v6681, 7
  %v6683 = vsub.s32 %v6680, %v6682
  %v6684 = vrot.slane %v6662, %v6683
  %v6686 = vunpack.c.l.s4 1966171168
  %v6687 = vunpack.c.0.s8 %v6686
  %v6688 = vlaneseq
  %v6689 = vshrl.u32 %v6688, 7
  %v6690 = vsub.s32 %v6687, %v6689
  %v6691 = vrot.slane %v6663, %v6690
  %v6692 = vcombine.low %v6670, %v6677
  %v6693 = vcombine.low %v6684, %v6691
  %v6695 = vunpack.c.l.s4 1966171168
  %v6696 = vunpack.c.0.s8 %v6695
  %v6697 = vlaneseq
  %v6698 = vshrl.u32 %v6697, 7
  %v6699 = vsub.s32 %v6696, %v6698
  %v6700 = vrot.slane %v6692, %v6699
  %v6702 = vunpack.c.l.s4 1966171168
  %v6703 = vunpack.c.0.s8 %v6702
  %v6704 = vlaneseq
  %v6705 = vshrl.u32 %v6704, 7
  %v6706 = vsub.s32 %v6703, %v6705
  %v6707 = vrot.slane %v6693, %v6706
  %v6708 = vcombine.low %v6700, %v6707
  %v6709 = vcombine.low %v5948, %v5962
  %v6710 = vcombine.low %v5970, %v5972
  %v6711 = vcombine.low %v5955, %v5969
  %v6712 = vcombine.low %v5971, %v5973
  %v6714 = vunpack.c.l.s4 1966171168
  %v6715 = vunpack.c.0.s8 %v6714
  %v6716 = vlaneseq
  %v6717 = vshrl.u32 %v6716, 7
  %v6718 = vsub.s32 %v6715, %v6717
  %v6719 = vrot.slane %v6709, %v6718
  %v6721 = vunpack.c.l.s4 1966171168
  %v6722 = vunpack.c.0.s8 %v6721
  %v6723 = vlaneseq
  %v6724 = vshrl.u32 %v6723, 7
  %v6725 = vsub.s32 %v6722, %v6724
  %v6726 = vrot.slane %v6710, %v6725
  %v6728 = vunpack.c.l.s4 1966171168
  %v6729 = vunpack.c.0.s8 %v6728
  %v6730 = vlaneseq
  %v6731 = vshrl.u32 %v6730, 7
  %v6732 = vsub.s32 %v6729, %v6731
  %v6733 = vrot.slane %v6711, %v6732
  %v6735 = vunpack.c.l.s4 1966171168
  %v6736 = vunpack.c.0.s8 %v6735
  %v6737 = vlaneseq
  %v6738 = vshrl.u32 %v6737, 7
  %v6739 = vsub.s32 %v6736, %v6738
  %v6740 = vrot.slane %v6712, %v6739
  %v6741 = vcombine.low %v6719, %v6726
  %v6742 = vcombine.low %v6733, %v6740
  %v6744 = vunpack.c.l.s4 1966171168
  %v6745 = vunpack.c.0.s8 %v6744
  %v6746 = vlaneseq
  %v6747 = vshrl.u32 %v6746, 7
  %v6748 = vsub.s32 %v6745, %v6747
  %v6749 = vrot.slane %v6741, %v6748
  %v6751 = vunpack.c.l.s4 1966171168
  %v6752 = vunpack.c.0.s8 %v6751
  %v6753 = vlaneseq
  %v6754 = vshrl.u32 %v6753, 7
  %v6755 = vsub.s32 %v6752, %v6754
  %v6756 = vrot.slane %v6742, %v6755
  %v6757 = vcombine.low %v6749, %v6756
  %v6758 = vcombine.low %v5997, %v6011
  %v6759 = vcombine.low %v6019, %v6021
  %v6760 = vcombine.low %v6004, %v6018
  %v6761 = vcombine.low %v6020, %v6022
  %v6763 = vunpack.c.l.s4 1966171168
  %v6764 = vunpack.c.0.s8 %v6763
  %v6765 = vlaneseq
  %v6766 = vshrl.u32 %v6765, 7
  %v6767 = vsub.s32 %v6764, %v6766
  %v6768 = vrot.slane %v6758, %v6767
  %v6770 = vunpack.c.l.s4 1966171168
  %v6771 = vunpack.c.0.s8 %v6770
  %v6772 = vlaneseq
  %v6773 = vshrl.u32 %v6772, 7
  %v6774 = vsub.s32 %v6771, %v6773
  %v6775 = vrot.slane %v6759, %v6774
  %v6777 = vunpack.c.l.s4 1966171168
  %v6778 = vunpack.c.0.s8 %v6777
  %v6779 = vlaneseq
  %v6780 = vshrl.u32 %v6779, 7
  %v6781 = vsub.s32 %v6778, %v6780
  %v6782 = vrot.slane %v6760, %v6781
  %v6784 = vunpack.c.l.s4 1966171168
  %v6785 = vunpack.c.0.s8 %v6784
  %v6786 = vlaneseq
  %v6787 = vshrl.u32 %v6786, 7
  %v6788 = vsub.s32 %v6785, %v6787
  %v6789 = vrot.slane %v6761, %v6788
  %v6790 = vcombine.low %v6768, %v6775
  %v6791 = vcombine.low %v6782, %v6789
  %v6793 = vunpack.c.l.s4 1966171168
  %v6794 = vunpack.c.0.s8 %v6793
  %v6795 = vlaneseq
  %v6796 = vshrl.u32 %v6795, 7
  %v6797 = vsub.s32 %v6794, %v6796
  %v6798 = vrot.slane %v6790, %v6797
  %v6800 = vunpack.c.l.s4 1966171168
  %v6801 = vunpack.c.0.s8 %v6800
  %v6802 = vlaneseq
  %v6803 = vshrl.u32 %v6802, 7
  %v6804 = vsub.s32 %v6801, %v6803
  %v6805 = vrot.slane %v6791, %v6804
  %v6806 = vcombine.low %v6798, %v6805
  %v6807 = vcombine.low %v6046, %v6060
  %v6808 = vcombine.low %v6068, %v6070
  %v6809 = vcombine.low %v6053, %v6067
  %v6810 = vcombine.low %v6069, %v6071
  %v6812 = vunpack.c.l.s4 1966171168
  %v6813 = vunpack.c.0.s8 %v6812
  %v6814 = vlaneseq
  %v6815 = vshrl.u32 %v6814, 7
  %v6816 = vsub.s32 %v6813, %v6815
  %v6817 = vrot.slane %v6807, %v6816
  %v6819 = vunpack.c.l.s4 1966171168
  %v6820 = vunpack.c.0.s8 %v6819
  %v6821 = vlaneseq
  %v6822 = vshrl.u32 %v6821, 7
  %v6823 = vsub.s32 %v6820, %v6822
  %v6824 = vrot.slane %v6808, %v6823
  %v6826 = vunpack.c.l.s4 1966171168
  %v6827 = vunpack.c.0.s8 %v6826
  %v6828 = vlaneseq
  %v6829 = vshrl.u32 %v6828, 7
  %v6830 = vsub.s32 %v6827, %v6829
  %v6831 = vrot.slane %v6809, %v6830
  %v6833 = vunpack.c.l.s4 1966171168
  %v6834 = vunpack.c.0.s8 %v6833
  %v6835 = vlaneseq
  %v6836 = vshrl.u32 %v6835, 7
  %v6837 = vsub.s32 %v6834, %v6836
  %v6838 = vrot.slane %v6810, %v6837
  %v6839 = vcombine.low %v6817, %v6824
  %v6840 = vcombine.low %v6831, %v6838
  %v6842 = vunpack.c.l.s4 1966171168
  %v6843 = vunpack.c.0.s8 %v6842
  %v6844 = vlaneseq
  %v6845 = vshrl.u32 %v6844, 7
  %v6846 = vsub.s32 %v6843, %v6845
  %v6847 = vrot.slane %v6839, %v6846
  %v6849 = vunpack.c.l.s4 1966171168
  %v6850 = vunpack.c.0.s8 %v6849
  %v6851 = vlaneseq
  %v6852 = vshrl.u32 %v6851, 7
  %v6853 = vsub.s32 %v6850, %v6852
  %v6854 = vrot.slane %v6840, %v6853
  %v6855 = vcombine.low %v6847, %v6854
  %v6856 = vcombine.low %v6095, %v6109
  %v6857 = vcombine.low %v6117, %v6119
  %v6858 = vcombine.low %v6102, %v6116
  %v6859 = vcombine.low %v6118, %v6120
  %v6861 = vunpack.c.l.s4 1966171168
  %v6862 = vunpack.c.0.s8 %v6861
  %v6863 = vlaneseq
  %v6864 = vshrl.u32 %v6863, 7
  %v6865 = vsub.s32 %v6862, %v6864
  %v6866 = vrot.slane %v6856, %v6865
  %v6868 = vunpack.c.l.s4 1966171168
  %v6869 = vunpack.c.0.s8 %v6868
  %v6870 = vlaneseq
  %v6871 = vshrl.u32 %v6870, 7
  %v6872 = vsub.s32 %v6869, %v6871
  %v6873 = vrot.slane %v6857, %v6872
  %v6875 = vunpack.c.l.s4 1966171168
  %v6876 = vunpack.c.0.s8 %v6875
  %v6877 = vlaneseq
  %v6878 = vshrl.u32 %v6877, 7
  %v6879 = vsub.s32 %v6876, %v6878
  %v6880 = vrot.slane %v6858, %v6879
  %v6882 = vunpack.c.l.s4 1966171168
  %v6883 = vunpack.c.0.s8 %v6882
  %v6884 = vlaneseq
  %v6885 = vshrl.u32 %v6884, 7
  %v6886 = vsub.s32 %v6883, %v6885
  %v6887 = vrot.slane %v6859, %v6886
  %v6888 = vcombine.low %v6866, %v6873
  %v6889 = vcombine.low %v6880, %v6887
  %v6891 = vunpack.c.l.s4 1966171168
  %v6892 = vunpack.c.0.s8 %v6891
  %v6893 = vlaneseq
  %v6894 = vshrl.u32 %v6893, 7
  %v6895 = vsub.s32 %v6892, %v6894
  %v6896 = vrot.slane %v6888, %v6895
  %v6898 = vunpack.c.l.s4 1966171168
  %v6899 = vunpack.c.0.s8 %v6898
  %v6900 = vlaneseq
  %v6901 = vshrl.u32 %v6900, 7
  %v6902 = vsub.s32 %v6899, %v6901
  %v6903 = vrot.slane %v6889, %v6902
  %v6904 = vcombine.low %v6896, %v6903
  %v6905 = vcombine.low %v6144, %v6158
  %v6906 = vcombine.low %v6166, %v6168
  %v6907 = vcombine.low %v6151, %v6165
  %v6908 = vcombine.low %v6167, %v6169
  %v6910 = vunpack.c.l.s4 1966171168
  %v6911 = vunpack.c.0.s8 %v6910
  %v6912 = vlaneseq
  %v6913 = vshrl.u32 %v6912, 7
  %v6914 = vsub.s32 %v6911, %v6913
  %v6915 = vrot.slane %v6905, %v6914
  %v6917 = vunpack.c.l.s4 1966171168
  %v6918 = vunpack.c.0.s8 %v6917
  %v6919 = vlaneseq
  %v6920 = vshrl.u32 %v6919, 7
  %v6921 = vsub.s32 %v6918, %v6920
  %v6922 = vrot.slane %v6906, %v6921
  %v6924 = vunpack.c.l.s4 1966171168
  %v6925 = vunpack.c.0.s8 %v6924
  %v6926 = vlaneseq
  %v6927 = vshrl.u32 %v6926, 7
  %v6928 = vsub.s32 %v6925, %v6927
  %v6929 = vrot.slane %v6907, %v6928
  %v6931 = vunpack.c.l.s4 1966171168
  %v6932 = vunpack.c.0.s8 %v6931
  %v6933 = vlaneseq
  %v6934 = vshrl.u32 %v6933, 7
  %v6935 = vsub.s32 %v6932, %v6934
  %v6936 = vrot.slane %v6908, %v6935
  %v6937 = vcombine.low %v6915, %v6922
  %v6938 = vcombine.low %v6929, %v6936
  %v6940 = vunpack.c.l.s4 1966171168
  %v6941 = vunpack.c.0.s8 %v6940
  %v6942 = vlaneseq
  %v6943 = vshrl.u32 %v6942, 7
  %v6944 = vsub.s32 %v6941, %v6943
  %v6945 = vrot.slane %v6937, %v6944
  %v6947 = vunpack.c.l.s4 1966171168
  %v6948 = vunpack.c.0.s8 %v6947
  %v6949 = vlaneseq
  %v6950 = vshrl.u32 %v6949, 7
  %v6951 = vsub.s32 %v6948, %v6950
  %v6952 = vrot.slane %v6938, %v6951
  %v6953 = vcombine.low %v6945, %v6952
  %v6954 = vcombine.low %v6193, %v6207
  %v6955 = vcombine.low %v6215, %v6217
  %v6956 = vcombine.low %v6200, %v6214
  %v6957 = vcombine.low %v6216, %v6218
  %v6959 = vunpack.c.l.s4 1966171168
  %v6960 = vunpack.c.0.s8 %v6959
  %v6961 = vlaneseq
  %v6962 = vshrl.u32 %v6961, 7
  %v6963 = vsub.s32 %v6960, %v6962
  %v6964 = vrot.slane %v6954, %v6963
  %v6966 = vunpack.c.l.s4 1966171168
  %v6967 = vunpack.c.0.s8 %v6966
  %v6968 = vlaneseq
  %v6969 = vshrl.u32 %v6968, 7
  %v6970 = vsub.s32 %v6967, %v6969
  %v6971 = vrot.slane %v6955, %v6970
  %v6973 = vunpack.c.l.s4 1966171168
  %v6974 = vunpack.c.0.s8 %v6973
  %v6975 = vlaneseq
  %v6976 = vshrl.u32 %v6975, 7
  %v6977 = vsub.s32 %v6974, %v6976
  %v6978 = vrot.slane %v6956, %v6977
  %v6980 = vunpack.c.l.s4 1966171168
  %v6981 = vunpack.c.0.s8 %v6980
  %v6982 = vlaneseq
  %v6983 = vshrl.u32 %v6982, 7
  %v6984 = vsub.s32 %v6981, %v6983
  %v6985 = vrot.slane %v6957, %v6984
  %v6986 = vcombine.low %v6964, %v6971
  %v6987 = vcombine.low %v6978, %v6985
  %v6989 = vunpack.c.l.s4 1966171168
  %v6990 = vunpack.c.0.s8 %v6989
  %v6991 = vlaneseq
  %v6992 = vshrl.u32 %v6991, 7
  %v6993 = vsub.s32 %v6990, %v6992
  %v6994 = vrot.slane %v6986, %v6993
  %v6996 = vunpack.c.l.s4 1966171168
  %v6997 = vunpack.c.0.s8 %v6996
  %v6998 = vlaneseq
  %v6999 = vshrl.u32 %v6998, 7
  %v7000 = vsub.s32 %v6997, %v6999
  %v7001 = vrot.slane %v6987, %v7000
  %v7002 = vcombine.low %v6994, %v7001
  %v7003 = vcombine.low %v6242, %v6256
  %v7004 = vcombine.low %v6264, %v6266
  %v7005 = vcombine.low %v6249, %v6263
  %v7006 = vcombine.low %v6265, %v6267
  %v7008 = vunpack.c.l.s4 1966171168
  %v7009 = vunpack.c.0.s8 %v7008
  %v7010 = vlaneseq
  %v7011 = vshrl.u32 %v7010, 7
  %v7012 = vsub.s32 %v7009, %v7011
  %v7013 = vrot.slane %v7003, %v7012
  %v7015 = vunpack.c.l.s4 1966171168
  %v7016 = vunpack.c.0.s8 %v7015
  %v7017 = vlaneseq
  %v7018 = vshrl.u32 %v7017, 7
  %v7019 = vsub.s32 %v7016, %v7018
  %v7020 = vrot.slane %v7004, %v7019
  %v7022 = vunpack.c.l.s4 1966171168
  %v7023 = vunpack.c.0.s8 %v7022
  %v7024 = vlaneseq
  %v7025 = vshrl.u32 %v7024, 7
  %v7026 = vsub.s32 %v7023, %v7025
  %v7027 = vrot.slane %v7005, %v7026
  %v7029 = vunpack.c.l.s4 1966171168
  %v7030 = vunpack.c.0.s8 %v7029
  %v7031 = vlaneseq
  %v7032 = vshrl.u32 %v7031, 7
  %v7033 = vsub.s32 %v7030, %v7032
  %v7034 = vrot.slane %v7006, %v7033
  %v7035 = vcombine.low %v7013, %v7020
  %v7036 = vcombine.low %v7027, %v7034
  %v7038 = vunpack.c.l.s4 1966171168
  %v7039 = vunpack.c.0.s8 %v7038
  %v7040 = vlaneseq
  %v7041 = vshrl.u32 %v7040, 7
  %v7042 = vsub.s32 %v7039, %v7041
  %v7043 = vrot.slane %v7035, %v7042
  %v7045 = vunpack.c.l.s4 1966171168
  %v7046 = vunpack.c.0.s8 %v7045
  %v7047 = vlaneseq
  %v7048 = vshrl.u32 %v7047, 7
  %v7049 = vsub.s32 %v7046, %v7048
  %v7050 = vrot.slane %v7036, %v7049
  %v7051 = vcombine.low %v7043, %v7050
  %v7052 = vcombine.low %v6291, %v6305
  %v7053 = vcombine.low %v6313, %v6315
  %v7054 = vcombine.low %v6298, %v6312
  %v7055 = vcombine.low %v6314, %v6316
  %v7057 = vunpack.c.l.s4 1966171168
  %v7058 = vunpack.c.0.s8 %v7057
  %v7059 = vlaneseq
  %v7060 = vshrl.u32 %v7059, 7
  %v7061 = vsub.s32 %v7058, %v7060
  %v7062 = vrot.slane %v7052, %v7061
  %v7064 = vunpack.c.l.s4 1966171168
  %v7065 = vunpack.c.0.s8 %v7064
  %v7066 = vlaneseq
  %v7067 = vshrl.u32 %v7066, 7
  %v7068 = vsub.s32 %v7065, %v7067
  %v7069 = vrot.slane %v7053, %v7068
  %v7071 = vunpack.c.l.s4 1966171168
  %v7072 = vunpack.c.0.s8 %v7071
  %v7073 = vlaneseq
  %v7074 = vshrl.u32 %v7073, 7
  %v7075 = vsub.s32 %v7072, %v7074
  %v7076 = vrot.slane %v7054, %v7075
  %v7078 = vunpack.c.l.s4 1966171168
  %v7079 = vunpack.c.0.s8 %v7078
  %v7080 = vlaneseq
  %v7081 = vshrl.u32 %v7080, 7
  %v7082 = vsub.s32 %v7079, %v7081
  %v7083 = vrot.slane %v7055, %v7082
  %v7084 = vcombine.low %v7062, %v7069
  %v7085 = vcombine.low %v7076, %v7083
  %v7087 = vunpack.c.l.s4 1966171168
  %v7088 = vunpack.c.0.s8 %v7087
  %v7089 = vlaneseq
  %v7090 = vshrl.u32 %v7089, 7
  %v7091 = vsub.s32 %v7088, %v7090
  %v7092 = vrot.slane %v7084, %v7091
  %v7094 = vunpack.c.l.s4 1966171168
  %v7095 = vunpack.c.0.s8 %v7094
  %v7096 = vlaneseq
  %v7097 = vshrl.u32 %v7096, 7
  %v7098 = vsub.s32 %v7095, %v7097
  %v7099 = vrot.slane %v7085, %v7098
  %v7100 = vcombine.low %v7092, %v7099
  %v7101 = vcombine.low %v6340, %v6354
  %v7102 = vcombine.low %v6362, %v6364
  %v7103 = vcombine.low %v6347, %v6361
  %v7104 = vcombine.low %v6363, %v6365
  %v7106 = vunpack.c.l.s4 1966171168
  %v7107 = vunpack.c.0.s8 %v7106
  %v7108 = vlaneseq
  %v7109 = vshrl.u32 %v7108, 7
  %v7110 = vsub.s32 %v7107, %v7109
  %v7111 = vrot.slane %v7101, %v7110
  %v7113 = vunpack.c.l.s4 1966171168
  %v7114 = vunpack.c.0.s8 %v7113
  %v7115 = vlaneseq
  %v7116 = vshrl.u32 %v7115, 7
  %v7117 = vsub.s32 %v7114, %v7116
  %v7118 = vrot.slane %v7102, %v7117
  %v7120 = vunpack.c.l.s4 1966171168
  %v7121 = vunpack.c.0.s8 %v7120
  %v7122 = vlaneseq
  %v7123 = vshrl.u32 %v7122, 7
  %v7124 = vsub.s32 %v7121, %v7123
  %v7125 = vrot.slane %v7103, %v7124
  %v7127 = vunpack.c.l.s4 1966171168
  %v7128 = vunpack.c.0.s8 %v7127
  %v7129 = vlaneseq
  %v7130 = vshrl.u32 %v7129, 7
  %v7131 = vsub.s32 %v7128, %v7130
  %v7132 = vrot.slane %v7104, %v7131
  %v7133 = vcombine.low %v7111, %v7118
  %v7134 = vcombine.low %v7125, %v7132
  %v7136 = vunpack.c.l.s4 1966171168
  %v7137 = vunpack.c.0.s8 %v7136
  %v7138 = vlaneseq
  %v7139 = vshrl.u32 %v7138, 7
  %v7140 = vsub.s32 %v7137, %v7139
  %v7141 = vrot.slane %v7133, %v7140
  %v7143 = vunpack.c.l.s4 1966171168
  %v7144 = vunpack.c.0.s8 %v7143
  %v7145 = vlaneseq
  %v7146 = vshrl.u32 %v7145, 7
  %v7147 = vsub.s32 %v7144, %v7146
  %v7148 = vrot.slane %v7134, %v7147
  %v7149 = vcombine.low %v7141, %v7148
  %7150 = vset.pattern.permute.xlu0 0
  %7151 = vperm.xlu0 %7150, %v6414
  %v7152 = vpop.permute.xlu0 %7151
  %7153 = vset.pattern.permute.xlu0 0
  %7154 = vperm.xlu0 %7153, %v6463
  %v7155 = vpop.permute.xlu0 %7154
  %7156 = vset.pattern.permute.xlu0 0
  %7157 = vperm.xlu0 %7156, %v6512
  %v7158 = vpop.permute.xlu0 %7157
  %7159 = vset.pattern.permute.xlu0 0
  %7160 = vperm.xlu0 %7159, %v6561
  %v7161 = vpop.permute.xlu0 %7160
  %7162 = vset.pattern.permute.xlu0 0
  %7163 = vperm.xlu0 %7162, %v6610
  %v7164 = vpop.permute.xlu0 %7163
  %7165 = vset.pattern.permute.xlu0 0
  %7166 = vperm.xlu0 %7165, %v6659
  %v7167 = vpop.permute.xlu0 %7166
  %7168 = vset.pattern.permute.xlu0 0
  %7169 = vperm.xlu0 %7168, %v6708
  %v7170 = vpop.permute.xlu0 %7169
  %7171 = vset.pattern.permute.xlu0 0
  %7172 = vperm.xlu0 %7171, %v6757
  %v7173 = vpop.permute.xlu0 %7172
  %7174 = vset.pattern.permute.xlu0 0
  %7175 = vperm.xlu0 %7174, %v6806
  %v7176 = vpop.permute.xlu0 %7175
  %7177 = vset.pattern.permute.xlu0 0
  %7178 = vperm.xlu0 %7177, %v6855
  %v7179 = vpop.permute.xlu0 %7178
  %7180 = vset.pattern.permute.xlu0 0
  %7181 = vperm.xlu0 %7180, %v6904
  %v7182 = vpop.permute.xlu0 %7181
  %7183 = vset.pattern.permute.xlu0 0
  %7184 = vperm.xlu0 %7183, %v6953
  %v7185 = vpop.permute.xlu0 %7184
  %7186 = vset.pattern.permute.xlu0 0
  %7187 = vperm.xlu0 %7186, %v7002
  %v7188 = vpop.permute.xlu0 %7187
  %7189 = vset.pattern.permute.xlu0 0
  %7190 = vperm.xlu0 %7189, %v7051
  %v7191 = vpop.permute.xlu0 %7190
  %7192 = vset.pattern.permute.xlu0 0
  %7193 = vperm.xlu0 %7192, %v7100
  %v7194 = vpop.permute.xlu0 %7193
  %7195 = vset.pattern.permute.xlu0 0
  %7196 = vperm.xlu0 %7195, %v7149
  %v7197 = vpop.permute.xlu0 %7196
  %v7198 = vlaneseq
  %v7199 = vshrl.u32 %v7198, 7
  %v7200 = vsub.s32 %v1617, %v7199
  %v7201 = vrot.slane %v7152, %v7200
  %v7202 = vlaneseq
  %v7203 = vshrl.u32 %v7202, 7
  %v7204 = vsub.s32 %v1622, %v7203
  %v7205 = vrot.slane %v7155, %v7204
  %v7206 = vsel %vm1627, %v7205, %v7201
  %v7207 = vlaneseq
  %v7208 = vshrl.u32 %v7207, 7
  %v7209 = vsub.s32 %v1629, %v7208
  %v7210 = vrot.slane %v7158, %v7209
  %v7211 = vsel %vm1634, %v7210, %v7206
  %v7212 = vlaneseq
  %v7213 = vshrl.u32 %v7212, 7
  %v7214 = vsub.s32 %v1636, %v7213
  %v7215 = vrot.slane %v7161, %v7214
  %v7216 = vsel %vm1641, %v7215, %v7211
  %v7217 = vlaneseq
  %v7218 = vshrl.u32 %v7217, 7
  %v7219 = vsub.s32 %v1643, %v7218
  %v7220 = vrot.slane %v7164, %v7219
  %v7221 = vsel %vm1648, %v7220, %v7216
  %v7222 = vlaneseq
  %v7223 = vshrl.u32 %v7222, 7
  %v7224 = vsub.s32 %v1650, %v7223
  %v7225 = vrot.slane %v7167, %v7224
  %v7226 = vsel %vm1655, %v7225, %v7221
  %v7227 = vlaneseq
  %v7228 = vshrl.u32 %v7227, 7
  %v7229 = vsub.s32 %v1657, %v7228
  %v7230 = vrot.slane %v7170, %v7229
  %v7231 = vsel %vm1662, %v7230, %v7226
  %v7232 = vlaneseq
  %v7233 = vshrl.u32 %v7232, 7
  %v7234 = vsub.s32 %v1664, %v7233
  %v7235 = vrot.slane %v7173, %v7234
  %v7236 = vsel %vm1669, %v7235, %v7231
  %v7237 = vlaneseq
  %v7238 = vshrl.u32 %v7237, 7
  %v7239 = vsub.s32 %v1671, %v7238
  %v7240 = vrot.slane %v7176, %v7239
  %v7241 = vsel %vm1676, %v7240, %v7236
  %v7242 = vlaneseq
  %v7243 = vshrl.u32 %v7242, 7
  %v7244 = vsub.s32 %v1678, %v7243
  %v7245 = vrot.slane %v7179, %v7244
  %v7246 = vsel %vm1683, %v7245, %v7241
  %v7247 = vlaneseq
  %v7248 = vshrl.u32 %v7247, 7
  %v7249 = vsub.s32 %v1685, %v7248
  %v7250 = vrot.slane %v7182, %v7249
  %v7251 = vsel %vm1690, %v7250, %v7246
  %v7252 = vlaneseq
  %v7253 = vshrl.u32 %v7252, 7
  %v7254 = vsub.s32 %v1692, %v7253
  %v7255 = vrot.slane %v7185, %v7254
  %v7256 = vsel %vm1697, %v7255, %v7251
  %v7257 = vlaneseq
  %v7258 = vshrl.u32 %v7257, 7
  %v7259 = vsub.s32 %v1699, %v7258
  %v7260 = vrot.slane %v7188, %v7259
  %v7261 = vsel %vm1704, %v7260, %v7256
  %v7262 = vlaneseq
  %v7263 = vshrl.u32 %v7262, 7
  %v7264 = vsub.s32 %v1706, %v7263
  %v7265 = vrot.slane %v7191, %v7264
  %v7266 = vsel %vm1711, %v7265, %v7261
  %v7267 = vlaneseq
  %v7268 = vshrl.u32 %v7267, 7
  %v7269 = vsub.s32 %v1713, %v7268
  %v7270 = vrot.slane %v7194, %v7269
  %v7271 = vsel %vm1718, %v7270, %v7266
  %v7272 = vlaneseq
  %v7273 = vshrl.u32 %v7272, 7
  %v7274 = vsub.s32 %v1720, %v7273
  %v7275 = vrot.slane %v7197, %v7274
  %v7276 = vsel %vm1725, %v7275, %v7271
  %v7278 = vunpack.c.l.s4 1966171168
  %v7279 = vunpack.c.0.s8 %v7278
  %v7280 = vlaneseq
  %v7281 = vshrl.u32 %v7280, 7
  %v7282 = vsub.s32 %v7279, %v7281
  %v7283 = vrot.slane %v7276, %v7282
  %v7285 = vunpack.c.l.s4 1966171168
  %v7286 = vunpack.c.0.s8 %v7285
  %v7287 = vlaneseq
  %v7288 = vshrl.u32 %v7287, 7
  %v7289 = vsub.s32 %v7286, %v7288
  %v7290 = vrot.slane %v7283, %v7289
  %v7292 = vsub.f32 %v5465, %v7290
  %v7293 = vlaneseq
  %v7294 = vshrl.u32 %v7293, 7
  %v7295 = vsub.s32 0, %v7294
  %v7296 = vrot.slane %v5464, %v7295
  %7298 = vbcast.lane.b32.xlu0 %v7296, 256
  %v7299 = vpop.permute.xlu0 %7298
  %s7301 = sor.u32 256, 8
  %7302 = vbcast.lane.b32.xlu0 %v7296, %s7301
  %v7303 = vpop.permute.xlu0 %7302
  %s7305 = sor.u32 256, 16
  %7306 = vbcast.lane.b32.xlu0 %v7296, %s7305
  %v7307 = vpop.permute.xlu0 %7306
  %s7309 = sor.u32 256, 24
  %7310 = vbcast.lane.b32.xlu0 %v7296, %s7309
  %v7311 = vpop.permute.xlu0 %7310
  %s7313 = sor.u32 256, 32
  %7314 = vbcast.lane.b32.xlu0 %v7296, %s7313
  %v7315 = vpop.permute.xlu0 %7314
  %s7317 = sor.u32 256, 40
  %7318 = vbcast.lane.b32.xlu0 %v7296, %s7317
  %v7319 = vpop.permute.xlu0 %7318
  %s7321 = sor.u32 256, 48
  %7322 = vbcast.lane.b32.xlu0 %v7296, %s7321
  %v7323 = vpop.permute.xlu0 %7322
  %s7325 = sor.u32 256, 56
  %7326 = vbcast.lane.b32.xlu0 %v7296, %s7325
  %v7327 = vpop.permute.xlu0 %7326
  %s7329 = sor.u32 256, 64
  %7330 = vbcast.lane.b32.xlu0 %v7296, %s7329
  %v7331 = vpop.permute.xlu0 %7330
  %s7333 = sor.u32 256, 72
  %7334 = vbcast.lane.b32.xlu0 %v7296, %s7333
  %v7335 = vpop.permute.xlu0 %7334
  %s7337 = sor.u32 256, 80
  %7338 = vbcast.lane.b32.xlu0 %v7296, %s7337
  %v7339 = vpop.permute.xlu0 %7338
  %s7341 = sor.u32 256, 88
  %7342 = vbcast.lane.b32.xlu0 %v7296, %s7341
  %v7343 = vpop.permute.xlu0 %7342
  %s7345 = sor.u32 256, 96
  %7346 = vbcast.lane.b32.xlu0 %v7296, %s7345
  %v7347 = vpop.permute.xlu0 %7346
  %s7349 = sor.u32 256, 104
  %7350 = vbcast.lane.b32.xlu0 %v7296, %s7349
  %v7351 = vpop.permute.xlu0 %7350
  %s7353 = sor.u32 256, 112
  %7354 = vbcast.lane.b32.xlu0 %v7296, %s7353
  %v7355 = vpop.permute.xlu0 %7354
  %s7357 = sor.u32 256, 120
  %7358 = vbcast.lane.b32.xlu0 %v7296, %s7357
  %v7359 = vpop.permute.xlu0 %7358
  %v7360 = vlaneseq
  %v7361 = vshrl.u32 %v7360, 7
  %v7362 = vsub.s32 0, %v7361
  %v7363 = vrot.slane %v7292, %v7362
  %7365 = vbcast.lane.b32.xlu0 %v7363, 256
  %v7366 = vpop.permute.xlu0 %7365
  %s7368 = sor.u32 256, 8
  %7369 = vbcast.lane.b32.xlu0 %v7363, %s7368
  %v7370 = vpop.permute.xlu0 %7369
  %s7372 = sor.u32 256, 16
  %7373 = vbcast.lane.b32.xlu0 %v7363, %s7372
  %v7374 = vpop.permute.xlu0 %7373
  %s7376 = sor.u32 256, 24
  %7377 = vbcast.lane.b32.xlu0 %v7363, %s7376
  %v7378 = vpop.permute.xlu0 %7377
  %s7380 = sor.u32 256, 32
  %7381 = vbcast.lane.b32.xlu0 %v7363, %s7380
  %v7382 = vpop.permute.xlu0 %7381
  %s7384 = sor.u32 256, 40
  %7385 = vbcast.lane.b32.xlu0 %v7363, %s7384
  %v7386 = vpop.permute.xlu0 %7385
  %s7388 = sor.u32 256, 48
  %7389 = vbcast.lane.b32.xlu0 %v7363, %s7388
  %v7390 = vpop.permute.xlu0 %7389
  %s7392 = sor.u32 256, 56
  %7393 = vbcast.lane.b32.xlu0 %v7363, %s7392
  %v7394 = vpop.permute.xlu0 %7393
  %s7396 = sor.u32 256, 64
  %7397 = vbcast.lane.b32.xlu0 %v7363, %s7396
  %v7398 = vpop.permute.xlu0 %7397
  %s7400 = sor.u32 256, 72
  %7401 = vbcast.lane.b32.xlu0 %v7363, %s7400
  %v7402 = vpop.permute.xlu0 %7401
  %s7404 = sor.u32 256, 80
  %7405 = vbcast.lane.b32.xlu0 %v7363, %s7404
  %v7406 = vpop.permute.xlu0 %7405
  %s7408 = sor.u32 256, 88
  %7409 = vbcast.lane.b32.xlu0 %v7363, %s7408
  %v7410 = vpop.permute.xlu0 %7409
  %s7412 = sor.u32 256, 96
  %7413 = vbcast.lane.b32.xlu0 %v7363, %s7412
  %v7414 = vpop.permute.xlu0 %7413
  %s7416 = sor.u32 256, 104
  %7417 = vbcast.lane.b32.xlu0 %v7363, %s7416
  %v7418 = vpop.permute.xlu0 %7417
  %s7420 = sor.u32 256, 112
  %7421 = vbcast.lane.b32.xlu0 %v7363, %s7420
  %v7422 = vpop.permute.xlu0 %7421
  %s7424 = sor.u32 256, 120
  %7425 = vbcast.lane.b32.xlu0 %v7363, %s7424
  %v7426 = vpop.permute.xlu0 %7425
  %v7427 = vmul.f32 %v3769, %v7299
  %v7428 = vmul.f32 %v3770, %v7303
  %v7429 = vmul.f32 %v3771, %v7307
  %v7430 = vmul.f32 %v3772, %v7311
  %v7431 = vmul.f32 %v3773, %v7315
  %v7432 = vmul.f32 %v3774, %v7319
  %v7433 = vmul.f32 %v3775, %v7323
  %v7434 = vmul.f32 %v3776, %v7327
  %v7435 = vmul.f32 %v3777, %v7331
  %v7436 = vmul.f32 %v3778, %v7335
  %v7437 = vmul.f32 %v3779, %v7339
  %v7438 = vmul.f32 %v3780, %v7343
  %v7439 = vmul.f32 %v3781, %v7347
  %v7440 = vmul.f32 %v3782, %v7351
  %v7441 = vmul.f32 %v3783, %v7355
  %v7442 = vmul.f32 %v3784, %v7359
  %v7443 = vadd.f32 %v7427, %v7366
  %v7444 = vadd.f32 %v7428, %v7370
  %v7445 = vadd.f32 %v7429, %v7374
  %v7446 = vadd.f32 %v7430, %v7378
  %v7447 = vadd.f32 %v7431, %v7382
  %v7448 = vadd.f32 %v7432, %v7386
  %v7449 = vadd.f32 %v7433, %v7390
  %v7450 = vadd.f32 %v7434, %v7394
  %v7451 = vadd.f32 %v7435, %v7398
  %v7452 = vadd.f32 %v7436, %v7402
  %v7453 = vadd.f32 %v7437, %v7406
  %v7454 = vadd.f32 %v7438, %v7410
  %v7455 = vadd.f32 %v7439, %v7414
  %v7456 = vadd.f32 %v7440, %v7418
  %v7457 = vadd.f32 %v7441, %v7422
  %v7458 = vadd.f32 %v7442, %v7426
  %v7459 = vmax.f32 %v7443, 0.0
  %v7460 = vmax.f32 %v7444, 0.0
  %v7461 = vmax.f32 %v7445, 0.0
  %v7462 = vmax.f32 %v7446, 0.0
  %v7463 = vmax.f32 %v7447, 0.0
  %v7464 = vmax.f32 %v7448, 0.0
  %v7465 = vmax.f32 %v7449, 0.0
  %v7466 = vmax.f32 %v7450, 0.0
  %v7467 = vmax.f32 %v7451, 0.0
  %v7468 = vmax.f32 %v7452, 0.0
  %v7469 = vmax.f32 %v7453, 0.0
  %v7470 = vmax.f32 %v7454, 0.0
  %v7471 = vmax.f32 %v7455, 0.0
  %v7472 = vmax.f32 %v7456, 0.0
  %v7473 = vmax.f32 %v7457, 0.0
  %v7474 = vmax.f32 %v7458, 0.0
  %7475 = vst.msk [vmem:[%s3 + $0x80] sm:$0xff] %vm30, %v7459
  %7476 = vst.msk [vmem:[%s3 + $0x88] sm:$0xff] %vm30, %v7460
  %7477 = vst.msk [vmem:[%s3 + $0x90] sm:$0xff] %vm30, %v7461
  %7478 = vst.msk [vmem:[%s3 + $0x98] sm:$0xff] %vm30, %v7462
  %7479 = vst.msk [vmem:[%s3 + $0xa0] sm:$0xff] %vm30, %v7463
  %7480 = vst.msk [vmem:[%s3 + $0xa8] sm:$0xff] %vm30, %v7464
  %7481 = vst.msk [vmem:[%s3 + $0xb0] sm:$0xff] %vm30, %v7465
  %7482 = vst.msk [vmem:[%s3 + $0xb8] sm:$0xff] %vm30, %v7466
  %7483 = vst.msk [vmem:[%s3 + $0xc0] sm:$0xff] %vm30, %v7467
  %7484 = vst.msk [vmem:[%s3 + $0xc8] sm:$0xff] %vm30, %v7468
  %7485 = vst.msk [vmem:[%s3 + $0xd0] sm:$0xff] %vm30, %v7469
  %7486 = vst.msk [vmem:[%s3 + $0xd8] sm:$0xff] %vm30, %v7470
  %7487 = vst.msk [vmem:[%s3 + $0xe0] sm:$0xff] %vm30, %v7471
  %7488 = vst.msk [vmem:[%s3 + $0xe8] sm:$0xff] %vm30, %v7472
  %7489 = vst.msk [vmem:[%s3 + $0xf0] sm:$0xff] %vm30, %v7473
  %7490 = vst.msk [vmem:[%s3 + $0xf8] sm:$0xff] %vm30, %v7474
  %v7491 = vld [vmem:[%s0 + $0x100] sm:$0xff]
  %v7492 = vld [vmem:[%s0 + $0x108] sm:$0xff]
  %v7493 = vld [vmem:[%s0 + $0x110] sm:$0xff]
  %v7494 = vld [vmem:[%s0 + $0x118] sm:$0xff]
  %v7495 = vld [vmem:[%s0 + $0x120] sm:$0xff]
  %v7496 = vld [vmem:[%s0 + $0x128] sm:$0xff]
  %v7497 = vld [vmem:[%s0 + $0x130] sm:$0xff]
  %v7498 = vld [vmem:[%s0 + $0x138] sm:$0xff]
  %v7499 = vld [vmem:[%s0 + $0x140] sm:$0xff]
  %v7500 = vld [vmem:[%s0 + $0x148] sm:$0xff]
  %v7501 = vld [vmem:[%s0 + $0x150] sm:$0xff]
  %v7502 = vld [vmem:[%s0 + $0x158] sm:$0xff]
  %v7503 = vld [vmem:[%s0 + $0x160] sm:$0xff]
  %v7504 = vld [vmem:[%s0 + $0x168] sm:$0xff]
  %v7505 = vld [vmem:[%s0 + $0x170] sm:$0xff]
  %v7506 = vld [vmem:[%s0 + $0x178] sm:$0xff]
  %v7507 = vsel %vm30, %v7491, 0.0
  %7508 = vadd.xlane.f32.xlu0 %v7507
  %v7509 = vpop.xlane.xlu0 %7508
  %v7510 = vsel %vm30, %v7492, 0.0
  %7511 = vadd.xlane.f32.xlu0 %v7510
  %v7512 = vpop.xlane.xlu0 %7511
  %v7513 = vsel %vm30, %v7493, 0.0
  %7514 = vadd.xlane.f32.xlu0 %v7513
  %v7515 = vpop.xlane.xlu0 %7514
  %v7516 = vsel %vm30, %v7494, 0.0
  %7517 = vadd.xlane.f32.xlu0 %v7516
  %v7518 = vpop.xlane.xlu0 %7517
  %v7519 = vsel %vm30, %v7495, 0.0
  %7520 = vadd.xlane.f32.xlu0 %v7519
  %v7521 = vpop.xlane.xlu0 %7520
  %v7522 = vsel %vm30, %v7496, 0.0
  %7523 = vadd.xlane.f32.xlu0 %v7522
  %v7524 = vpop.xlane.xlu0 %7523
  %v7525 = vsel %vm30, %v7497, 0.0
  %7526 = vadd.xlane.f32.xlu0 %v7525
  %v7527 = vpop.xlane.xlu0 %7526
  %v7528 = vsel %vm30, %v7498, 0.0
  %7529 = vadd.xlane.f32.xlu0 %v7528
  %v7530 = vpop.xlane.xlu0 %7529
  %v7531 = vsel %vm30, %v7499, 0.0
  %7532 = vadd.xlane.f32.xlu0 %v7531
  %v7533 = vpop.xlane.xlu0 %7532
  %v7534 = vsel %vm30, %v7500, 0.0
  %7535 = vadd.xlane.f32.xlu0 %v7534
  %v7536 = vpop.xlane.xlu0 %7535
  %v7537 = vsel %vm30, %v7501, 0.0
  %7538 = vadd.xlane.f32.xlu0 %v7537
  %v7539 = vpop.xlane.xlu0 %7538
  %v7540 = vsel %vm30, %v7502, 0.0
  %7541 = vadd.xlane.f32.xlu0 %v7540
  %v7542 = vpop.xlane.xlu0 %7541
  %v7543 = vsel %vm30, %v7503, 0.0
  %7544 = vadd.xlane.f32.xlu0 %v7543
  %v7545 = vpop.xlane.xlu0 %7544
  %v7546 = vsel %vm30, %v7504, 0.0
  %7547 = vadd.xlane.f32.xlu0 %v7546
  %v7548 = vpop.xlane.xlu0 %7547
  %v7549 = vsel %vm30, %v7505, 0.0
  %7550 = vadd.xlane.f32.xlu0 %v7549
  %v7551 = vpop.xlane.xlu0 %7550
  %v7552 = vsel %vm30, %v7506, 0.0
  %7553 = vadd.xlane.f32.xlu0 %v7552
  %v7554 = vpop.xlane.xlu0 %7553
  %v7555 = vadd.f32 %v7509, 0.0
  %v7556 = vadd.f32 %v7512, 0.0
  %v7557 = vadd.f32 %v7515, 0.0
  %v7558 = vadd.f32 %v7518, 0.0
  %v7559 = vadd.f32 %v7521, 0.0
  %v7560 = vadd.f32 %v7524, 0.0
  %v7561 = vadd.f32 %v7527, 0.0
  %v7562 = vadd.f32 %v7530, 0.0
  %v7563 = vadd.f32 %v7533, 0.0
  %v7564 = vadd.f32 %v7536, 0.0
  %v7565 = vadd.f32 %v7539, 0.0
  %v7566 = vadd.f32 %v7542, 0.0
  %v7567 = vadd.f32 %v7545, 0.0
  %v7568 = vadd.f32 %v7548, 0.0
  %v7569 = vadd.f32 %v7551, 0.0
  %v7570 = vadd.f32 %v7554, 0.0
  %v7571 = vmul.f32 %v7555, 0.04
  %v7572 = vmul.f32 %v7556, 0.04
  %v7573 = vmul.f32 %v7557, 0.04
  %v7574 = vmul.f32 %v7558, 0.04
  %v7575 = vmul.f32 %v7559, 0.04
  %v7576 = vmul.f32 %v7560, 0.04
  %v7577 = vmul.f32 %v7561, 0.04
  %v7578 = vmul.f32 %v7562, 0.04
  %v7579 = vmul.f32 %v7563, 0.04
  %v7580 = vmul.f32 %v7564, 0.04
  %v7581 = vmul.f32 %v7565, 0.04
  %v7582 = vmul.f32 %v7566, 0.04
  %v7583 = vmul.f32 %v7567, 0.04
  %v7584 = vmul.f32 %v7568, 0.04
  %v7585 = vmul.f32 %v7569, 0.04
  %v7586 = vmul.f32 %v7570, 0.04
  %v7587 = vsub.f32 %v7491, %v7571
  %v7588 = vsub.f32 %v7492, %v7572
  %v7589 = vsub.f32 %v7493, %v7573
  %v7590 = vsub.f32 %v7494, %v7574
  %v7591 = vsub.f32 %v7495, %v7575
  %v7592 = vsub.f32 %v7496, %v7576
  %v7593 = vsub.f32 %v7497, %v7577
  %v7594 = vsub.f32 %v7498, %v7578
  %v7595 = vsub.f32 %v7499, %v7579
  %v7596 = vsub.f32 %v7500, %v7580
  %v7597 = vsub.f32 %v7501, %v7581
  %v7598 = vsub.f32 %v7502, %v7582
  %v7599 = vsub.f32 %v7503, %v7583
  %v7600 = vsub.f32 %v7504, %v7584
  %v7601 = vsub.f32 %v7505, %v7585
  %v7602 = vsub.f32 %v7506, %v7586
  %v7603 = vmul.f32 %v7587, %v7587
  %v7604 = vmul.f32 %v7588, %v7588
  %v7605 = vmul.f32 %v7589, %v7589
  %v7606 = vmul.f32 %v7590, %v7590
  %v7607 = vmul.f32 %v7591, %v7591
  %v7608 = vmul.f32 %v7592, %v7592
  %v7609 = vmul.f32 %v7593, %v7593
  %v7610 = vmul.f32 %v7594, %v7594
  %v7611 = vmul.f32 %v7595, %v7595
  %v7612 = vmul.f32 %v7596, %v7596
  %v7613 = vmul.f32 %v7597, %v7597
  %v7614 = vmul.f32 %v7598, %v7598
  %v7615 = vmul.f32 %v7599, %v7599
  %v7616 = vmul.f32 %v7600, %v7600
  %v7617 = vmul.f32 %v7601, %v7601
  %v7618 = vmul.f32 %v7602, %v7602
  %v7619 = vsel %vm30, %v7603, 0.0
  %7620 = vadd.xlane.f32.xlu0 %v7619
  %v7621 = vpop.xlane.xlu0 %7620
  %v7622 = vsel %vm30, %v7604, 0.0
  %7623 = vadd.xlane.f32.xlu0 %v7622
  %v7624 = vpop.xlane.xlu0 %7623
  %v7625 = vsel %vm30, %v7605, 0.0
  %7626 = vadd.xlane.f32.xlu0 %v7625
  %v7627 = vpop.xlane.xlu0 %7626
  %v7628 = vsel %vm30, %v7606, 0.0
  %7629 = vadd.xlane.f32.xlu0 %v7628
  %v7630 = vpop.xlane.xlu0 %7629
  %v7631 = vsel %vm30, %v7607, 0.0
  %7632 = vadd.xlane.f32.xlu0 %v7631
  %v7633 = vpop.xlane.xlu0 %7632
  %v7634 = vsel %vm30, %v7608, 0.0
  %7635 = vadd.xlane.f32.xlu0 %v7634
  %v7636 = vpop.xlane.xlu0 %7635
  %v7637 = vsel %vm30, %v7609, 0.0
  %7638 = vadd.xlane.f32.xlu0 %v7637
  %v7639 = vpop.xlane.xlu0 %7638
  %v7640 = vsel %vm30, %v7610, 0.0
  %7641 = vadd.xlane.f32.xlu0 %v7640
  %v7642 = vpop.xlane.xlu0 %7641
  %v7643 = vsel %vm30, %v7611, 0.0
  %7644 = vadd.xlane.f32.xlu0 %v7643
  %v7645 = vpop.xlane.xlu0 %7644
  %v7646 = vsel %vm30, %v7612, 0.0
  %7647 = vadd.xlane.f32.xlu0 %v7646
  %v7648 = vpop.xlane.xlu0 %7647
  %v7649 = vsel %vm30, %v7613, 0.0
  %7650 = vadd.xlane.f32.xlu0 %v7649
  %v7651 = vpop.xlane.xlu0 %7650
  %v7652 = vsel %vm30, %v7614, 0.0
  %7653 = vadd.xlane.f32.xlu0 %v7652
  %v7654 = vpop.xlane.xlu0 %7653
  %v7655 = vsel %vm30, %v7615, 0.0
  %7656 = vadd.xlane.f32.xlu0 %v7655
  %v7657 = vpop.xlane.xlu0 %7656
  %v7658 = vsel %vm30, %v7616, 0.0
  %7659 = vadd.xlane.f32.xlu0 %v7658
  %v7660 = vpop.xlane.xlu0 %7659
  %v7661 = vsel %vm30, %v7617, 0.0
  %7662 = vadd.xlane.f32.xlu0 %v7661
  %v7663 = vpop.xlane.xlu0 %7662
  %v7664 = vsel %vm30, %v7618, 0.0
  %7665 = vadd.xlane.f32.xlu0 %v7664
  %v7666 = vpop.xlane.xlu0 %7665
  %v7667 = vadd.f32 %v7621, 0.0
  %v7668 = vadd.f32 %v7624, 0.0
  %v7669 = vadd.f32 %v7627, 0.0
  %v7670 = vadd.f32 %v7630, 0.0
  %v7671 = vadd.f32 %v7633, 0.0
  %v7672 = vadd.f32 %v7636, 0.0
  %v7673 = vadd.f32 %v7639, 0.0
  %v7674 = vadd.f32 %v7642, 0.0
  %v7675 = vadd.f32 %v7645, 0.0
  %v7676 = vadd.f32 %v7648, 0.0
  %v7677 = vadd.f32 %v7651, 0.0
  %v7678 = vadd.f32 %v7654, 0.0
  %v7679 = vadd.f32 %v7657, 0.0
  %v7680 = vadd.f32 %v7660, 0.0
  %v7681 = vadd.f32 %v7663, 0.0
  %v7682 = vadd.f32 %v7666, 0.0
  %v7683 = vmul.f32 %v7667, 0.04
  %v7684 = vmul.f32 %v7668, 0.04
  %v7685 = vmul.f32 %v7669, 0.04
  %v7686 = vmul.f32 %v7670, 0.04
  %v7687 = vmul.f32 %v7671, 0.04
  %v7688 = vmul.f32 %v7672, 0.04
  %v7689 = vmul.f32 %v7673, 0.04
  %v7690 = vmul.f32 %v7674, 0.04
  %v7691 = vmul.f32 %v7675, 0.04
  %v7692 = vmul.f32 %v7676, 0.04
  %v7693 = vmul.f32 %v7677, 0.04
  %v7694 = vmul.f32 %v7678, 0.04
  %v7695 = vmul.f32 %v7679, 0.04
  %v7696 = vmul.f32 %v7680, 0.04
  %v7697 = vmul.f32 %v7681, 0.04
  %v7698 = vmul.f32 %v7682, 0.04
  %v7699 = vadd.f32 %v7683, 0.001
  %v7700 = vadd.f32 %v7684, 0.001
  %v7701 = vadd.f32 %v7685, 0.001
  %v7702 = vadd.f32 %v7686, 0.001
  %v7703 = vadd.f32 %v7687, 0.001
  %v7704 = vadd.f32 %v7688, 0.001
  %v7705 = vadd.f32 %v7689, 0.001
  %v7706 = vadd.f32 %v7690, 0.001
  %v7707 = vadd.f32 %v7691, 0.001
  %v7708 = vadd.f32 %v7692, 0.001
  %v7709 = vadd.f32 %v7693, 0.001
  %v7710 = vadd.f32 %v7694, 0.001
  %v7711 = vadd.f32 %v7695, 0.001
  %v7712 = vadd.f32 %v7696, 0.001
  %v7713 = vadd.f32 %v7697, 0.001
  %v7714 = vadd.f32 %v7698, 0.001
  %v7715 = vrsqrt.pop %v7699
  %v7716 = vrsqrt.pop %v7700
  %v7717 = vrsqrt.pop %v7701
  %v7718 = vrsqrt.pop %v7702
  %v7719 = vrsqrt.pop %v7703
  %v7720 = vrsqrt.pop %v7704
  %v7721 = vrsqrt.pop %v7705
  %v7722 = vrsqrt.pop %v7706
  %v7723 = vrsqrt.pop %v7707
  %v7724 = vrsqrt.pop %v7708
  %v7725 = vrsqrt.pop %v7709
  %v7726 = vrsqrt.pop %v7710
  %v7727 = vrsqrt.pop %v7711
  %v7728 = vrsqrt.pop %v7712
  %v7729 = vrsqrt.pop %v7713
  %v7730 = vrsqrt.pop %v7714
  %v7731 = vld [vmem:[%s1 + $0x2] sm:$0x1]
  %v7748 = vlaneseq
  %v7749 = vshrl.u32 %v7748, 7
  %v7750 = vsub.s32 0, %v7749
  %v7751 = vrot.slane %v7715, %v7750
  %v7752 = vlaneseq
  %v7753 = vshrl.u32 %v7752, 7
  %v7754 = vsub.s32 1, %v7753
  %v7755 = vrot.slane %v7715, %v7754
  %v7756 = vlaneseq
  %v7757 = vshrl.u32 %v7756, 7
  %v7758 = vsub.s32 2, %v7757
  %v7759 = vrot.slane %v7715, %v7758
  %v7760 = vlaneseq
  %v7761 = vshrl.u32 %v7760, 7
  %v7762 = vsub.s32 3, %v7761
  %v7763 = vrot.slane %v7715, %v7762
  %v7764 = vlaneseq
  %v7765 = vshrl.u32 %v7764, 7
  %v7766 = vsub.s32 4, %v7765
  %v7767 = vrot.slane %v7715, %v7766
  %v7768 = vlaneseq
  %v7769 = vshrl.u32 %v7768, 7
  %v7770 = vsub.s32 5, %v7769
  %v7771 = vrot.slane %v7715, %v7770
  %v7772 = vlaneseq
  %v7773 = vshrl.u32 %v7772, 7
  %v7774 = vsub.s32 6, %v7773
  %v7775 = vrot.slane %v7715, %v7774
  %v7776 = vlaneseq
  %v7777 = vshrl.u32 %v7776, 7
  %v7778 = vsub.s32 7, %v7777
  %v7779 = vrot.slane %v7715, %v7778
  %v7780 = vlaneseq
  %v7781 = vshrl.u32 %v7780, 7
  %v7782 = vsub.s32 0, %v7781
  %v7783 = vrot.slane %v7716, %v7782
  %v7784 = vlaneseq
  %v7785 = vshrl.u32 %v7784, 7
  %v7786 = vsub.s32 1, %v7785
  %v7787 = vrot.slane %v7716, %v7786
  %v7788 = vlaneseq
  %v7789 = vshrl.u32 %v7788, 7
  %v7790 = vsub.s32 2, %v7789
  %v7791 = vrot.slane %v7716, %v7790
  %v7792 = vlaneseq
  %v7793 = vshrl.u32 %v7792, 7
  %v7794 = vsub.s32 3, %v7793
  %v7795 = vrot.slane %v7716, %v7794
  %v7796 = vlaneseq
  %v7797 = vshrl.u32 %v7796, 7
  %v7798 = vsub.s32 4, %v7797
  %v7799 = vrot.slane %v7716, %v7798
  %v7800 = vlaneseq
  %v7801 = vshrl.u32 %v7800, 7
  %v7802 = vsub.s32 5, %v7801
  %v7803 = vrot.slane %v7716, %v7802
  %v7804 = vlaneseq
  %v7805 = vshrl.u32 %v7804, 7
  %v7806 = vsub.s32 6, %v7805
  %v7807 = vrot.slane %v7716, %v7806
  %v7808 = vlaneseq
  %v7809 = vshrl.u32 %v7808, 7
  %v7810 = vsub.s32 7, %v7809
  %v7811 = vrot.slane %v7716, %v7810
  %v7812 = vlaneseq
  %v7813 = vshrl.u32 %v7812, 7
  %v7814 = vsub.s32 0, %v7813
  %v7815 = vrot.slane %v7717, %v7814
  %v7816 = vlaneseq
  %v7817 = vshrl.u32 %v7816, 7
  %v7818 = vsub.s32 1, %v7817
  %v7819 = vrot.slane %v7717, %v7818
  %v7820 = vlaneseq
  %v7821 = vshrl.u32 %v7820, 7
  %v7822 = vsub.s32 2, %v7821
  %v7823 = vrot.slane %v7717, %v7822
  %v7824 = vlaneseq
  %v7825 = vshrl.u32 %v7824, 7
  %v7826 = vsub.s32 3, %v7825
  %v7827 = vrot.slane %v7717, %v7826
  %v7828 = vlaneseq
  %v7829 = vshrl.u32 %v7828, 7
  %v7830 = vsub.s32 4, %v7829
  %v7831 = vrot.slane %v7717, %v7830
  %v7832 = vlaneseq
  %v7833 = vshrl.u32 %v7832, 7
  %v7834 = vsub.s32 5, %v7833
  %v7835 = vrot.slane %v7717, %v7834
  %v7836 = vlaneseq
  %v7837 = vshrl.u32 %v7836, 7
  %v7838 = vsub.s32 6, %v7837
  %v7839 = vrot.slane %v7717, %v7838
  %v7840 = vlaneseq
  %v7841 = vshrl.u32 %v7840, 7
  %v7842 = vsub.s32 7, %v7841
  %v7843 = vrot.slane %v7717, %v7842
  %v7844 = vlaneseq
  %v7845 = vshrl.u32 %v7844, 7
  %v7846 = vsub.s32 0, %v7845
  %v7847 = vrot.slane %v7718, %v7846
  %v7848 = vlaneseq
  %v7849 = vshrl.u32 %v7848, 7
  %v7850 = vsub.s32 1, %v7849
  %v7851 = vrot.slane %v7718, %v7850
  %v7852 = vlaneseq
  %v7853 = vshrl.u32 %v7852, 7
  %v7854 = vsub.s32 2, %v7853
  %v7855 = vrot.slane %v7718, %v7854
  %v7856 = vlaneseq
  %v7857 = vshrl.u32 %v7856, 7
  %v7858 = vsub.s32 3, %v7857
  %v7859 = vrot.slane %v7718, %v7858
  %v7860 = vlaneseq
  %v7861 = vshrl.u32 %v7860, 7
  %v7862 = vsub.s32 4, %v7861
  %v7863 = vrot.slane %v7718, %v7862
  %v7864 = vlaneseq
  %v7865 = vshrl.u32 %v7864, 7
  %v7866 = vsub.s32 5, %v7865
  %v7867 = vrot.slane %v7718, %v7866
  %v7868 = vlaneseq
  %v7869 = vshrl.u32 %v7868, 7
  %v7870 = vsub.s32 6, %v7869
  %v7871 = vrot.slane %v7718, %v7870
  %v7872 = vlaneseq
  %v7873 = vshrl.u32 %v7872, 7
  %v7874 = vsub.s32 7, %v7873
  %v7875 = vrot.slane %v7718, %v7874
  %v7876 = vlaneseq
  %v7877 = vshrl.u32 %v7876, 7
  %v7878 = vsub.s32 0, %v7877
  %v7879 = vrot.slane %v7719, %v7878
  %v7880 = vlaneseq
  %v7881 = vshrl.u32 %v7880, 7
  %v7882 = vsub.s32 1, %v7881
  %v7883 = vrot.slane %v7719, %v7882
  %v7884 = vlaneseq
  %v7885 = vshrl.u32 %v7884, 7
  %v7886 = vsub.s32 2, %v7885
  %v7887 = vrot.slane %v7719, %v7886
  %v7888 = vlaneseq
  %v7889 = vshrl.u32 %v7888, 7
  %v7890 = vsub.s32 3, %v7889
  %v7891 = vrot.slane %v7719, %v7890
  %v7892 = vlaneseq
  %v7893 = vshrl.u32 %v7892, 7
  %v7894 = vsub.s32 4, %v7893
  %v7895 = vrot.slane %v7719, %v7894
  %v7896 = vlaneseq
  %v7897 = vshrl.u32 %v7896, 7
  %v7898 = vsub.s32 5, %v7897
  %v7899 = vrot.slane %v7719, %v7898
  %v7900 = vlaneseq
  %v7901 = vshrl.u32 %v7900, 7
  %v7902 = vsub.s32 6, %v7901
  %v7903 = vrot.slane %v7719, %v7902
  %v7904 = vlaneseq
  %v7905 = vshrl.u32 %v7904, 7
  %v7906 = vsub.s32 7, %v7905
  %v7907 = vrot.slane %v7719, %v7906
  %v7908 = vlaneseq
  %v7909 = vshrl.u32 %v7908, 7
  %v7910 = vsub.s32 0, %v7909
  %v7911 = vrot.slane %v7720, %v7910
  %v7912 = vlaneseq
  %v7913 = vshrl.u32 %v7912, 7
  %v7914 = vsub.s32 1, %v7913
  %v7915 = vrot.slane %v7720, %v7914
  %v7916 = vlaneseq
  %v7917 = vshrl.u32 %v7916, 7
  %v7918 = vsub.s32 2, %v7917
  %v7919 = vrot.slane %v7720, %v7918
  %v7920 = vlaneseq
  %v7921 = vshrl.u32 %v7920, 7
  %v7922 = vsub.s32 3, %v7921
  %v7923 = vrot.slane %v7720, %v7922
  %v7924 = vlaneseq
  %v7925 = vshrl.u32 %v7924, 7
  %v7926 = vsub.s32 4, %v7925
  %v7927 = vrot.slane %v7720, %v7926
  %v7928 = vlaneseq
  %v7929 = vshrl.u32 %v7928, 7
  %v7930 = vsub.s32 5, %v7929
  %v7931 = vrot.slane %v7720, %v7930
  %v7932 = vlaneseq
  %v7933 = vshrl.u32 %v7932, 7
  %v7934 = vsub.s32 6, %v7933
  %v7935 = vrot.slane %v7720, %v7934
  %v7936 = vlaneseq
  %v7937 = vshrl.u32 %v7936, 7
  %v7938 = vsub.s32 7, %v7937
  %v7939 = vrot.slane %v7720, %v7938
  %v7940 = vlaneseq
  %v7941 = vshrl.u32 %v7940, 7
  %v7942 = vsub.s32 0, %v7941
  %v7943 = vrot.slane %v7721, %v7942
  %v7944 = vlaneseq
  %v7945 = vshrl.u32 %v7944, 7
  %v7946 = vsub.s32 1, %v7945
  %v7947 = vrot.slane %v7721, %v7946
  %v7948 = vlaneseq
  %v7949 = vshrl.u32 %v7948, 7
  %v7950 = vsub.s32 2, %v7949
  %v7951 = vrot.slane %v7721, %v7950
  %v7952 = vlaneseq
  %v7953 = vshrl.u32 %v7952, 7
  %v7954 = vsub.s32 3, %v7953
  %v7955 = vrot.slane %v7721, %v7954
  %v7956 = vlaneseq
  %v7957 = vshrl.u32 %v7956, 7
  %v7958 = vsub.s32 4, %v7957
  %v7959 = vrot.slane %v7721, %v7958
  %v7960 = vlaneseq
  %v7961 = vshrl.u32 %v7960, 7
  %v7962 = vsub.s32 5, %v7961
  %v7963 = vrot.slane %v7721, %v7962
  %v7964 = vlaneseq
  %v7965 = vshrl.u32 %v7964, 7
  %v7966 = vsub.s32 6, %v7965
  %v7967 = vrot.slane %v7721, %v7966
  %v7968 = vlaneseq
  %v7969 = vshrl.u32 %v7968, 7
  %v7970 = vsub.s32 7, %v7969
  %v7971 = vrot.slane %v7721, %v7970
  %v7972 = vlaneseq
  %v7973 = vshrl.u32 %v7972, 7
  %v7974 = vsub.s32 0, %v7973
  %v7975 = vrot.slane %v7722, %v7974
  %v7976 = vlaneseq
  %v7977 = vshrl.u32 %v7976, 7
  %v7978 = vsub.s32 1, %v7977
  %v7979 = vrot.slane %v7722, %v7978
  %v7980 = vlaneseq
  %v7981 = vshrl.u32 %v7980, 7
  %v7982 = vsub.s32 2, %v7981
  %v7983 = vrot.slane %v7722, %v7982
  %v7984 = vlaneseq
  %v7985 = vshrl.u32 %v7984, 7
  %v7986 = vsub.s32 3, %v7985
  %v7987 = vrot.slane %v7722, %v7986
  %v7988 = vlaneseq
  %v7989 = vshrl.u32 %v7988, 7
  %v7990 = vsub.s32 4, %v7989
  %v7991 = vrot.slane %v7722, %v7990
  %v7992 = vlaneseq
  %v7993 = vshrl.u32 %v7992, 7
  %v7994 = vsub.s32 5, %v7993
  %v7995 = vrot.slane %v7722, %v7994
  %v7996 = vlaneseq
  %v7997 = vshrl.u32 %v7996, 7
  %v7998 = vsub.s32 6, %v7997
  %v7999 = vrot.slane %v7722, %v7998
  %v8000 = vlaneseq
  %v8001 = vshrl.u32 %v8000, 7
  %v8002 = vsub.s32 7, %v8001
  %v8003 = vrot.slane %v7722, %v8002
  %v8004 = vlaneseq
  %v8005 = vshrl.u32 %v8004, 7
  %v8006 = vsub.s32 0, %v8005
  %v8007 = vrot.slane %v7723, %v8006
  %v8008 = vlaneseq
  %v8009 = vshrl.u32 %v8008, 7
  %v8010 = vsub.s32 1, %v8009
  %v8011 = vrot.slane %v7723, %v8010
  %v8012 = vlaneseq
  %v8013 = vshrl.u32 %v8012, 7
  %v8014 = vsub.s32 2, %v8013
  %v8015 = vrot.slane %v7723, %v8014
  %v8016 = vlaneseq
  %v8017 = vshrl.u32 %v8016, 7
  %v8018 = vsub.s32 3, %v8017
  %v8019 = vrot.slane %v7723, %v8018
  %v8020 = vlaneseq
  %v8021 = vshrl.u32 %v8020, 7
  %v8022 = vsub.s32 4, %v8021
  %v8023 = vrot.slane %v7723, %v8022
  %v8024 = vlaneseq
  %v8025 = vshrl.u32 %v8024, 7
  %v8026 = vsub.s32 5, %v8025
  %v8027 = vrot.slane %v7723, %v8026
  %v8028 = vlaneseq
  %v8029 = vshrl.u32 %v8028, 7
  %v8030 = vsub.s32 6, %v8029
  %v8031 = vrot.slane %v7723, %v8030
  %v8032 = vlaneseq
  %v8033 = vshrl.u32 %v8032, 7
  %v8034 = vsub.s32 7, %v8033
  %v8035 = vrot.slane %v7723, %v8034
  %v8036 = vlaneseq
  %v8037 = vshrl.u32 %v8036, 7
  %v8038 = vsub.s32 0, %v8037
  %v8039 = vrot.slane %v7724, %v8038
  %v8040 = vlaneseq
  %v8041 = vshrl.u32 %v8040, 7
  %v8042 = vsub.s32 1, %v8041
  %v8043 = vrot.slane %v7724, %v8042
  %v8044 = vlaneseq
  %v8045 = vshrl.u32 %v8044, 7
  %v8046 = vsub.s32 2, %v8045
  %v8047 = vrot.slane %v7724, %v8046
  %v8048 = vlaneseq
  %v8049 = vshrl.u32 %v8048, 7
  %v8050 = vsub.s32 3, %v8049
  %v8051 = vrot.slane %v7724, %v8050
  %v8052 = vlaneseq
  %v8053 = vshrl.u32 %v8052, 7
  %v8054 = vsub.s32 4, %v8053
  %v8055 = vrot.slane %v7724, %v8054
  %v8056 = vlaneseq
  %v8057 = vshrl.u32 %v8056, 7
  %v8058 = vsub.s32 5, %v8057
  %v8059 = vrot.slane %v7724, %v8058
  %v8060 = vlaneseq
  %v8061 = vshrl.u32 %v8060, 7
  %v8062 = vsub.s32 6, %v8061
  %v8063 = vrot.slane %v7724, %v8062
  %v8064 = vlaneseq
  %v8065 = vshrl.u32 %v8064, 7
  %v8066 = vsub.s32 7, %v8065
  %v8067 = vrot.slane %v7724, %v8066
  %v8068 = vlaneseq
  %v8069 = vshrl.u32 %v8068, 7
  %v8070 = vsub.s32 0, %v8069
  %v8071 = vrot.slane %v7725, %v8070
  %v8072 = vlaneseq
  %v8073 = vshrl.u32 %v8072, 7
  %v8074 = vsub.s32 1, %v8073
  %v8075 = vrot.slane %v7725, %v8074
  %v8076 = vlaneseq
  %v8077 = vshrl.u32 %v8076, 7
  %v8078 = vsub.s32 2, %v8077
  %v8079 = vrot.slane %v7725, %v8078
  %v8080 = vlaneseq
  %v8081 = vshrl.u32 %v8080, 7
  %v8082 = vsub.s32 3, %v8081
  %v8083 = vrot.slane %v7725, %v8082
  %v8084 = vlaneseq
  %v8085 = vshrl.u32 %v8084, 7
  %v8086 = vsub.s32 4, %v8085
  %v8087 = vrot.slane %v7725, %v8086
  %v8088 = vlaneseq
  %v8089 = vshrl.u32 %v8088, 7
  %v8090 = vsub.s32 5, %v8089
  %v8091 = vrot.slane %v7725, %v8090
  %v8092 = vlaneseq
  %v8093 = vshrl.u32 %v8092, 7
  %v8094 = vsub.s32 6, %v8093
  %v8095 = vrot.slane %v7725, %v8094
  %v8096 = vlaneseq
  %v8097 = vshrl.u32 %v8096, 7
  %v8098 = vsub.s32 7, %v8097
  %v8099 = vrot.slane %v7725, %v8098
  %v8100 = vlaneseq
  %v8101 = vshrl.u32 %v8100, 7
  %v8102 = vsub.s32 0, %v8101
  %v8103 = vrot.slane %v7726, %v8102
  %v8104 = vlaneseq
  %v8105 = vshrl.u32 %v8104, 7
  %v8106 = vsub.s32 1, %v8105
  %v8107 = vrot.slane %v7726, %v8106
  %v8108 = vlaneseq
  %v8109 = vshrl.u32 %v8108, 7
  %v8110 = vsub.s32 2, %v8109
  %v8111 = vrot.slane %v7726, %v8110
  %v8112 = vlaneseq
  %v8113 = vshrl.u32 %v8112, 7
  %v8114 = vsub.s32 3, %v8113
  %v8115 = vrot.slane %v7726, %v8114
  %v8116 = vlaneseq
  %v8117 = vshrl.u32 %v8116, 7
  %v8118 = vsub.s32 4, %v8117
  %v8119 = vrot.slane %v7726, %v8118
  %v8120 = vlaneseq
  %v8121 = vshrl.u32 %v8120, 7
  %v8122 = vsub.s32 5, %v8121
  %v8123 = vrot.slane %v7726, %v8122
  %v8124 = vlaneseq
  %v8125 = vshrl.u32 %v8124, 7
  %v8126 = vsub.s32 6, %v8125
  %v8127 = vrot.slane %v7726, %v8126
  %v8128 = vlaneseq
  %v8129 = vshrl.u32 %v8128, 7
  %v8130 = vsub.s32 7, %v8129
  %v8131 = vrot.slane %v7726, %v8130
  %v8132 = vlaneseq
  %v8133 = vshrl.u32 %v8132, 7
  %v8134 = vsub.s32 0, %v8133
  %v8135 = vrot.slane %v7727, %v8134
  %v8136 = vlaneseq
  %v8137 = vshrl.u32 %v8136, 7
  %v8138 = vsub.s32 1, %v8137
  %v8139 = vrot.slane %v7727, %v8138
  %v8140 = vlaneseq
  %v8141 = vshrl.u32 %v8140, 7
  %v8142 = vsub.s32 2, %v8141
  %v8143 = vrot.slane %v7727, %v8142
  %v8144 = vlaneseq
  %v8145 = vshrl.u32 %v8144, 7
  %v8146 = vsub.s32 3, %v8145
  %v8147 = vrot.slane %v7727, %v8146
  %v8148 = vlaneseq
  %v8149 = vshrl.u32 %v8148, 7
  %v8150 = vsub.s32 4, %v8149
  %v8151 = vrot.slane %v7727, %v8150
  %v8152 = vlaneseq
  %v8153 = vshrl.u32 %v8152, 7
  %v8154 = vsub.s32 5, %v8153
  %v8155 = vrot.slane %v7727, %v8154
  %v8156 = vlaneseq
  %v8157 = vshrl.u32 %v8156, 7
  %v8158 = vsub.s32 6, %v8157
  %v8159 = vrot.slane %v7727, %v8158
  %v8160 = vlaneseq
  %v8161 = vshrl.u32 %v8160, 7
  %v8162 = vsub.s32 7, %v8161
  %v8163 = vrot.slane %v7727, %v8162
  %v8164 = vlaneseq
  %v8165 = vshrl.u32 %v8164, 7
  %v8166 = vsub.s32 0, %v8165
  %v8167 = vrot.slane %v7728, %v8166
  %v8168 = vlaneseq
  %v8169 = vshrl.u32 %v8168, 7
  %v8170 = vsub.s32 1, %v8169
  %v8171 = vrot.slane %v7728, %v8170
  %v8172 = vlaneseq
  %v8173 = vshrl.u32 %v8172, 7
  %v8174 = vsub.s32 2, %v8173
  %v8175 = vrot.slane %v7728, %v8174
  %v8176 = vlaneseq
  %v8177 = vshrl.u32 %v8176, 7
  %v8178 = vsub.s32 3, %v8177
  %v8179 = vrot.slane %v7728, %v8178
  %v8180 = vlaneseq
  %v8181 = vshrl.u32 %v8180, 7
  %v8182 = vsub.s32 4, %v8181
  %v8183 = vrot.slane %v7728, %v8182
  %v8184 = vlaneseq
  %v8185 = vshrl.u32 %v8184, 7
  %v8186 = vsub.s32 5, %v8185
  %v8187 = vrot.slane %v7728, %v8186
  %v8188 = vlaneseq
  %v8189 = vshrl.u32 %v8188, 7
  %v8190 = vsub.s32 6, %v8189
  %v8191 = vrot.slane %v7728, %v8190
  %v8192 = vlaneseq
  %v8193 = vshrl.u32 %v8192, 7
  %v8194 = vsub.s32 7, %v8193
  %v8195 = vrot.slane %v7728, %v8194
  %v8196 = vlaneseq
  %v8197 = vshrl.u32 %v8196, 7
  %v8198 = vsub.s32 0, %v8197
  %v8199 = vrot.slane %v7729, %v8198
  %v8200 = vlaneseq
  %v8201 = vshrl.u32 %v8200, 7
  %v8202 = vsub.s32 1, %v8201
  %v8203 = vrot.slane %v7729, %v8202
  %v8204 = vlaneseq
  %v8205 = vshrl.u32 %v8204, 7
  %v8206 = vsub.s32 2, %v8205
  %v8207 = vrot.slane %v7729, %v8206
  %v8208 = vlaneseq
  %v8209 = vshrl.u32 %v8208, 7
  %v8210 = vsub.s32 3, %v8209
  %v8211 = vrot.slane %v7729, %v8210
  %v8212 = vlaneseq
  %v8213 = vshrl.u32 %v8212, 7
  %v8214 = vsub.s32 4, %v8213
  %v8215 = vrot.slane %v7729, %v8214
  %v8216 = vlaneseq
  %v8217 = vshrl.u32 %v8216, 7
  %v8218 = vsub.s32 5, %v8217
  %v8219 = vrot.slane %v7729, %v8218
  %v8220 = vlaneseq
  %v8221 = vshrl.u32 %v8220, 7
  %v8222 = vsub.s32 6, %v8221
  %v8223 = vrot.slane %v7729, %v8222
  %v8224 = vlaneseq
  %v8225 = vshrl.u32 %v8224, 7
  %v8226 = vsub.s32 7, %v8225
  %v8227 = vrot.slane %v7729, %v8226
  %v8228 = vlaneseq
  %v8229 = vshrl.u32 %v8228, 7
  %v8230 = vsub.s32 0, %v8229
  %v8231 = vrot.slane %v7730, %v8230
  %v8232 = vlaneseq
  %v8233 = vshrl.u32 %v8232, 7
  %v8234 = vsub.s32 1, %v8233
  %v8235 = vrot.slane %v7730, %v8234
  %v8236 = vlaneseq
  %v8237 = vshrl.u32 %v8236, 7
  %v8238 = vsub.s32 2, %v8237
  %v8239 = vrot.slane %v7730, %v8238
  %v8240 = vlaneseq
  %v8241 = vshrl.u32 %v8240, 7
  %v8242 = vsub.s32 3, %v8241
  %v8243 = vrot.slane %v7730, %v8242
  %v8244 = vlaneseq
  %v8245 = vshrl.u32 %v8244, 7
  %v8246 = vsub.s32 4, %v8245
  %v8247 = vrot.slane %v7730, %v8246
  %v8248 = vlaneseq
  %v8249 = vshrl.u32 %v8248, 7
  %v8250 = vsub.s32 5, %v8249
  %v8251 = vrot.slane %v7730, %v8250
  %v8252 = vlaneseq
  %v8253 = vshrl.u32 %v8252, 7
  %v8254 = vsub.s32 6, %v8253
  %v8255 = vrot.slane %v7730, %v8254
  %v8256 = vlaneseq
  %v8257 = vshrl.u32 %v8256, 7
  %v8258 = vsub.s32 7, %v8257
  %v8259 = vrot.slane %v7730, %v8258
  %v8260 = vcombine.low %v7751, %v7755
  %v8261 = vcombine.low %v7759, %v7763
  %v8262 = vcombine.low %v7767, %v7771
  %v8263 = vcombine.low %v7775, %v7779
  %v8265 = vunpack.c.l.s4 1966171168
  %v8266 = vunpack.c.0.s8 %v8265
  %v8267 = vlaneseq
  %v8268 = vshrl.u32 %v8267, 7
  %v8269 = vsub.s32 %v8266, %v8268
  %v8270 = vrot.slane %v8260, %v8269
  %v8272 = vunpack.c.l.s4 1966171168
  %v8273 = vunpack.c.0.s8 %v8272
  %v8274 = vlaneseq
  %v8275 = vshrl.u32 %v8274, 7
  %v8276 = vsub.s32 %v8273, %v8275
  %v8277 = vrot.slane %v8261, %v8276
  %v8279 = vunpack.c.l.s4 1966171168
  %v8280 = vunpack.c.0.s8 %v8279
  %v8281 = vlaneseq
  %v8282 = vshrl.u32 %v8281, 7
  %v8283 = vsub.s32 %v8280, %v8282
  %v8284 = vrot.slane %v8262, %v8283
  %v8286 = vunpack.c.l.s4 1966171168
  %v8287 = vunpack.c.0.s8 %v8286
  %v8288 = vlaneseq
  %v8289 = vshrl.u32 %v8288, 7
  %v8290 = vsub.s32 %v8287, %v8289
  %v8291 = vrot.slane %v8263, %v8290
  %v8292 = vcombine.low %v8270, %v8277
  %v8293 = vcombine.low %v8284, %v8291
  %v8295 = vunpack.c.l.s4 1966171168
  %v8296 = vunpack.c.0.s8 %v8295
  %v8297 = vlaneseq
  %v8298 = vshrl.u32 %v8297, 7
  %v8299 = vsub.s32 %v8296, %v8298
  %v8300 = vrot.slane %v8292, %v8299
  %v8302 = vunpack.c.l.s4 1966171168
  %v8303 = vunpack.c.0.s8 %v8302
  %v8304 = vlaneseq
  %v8305 = vshrl.u32 %v8304, 7
  %v8306 = vsub.s32 %v8303, %v8305
  %v8307 = vrot.slane %v8293, %v8306
  %v8308 = vcombine.low %v8300, %v8307
  %v8309 = vcombine.low %v7783, %v7787
  %v8310 = vcombine.low %v7791, %v7795
  %v8311 = vcombine.low %v7799, %v7803
  %v8312 = vcombine.low %v7807, %v7811
  %v8314 = vunpack.c.l.s4 1966171168
  %v8315 = vunpack.c.0.s8 %v8314
  %v8316 = vlaneseq
  %v8317 = vshrl.u32 %v8316, 7
  %v8318 = vsub.s32 %v8315, %v8317
  %v8319 = vrot.slane %v8309, %v8318
  %v8321 = vunpack.c.l.s4 1966171168
  %v8322 = vunpack.c.0.s8 %v8321
  %v8323 = vlaneseq
  %v8324 = vshrl.u32 %v8323, 7
  %v8325 = vsub.s32 %v8322, %v8324
  %v8326 = vrot.slane %v8310, %v8325
  %v8328 = vunpack.c.l.s4 1966171168
  %v8329 = vunpack.c.0.s8 %v8328
  %v8330 = vlaneseq
  %v8331 = vshrl.u32 %v8330, 7
  %v8332 = vsub.s32 %v8329, %v8331
  %v8333 = vrot.slane %v8311, %v8332
  %v8335 = vunpack.c.l.s4 1966171168
  %v8336 = vunpack.c.0.s8 %v8335
  %v8337 = vlaneseq
  %v8338 = vshrl.u32 %v8337, 7
  %v8339 = vsub.s32 %v8336, %v8338
  %v8340 = vrot.slane %v8312, %v8339
  %v8341 = vcombine.low %v8319, %v8326
  %v8342 = vcombine.low %v8333, %v8340
  %v8344 = vunpack.c.l.s4 1966171168
  %v8345 = vunpack.c.0.s8 %v8344
  %v8346 = vlaneseq
  %v8347 = vshrl.u32 %v8346, 7
  %v8348 = vsub.s32 %v8345, %v8347
  %v8349 = vrot.slane %v8341, %v8348
  %v8351 = vunpack.c.l.s4 1966171168
  %v8352 = vunpack.c.0.s8 %v8351
  %v8353 = vlaneseq
  %v8354 = vshrl.u32 %v8353, 7
  %v8355 = vsub.s32 %v8352, %v8354
  %v8356 = vrot.slane %v8342, %v8355
  %v8357 = vcombine.low %v8349, %v8356
  %v8358 = vcombine.low %v7815, %v7819
  %v8359 = vcombine.low %v7823, %v7827
  %v8360 = vcombine.low %v7831, %v7835
  %v8361 = vcombine.low %v7839, %v7843
  %v8363 = vunpack.c.l.s4 1966171168
  %v8364 = vunpack.c.0.s8 %v8363
  %v8365 = vlaneseq
  %v8366 = vshrl.u32 %v8365, 7
  %v8367 = vsub.s32 %v8364, %v8366
  %v8368 = vrot.slane %v8358, %v8367
  %v8370 = vunpack.c.l.s4 1966171168
  %v8371 = vunpack.c.0.s8 %v8370
  %v8372 = vlaneseq
  %v8373 = vshrl.u32 %v8372, 7
  %v8374 = vsub.s32 %v8371, %v8373
  %v8375 = vrot.slane %v8359, %v8374
  %v8377 = vunpack.c.l.s4 1966171168
  %v8378 = vunpack.c.0.s8 %v8377
  %v8379 = vlaneseq
  %v8380 = vshrl.u32 %v8379, 7
  %v8381 = vsub.s32 %v8378, %v8380
  %v8382 = vrot.slane %v8360, %v8381
  %v8384 = vunpack.c.l.s4 1966171168
  %v8385 = vunpack.c.0.s8 %v8384
  %v8386 = vlaneseq
  %v8387 = vshrl.u32 %v8386, 7
  %v8388 = vsub.s32 %v8385, %v8387
  %v8389 = vrot.slane %v8361, %v8388
  %v8390 = vcombine.low %v8368, %v8375
  %v8391 = vcombine.low %v8382, %v8389
  %v8393 = vunpack.c.l.s4 1966171168
  %v8394 = vunpack.c.0.s8 %v8393
  %v8395 = vlaneseq
  %v8396 = vshrl.u32 %v8395, 7
  %v8397 = vsub.s32 %v8394, %v8396
  %v8398 = vrot.slane %v8390, %v8397
  %v8400 = vunpack.c.l.s4 1966171168
  %v8401 = vunpack.c.0.s8 %v8400
  %v8402 = vlaneseq
  %v8403 = vshrl.u32 %v8402, 7
  %v8404 = vsub.s32 %v8401, %v8403
  %v8405 = vrot.slane %v8391, %v8404
  %v8406 = vcombine.low %v8398, %v8405
  %v8407 = vcombine.low %v7847, %v7851
  %v8408 = vcombine.low %v7855, %v7859
  %v8409 = vcombine.low %v7863, %v7867
  %v8410 = vcombine.low %v7871, %v7875
  %v8412 = vunpack.c.l.s4 1966171168
  %v8413 = vunpack.c.0.s8 %v8412
  %v8414 = vlaneseq
  %v8415 = vshrl.u32 %v8414, 7
  %v8416 = vsub.s32 %v8413, %v8415
  %v8417 = vrot.slane %v8407, %v8416
  %v8419 = vunpack.c.l.s4 1966171168
  %v8420 = vunpack.c.0.s8 %v8419
  %v8421 = vlaneseq
  %v8422 = vshrl.u32 %v8421, 7
  %v8423 = vsub.s32 %v8420, %v8422
  %v8424 = vrot.slane %v8408, %v8423
  %v8426 = vunpack.c.l.s4 1966171168
  %v8427 = vunpack.c.0.s8 %v8426
  %v8428 = vlaneseq
  %v8429 = vshrl.u32 %v8428, 7
  %v8430 = vsub.s32 %v8427, %v8429
  %v8431 = vrot.slane %v8409, %v8430
  %v8433 = vunpack.c.l.s4 1966171168
  %v8434 = vunpack.c.0.s8 %v8433
  %v8435 = vlaneseq
  %v8436 = vshrl.u32 %v8435, 7
  %v8437 = vsub.s32 %v8434, %v8436
  %v8438 = vrot.slane %v8410, %v8437
  %v8439 = vcombine.low %v8417, %v8424
  %v8440 = vcombine.low %v8431, %v8438
  %v8442 = vunpack.c.l.s4 1966171168
  %v8443 = vunpack.c.0.s8 %v8442
  %v8444 = vlaneseq
  %v8445 = vshrl.u32 %v8444, 7
  %v8446 = vsub.s32 %v8443, %v8445
  %v8447 = vrot.slane %v8439, %v8446
  %v8449 = vunpack.c.l.s4 1966171168
  %v8450 = vunpack.c.0.s8 %v8449
  %v8451 = vlaneseq
  %v8452 = vshrl.u32 %v8451, 7
  %v8453 = vsub.s32 %v8450, %v8452
  %v8454 = vrot.slane %v8440, %v8453
  %v8455 = vcombine.low %v8447, %v8454
  %v8456 = vcombine.low %v7879, %v7883
  %v8457 = vcombine.low %v7887, %v7891
  %v8458 = vcombine.low %v7895, %v7899
  %v8459 = vcombine.low %v7903, %v7907
  %v8461 = vunpack.c.l.s4 1966171168
  %v8462 = vunpack.c.0.s8 %v8461
  %v8463 = vlaneseq
  %v8464 = vshrl.u32 %v8463, 7
  %v8465 = vsub.s32 %v8462, %v8464
  %v8466 = vrot.slane %v8456, %v8465
  %v8468 = vunpack.c.l.s4 1966171168
  %v8469 = vunpack.c.0.s8 %v8468
  %v8470 = vlaneseq
  %v8471 = vshrl.u32 %v8470, 7
  %v8472 = vsub.s32 %v8469, %v8471
  %v8473 = vrot.slane %v8457, %v8472
  %v8475 = vunpack.c.l.s4 1966171168
  %v8476 = vunpack.c.0.s8 %v8475
  %v8477 = vlaneseq
  %v8478 = vshrl.u32 %v8477, 7
  %v8479 = vsub.s32 %v8476, %v8478
  %v8480 = vrot.slane %v8458, %v8479
  %v8482 = vunpack.c.l.s4 1966171168
  %v8483 = vunpack.c.0.s8 %v8482
  %v8484 = vlaneseq
  %v8485 = vshrl.u32 %v8484, 7
  %v8486 = vsub.s32 %v8483, %v8485
  %v8487 = vrot.slane %v8459, %v8486
  %v8488 = vcombine.low %v8466, %v8473
  %v8489 = vcombine.low %v8480, %v8487
  %v8491 = vunpack.c.l.s4 1966171168
  %v8492 = vunpack.c.0.s8 %v8491
  %v8493 = vlaneseq
  %v8494 = vshrl.u32 %v8493, 7
  %v8495 = vsub.s32 %v8492, %v8494
  %v8496 = vrot.slane %v8488, %v8495
  %v8498 = vunpack.c.l.s4 1966171168
  %v8499 = vunpack.c.0.s8 %v8498
  %v8500 = vlaneseq
  %v8501 = vshrl.u32 %v8500, 7
  %v8502 = vsub.s32 %v8499, %v8501
  %v8503 = vrot.slane %v8489, %v8502
  %v8504 = vcombine.low %v8496, %v8503
  %v8505 = vcombine.low %v7911, %v7915
  %v8506 = vcombine.low %v7919, %v7923
  %v8507 = vcombine.low %v7927, %v7931
  %v8508 = vcombine.low %v7935, %v7939
  %v8510 = vunpack.c.l.s4 1966171168
  %v8511 = vunpack.c.0.s8 %v8510
  %v8512 = vlaneseq
  %v8513 = vshrl.u32 %v8512, 7
  %v8514 = vsub.s32 %v8511, %v8513
  %v8515 = vrot.slane %v8505, %v8514
  %v8517 = vunpack.c.l.s4 1966171168
  %v8518 = vunpack.c.0.s8 %v8517
  %v8519 = vlaneseq
  %v8520 = vshrl.u32 %v8519, 7
  %v8521 = vsub.s32 %v8518, %v8520
  %v8522 = vrot.slane %v8506, %v8521
  %v8524 = vunpack.c.l.s4 1966171168
  %v8525 = vunpack.c.0.s8 %v8524
  %v8526 = vlaneseq
  %v8527 = vshrl.u32 %v8526, 7
  %v8528 = vsub.s32 %v8525, %v8527
  %v8529 = vrot.slane %v8507, %v8528
  %v8531 = vunpack.c.l.s4 1966171168
  %v8532 = vunpack.c.0.s8 %v8531
  %v8533 = vlaneseq
  %v8534 = vshrl.u32 %v8533, 7
  %v8535 = vsub.s32 %v8532, %v8534
  %v8536 = vrot.slane %v8508, %v8535
  %v8537 = vcombine.low %v8515, %v8522
  %v8538 = vcombine.low %v8529, %v8536
  %v8540 = vunpack.c.l.s4 1966171168
  %v8541 = vunpack.c.0.s8 %v8540
  %v8542 = vlaneseq
  %v8543 = vshrl.u32 %v8542, 7
  %v8544 = vsub.s32 %v8541, %v8543
  %v8545 = vrot.slane %v8537, %v8544
  %v8547 = vunpack.c.l.s4 1966171168
  %v8548 = vunpack.c.0.s8 %v8547
  %v8549 = vlaneseq
  %v8550 = vshrl.u32 %v8549, 7
  %v8551 = vsub.s32 %v8548, %v8550
  %v8552 = vrot.slane %v8538, %v8551
  %v8553 = vcombine.low %v8545, %v8552
  %v8554 = vcombine.low %v7943, %v7947
  %v8555 = vcombine.low %v7951, %v7955
  %v8556 = vcombine.low %v7959, %v7963
  %v8557 = vcombine.low %v7967, %v7971
  %v8559 = vunpack.c.l.s4 1966171168
  %v8560 = vunpack.c.0.s8 %v8559
  %v8561 = vlaneseq
  %v8562 = vshrl.u32 %v8561, 7
  %v8563 = vsub.s32 %v8560, %v8562
  %v8564 = vrot.slane %v8554, %v8563
  %v8566 = vunpack.c.l.s4 1966171168
  %v8567 = vunpack.c.0.s8 %v8566
  %v8568 = vlaneseq
  %v8569 = vshrl.u32 %v8568, 7
  %v8570 = vsub.s32 %v8567, %v8569
  %v8571 = vrot.slane %v8555, %v8570
  %v8573 = vunpack.c.l.s4 1966171168
  %v8574 = vunpack.c.0.s8 %v8573
  %v8575 = vlaneseq
  %v8576 = vshrl.u32 %v8575, 7
  %v8577 = vsub.s32 %v8574, %v8576
  %v8578 = vrot.slane %v8556, %v8577
  %v8580 = vunpack.c.l.s4 1966171168
  %v8581 = vunpack.c.0.s8 %v8580
  %v8582 = vlaneseq
  %v8583 = vshrl.u32 %v8582, 7
  %v8584 = vsub.s32 %v8581, %v8583
  %v8585 = vrot.slane %v8557, %v8584
  %v8586 = vcombine.low %v8564, %v8571
  %v8587 = vcombine.low %v8578, %v8585
  %v8589 = vunpack.c.l.s4 1966171168
  %v8590 = vunpack.c.0.s8 %v8589
  %v8591 = vlaneseq
  %v8592 = vshrl.u32 %v8591, 7
  %v8593 = vsub.s32 %v8590, %v8592
  %v8594 = vrot.slane %v8586, %v8593
  %v8596 = vunpack.c.l.s4 1966171168
  %v8597 = vunpack.c.0.s8 %v8596
  %v8598 = vlaneseq
  %v8599 = vshrl.u32 %v8598, 7
  %v8600 = vsub.s32 %v8597, %v8599
  %v8601 = vrot.slane %v8587, %v8600
  %v8602 = vcombine.low %v8594, %v8601
  %v8603 = vcombine.low %v7975, %v7979
  %v8604 = vcombine.low %v7983, %v7987
  %v8605 = vcombine.low %v7991, %v7995
  %v8606 = vcombine.low %v7999, %v8003
  %v8608 = vunpack.c.l.s4 1966171168
  %v8609 = vunpack.c.0.s8 %v8608
  %v8610 = vlaneseq
  %v8611 = vshrl.u32 %v8610, 7
  %v8612 = vsub.s32 %v8609, %v8611
  %v8613 = vrot.slane %v8603, %v8612
  %v8615 = vunpack.c.l.s4 1966171168
  %v8616 = vunpack.c.0.s8 %v8615
  %v8617 = vlaneseq
  %v8618 = vshrl.u32 %v8617, 7
  %v8619 = vsub.s32 %v8616, %v8618
  %v8620 = vrot.slane %v8604, %v8619
  %v8622 = vunpack.c.l.s4 1966171168
  %v8623 = vunpack.c.0.s8 %v8622
  %v8624 = vlaneseq
  %v8625 = vshrl.u32 %v8624, 7
  %v8626 = vsub.s32 %v8623, %v8625
  %v8627 = vrot.slane %v8605, %v8626
  %v8629 = vunpack.c.l.s4 1966171168
  %v8630 = vunpack.c.0.s8 %v8629
  %v8631 = vlaneseq
  %v8632 = vshrl.u32 %v8631, 7
  %v8633 = vsub.s32 %v8630, %v8632
  %v8634 = vrot.slane %v8606, %v8633
  %v8635 = vcombine.low %v8613, %v8620
  %v8636 = vcombine.low %v8627, %v8634
  %v8638 = vunpack.c.l.s4 1966171168
  %v8639 = vunpack.c.0.s8 %v8638
  %v8640 = vlaneseq
  %v8641 = vshrl.u32 %v8640, 7
  %v8642 = vsub.s32 %v8639, %v8641
  %v8643 = vrot.slane %v8635, %v8642
  %v8645 = vunpack.c.l.s4 1966171168
  %v8646 = vunpack.c.0.s8 %v8645
  %v8647 = vlaneseq
  %v8648 = vshrl.u32 %v8647, 7
  %v8649 = vsub.s32 %v8646, %v8648
  %v8650 = vrot.slane %v8636, %v8649
  %v8651 = vcombine.low %v8643, %v8650
  %v8652 = vcombine.low %v8007, %v8011
  %v8653 = vcombine.low %v8015, %v8019
  %v8654 = vcombine.low %v8023, %v8027
  %v8655 = vcombine.low %v8031, %v8035
  %v8657 = vunpack.c.l.s4 1966171168
  %v8658 = vunpack.c.0.s8 %v8657
  %v8659 = vlaneseq
  %v8660 = vshrl.u32 %v8659, 7
  %v8661 = vsub.s32 %v8658, %v8660
  %v8662 = vrot.slane %v8652, %v8661
  %v8664 = vunpack.c.l.s4 1966171168
  %v8665 = vunpack.c.0.s8 %v8664
  %v8666 = vlaneseq
  %v8667 = vshrl.u32 %v8666, 7
  %v8668 = vsub.s32 %v8665, %v8667
  %v8669 = vrot.slane %v8653, %v8668
  %v8671 = vunpack.c.l.s4 1966171168
  %v8672 = vunpack.c.0.s8 %v8671
  %v8673 = vlaneseq
  %v8674 = vshrl.u32 %v8673, 7
  %v8675 = vsub.s32 %v8672, %v8674
  %v8676 = vrot.slane %v8654, %v8675
  %v8678 = vunpack.c.l.s4 1966171168
  %v8679 = vunpack.c.0.s8 %v8678
  %v8680 = vlaneseq
  %v8681 = vshrl.u32 %v8680, 7
  %v8682 = vsub.s32 %v8679, %v8681
  %v8683 = vrot.slane %v8655, %v8682
  %v8684 = vcombine.low %v8662, %v8669
  %v8685 = vcombine.low %v8676, %v8683
  %v8687 = vunpack.c.l.s4 1966171168
  %v8688 = vunpack.c.0.s8 %v8687
  %v8689 = vlaneseq
  %v8690 = vshrl.u32 %v8689, 7
  %v8691 = vsub.s32 %v8688, %v8690
  %v8692 = vrot.slane %v8684, %v8691
  %v8694 = vunpack.c.l.s4 1966171168
  %v8695 = vunpack.c.0.s8 %v8694
  %v8696 = vlaneseq
  %v8697 = vshrl.u32 %v8696, 7
  %v8698 = vsub.s32 %v8695, %v8697
  %v8699 = vrot.slane %v8685, %v8698
  %v8700 = vcombine.low %v8692, %v8699
  %v8701 = vcombine.low %v8039, %v8043
  %v8702 = vcombine.low %v8047, %v8051
  %v8703 = vcombine.low %v8055, %v8059
  %v8704 = vcombine.low %v8063, %v8067
  %v8706 = vunpack.c.l.s4 1966171168
  %v8707 = vunpack.c.0.s8 %v8706
  %v8708 = vlaneseq
  %v8709 = vshrl.u32 %v8708, 7
  %v8710 = vsub.s32 %v8707, %v8709
  %v8711 = vrot.slane %v8701, %v8710
  %v8713 = vunpack.c.l.s4 1966171168
  %v8714 = vunpack.c.0.s8 %v8713
  %v8715 = vlaneseq
  %v8716 = vshrl.u32 %v8715, 7
  %v8717 = vsub.s32 %v8714, %v8716
  %v8718 = vrot.slane %v8702, %v8717
  %v8720 = vunpack.c.l.s4 1966171168
  %v8721 = vunpack.c.0.s8 %v8720
  %v8722 = vlaneseq
  %v8723 = vshrl.u32 %v8722, 7
  %v8724 = vsub.s32 %v8721, %v8723
  %v8725 = vrot.slane %v8703, %v8724
  %v8727 = vunpack.c.l.s4 1966171168
  %v8728 = vunpack.c.0.s8 %v8727
  %v8729 = vlaneseq
  %v8730 = vshrl.u32 %v8729, 7
  %v8731 = vsub.s32 %v8728, %v8730
  %v8732 = vrot.slane %v8704, %v8731
  %v8733 = vcombine.low %v8711, %v8718
  %v8734 = vcombine.low %v8725, %v8732
  %v8736 = vunpack.c.l.s4 1966171168
  %v8737 = vunpack.c.0.s8 %v8736
  %v8738 = vlaneseq
  %v8739 = vshrl.u32 %v8738, 7
  %v8740 = vsub.s32 %v8737, %v8739
  %v8741 = vrot.slane %v8733, %v8740
  %v8743 = vunpack.c.l.s4 1966171168
  %v8744 = vunpack.c.0.s8 %v8743
  %v8745 = vlaneseq
  %v8746 = vshrl.u32 %v8745, 7
  %v8747 = vsub.s32 %v8744, %v8746
  %v8748 = vrot.slane %v8734, %v8747
  %v8749 = vcombine.low %v8741, %v8748
  %v8750 = vcombine.low %v8071, %v8075
  %v8751 = vcombine.low %v8079, %v8083
  %v8752 = vcombine.low %v8087, %v8091
  %v8753 = vcombine.low %v8095, %v8099
  %v8755 = vunpack.c.l.s4 1966171168
  %v8756 = vunpack.c.0.s8 %v8755
  %v8757 = vlaneseq
  %v8758 = vshrl.u32 %v8757, 7
  %v8759 = vsub.s32 %v8756, %v8758
  %v8760 = vrot.slane %v8750, %v8759
  %v8762 = vunpack.c.l.s4 1966171168
  %v8763 = vunpack.c.0.s8 %v8762
  %v8764 = vlaneseq
  %v8765 = vshrl.u32 %v8764, 7
  %v8766 = vsub.s32 %v8763, %v8765
  %v8767 = vrot.slane %v8751, %v8766
  %v8769 = vunpack.c.l.s4 1966171168
  %v8770 = vunpack.c.0.s8 %v8769
  %v8771 = vlaneseq
  %v8772 = vshrl.u32 %v8771, 7
  %v8773 = vsub.s32 %v8770, %v8772
  %v8774 = vrot.slane %v8752, %v8773
  %v8776 = vunpack.c.l.s4 1966171168
  %v8777 = vunpack.c.0.s8 %v8776
  %v8778 = vlaneseq
  %v8779 = vshrl.u32 %v8778, 7
  %v8780 = vsub.s32 %v8777, %v8779
  %v8781 = vrot.slane %v8753, %v8780
  %v8782 = vcombine.low %v8760, %v8767
  %v8783 = vcombine.low %v8774, %v8781
  %v8785 = vunpack.c.l.s4 1966171168
  %v8786 = vunpack.c.0.s8 %v8785
  %v8787 = vlaneseq
  %v8788 = vshrl.u32 %v8787, 7
  %v8789 = vsub.s32 %v8786, %v8788
  %v8790 = vrot.slane %v8782, %v8789
  %v8792 = vunpack.c.l.s4 1966171168
  %v8793 = vunpack.c.0.s8 %v8792
  %v8794 = vlaneseq
  %v8795 = vshrl.u32 %v8794, 7
  %v8796 = vsub.s32 %v8793, %v8795
  %v8797 = vrot.slane %v8783, %v8796
  %v8798 = vcombine.low %v8790, %v8797
  %v8799 = vcombine.low %v8103, %v8107
  %v8800 = vcombine.low %v8111, %v8115
  %v8801 = vcombine.low %v8119, %v8123
  %v8802 = vcombine.low %v8127, %v8131
  %v8804 = vunpack.c.l.s4 1966171168
  %v8805 = vunpack.c.0.s8 %v8804
  %v8806 = vlaneseq
  %v8807 = vshrl.u32 %v8806, 7
  %v8808 = vsub.s32 %v8805, %v8807
  %v8809 = vrot.slane %v8799, %v8808
  %v8811 = vunpack.c.l.s4 1966171168
  %v8812 = vunpack.c.0.s8 %v8811
  %v8813 = vlaneseq
  %v8814 = vshrl.u32 %v8813, 7
  %v8815 = vsub.s32 %v8812, %v8814
  %v8816 = vrot.slane %v8800, %v8815
  %v8818 = vunpack.c.l.s4 1966171168
  %v8819 = vunpack.c.0.s8 %v8818
  %v8820 = vlaneseq
  %v8821 = vshrl.u32 %v8820, 7
  %v8822 = vsub.s32 %v8819, %v8821
  %v8823 = vrot.slane %v8801, %v8822
  %v8825 = vunpack.c.l.s4 1966171168
  %v8826 = vunpack.c.0.s8 %v8825
  %v8827 = vlaneseq
  %v8828 = vshrl.u32 %v8827, 7
  %v8829 = vsub.s32 %v8826, %v8828
  %v8830 = vrot.slane %v8802, %v8829
  %v8831 = vcombine.low %v8809, %v8816
  %v8832 = vcombine.low %v8823, %v8830
  %v8834 = vunpack.c.l.s4 1966171168
  %v8835 = vunpack.c.0.s8 %v8834
  %v8836 = vlaneseq
  %v8837 = vshrl.u32 %v8836, 7
  %v8838 = vsub.s32 %v8835, %v8837
  %v8839 = vrot.slane %v8831, %v8838
  %v8841 = vunpack.c.l.s4 1966171168
  %v8842 = vunpack.c.0.s8 %v8841
  %v8843 = vlaneseq
  %v8844 = vshrl.u32 %v8843, 7
  %v8845 = vsub.s32 %v8842, %v8844
  %v8846 = vrot.slane %v8832, %v8845
  %v8847 = vcombine.low %v8839, %v8846
  %v8848 = vcombine.low %v8135, %v8139
  %v8849 = vcombine.low %v8143, %v8147
  %v8850 = vcombine.low %v8151, %v8155
  %v8851 = vcombine.low %v8159, %v8163
  %v8853 = vunpack.c.l.s4 1966171168
  %v8854 = vunpack.c.0.s8 %v8853
  %v8855 = vlaneseq
  %v8856 = vshrl.u32 %v8855, 7
  %v8857 = vsub.s32 %v8854, %v8856
  %v8858 = vrot.slane %v8848, %v8857
  %v8860 = vunpack.c.l.s4 1966171168
  %v8861 = vunpack.c.0.s8 %v8860
  %v8862 = vlaneseq
  %v8863 = vshrl.u32 %v8862, 7
  %v8864 = vsub.s32 %v8861, %v8863
  %v8865 = vrot.slane %v8849, %v8864
  %v8867 = vunpack.c.l.s4 1966171168
  %v8868 = vunpack.c.0.s8 %v8867
  %v8869 = vlaneseq
  %v8870 = vshrl.u32 %v8869, 7
  %v8871 = vsub.s32 %v8868, %v8870
  %v8872 = vrot.slane %v8850, %v8871
  %v8874 = vunpack.c.l.s4 1966171168
  %v8875 = vunpack.c.0.s8 %v8874
  %v8876 = vlaneseq
  %v8877 = vshrl.u32 %v8876, 7
  %v8878 = vsub.s32 %v8875, %v8877
  %v8879 = vrot.slane %v8851, %v8878
  %v8880 = vcombine.low %v8858, %v8865
  %v8881 = vcombine.low %v8872, %v8879
  %v8883 = vunpack.c.l.s4 1966171168
  %v8884 = vunpack.c.0.s8 %v8883
  %v8885 = vlaneseq
  %v8886 = vshrl.u32 %v8885, 7
  %v8887 = vsub.s32 %v8884, %v8886
  %v8888 = vrot.slane %v8880, %v8887
  %v8890 = vunpack.c.l.s4 1966171168
  %v8891 = vunpack.c.0.s8 %v8890
  %v8892 = vlaneseq
  %v8893 = vshrl.u32 %v8892, 7
  %v8894 = vsub.s32 %v8891, %v8893
  %v8895 = vrot.slane %v8881, %v8894
  %v8896 = vcombine.low %v8888, %v8895
  %v8897 = vcombine.low %v8167, %v8171
  %v8898 = vcombine.low %v8175, %v8179
  %v8899 = vcombine.low %v8183, %v8187
  %v8900 = vcombine.low %v8191, %v8195
  %v8902 = vunpack.c.l.s4 1966171168
  %v8903 = vunpack.c.0.s8 %v8902
  %v8904 = vlaneseq
  %v8905 = vshrl.u32 %v8904, 7
  %v8906 = vsub.s32 %v8903, %v8905
  %v8907 = vrot.slane %v8897, %v8906
  %v8909 = vunpack.c.l.s4 1966171168
  %v8910 = vunpack.c.0.s8 %v8909
  %v8911 = vlaneseq
  %v8912 = vshrl.u32 %v8911, 7
  %v8913 = vsub.s32 %v8910, %v8912
  %v8914 = vrot.slane %v8898, %v8913
  %v8916 = vunpack.c.l.s4 1966171168
  %v8917 = vunpack.c.0.s8 %v8916
  %v8918 = vlaneseq
  %v8919 = vshrl.u32 %v8918, 7
  %v8920 = vsub.s32 %v8917, %v8919
  %v8921 = vrot.slane %v8899, %v8920
  %v8923 = vunpack.c.l.s4 1966171168
  %v8924 = vunpack.c.0.s8 %v8923
  %v8925 = vlaneseq
  %v8926 = vshrl.u32 %v8925, 7
  %v8927 = vsub.s32 %v8924, %v8926
  %v8928 = vrot.slane %v8900, %v8927
  %v8929 = vcombine.low %v8907, %v8914
  %v8930 = vcombine.low %v8921, %v8928
  %v8932 = vunpack.c.l.s4 1966171168
  %v8933 = vunpack.c.0.s8 %v8932
  %v8934 = vlaneseq
  %v8935 = vshrl.u32 %v8934, 7
  %v8936 = vsub.s32 %v8933, %v8935
  %v8937 = vrot.slane %v8929, %v8936
  %v8939 = vunpack.c.l.s4 1966171168
  %v8940 = vunpack.c.0.s8 %v8939
  %v8941 = vlaneseq
  %v8942 = vshrl.u32 %v8941, 7
  %v8943 = vsub.s32 %v8940, %v8942
  %v8944 = vrot.slane %v8930, %v8943
  %v8945 = vcombine.low %v8937, %v8944
  %v8946 = vcombine.low %v8199, %v8203
  %v8947 = vcombine.low %v8207, %v8211
  %v8948 = vcombine.low %v8215, %v8219
  %v8949 = vcombine.low %v8223, %v8227
  %v8951 = vunpack.c.l.s4 1966171168
  %v8952 = vunpack.c.0.s8 %v8951
  %v8953 = vlaneseq
  %v8954 = vshrl.u32 %v8953, 7
  %v8955 = vsub.s32 %v8952, %v8954
  %v8956 = vrot.slane %v8946, %v8955
  %v8958 = vunpack.c.l.s4 1966171168
  %v8959 = vunpack.c.0.s8 %v8958
  %v8960 = vlaneseq
  %v8961 = vshrl.u32 %v8960, 7
  %v8962 = vsub.s32 %v8959, %v8961
  %v8963 = vrot.slane %v8947, %v8962
  %v8965 = vunpack.c.l.s4 1966171168
  %v8966 = vunpack.c.0.s8 %v8965
  %v8967 = vlaneseq
  %v8968 = vshrl.u32 %v8967, 7
  %v8969 = vsub.s32 %v8966, %v8968
  %v8970 = vrot.slane %v8948, %v8969
  %v8972 = vunpack.c.l.s4 1966171168
  %v8973 = vunpack.c.0.s8 %v8972
  %v8974 = vlaneseq
  %v8975 = vshrl.u32 %v8974, 7
  %v8976 = vsub.s32 %v8973, %v8975
  %v8977 = vrot.slane %v8949, %v8976
  %v8978 = vcombine.low %v8956, %v8963
  %v8979 = vcombine.low %v8970, %v8977
  %v8981 = vunpack.c.l.s4 1966171168
  %v8982 = vunpack.c.0.s8 %v8981
  %v8983 = vlaneseq
  %v8984 = vshrl.u32 %v8983, 7
  %v8985 = vsub.s32 %v8982, %v8984
  %v8986 = vrot.slane %v8978, %v8985
  %v8988 = vunpack.c.l.s4 1966171168
  %v8989 = vunpack.c.0.s8 %v8988
  %v8990 = vlaneseq
  %v8991 = vshrl.u32 %v8990, 7
  %v8992 = vsub.s32 %v8989, %v8991
  %v8993 = vrot.slane %v8979, %v8992
  %v8994 = vcombine.low %v8986, %v8993
  %v8995 = vcombine.low %v8231, %v8235
  %v8996 = vcombine.low %v8239, %v8243
  %v8997 = vcombine.low %v8247, %v8251
  %v8998 = vcombine.low %v8255, %v8259
  %v9000 = vunpack.c.l.s4 1966171168
  %v9001 = vunpack.c.0.s8 %v9000
  %v9002 = vlaneseq
  %v9003 = vshrl.u32 %v9002, 7
  %v9004 = vsub.s32 %v9001, %v9003
  %v9005 = vrot.slane %v8995, %v9004
  %v9007 = vunpack.c.l.s4 1966171168
  %v9008 = vunpack.c.0.s8 %v9007
  %v9009 = vlaneseq
  %v9010 = vshrl.u32 %v9009, 7
  %v9011 = vsub.s32 %v9008, %v9010
  %v9012 = vrot.slane %v8996, %v9011
  %v9014 = vunpack.c.l.s4 1966171168
  %v9015 = vunpack.c.0.s8 %v9014
  %v9016 = vlaneseq
  %v9017 = vshrl.u32 %v9016, 7
  %v9018 = vsub.s32 %v9015, %v9017
  %v9019 = vrot.slane %v8997, %v9018
  %v9021 = vunpack.c.l.s4 1966171168
  %v9022 = vunpack.c.0.s8 %v9021
  %v9023 = vlaneseq
  %v9024 = vshrl.u32 %v9023, 7
  %v9025 = vsub.s32 %v9022, %v9024
  %v9026 = vrot.slane %v8998, %v9025
  %v9027 = vcombine.low %v9005, %v9012
  %v9028 = vcombine.low %v9019, %v9026
  %v9030 = vunpack.c.l.s4 1966171168
  %v9031 = vunpack.c.0.s8 %v9030
  %v9032 = vlaneseq
  %v9033 = vshrl.u32 %v9032, 7
  %v9034 = vsub.s32 %v9031, %v9033
  %v9035 = vrot.slane %v9027, %v9034
  %v9037 = vunpack.c.l.s4 1966171168
  %v9038 = vunpack.c.0.s8 %v9037
  %v9039 = vlaneseq
  %v9040 = vshrl.u32 %v9039, 7
  %v9041 = vsub.s32 %v9038, %v9040
  %v9042 = vrot.slane %v9028, %v9041
  %v9043 = vcombine.low %v9035, %v9042
  %9044 = vset.pattern.permute.xlu0 0
  %9045 = vperm.xlu0 %9044, %v8308
  %v9046 = vpop.permute.xlu0 %9045
  %9047 = vset.pattern.permute.xlu0 0
  %9048 = vperm.xlu0 %9047, %v8357
  %v9049 = vpop.permute.xlu0 %9048
  %9050 = vset.pattern.permute.xlu0 0
  %9051 = vperm.xlu0 %9050, %v8406
  %v9052 = vpop.permute.xlu0 %9051
  %9053 = vset.pattern.permute.xlu0 0
  %9054 = vperm.xlu0 %9053, %v8455
  %v9055 = vpop.permute.xlu0 %9054
  %9056 = vset.pattern.permute.xlu0 0
  %9057 = vperm.xlu0 %9056, %v8504
  %v9058 = vpop.permute.xlu0 %9057
  %9059 = vset.pattern.permute.xlu0 0
  %9060 = vperm.xlu0 %9059, %v8553
  %v9061 = vpop.permute.xlu0 %9060
  %9062 = vset.pattern.permute.xlu0 0
  %9063 = vperm.xlu0 %9062, %v8602
  %v9064 = vpop.permute.xlu0 %9063
  %9065 = vset.pattern.permute.xlu0 0
  %9066 = vperm.xlu0 %9065, %v8651
  %v9067 = vpop.permute.xlu0 %9066
  %9068 = vset.pattern.permute.xlu0 0
  %9069 = vperm.xlu0 %9068, %v8700
  %v9070 = vpop.permute.xlu0 %9069
  %9071 = vset.pattern.permute.xlu0 0
  %9072 = vperm.xlu0 %9071, %v8749
  %v9073 = vpop.permute.xlu0 %9072
  %9074 = vset.pattern.permute.xlu0 0
  %9075 = vperm.xlu0 %9074, %v8798
  %v9076 = vpop.permute.xlu0 %9075
  %9077 = vset.pattern.permute.xlu0 0
  %9078 = vperm.xlu0 %9077, %v8847
  %v9079 = vpop.permute.xlu0 %9078
  %9080 = vset.pattern.permute.xlu0 0
  %9081 = vperm.xlu0 %9080, %v8896
  %v9082 = vpop.permute.xlu0 %9081
  %9083 = vset.pattern.permute.xlu0 0
  %9084 = vperm.xlu0 %9083, %v8945
  %v9085 = vpop.permute.xlu0 %9084
  %9086 = vset.pattern.permute.xlu0 0
  %9087 = vperm.xlu0 %9086, %v8994
  %v9088 = vpop.permute.xlu0 %9087
  %9089 = vset.pattern.permute.xlu0 0
  %9090 = vperm.xlu0 %9089, %v9043
  %v9091 = vpop.permute.xlu0 %9090
  %v9092 = vlaneseq
  %v9093 = vshrl.u32 %v9092, 7
  %v9094 = vsub.s32 %v1617, %v9093
  %v9095 = vrot.slane %v9046, %v9094
  %v9096 = vlaneseq
  %v9097 = vshrl.u32 %v9096, 7
  %v9098 = vsub.s32 %v1622, %v9097
  %v9099 = vrot.slane %v9049, %v9098
  %v9100 = vsel %vm1627, %v9099, %v9095
  %v9101 = vlaneseq
  %v9102 = vshrl.u32 %v9101, 7
  %v9103 = vsub.s32 %v1629, %v9102
  %v9104 = vrot.slane %v9052, %v9103
  %v9105 = vsel %vm1634, %v9104, %v9100
  %v9106 = vlaneseq
  %v9107 = vshrl.u32 %v9106, 7
  %v9108 = vsub.s32 %v1636, %v9107
  %v9109 = vrot.slane %v9055, %v9108
  %v9110 = vsel %vm1641, %v9109, %v9105
  %v9111 = vlaneseq
  %v9112 = vshrl.u32 %v9111, 7
  %v9113 = vsub.s32 %v1643, %v9112
  %v9114 = vrot.slane %v9058, %v9113
  %v9115 = vsel %vm1648, %v9114, %v9110
  %v9116 = vlaneseq
  %v9117 = vshrl.u32 %v9116, 7
  %v9118 = vsub.s32 %v1650, %v9117
  %v9119 = vrot.slane %v9061, %v9118
  %v9120 = vsel %vm1655, %v9119, %v9115
  %v9121 = vlaneseq
  %v9122 = vshrl.u32 %v9121, 7
  %v9123 = vsub.s32 %v1657, %v9122
  %v9124 = vrot.slane %v9064, %v9123
  %v9125 = vsel %vm1662, %v9124, %v9120
  %v9126 = vlaneseq
  %v9127 = vshrl.u32 %v9126, 7
  %v9128 = vsub.s32 %v1664, %v9127
  %v9129 = vrot.slane %v9067, %v9128
  %v9130 = vsel %vm1669, %v9129, %v9125
  %v9131 = vlaneseq
  %v9132 = vshrl.u32 %v9131, 7
  %v9133 = vsub.s32 %v1671, %v9132
  %v9134 = vrot.slane %v9070, %v9133
  %v9135 = vsel %vm1676, %v9134, %v9130
  %v9136 = vlaneseq
  %v9137 = vshrl.u32 %v9136, 7
  %v9138 = vsub.s32 %v1678, %v9137
  %v9139 = vrot.slane %v9073, %v9138
  %v9140 = vsel %vm1683, %v9139, %v9135
  %v9141 = vlaneseq
  %v9142 = vshrl.u32 %v9141, 7
  %v9143 = vsub.s32 %v1685, %v9142
  %v9144 = vrot.slane %v9076, %v9143
  %v9145 = vsel %vm1690, %v9144, %v9140
  %v9146 = vlaneseq
  %v9147 = vshrl.u32 %v9146, 7
  %v9148 = vsub.s32 %v1692, %v9147
  %v9149 = vrot.slane %v9079, %v9148
  %v9150 = vsel %vm1697, %v9149, %v9145
  %v9151 = vlaneseq
  %v9152 = vshrl.u32 %v9151, 7
  %v9153 = vsub.s32 %v1699, %v9152
  %v9154 = vrot.slane %v9082, %v9153
  %v9155 = vsel %vm1704, %v9154, %v9150
  %v9156 = vlaneseq
  %v9157 = vshrl.u32 %v9156, 7
  %v9158 = vsub.s32 %v1706, %v9157
  %v9159 = vrot.slane %v9085, %v9158
  %v9160 = vsel %vm1711, %v9159, %v9155
  %v9161 = vlaneseq
  %v9162 = vshrl.u32 %v9161, 7
  %v9163 = vsub.s32 %v1713, %v9162
  %v9164 = vrot.slane %v9088, %v9163
  %v9165 = vsel %vm1718, %v9164, %v9160
  %v9166 = vlaneseq
  %v9167 = vshrl.u32 %v9166, 7
  %v9168 = vsub.s32 %v1720, %v9167
  %v9169 = vrot.slane %v9091, %v9168
  %v9170 = vsel %vm1725, %v9169, %v9165
  %v9172 = vunpack.c.l.s4 1966171168
  %v9173 = vunpack.c.0.s8 %v9172
  %v9174 = vlaneseq
  %v9175 = vshrl.u32 %v9174, 7
  %v9176 = vsub.s32 %v9173, %v9175
  %v9177 = vrot.slane %v9170, %v9176
  %v9179 = vunpack.c.l.s4 1966171168
  %v9180 = vunpack.c.0.s8 %v9179
  %v9181 = vlaneseq
  %v9182 = vshrl.u32 %v9181, 7
  %v9183 = vsub.s32 %v9180, %v9182
  %v9184 = vrot.slane %v9177, %v9183
  %v9186 = vmul.f32 %v7731, %v9184
  %v9187 = vld [vmem:[%s2 + $0x2] sm:$0x1]
  %v9189 = vlaneseq
  %v9190 = vshrl.u32 %v9189, 7
  %v9191 = vsub.s32 0, %v9190
  %v9192 = vrot.slane %v9186, %v9191
  %9194 = vbcast.lane.b32.xlu0 %v9192, 256
  %v9195 = vpop.permute.xlu0 %9194
  %s9197 = sor.u32 256, 8
  %9198 = vbcast.lane.b32.xlu0 %v9192, %s9197
  %v9199 = vpop.permute.xlu0 %9198
  %s9201 = sor.u32 256, 16
  %9202 = vbcast.lane.b32.xlu0 %v9192, %s9201
  %v9203 = vpop.permute.xlu0 %9202
  %s9205 = sor.u32 256, 24
  %9206 = vbcast.lane.b32.xlu0 %v9192, %s9205
  %v9207 = vpop.permute.xlu0 %9206
  %s9209 = sor.u32 256, 32
  %9210 = vbcast.lane.b32.xlu0 %v9192, %s9209
  %v9211 = vpop.permute.xlu0 %9210
  %s9213 = sor.u32 256, 40
  %9214 = vbcast.lane.b32.xlu0 %v9192, %s9213
  %v9215 = vpop.permute.xlu0 %9214
  %s9217 = sor.u32 256, 48
  %9218 = vbcast.lane.b32.xlu0 %v9192, %s9217
  %v9219 = vpop.permute.xlu0 %9218
  %s9221 = sor.u32 256, 56
  %9222 = vbcast.lane.b32.xlu0 %v9192, %s9221
  %v9223 = vpop.permute.xlu0 %9222
  %s9225 = sor.u32 256, 64
  %9226 = vbcast.lane.b32.xlu0 %v9192, %s9225
  %v9227 = vpop.permute.xlu0 %9226
  %s9229 = sor.u32 256, 72
  %9230 = vbcast.lane.b32.xlu0 %v9192, %s9229
  %v9231 = vpop.permute.xlu0 %9230
  %s9233 = sor.u32 256, 80
  %9234 = vbcast.lane.b32.xlu0 %v9192, %s9233
  %v9235 = vpop.permute.xlu0 %9234
  %s9237 = sor.u32 256, 88
  %9238 = vbcast.lane.b32.xlu0 %v9192, %s9237
  %v9239 = vpop.permute.xlu0 %9238
  %s9241 = sor.u32 256, 96
  %9242 = vbcast.lane.b32.xlu0 %v9192, %s9241
  %v9243 = vpop.permute.xlu0 %9242
  %s9245 = sor.u32 256, 104
  %9246 = vbcast.lane.b32.xlu0 %v9192, %s9245
  %v9247 = vpop.permute.xlu0 %9246
  %s9249 = sor.u32 256, 112
  %9250 = vbcast.lane.b32.xlu0 %v9192, %s9249
  %v9251 = vpop.permute.xlu0 %9250
  %s9253 = sor.u32 256, 120
  %9254 = vbcast.lane.b32.xlu0 %v9192, %s9253
  %v9255 = vpop.permute.xlu0 %9254
  %v9272 = vmul.f32 %v7571, %v9195
  %v9273 = vmul.f32 %v7572, %v9199
  %v9274 = vmul.f32 %v7573, %v9203
  %v9275 = vmul.f32 %v7574, %v9207
  %v9276 = vmul.f32 %v7575, %v9211
  %v9277 = vmul.f32 %v7576, %v9215
  %v9278 = vmul.f32 %v7577, %v9219
  %v9279 = vmul.f32 %v7578, %v9223
  %v9280 = vmul.f32 %v7579, %v9227
  %v9281 = vmul.f32 %v7580, %v9231
  %v9282 = vmul.f32 %v7581, %v9235
  %v9283 = vmul.f32 %v7582, %v9239
  %v9284 = vmul.f32 %v7583, %v9243
  %v9285 = vmul.f32 %v7584, %v9247
  %v9286 = vmul.f32 %v7585, %v9251
  %v9287 = vmul.f32 %v7586, %v9255
  %v9304 = vcombine.high %v9272, %v9272
  %v9306 = vunpack.c.l.s4 1966171168
  %v9307 = vunpack.c.0.s8 %v9306
  %v9308 = vlaneseq
  %v9309 = vshrl.u32 %v9308, 7
  %v9310 = vsub.s32 %v9307, %v9309
  %v9311 = vrot.slane %v9272, %v9310
  %v9313 = vunpack.c.l.s4 1966171168
  %v9314 = vunpack.c.0.s8 %v9313
  %v9315 = vlaneseq
  %v9316 = vshrl.u32 %v9315, 7
  %v9317 = vsub.s32 %v9314, %v9316
  %v9318 = vrot.slane %v9304, %v9317
  %v9319 = vcombine.high %v9311, %v9311
  %v9320 = vcombine.high %v9318, %v9318
  %v9322 = vunpack.c.l.s4 1966171168
  %v9323 = vunpack.c.0.s8 %v9322
  %v9324 = vlaneseq
  %v9325 = vshrl.u32 %v9324, 7
  %v9326 = vsub.s32 %v9323, %v9325
  %v9327 = vrot.slane %v9311, %v9326
  %v9329 = vunpack.c.l.s4 1966171168
  %v9330 = vunpack.c.0.s8 %v9329
  %v9331 = vlaneseq
  %v9332 = vshrl.u32 %v9331, 7
  %v9333 = vsub.s32 %v9330, %v9332
  %v9334 = vrot.slane %v9318, %v9333
  %v9336 = vunpack.c.l.s4 1966171168
  %v9337 = vunpack.c.0.s8 %v9336
  %v9338 = vlaneseq
  %v9339 = vshrl.u32 %v9338, 7
  %v9340 = vsub.s32 %v9337, %v9339
  %v9341 = vrot.slane %v9319, %v9340
  %v9343 = vunpack.c.l.s4 1966171168
  %v9344 = vunpack.c.0.s8 %v9343
  %v9345 = vlaneseq
  %v9346 = vshrl.u32 %v9345, 7
  %v9347 = vsub.s32 %v9344, %v9346
  %v9348 = vrot.slane %v9320, %v9347
  %v9349 = vcombine.high %v9327, %v9327
  %v9350 = vcombine.high %v9334, %v9334
  %v9351 = vcombine.high %v9341, %v9341
  %v9352 = vcombine.high %v9348, %v9348
  %v9353 = vcombine.high %v9273, %v9273
  %v9355 = vunpack.c.l.s4 1966171168
  %v9356 = vunpack.c.0.s8 %v9355
  %v9357 = vlaneseq
  %v9358 = vshrl.u32 %v9357, 7
  %v9359 = vsub.s32 %v9356, %v9358
  %v9360 = vrot.slane %v9273, %v9359
  %v9362 = vunpack.c.l.s4 1966171168
  %v9363 = vunpack.c.0.s8 %v9362
  %v9364 = vlaneseq
  %v9365 = vshrl.u32 %v9364, 7
  %v9366 = vsub.s32 %v9363, %v9365
  %v9367 = vrot.slane %v9353, %v9366
  %v9368 = vcombine.high %v9360, %v9360
  %v9369 = vcombine.high %v9367, %v9367
  %v9371 = vunpack.c.l.s4 1966171168
  %v9372 = vunpack.c.0.s8 %v9371
  %v9373 = vlaneseq
  %v9374 = vshrl.u32 %v9373, 7
  %v9375 = vsub.s32 %v9372, %v9374
  %v9376 = vrot.slane %v9360, %v9375
  %v9378 = vunpack.c.l.s4 1966171168
  %v9379 = vunpack.c.0.s8 %v9378
  %v9380 = vlaneseq
  %v9381 = vshrl.u32 %v9380, 7
  %v9382 = vsub.s32 %v9379, %v9381
  %v9383 = vrot.slane %v9367, %v9382
  %v9385 = vunpack.c.l.s4 1966171168
  %v9386 = vunpack.c.0.s8 %v9385
  %v9387 = vlaneseq
  %v9388 = vshrl.u32 %v9387, 7
  %v9389 = vsub.s32 %v9386, %v9388
  %v9390 = vrot.slane %v9368, %v9389
  %v9392 = vunpack.c.l.s4 1966171168
  %v9393 = vunpack.c.0.s8 %v9392
  %v9394 = vlaneseq
  %v9395 = vshrl.u32 %v9394, 7
  %v9396 = vsub.s32 %v9393, %v9395
  %v9397 = vrot.slane %v9369, %v9396
  %v9398 = vcombine.high %v9376, %v9376
  %v9399 = vcombine.high %v9383, %v9383
  %v9400 = vcombine.high %v9390, %v9390
  %v9401 = vcombine.high %v9397, %v9397
  %v9402 = vcombine.high %v9274, %v9274
  %v9404 = vunpack.c.l.s4 1966171168
  %v9405 = vunpack.c.0.s8 %v9404
  %v9406 = vlaneseq
  %v9407 = vshrl.u32 %v9406, 7
  %v9408 = vsub.s32 %v9405, %v9407
  %v9409 = vrot.slane %v9274, %v9408
  %v9411 = vunpack.c.l.s4 1966171168
  %v9412 = vunpack.c.0.s8 %v9411
  %v9413 = vlaneseq
  %v9414 = vshrl.u32 %v9413, 7
  %v9415 = vsub.s32 %v9412, %v9414
  %v9416 = vrot.slane %v9402, %v9415
  %v9417 = vcombine.high %v9409, %v9409
  %v9418 = vcombine.high %v9416, %v9416
  %v9420 = vunpack.c.l.s4 1966171168
  %v9421 = vunpack.c.0.s8 %v9420
  %v9422 = vlaneseq
  %v9423 = vshrl.u32 %v9422, 7
  %v9424 = vsub.s32 %v9421, %v9423
  %v9425 = vrot.slane %v9409, %v9424
  %v9427 = vunpack.c.l.s4 1966171168
  %v9428 = vunpack.c.0.s8 %v9427
  %v9429 = vlaneseq
  %v9430 = vshrl.u32 %v9429, 7
  %v9431 = vsub.s32 %v9428, %v9430
  %v9432 = vrot.slane %v9416, %v9431
  %v9434 = vunpack.c.l.s4 1966171168
  %v9435 = vunpack.c.0.s8 %v9434
  %v9436 = vlaneseq
  %v9437 = vshrl.u32 %v9436, 7
  %v9438 = vsub.s32 %v9435, %v9437
  %v9439 = vrot.slane %v9417, %v9438
  %v9441 = vunpack.c.l.s4 1966171168
  %v9442 = vunpack.c.0.s8 %v9441
  %v9443 = vlaneseq
  %v9444 = vshrl.u32 %v9443, 7
  %v9445 = vsub.s32 %v9442, %v9444
  %v9446 = vrot.slane %v9418, %v9445
  %v9447 = vcombine.high %v9425, %v9425
  %v9448 = vcombine.high %v9432, %v9432
  %v9449 = vcombine.high %v9439, %v9439
  %v9450 = vcombine.high %v9446, %v9446
  %v9451 = vcombine.high %v9275, %v9275
  %v9453 = vunpack.c.l.s4 1966171168
  %v9454 = vunpack.c.0.s8 %v9453
  %v9455 = vlaneseq
  %v9456 = vshrl.u32 %v9455, 7
  %v9457 = vsub.s32 %v9454, %v9456
  %v9458 = vrot.slane %v9275, %v9457
  %v9460 = vunpack.c.l.s4 1966171168
  %v9461 = vunpack.c.0.s8 %v9460
  %v9462 = vlaneseq
  %v9463 = vshrl.u32 %v9462, 7
  %v9464 = vsub.s32 %v9461, %v9463
  %v9465 = vrot.slane %v9451, %v9464
  %v9466 = vcombine.high %v9458, %v9458
  %v9467 = vcombine.high %v9465, %v9465
  %v9469 = vunpack.c.l.s4 1966171168
  %v9470 = vunpack.c.0.s8 %v9469
  %v9471 = vlaneseq
  %v9472 = vshrl.u32 %v9471, 7
  %v9473 = vsub.s32 %v9470, %v9472
  %v9474 = vrot.slane %v9458, %v9473
  %v9476 = vunpack.c.l.s4 1966171168
  %v9477 = vunpack.c.0.s8 %v9476
  %v9478 = vlaneseq
  %v9479 = vshrl.u32 %v9478, 7
  %v9480 = vsub.s32 %v9477, %v9479
  %v9481 = vrot.slane %v9465, %v9480
  %v9483 = vunpack.c.l.s4 1966171168
  %v9484 = vunpack.c.0.s8 %v9483
  %v9485 = vlaneseq
  %v9486 = vshrl.u32 %v9485, 7
  %v9487 = vsub.s32 %v9484, %v9486
  %v9488 = vrot.slane %v9466, %v9487
  %v9490 = vunpack.c.l.s4 1966171168
  %v9491 = vunpack.c.0.s8 %v9490
  %v9492 = vlaneseq
  %v9493 = vshrl.u32 %v9492, 7
  %v9494 = vsub.s32 %v9491, %v9493
  %v9495 = vrot.slane %v9467, %v9494
  %v9496 = vcombine.high %v9474, %v9474
  %v9497 = vcombine.high %v9481, %v9481
  %v9498 = vcombine.high %v9488, %v9488
  %v9499 = vcombine.high %v9495, %v9495
  %v9500 = vcombine.high %v9276, %v9276
  %v9502 = vunpack.c.l.s4 1966171168
  %v9503 = vunpack.c.0.s8 %v9502
  %v9504 = vlaneseq
  %v9505 = vshrl.u32 %v9504, 7
  %v9506 = vsub.s32 %v9503, %v9505
  %v9507 = vrot.slane %v9276, %v9506
  %v9509 = vunpack.c.l.s4 1966171168
  %v9510 = vunpack.c.0.s8 %v9509
  %v9511 = vlaneseq
  %v9512 = vshrl.u32 %v9511, 7
  %v9513 = vsub.s32 %v9510, %v9512
  %v9514 = vrot.slane %v9500, %v9513
  %v9515 = vcombine.high %v9507, %v9507
  %v9516 = vcombine.high %v9514, %v9514
  %v9518 = vunpack.c.l.s4 1966171168
  %v9519 = vunpack.c.0.s8 %v9518
  %v9520 = vlaneseq
  %v9521 = vshrl.u32 %v9520, 7
  %v9522 = vsub.s32 %v9519, %v9521
  %v9523 = vrot.slane %v9507, %v9522
  %v9525 = vunpack.c.l.s4 1966171168
  %v9526 = vunpack.c.0.s8 %v9525
  %v9527 = vlaneseq
  %v9528 = vshrl.u32 %v9527, 7
  %v9529 = vsub.s32 %v9526, %v9528
  %v9530 = vrot.slane %v9514, %v9529
  %v9532 = vunpack.c.l.s4 1966171168
  %v9533 = vunpack.c.0.s8 %v9532
  %v9534 = vlaneseq
  %v9535 = vshrl.u32 %v9534, 7
  %v9536 = vsub.s32 %v9533, %v9535
  %v9537 = vrot.slane %v9515, %v9536
  %v9539 = vunpack.c.l.s4 1966171168
  %v9540 = vunpack.c.0.s8 %v9539
  %v9541 = vlaneseq
  %v9542 = vshrl.u32 %v9541, 7
  %v9543 = vsub.s32 %v9540, %v9542
  %v9544 = vrot.slane %v9516, %v9543
  %v9545 = vcombine.high %v9523, %v9523
  %v9546 = vcombine.high %v9530, %v9530
  %v9547 = vcombine.high %v9537, %v9537
  %v9548 = vcombine.high %v9544, %v9544
  %v9549 = vcombine.high %v9277, %v9277
  %v9551 = vunpack.c.l.s4 1966171168
  %v9552 = vunpack.c.0.s8 %v9551
  %v9553 = vlaneseq
  %v9554 = vshrl.u32 %v9553, 7
  %v9555 = vsub.s32 %v9552, %v9554
  %v9556 = vrot.slane %v9277, %v9555
  %v9558 = vunpack.c.l.s4 1966171168
  %v9559 = vunpack.c.0.s8 %v9558
  %v9560 = vlaneseq
  %v9561 = vshrl.u32 %v9560, 7
  %v9562 = vsub.s32 %v9559, %v9561
  %v9563 = vrot.slane %v9549, %v9562
  %v9564 = vcombine.high %v9556, %v9556
  %v9565 = vcombine.high %v9563, %v9563
  %v9567 = vunpack.c.l.s4 1966171168
  %v9568 = vunpack.c.0.s8 %v9567
  %v9569 = vlaneseq
  %v9570 = vshrl.u32 %v9569, 7
  %v9571 = vsub.s32 %v9568, %v9570
  %v9572 = vrot.slane %v9556, %v9571
  %v9574 = vunpack.c.l.s4 1966171168
  %v9575 = vunpack.c.0.s8 %v9574
  %v9576 = vlaneseq
  %v9577 = vshrl.u32 %v9576, 7
  %v9578 = vsub.s32 %v9575, %v9577
  %v9579 = vrot.slane %v9563, %v9578
  %v9581 = vunpack.c.l.s4 1966171168
  %v9582 = vunpack.c.0.s8 %v9581
  %v9583 = vlaneseq
  %v9584 = vshrl.u32 %v9583, 7
  %v9585 = vsub.s32 %v9582, %v9584
  %v9586 = vrot.slane %v9564, %v9585
  %v9588 = vunpack.c.l.s4 1966171168
  %v9589 = vunpack.c.0.s8 %v9588
  %v9590 = vlaneseq
  %v9591 = vshrl.u32 %v9590, 7
  %v9592 = vsub.s32 %v9589, %v9591
  %v9593 = vrot.slane %v9565, %v9592
  %v9594 = vcombine.high %v9572, %v9572
  %v9595 = vcombine.high %v9579, %v9579
  %v9596 = vcombine.high %v9586, %v9586
  %v9597 = vcombine.high %v9593, %v9593
  %v9598 = vcombine.high %v9278, %v9278
  %v9600 = vunpack.c.l.s4 1966171168
  %v9601 = vunpack.c.0.s8 %v9600
  %v9602 = vlaneseq
  %v9603 = vshrl.u32 %v9602, 7
  %v9604 = vsub.s32 %v9601, %v9603
  %v9605 = vrot.slane %v9278, %v9604
  %v9607 = vunpack.c.l.s4 1966171168
  %v9608 = vunpack.c.0.s8 %v9607
  %v9609 = vlaneseq
  %v9610 = vshrl.u32 %v9609, 7
  %v9611 = vsub.s32 %v9608, %v9610
  %v9612 = vrot.slane %v9598, %v9611
  %v9613 = vcombine.high %v9605, %v9605
  %v9614 = vcombine.high %v9612, %v9612
  %v9616 = vunpack.c.l.s4 1966171168
  %v9617 = vunpack.c.0.s8 %v9616
  %v9618 = vlaneseq
  %v9619 = vshrl.u32 %v9618, 7
  %v9620 = vsub.s32 %v9617, %v9619
  %v9621 = vrot.slane %v9605, %v9620
  %v9623 = vunpack.c.l.s4 1966171168
  %v9624 = vunpack.c.0.s8 %v9623
  %v9625 = vlaneseq
  %v9626 = vshrl.u32 %v9625, 7
  %v9627 = vsub.s32 %v9624, %v9626
  %v9628 = vrot.slane %v9612, %v9627
  %v9630 = vunpack.c.l.s4 1966171168
  %v9631 = vunpack.c.0.s8 %v9630
  %v9632 = vlaneseq
  %v9633 = vshrl.u32 %v9632, 7
  %v9634 = vsub.s32 %v9631, %v9633
  %v9635 = vrot.slane %v9613, %v9634
  %v9637 = vunpack.c.l.s4 1966171168
  %v9638 = vunpack.c.0.s8 %v9637
  %v9639 = vlaneseq
  %v9640 = vshrl.u32 %v9639, 7
  %v9641 = vsub.s32 %v9638, %v9640
  %v9642 = vrot.slane %v9614, %v9641
  %v9643 = vcombine.high %v9621, %v9621
  %v9644 = vcombine.high %v9628, %v9628
  %v9645 = vcombine.high %v9635, %v9635
  %v9646 = vcombine.high %v9642, %v9642
  %v9647 = vcombine.high %v9279, %v9279
  %v9649 = vunpack.c.l.s4 1966171168
  %v9650 = vunpack.c.0.s8 %v9649
  %v9651 = vlaneseq
  %v9652 = vshrl.u32 %v9651, 7
  %v9653 = vsub.s32 %v9650, %v9652
  %v9654 = vrot.slane %v9279, %v9653
  %v9656 = vunpack.c.l.s4 1966171168
  %v9657 = vunpack.c.0.s8 %v9656
  %v9658 = vlaneseq
  %v9659 = vshrl.u32 %v9658, 7
  %v9660 = vsub.s32 %v9657, %v9659
  %v9661 = vrot.slane %v9647, %v9660
  %v9662 = vcombine.high %v9654, %v9654
  %v9663 = vcombine.high %v9661, %v9661
  %v9665 = vunpack.c.l.s4 1966171168
  %v9666 = vunpack.c.0.s8 %v9665
  %v9667 = vlaneseq
  %v9668 = vshrl.u32 %v9667, 7
  %v9669 = vsub.s32 %v9666, %v9668
  %v9670 = vrot.slane %v9654, %v9669
  %v9672 = vunpack.c.l.s4 1966171168
  %v9673 = vunpack.c.0.s8 %v9672
  %v9674 = vlaneseq
  %v9675 = vshrl.u32 %v9674, 7
  %v9676 = vsub.s32 %v9673, %v9675
  %v9677 = vrot.slane %v9661, %v9676
  %v9679 = vunpack.c.l.s4 1966171168
  %v9680 = vunpack.c.0.s8 %v9679
  %v9681 = vlaneseq
  %v9682 = vshrl.u32 %v9681, 7
  %v9683 = vsub.s32 %v9680, %v9682
  %v9684 = vrot.slane %v9662, %v9683
  %v9686 = vunpack.c.l.s4 1966171168
  %v9687 = vunpack.c.0.s8 %v9686
  %v9688 = vlaneseq
  %v9689 = vshrl.u32 %v9688, 7
  %v9690 = vsub.s32 %v9687, %v9689
  %v9691 = vrot.slane %v9663, %v9690
  %v9692 = vcombine.high %v9670, %v9670
  %v9693 = vcombine.high %v9677, %v9677
  %v9694 = vcombine.high %v9684, %v9684
  %v9695 = vcombine.high %v9691, %v9691
  %v9696 = vcombine.high %v9280, %v9280
  %v9698 = vunpack.c.l.s4 1966171168
  %v9699 = vunpack.c.0.s8 %v9698
  %v9700 = vlaneseq
  %v9701 = vshrl.u32 %v9700, 7
  %v9702 = vsub.s32 %v9699, %v9701
  %v9703 = vrot.slane %v9280, %v9702
  %v9705 = vunpack.c.l.s4 1966171168
  %v9706 = vunpack.c.0.s8 %v9705
  %v9707 = vlaneseq
  %v9708 = vshrl.u32 %v9707, 7
  %v9709 = vsub.s32 %v9706, %v9708
  %v9710 = vrot.slane %v9696, %v9709
  %v9711 = vcombine.high %v9703, %v9703
  %v9712 = vcombine.high %v9710, %v9710
  %v9714 = vunpack.c.l.s4 1966171168
  %v9715 = vunpack.c.0.s8 %v9714
  %v9716 = vlaneseq
  %v9717 = vshrl.u32 %v9716, 7
  %v9718 = vsub.s32 %v9715, %v9717
  %v9719 = vrot.slane %v9703, %v9718
  %v9721 = vunpack.c.l.s4 1966171168
  %v9722 = vunpack.c.0.s8 %v9721
  %v9723 = vlaneseq
  %v9724 = vshrl.u32 %v9723, 7
  %v9725 = vsub.s32 %v9722, %v9724
  %v9726 = vrot.slane %v9710, %v9725
  %v9728 = vunpack.c.l.s4 1966171168
  %v9729 = vunpack.c.0.s8 %v9728
  %v9730 = vlaneseq
  %v9731 = vshrl.u32 %v9730, 7
  %v9732 = vsub.s32 %v9729, %v9731
  %v9733 = vrot.slane %v9711, %v9732
  %v9735 = vunpack.c.l.s4 1966171168
  %v9736 = vunpack.c.0.s8 %v9735
  %v9737 = vlaneseq
  %v9738 = vshrl.u32 %v9737, 7
  %v9739 = vsub.s32 %v9736, %v9738
  %v9740 = vrot.slane %v9712, %v9739
  %v9741 = vcombine.high %v9719, %v9719
  %v9742 = vcombine.high %v9726, %v9726
  %v9743 = vcombine.high %v9733, %v9733
  %v9744 = vcombine.high %v9740, %v9740
  %v9745 = vcombine.high %v9281, %v9281
  %v9747 = vunpack.c.l.s4 1966171168
  %v9748 = vunpack.c.0.s8 %v9747
  %v9749 = vlaneseq
  %v9750 = vshrl.u32 %v9749, 7
  %v9751 = vsub.s32 %v9748, %v9750
  %v9752 = vrot.slane %v9281, %v9751
  %v9754 = vunpack.c.l.s4 1966171168
  %v9755 = vunpack.c.0.s8 %v9754
  %v9756 = vlaneseq
  %v9757 = vshrl.u32 %v9756, 7
  %v9758 = vsub.s32 %v9755, %v9757
  %v9759 = vrot.slane %v9745, %v9758
  %v9760 = vcombine.high %v9752, %v9752
  %v9761 = vcombine.high %v9759, %v9759
  %v9763 = vunpack.c.l.s4 1966171168
  %v9764 = vunpack.c.0.s8 %v9763
  %v9765 = vlaneseq
  %v9766 = vshrl.u32 %v9765, 7
  %v9767 = vsub.s32 %v9764, %v9766
  %v9768 = vrot.slane %v9752, %v9767
  %v9770 = vunpack.c.l.s4 1966171168
  %v9771 = vunpack.c.0.s8 %v9770
  %v9772 = vlaneseq
  %v9773 = vshrl.u32 %v9772, 7
  %v9774 = vsub.s32 %v9771, %v9773
  %v9775 = vrot.slane %v9759, %v9774
  %v9777 = vunpack.c.l.s4 1966171168
  %v9778 = vunpack.c.0.s8 %v9777
  %v9779 = vlaneseq
  %v9780 = vshrl.u32 %v9779, 7
  %v9781 = vsub.s32 %v9778, %v9780
  %v9782 = vrot.slane %v9760, %v9781
  %v9784 = vunpack.c.l.s4 1966171168
  %v9785 = vunpack.c.0.s8 %v9784
  %v9786 = vlaneseq
  %v9787 = vshrl.u32 %v9786, 7
  %v9788 = vsub.s32 %v9785, %v9787
  %v9789 = vrot.slane %v9761, %v9788
  %v9790 = vcombine.high %v9768, %v9768
  %v9791 = vcombine.high %v9775, %v9775
  %v9792 = vcombine.high %v9782, %v9782
  %v9793 = vcombine.high %v9789, %v9789
  %v9794 = vcombine.high %v9282, %v9282
  %v9796 = vunpack.c.l.s4 1966171168
  %v9797 = vunpack.c.0.s8 %v9796
  %v9798 = vlaneseq
  %v9799 = vshrl.u32 %v9798, 7
  %v9800 = vsub.s32 %v9797, %v9799
  %v9801 = vrot.slane %v9282, %v9800
  %v9803 = vunpack.c.l.s4 1966171168
  %v9804 = vunpack.c.0.s8 %v9803
  %v9805 = vlaneseq
  %v9806 = vshrl.u32 %v9805, 7
  %v9807 = vsub.s32 %v9804, %v9806
  %v9808 = vrot.slane %v9794, %v9807
  %v9809 = vcombine.high %v9801, %v9801
  %v9810 = vcombine.high %v9808, %v9808
  %v9812 = vunpack.c.l.s4 1966171168
  %v9813 = vunpack.c.0.s8 %v9812
  %v9814 = vlaneseq
  %v9815 = vshrl.u32 %v9814, 7
  %v9816 = vsub.s32 %v9813, %v9815
  %v9817 = vrot.slane %v9801, %v9816
  %v9819 = vunpack.c.l.s4 1966171168
  %v9820 = vunpack.c.0.s8 %v9819
  %v9821 = vlaneseq
  %v9822 = vshrl.u32 %v9821, 7
  %v9823 = vsub.s32 %v9820, %v9822
  %v9824 = vrot.slane %v9808, %v9823
  %v9826 = vunpack.c.l.s4 1966171168
  %v9827 = vunpack.c.0.s8 %v9826
  %v9828 = vlaneseq
  %v9829 = vshrl.u32 %v9828, 7
  %v9830 = vsub.s32 %v9827, %v9829
  %v9831 = vrot.slane %v9809, %v9830
  %v9833 = vunpack.c.l.s4 1966171168
  %v9834 = vunpack.c.0.s8 %v9833
  %v9835 = vlaneseq
  %v9836 = vshrl.u32 %v9835, 7
  %v9837 = vsub.s32 %v9834, %v9836
  %v9838 = vrot.slane %v9810, %v9837
  %v9839 = vcombine.high %v9817, %v9817
  %v9840 = vcombine.high %v9824, %v9824
  %v9841 = vcombine.high %v9831, %v9831
  %v9842 = vcombine.high %v9838, %v9838
  %v9843 = vcombine.high %v9283, %v9283
  %v9845 = vunpack.c.l.s4 1966171168
  %v9846 = vunpack.c.0.s8 %v9845
  %v9847 = vlaneseq
  %v9848 = vshrl.u32 %v9847, 7
  %v9849 = vsub.s32 %v9846, %v9848
  %v9850 = vrot.slane %v9283, %v9849
  %v9852 = vunpack.c.l.s4 1966171168
  %v9853 = vunpack.c.0.s8 %v9852
  %v9854 = vlaneseq
  %v9855 = vshrl.u32 %v9854, 7
  %v9856 = vsub.s32 %v9853, %v9855
  %v9857 = vrot.slane %v9843, %v9856
  %v9858 = vcombine.high %v9850, %v9850
  %v9859 = vcombine.high %v9857, %v9857
  %v9861 = vunpack.c.l.s4 1966171168
  %v9862 = vunpack.c.0.s8 %v9861
  %v9863 = vlaneseq
  %v9864 = vshrl.u32 %v9863, 7
  %v9865 = vsub.s32 %v9862, %v9864
  %v9866 = vrot.slane %v9850, %v9865
  %v9868 = vunpack.c.l.s4 1966171168
  %v9869 = vunpack.c.0.s8 %v9868
  %v9870 = vlaneseq
  %v9871 = vshrl.u32 %v9870, 7
  %v9872 = vsub.s32 %v9869, %v9871
  %v9873 = vrot.slane %v9857, %v9872
  %v9875 = vunpack.c.l.s4 1966171168
  %v9876 = vunpack.c.0.s8 %v9875
  %v9877 = vlaneseq
  %v9878 = vshrl.u32 %v9877, 7
  %v9879 = vsub.s32 %v9876, %v9878
  %v9880 = vrot.slane %v9858, %v9879
  %v9882 = vunpack.c.l.s4 1966171168
  %v9883 = vunpack.c.0.s8 %v9882
  %v9884 = vlaneseq
  %v9885 = vshrl.u32 %v9884, 7
  %v9886 = vsub.s32 %v9883, %v9885
  %v9887 = vrot.slane %v9859, %v9886
  %v9888 = vcombine.high %v9866, %v9866
  %v9889 = vcombine.high %v9873, %v9873
  %v9890 = vcombine.high %v9880, %v9880
  %v9891 = vcombine.high %v9887, %v9887
  %v9892 = vcombine.high %v9284, %v9284
  %v9894 = vunpack.c.l.s4 1966171168
  %v9895 = vunpack.c.0.s8 %v9894
  %v9896 = vlaneseq
  %v9897 = vshrl.u32 %v9896, 7
  %v9898 = vsub.s32 %v9895, %v9897
  %v9899 = vrot.slane %v9284, %v9898
  %v9901 = vunpack.c.l.s4 1966171168
  %v9902 = vunpack.c.0.s8 %v9901
  %v9903 = vlaneseq
  %v9904 = vshrl.u32 %v9903, 7
  %v9905 = vsub.s32 %v9902, %v9904
  %v9906 = vrot.slane %v9892, %v9905
  %v9907 = vcombine.high %v9899, %v9899
  %v9908 = vcombine.high %v9906, %v9906
  %v9910 = vunpack.c.l.s4 1966171168
  %v9911 = vunpack.c.0.s8 %v9910
  %v9912 = vlaneseq
  %v9913 = vshrl.u32 %v9912, 7
  %v9914 = vsub.s32 %v9911, %v9913
  %v9915 = vrot.slane %v9899, %v9914
  %v9917 = vunpack.c.l.s4 1966171168
  %v9918 = vunpack.c.0.s8 %v9917
  %v9919 = vlaneseq
  %v9920 = vshrl.u32 %v9919, 7
  %v9921 = vsub.s32 %v9918, %v9920
  %v9922 = vrot.slane %v9906, %v9921
  %v9924 = vunpack.c.l.s4 1966171168
  %v9925 = vunpack.c.0.s8 %v9924
  %v9926 = vlaneseq
  %v9927 = vshrl.u32 %v9926, 7
  %v9928 = vsub.s32 %v9925, %v9927
  %v9929 = vrot.slane %v9907, %v9928
  %v9931 = vunpack.c.l.s4 1966171168
  %v9932 = vunpack.c.0.s8 %v9931
  %v9933 = vlaneseq
  %v9934 = vshrl.u32 %v9933, 7
  %v9935 = vsub.s32 %v9932, %v9934
  %v9936 = vrot.slane %v9908, %v9935
  %v9937 = vcombine.high %v9915, %v9915
  %v9938 = vcombine.high %v9922, %v9922
  %v9939 = vcombine.high %v9929, %v9929
  %v9940 = vcombine.high %v9936, %v9936
  %v9941 = vcombine.high %v9285, %v9285
  %v9943 = vunpack.c.l.s4 1966171168
  %v9944 = vunpack.c.0.s8 %v9943
  %v9945 = vlaneseq
  %v9946 = vshrl.u32 %v9945, 7
  %v9947 = vsub.s32 %v9944, %v9946
  %v9948 = vrot.slane %v9285, %v9947
  %v9950 = vunpack.c.l.s4 1966171168
  %v9951 = vunpack.c.0.s8 %v9950
  %v9952 = vlaneseq
  %v9953 = vshrl.u32 %v9952, 7
  %v9954 = vsub.s32 %v9951, %v9953
  %v9955 = vrot.slane %v9941, %v9954
  %v9956 = vcombine.high %v9948, %v9948
  %v9957 = vcombine.high %v9955, %v9955
  %v9959 = vunpack.c.l.s4 1966171168
  %v9960 = vunpack.c.0.s8 %v9959
  %v9961 = vlaneseq
  %v9962 = vshrl.u32 %v9961, 7
  %v9963 = vsub.s32 %v9960, %v9962
  %v9964 = vrot.slane %v9948, %v9963
  %v9966 = vunpack.c.l.s4 1966171168
  %v9967 = vunpack.c.0.s8 %v9966
  %v9968 = vlaneseq
  %v9969 = vshrl.u32 %v9968, 7
  %v9970 = vsub.s32 %v9967, %v9969
  %v9971 = vrot.slane %v9955, %v9970
  %v9973 = vunpack.c.l.s4 1966171168
  %v9974 = vunpack.c.0.s8 %v9973
  %v9975 = vlaneseq
  %v9976 = vshrl.u32 %v9975, 7
  %v9977 = vsub.s32 %v9974, %v9976
  %v9978 = vrot.slane %v9956, %v9977
  %v9980 = vunpack.c.l.s4 1966171168
  %v9981 = vunpack.c.0.s8 %v9980
  %v9982 = vlaneseq
  %v9983 = vshrl.u32 %v9982, 7
  %v9984 = vsub.s32 %v9981, %v9983
  %v9985 = vrot.slane %v9957, %v9984
  %v9986 = vcombine.high %v9964, %v9964
  %v9987 = vcombine.high %v9971, %v9971
  %v9988 = vcombine.high %v9978, %v9978
  %v9989 = vcombine.high %v9985, %v9985
  %v9990 = vcombine.high %v9286, %v9286
  %v9992 = vunpack.c.l.s4 1966171168
  %v9993 = vunpack.c.0.s8 %v9992
  %v9994 = vlaneseq
  %v9995 = vshrl.u32 %v9994, 7
  %v9996 = vsub.s32 %v9993, %v9995
  %v9997 = vrot.slane %v9286, %v9996
  %v9999 = vunpack.c.l.s4 1966171168
  %v10000 = vunpack.c.0.s8 %v9999
  %v10001 = vlaneseq
  %v10002 = vshrl.u32 %v10001, 7
  %v10003 = vsub.s32 %v10000, %v10002
  %v10004 = vrot.slane %v9990, %v10003
  %v10005 = vcombine.high %v9997, %v9997
  %v10006 = vcombine.high %v10004, %v10004
  %v10008 = vunpack.c.l.s4 1966171168
  %v10009 = vunpack.c.0.s8 %v10008
  %v10010 = vlaneseq
  %v10011 = vshrl.u32 %v10010, 7
  %v10012 = vsub.s32 %v10009, %v10011
  %v10013 = vrot.slane %v9997, %v10012
  %v10015 = vunpack.c.l.s4 1966171168
  %v10016 = vunpack.c.0.s8 %v10015
  %v10017 = vlaneseq
  %v10018 = vshrl.u32 %v10017, 7
  %v10019 = vsub.s32 %v10016, %v10018
  %v10020 = vrot.slane %v10004, %v10019
  %v10022 = vunpack.c.l.s4 1966171168
  %v10023 = vunpack.c.0.s8 %v10022
  %v10024 = vlaneseq
  %v10025 = vshrl.u32 %v10024, 7
  %v10026 = vsub.s32 %v10023, %v10025
  %v10027 = vrot.slane %v10005, %v10026
  %v10029 = vunpack.c.l.s4 1966171168
  %v10030 = vunpack.c.0.s8 %v10029
  %v10031 = vlaneseq
  %v10032 = vshrl.u32 %v10031, 7
  %v10033 = vsub.s32 %v10030, %v10032
  %v10034 = vrot.slane %v10006, %v10033
  %v10035 = vcombine.high %v10013, %v10013
  %v10036 = vcombine.high %v10020, %v10020
  %v10037 = vcombine.high %v10027, %v10027
  %v10038 = vcombine.high %v10034, %v10034
  %v10039 = vcombine.high %v9287, %v9287
  %v10041 = vunpack.c.l.s4 1966171168
  %v10042 = vunpack.c.0.s8 %v10041
  %v10043 = vlaneseq
  %v10044 = vshrl.u32 %v10043, 7
  %v10045 = vsub.s32 %v10042, %v10044
  %v10046 = vrot.slane %v9287, %v10045
  %v10048 = vunpack.c.l.s4 1966171168
  %v10049 = vunpack.c.0.s8 %v10048
  %v10050 = vlaneseq
  %v10051 = vshrl.u32 %v10050, 7
  %v10052 = vsub.s32 %v10049, %v10051
  %v10053 = vrot.slane %v10039, %v10052
  %v10054 = vcombine.high %v10046, %v10046
  %v10055 = vcombine.high %v10053, %v10053
  %v10057 = vunpack.c.l.s4 1966171168
  %v10058 = vunpack.c.0.s8 %v10057
  %v10059 = vlaneseq
  %v10060 = vshrl.u32 %v10059, 7
  %v10061 = vsub.s32 %v10058, %v10060
  %v10062 = vrot.slane %v10046, %v10061
  %v10064 = vunpack.c.l.s4 1966171168
  %v10065 = vunpack.c.0.s8 %v10064
  %v10066 = vlaneseq
  %v10067 = vshrl.u32 %v10066, 7
  %v10068 = vsub.s32 %v10065, %v10067
  %v10069 = vrot.slane %v10053, %v10068
  %v10071 = vunpack.c.l.s4 1966171168
  %v10072 = vunpack.c.0.s8 %v10071
  %v10073 = vlaneseq
  %v10074 = vshrl.u32 %v10073, 7
  %v10075 = vsub.s32 %v10072, %v10074
  %v10076 = vrot.slane %v10054, %v10075
  %v10078 = vunpack.c.l.s4 1966171168
  %v10079 = vunpack.c.0.s8 %v10078
  %v10080 = vlaneseq
  %v10081 = vshrl.u32 %v10080, 7
  %v10082 = vsub.s32 %v10079, %v10081
  %v10083 = vrot.slane %v10055, %v10082
  %v10084 = vcombine.high %v10062, %v10062
  %v10085 = vcombine.high %v10069, %v10069
  %v10086 = vcombine.high %v10076, %v10076
  %v10087 = vcombine.high %v10083, %v10083
  %v10088 = vcombine.low %v9327, %v9341
  %v10089 = vcombine.low %v9349, %v9351
  %v10090 = vcombine.low %v9334, %v9348
  %v10091 = vcombine.low %v9350, %v9352
  %v10093 = vunpack.c.l.s4 1966171168
  %v10094 = vunpack.c.0.s8 %v10093
  %v10095 = vlaneseq
  %v10096 = vshrl.u32 %v10095, 7
  %v10097 = vsub.s32 %v10094, %v10096
  %v10098 = vrot.slane %v10088, %v10097
  %v10100 = vunpack.c.l.s4 1966171168
  %v10101 = vunpack.c.0.s8 %v10100
  %v10102 = vlaneseq
  %v10103 = vshrl.u32 %v10102, 7
  %v10104 = vsub.s32 %v10101, %v10103
  %v10105 = vrot.slane %v10089, %v10104
  %v10107 = vunpack.c.l.s4 1966171168
  %v10108 = vunpack.c.0.s8 %v10107
  %v10109 = vlaneseq
  %v10110 = vshrl.u32 %v10109, 7
  %v10111 = vsub.s32 %v10108, %v10110
  %v10112 = vrot.slane %v10090, %v10111
  %v10114 = vunpack.c.l.s4 1966171168
  %v10115 = vunpack.c.0.s8 %v10114
  %v10116 = vlaneseq
  %v10117 = vshrl.u32 %v10116, 7
  %v10118 = vsub.s32 %v10115, %v10117
  %v10119 = vrot.slane %v10091, %v10118
  %v10120 = vcombine.low %v10098, %v10105
  %v10121 = vcombine.low %v10112, %v10119
  %v10123 = vunpack.c.l.s4 1966171168
  %v10124 = vunpack.c.0.s8 %v10123
  %v10125 = vlaneseq
  %v10126 = vshrl.u32 %v10125, 7
  %v10127 = vsub.s32 %v10124, %v10126
  %v10128 = vrot.slane %v10120, %v10127
  %v10130 = vunpack.c.l.s4 1966171168
  %v10131 = vunpack.c.0.s8 %v10130
  %v10132 = vlaneseq
  %v10133 = vshrl.u32 %v10132, 7
  %v10134 = vsub.s32 %v10131, %v10133
  %v10135 = vrot.slane %v10121, %v10134
  %v10136 = vcombine.low %v10128, %v10135
  %v10137 = vcombine.low %v9376, %v9390
  %v10138 = vcombine.low %v9398, %v9400
  %v10139 = vcombine.low %v9383, %v9397
  %v10140 = vcombine.low %v9399, %v9401
  %v10142 = vunpack.c.l.s4 1966171168
  %v10143 = vunpack.c.0.s8 %v10142
  %v10144 = vlaneseq
  %v10145 = vshrl.u32 %v10144, 7
  %v10146 = vsub.s32 %v10143, %v10145
  %v10147 = vrot.slane %v10137, %v10146
  %v10149 = vunpack.c.l.s4 1966171168
  %v10150 = vunpack.c.0.s8 %v10149
  %v10151 = vlaneseq
  %v10152 = vshrl.u32 %v10151, 7
  %v10153 = vsub.s32 %v10150, %v10152
  %v10154 = vrot.slane %v10138, %v10153
  %v10156 = vunpack.c.l.s4 1966171168
  %v10157 = vunpack.c.0.s8 %v10156
  %v10158 = vlaneseq
  %v10159 = vshrl.u32 %v10158, 7
  %v10160 = vsub.s32 %v10157, %v10159
  %v10161 = vrot.slane %v10139, %v10160
  %v10163 = vunpack.c.l.s4 1966171168
  %v10164 = vunpack.c.0.s8 %v10163
  %v10165 = vlaneseq
  %v10166 = vshrl.u32 %v10165, 7
  %v10167 = vsub.s32 %v10164, %v10166
  %v10168 = vrot.slane %v10140, %v10167
  %v10169 = vcombine.low %v10147, %v10154
  %v10170 = vcombine.low %v10161, %v10168
  %v10172 = vunpack.c.l.s4 1966171168
  %v10173 = vunpack.c.0.s8 %v10172
  %v10174 = vlaneseq
  %v10175 = vshrl.u32 %v10174, 7
  %v10176 = vsub.s32 %v10173, %v10175
  %v10177 = vrot.slane %v10169, %v10176
  %v10179 = vunpack.c.l.s4 1966171168
  %v10180 = vunpack.c.0.s8 %v10179
  %v10181 = vlaneseq
  %v10182 = vshrl.u32 %v10181, 7
  %v10183 = vsub.s32 %v10180, %v10182
  %v10184 = vrot.slane %v10170, %v10183
  %v10185 = vcombine.low %v10177, %v10184
  %v10186 = vcombine.low %v9425, %v9439
  %v10187 = vcombine.low %v9447, %v9449
  %v10188 = vcombine.low %v9432, %v9446
  %v10189 = vcombine.low %v9448, %v9450
  %v10191 = vunpack.c.l.s4 1966171168
  %v10192 = vunpack.c.0.s8 %v10191
  %v10193 = vlaneseq
  %v10194 = vshrl.u32 %v10193, 7
  %v10195 = vsub.s32 %v10192, %v10194
  %v10196 = vrot.slane %v10186, %v10195
  %v10198 = vunpack.c.l.s4 1966171168
  %v10199 = vunpack.c.0.s8 %v10198
  %v10200 = vlaneseq
  %v10201 = vshrl.u32 %v10200, 7
  %v10202 = vsub.s32 %v10199, %v10201
  %v10203 = vrot.slane %v10187, %v10202
  %v10205 = vunpack.c.l.s4 1966171168
  %v10206 = vunpack.c.0.s8 %v10205
  %v10207 = vlaneseq
  %v10208 = vshrl.u32 %v10207, 7
  %v10209 = vsub.s32 %v10206, %v10208
  %v10210 = vrot.slane %v10188, %v10209
  %v10212 = vunpack.c.l.s4 1966171168
  %v10213 = vunpack.c.0.s8 %v10212
  %v10214 = vlaneseq
  %v10215 = vshrl.u32 %v10214, 7
  %v10216 = vsub.s32 %v10213, %v10215
  %v10217 = vrot.slane %v10189, %v10216
  %v10218 = vcombine.low %v10196, %v10203
  %v10219 = vcombine.low %v10210, %v10217
  %v10221 = vunpack.c.l.s4 1966171168
  %v10222 = vunpack.c.0.s8 %v10221
  %v10223 = vlaneseq
  %v10224 = vshrl.u32 %v10223, 7
  %v10225 = vsub.s32 %v10222, %v10224
  %v10226 = vrot.slane %v10218, %v10225
  %v10228 = vunpack.c.l.s4 1966171168
  %v10229 = vunpack.c.0.s8 %v10228
  %v10230 = vlaneseq
  %v10231 = vshrl.u32 %v10230, 7
  %v10232 = vsub.s32 %v10229, %v10231
  %v10233 = vrot.slane %v10219, %v10232
  %v10234 = vcombine.low %v10226, %v10233
  %v10235 = vcombine.low %v9474, %v9488
  %v10236 = vcombine.low %v9496, %v9498
  %v10237 = vcombine.low %v9481, %v9495
  %v10238 = vcombine.low %v9497, %v9499
  %v10240 = vunpack.c.l.s4 1966171168
  %v10241 = vunpack.c.0.s8 %v10240
  %v10242 = vlaneseq
  %v10243 = vshrl.u32 %v10242, 7
  %v10244 = vsub.s32 %v10241, %v10243
  %v10245 = vrot.slane %v10235, %v10244
  %v10247 = vunpack.c.l.s4 1966171168
  %v10248 = vunpack.c.0.s8 %v10247
  %v10249 = vlaneseq
  %v10250 = vshrl.u32 %v10249, 7
  %v10251 = vsub.s32 %v10248, %v10250
  %v10252 = vrot.slane %v10236, %v10251
  %v10254 = vunpack.c.l.s4 1966171168
  %v10255 = vunpack.c.0.s8 %v10254
  %v10256 = vlaneseq
  %v10257 = vshrl.u32 %v10256, 7
  %v10258 = vsub.s32 %v10255, %v10257
  %v10259 = vrot.slane %v10237, %v10258
  %v10261 = vunpack.c.l.s4 1966171168
  %v10262 = vunpack.c.0.s8 %v10261
  %v10263 = vlaneseq
  %v10264 = vshrl.u32 %v10263, 7
  %v10265 = vsub.s32 %v10262, %v10264
  %v10266 = vrot.slane %v10238, %v10265
  %v10267 = vcombine.low %v10245, %v10252
  %v10268 = vcombine.low %v10259, %v10266
  %v10270 = vunpack.c.l.s4 1966171168
  %v10271 = vunpack.c.0.s8 %v10270
  %v10272 = vlaneseq
  %v10273 = vshrl.u32 %v10272, 7
  %v10274 = vsub.s32 %v10271, %v10273
  %v10275 = vrot.slane %v10267, %v10274
  %v10277 = vunpack.c.l.s4 1966171168
  %v10278 = vunpack.c.0.s8 %v10277
  %v10279 = vlaneseq
  %v10280 = vshrl.u32 %v10279, 7
  %v10281 = vsub.s32 %v10278, %v10280
  %v10282 = vrot.slane %v10268, %v10281
  %v10283 = vcombine.low %v10275, %v10282
  %v10284 = vcombine.low %v9523, %v9537
  %v10285 = vcombine.low %v9545, %v9547
  %v10286 = vcombine.low %v9530, %v9544
  %v10287 = vcombine.low %v9546, %v9548
  %v10289 = vunpack.c.l.s4 1966171168
  %v10290 = vunpack.c.0.s8 %v10289
  %v10291 = vlaneseq
  %v10292 = vshrl.u32 %v10291, 7
  %v10293 = vsub.s32 %v10290, %v10292
  %v10294 = vrot.slane %v10284, %v10293
  %v10296 = vunpack.c.l.s4 1966171168
  %v10297 = vunpack.c.0.s8 %v10296
  %v10298 = vlaneseq
  %v10299 = vshrl.u32 %v10298, 7
  %v10300 = vsub.s32 %v10297, %v10299
  %v10301 = vrot.slane %v10285, %v10300
  %v10303 = vunpack.c.l.s4 1966171168
  %v10304 = vunpack.c.0.s8 %v10303
  %v10305 = vlaneseq
  %v10306 = vshrl.u32 %v10305, 7
  %v10307 = vsub.s32 %v10304, %v10306
  %v10308 = vrot.slane %v10286, %v10307
  %v10310 = vunpack.c.l.s4 1966171168
  %v10311 = vunpack.c.0.s8 %v10310
  %v10312 = vlaneseq
  %v10313 = vshrl.u32 %v10312, 7
  %v10314 = vsub.s32 %v10311, %v10313
  %v10315 = vrot.slane %v10287, %v10314
  %v10316 = vcombine.low %v10294, %v10301
  %v10317 = vcombine.low %v10308, %v10315
  %v10319 = vunpack.c.l.s4 1966171168
  %v10320 = vunpack.c.0.s8 %v10319
  %v10321 = vlaneseq
  %v10322 = vshrl.u32 %v10321, 7
  %v10323 = vsub.s32 %v10320, %v10322
  %v10324 = vrot.slane %v10316, %v10323
  %v10326 = vunpack.c.l.s4 1966171168
  %v10327 = vunpack.c.0.s8 %v10326
  %v10328 = vlaneseq
  %v10329 = vshrl.u32 %v10328, 7
  %v10330 = vsub.s32 %v10327, %v10329
  %v10331 = vrot.slane %v10317, %v10330
  %v10332 = vcombine.low %v10324, %v10331
  %v10333 = vcombine.low %v9572, %v9586
  %v10334 = vcombine.low %v9594, %v9596
  %v10335 = vcombine.low %v9579, %v9593
  %v10336 = vcombine.low %v9595, %v9597
  %v10338 = vunpack.c.l.s4 1966171168
  %v10339 = vunpack.c.0.s8 %v10338
  %v10340 = vlaneseq
  %v10341 = vshrl.u32 %v10340, 7
  %v10342 = vsub.s32 %v10339, %v10341
  %v10343 = vrot.slane %v10333, %v10342
  %v10345 = vunpack.c.l.s4 1966171168
  %v10346 = vunpack.c.0.s8 %v10345
  %v10347 = vlaneseq
  %v10348 = vshrl.u32 %v10347, 7
  %v10349 = vsub.s32 %v10346, %v10348
  %v10350 = vrot.slane %v10334, %v10349
  %v10352 = vunpack.c.l.s4 1966171168
  %v10353 = vunpack.c.0.s8 %v10352
  %v10354 = vlaneseq
  %v10355 = vshrl.u32 %v10354, 7
  %v10356 = vsub.s32 %v10353, %v10355
  %v10357 = vrot.slane %v10335, %v10356
  %v10359 = vunpack.c.l.s4 1966171168
  %v10360 = vunpack.c.0.s8 %v10359
  %v10361 = vlaneseq
  %v10362 = vshrl.u32 %v10361, 7
  %v10363 = vsub.s32 %v10360, %v10362
  %v10364 = vrot.slane %v10336, %v10363
  %v10365 = vcombine.low %v10343, %v10350
  %v10366 = vcombine.low %v10357, %v10364
  %v10368 = vunpack.c.l.s4 1966171168
  %v10369 = vunpack.c.0.s8 %v10368
  %v10370 = vlaneseq
  %v10371 = vshrl.u32 %v10370, 7
  %v10372 = vsub.s32 %v10369, %v10371
  %v10373 = vrot.slane %v10365, %v10372
  %v10375 = vunpack.c.l.s4 1966171168
  %v10376 = vunpack.c.0.s8 %v10375
  %v10377 = vlaneseq
  %v10378 = vshrl.u32 %v10377, 7
  %v10379 = vsub.s32 %v10376, %v10378
  %v10380 = vrot.slane %v10366, %v10379
  %v10381 = vcombine.low %v10373, %v10380
  %v10382 = vcombine.low %v9621, %v9635
  %v10383 = vcombine.low %v9643, %v9645
  %v10384 = vcombine.low %v9628, %v9642
  %v10385 = vcombine.low %v9644, %v9646
  %v10387 = vunpack.c.l.s4 1966171168
  %v10388 = vunpack.c.0.s8 %v10387
  %v10389 = vlaneseq
  %v10390 = vshrl.u32 %v10389, 7
  %v10391 = vsub.s32 %v10388, %v10390
  %v10392 = vrot.slane %v10382, %v10391
  %v10394 = vunpack.c.l.s4 1966171168
  %v10395 = vunpack.c.0.s8 %v10394
  %v10396 = vlaneseq
  %v10397 = vshrl.u32 %v10396, 7
  %v10398 = vsub.s32 %v10395, %v10397
  %v10399 = vrot.slane %v10383, %v10398
  %v10401 = vunpack.c.l.s4 1966171168
  %v10402 = vunpack.c.0.s8 %v10401
  %v10403 = vlaneseq
  %v10404 = vshrl.u32 %v10403, 7
  %v10405 = vsub.s32 %v10402, %v10404
  %v10406 = vrot.slane %v10384, %v10405
  %v10408 = vunpack.c.l.s4 1966171168
  %v10409 = vunpack.c.0.s8 %v10408
  %v10410 = vlaneseq
  %v10411 = vshrl.u32 %v10410, 7
  %v10412 = vsub.s32 %v10409, %v10411
  %v10413 = vrot.slane %v10385, %v10412
  %v10414 = vcombine.low %v10392, %v10399
  %v10415 = vcombine.low %v10406, %v10413
  %v10417 = vunpack.c.l.s4 1966171168
  %v10418 = vunpack.c.0.s8 %v10417
  %v10419 = vlaneseq
  %v10420 = vshrl.u32 %v10419, 7
  %v10421 = vsub.s32 %v10418, %v10420
  %v10422 = vrot.slane %v10414, %v10421
  %v10424 = vunpack.c.l.s4 1966171168
  %v10425 = vunpack.c.0.s8 %v10424
  %v10426 = vlaneseq
  %v10427 = vshrl.u32 %v10426, 7
  %v10428 = vsub.s32 %v10425, %v10427
  %v10429 = vrot.slane %v10415, %v10428
  %v10430 = vcombine.low %v10422, %v10429
  %v10431 = vcombine.low %v9670, %v9684
  %v10432 = vcombine.low %v9692, %v9694
  %v10433 = vcombine.low %v9677, %v9691
  %v10434 = vcombine.low %v9693, %v9695
  %v10436 = vunpack.c.l.s4 1966171168
  %v10437 = vunpack.c.0.s8 %v10436
  %v10438 = vlaneseq
  %v10439 = vshrl.u32 %v10438, 7
  %v10440 = vsub.s32 %v10437, %v10439
  %v10441 = vrot.slane %v10431, %v10440
  %v10443 = vunpack.c.l.s4 1966171168
  %v10444 = vunpack.c.0.s8 %v10443
  %v10445 = vlaneseq
  %v10446 = vshrl.u32 %v10445, 7
  %v10447 = vsub.s32 %v10444, %v10446
  %v10448 = vrot.slane %v10432, %v10447
  %v10450 = vunpack.c.l.s4 1966171168
  %v10451 = vunpack.c.0.s8 %v10450
  %v10452 = vlaneseq
  %v10453 = vshrl.u32 %v10452, 7
  %v10454 = vsub.s32 %v10451, %v10453
  %v10455 = vrot.slane %v10433, %v10454
  %v10457 = vunpack.c.l.s4 1966171168
  %v10458 = vunpack.c.0.s8 %v10457
  %v10459 = vlaneseq
  %v10460 = vshrl.u32 %v10459, 7
  %v10461 = vsub.s32 %v10458, %v10460
  %v10462 = vrot.slane %v10434, %v10461
  %v10463 = vcombine.low %v10441, %v10448
  %v10464 = vcombine.low %v10455, %v10462
  %v10466 = vunpack.c.l.s4 1966171168
  %v10467 = vunpack.c.0.s8 %v10466
  %v10468 = vlaneseq
  %v10469 = vshrl.u32 %v10468, 7
  %v10470 = vsub.s32 %v10467, %v10469
  %v10471 = vrot.slane %v10463, %v10470
  %v10473 = vunpack.c.l.s4 1966171168
  %v10474 = vunpack.c.0.s8 %v10473
  %v10475 = vlaneseq
  %v10476 = vshrl.u32 %v10475, 7
  %v10477 = vsub.s32 %v10474, %v10476
  %v10478 = vrot.slane %v10464, %v10477
  %v10479 = vcombine.low %v10471, %v10478
  %v10480 = vcombine.low %v9719, %v9733
  %v10481 = vcombine.low %v9741, %v9743
  %v10482 = vcombine.low %v9726, %v9740
  %v10483 = vcombine.low %v9742, %v9744
  %v10485 = vunpack.c.l.s4 1966171168
  %v10486 = vunpack.c.0.s8 %v10485
  %v10487 = vlaneseq
  %v10488 = vshrl.u32 %v10487, 7
  %v10489 = vsub.s32 %v10486, %v10488
  %v10490 = vrot.slane %v10480, %v10489
  %v10492 = vunpack.c.l.s4 1966171168
  %v10493 = vunpack.c.0.s8 %v10492
  %v10494 = vlaneseq
  %v10495 = vshrl.u32 %v10494, 7
  %v10496 = vsub.s32 %v10493, %v10495
  %v10497 = vrot.slane %v10481, %v10496
  %v10499 = vunpack.c.l.s4 1966171168
  %v10500 = vunpack.c.0.s8 %v10499
  %v10501 = vlaneseq
  %v10502 = vshrl.u32 %v10501, 7
  %v10503 = vsub.s32 %v10500, %v10502
  %v10504 = vrot.slane %v10482, %v10503
  %v10506 = vunpack.c.l.s4 1966171168
  %v10507 = vunpack.c.0.s8 %v10506
  %v10508 = vlaneseq
  %v10509 = vshrl.u32 %v10508, 7
  %v10510 = vsub.s32 %v10507, %v10509
  %v10511 = vrot.slane %v10483, %v10510
  %v10512 = vcombine.low %v10490, %v10497
  %v10513 = vcombine.low %v10504, %v10511
  %v10515 = vunpack.c.l.s4 1966171168
  %v10516 = vunpack.c.0.s8 %v10515
  %v10517 = vlaneseq
  %v10518 = vshrl.u32 %v10517, 7
  %v10519 = vsub.s32 %v10516, %v10518
  %v10520 = vrot.slane %v10512, %v10519
  %v10522 = vunpack.c.l.s4 1966171168
  %v10523 = vunpack.c.0.s8 %v10522
  %v10524 = vlaneseq
  %v10525 = vshrl.u32 %v10524, 7
  %v10526 = vsub.s32 %v10523, %v10525
  %v10527 = vrot.slane %v10513, %v10526
  %v10528 = vcombine.low %v10520, %v10527
  %v10529 = vcombine.low %v9768, %v9782
  %v10530 = vcombine.low %v9790, %v9792
  %v10531 = vcombine.low %v9775, %v9789
  %v10532 = vcombine.low %v9791, %v9793
  %v10534 = vunpack.c.l.s4 1966171168
  %v10535 = vunpack.c.0.s8 %v10534
  %v10536 = vlaneseq
  %v10537 = vshrl.u32 %v10536, 7
  %v10538 = vsub.s32 %v10535, %v10537
  %v10539 = vrot.slane %v10529, %v10538
  %v10541 = vunpack.c.l.s4 1966171168
  %v10542 = vunpack.c.0.s8 %v10541
  %v10543 = vlaneseq
  %v10544 = vshrl.u32 %v10543, 7
  %v10545 = vsub.s32 %v10542, %v10544
  %v10546 = vrot.slane %v10530, %v10545
  %v10548 = vunpack.c.l.s4 1966171168
  %v10549 = vunpack.c.0.s8 %v10548
  %v10550 = vlaneseq
  %v10551 = vshrl.u32 %v10550, 7
  %v10552 = vsub.s32 %v10549, %v10551
  %v10553 = vrot.slane %v10531, %v10552
  %v10555 = vunpack.c.l.s4 1966171168
  %v10556 = vunpack.c.0.s8 %v10555
  %v10557 = vlaneseq
  %v10558 = vshrl.u32 %v10557, 7
  %v10559 = vsub.s32 %v10556, %v10558
  %v10560 = vrot.slane %v10532, %v10559
  %v10561 = vcombine.low %v10539, %v10546
  %v10562 = vcombine.low %v10553, %v10560
  %v10564 = vunpack.c.l.s4 1966171168
  %v10565 = vunpack.c.0.s8 %v10564
  %v10566 = vlaneseq
  %v10567 = vshrl.u32 %v10566, 7
  %v10568 = vsub.s32 %v10565, %v10567
  %v10569 = vrot.slane %v10561, %v10568
  %v10571 = vunpack.c.l.s4 1966171168
  %v10572 = vunpack.c.0.s8 %v10571
  %v10573 = vlaneseq
  %v10574 = vshrl.u32 %v10573, 7
  %v10575 = vsub.s32 %v10572, %v10574
  %v10576 = vrot.slane %v10562, %v10575
  %v10577 = vcombine.low %v10569, %v10576
  %v10578 = vcombine.low %v9817, %v9831
  %v10579 = vcombine.low %v9839, %v9841
  %v10580 = vcombine.low %v9824, %v9838
  %v10581 = vcombine.low %v9840, %v9842
  %v10583 = vunpack.c.l.s4 1966171168
  %v10584 = vunpack.c.0.s8 %v10583
  %v10585 = vlaneseq
  %v10586 = vshrl.u32 %v10585, 7
  %v10587 = vsub.s32 %v10584, %v10586
  %v10588 = vrot.slane %v10578, %v10587
  %v10590 = vunpack.c.l.s4 1966171168
  %v10591 = vunpack.c.0.s8 %v10590
  %v10592 = vlaneseq
  %v10593 = vshrl.u32 %v10592, 7
  %v10594 = vsub.s32 %v10591, %v10593
  %v10595 = vrot.slane %v10579, %v10594
  %v10597 = vunpack.c.l.s4 1966171168
  %v10598 = vunpack.c.0.s8 %v10597
  %v10599 = vlaneseq
  %v10600 = vshrl.u32 %v10599, 7
  %v10601 = vsub.s32 %v10598, %v10600
  %v10602 = vrot.slane %v10580, %v10601
  %v10604 = vunpack.c.l.s4 1966171168
  %v10605 = vunpack.c.0.s8 %v10604
  %v10606 = vlaneseq
  %v10607 = vshrl.u32 %v10606, 7
  %v10608 = vsub.s32 %v10605, %v10607
  %v10609 = vrot.slane %v10581, %v10608
  %v10610 = vcombine.low %v10588, %v10595
  %v10611 = vcombine.low %v10602, %v10609
  %v10613 = vunpack.c.l.s4 1966171168
  %v10614 = vunpack.c.0.s8 %v10613
  %v10615 = vlaneseq
  %v10616 = vshrl.u32 %v10615, 7
  %v10617 = vsub.s32 %v10614, %v10616
  %v10618 = vrot.slane %v10610, %v10617
  %v10620 = vunpack.c.l.s4 1966171168
  %v10621 = vunpack.c.0.s8 %v10620
  %v10622 = vlaneseq
  %v10623 = vshrl.u32 %v10622, 7
  %v10624 = vsub.s32 %v10621, %v10623
  %v10625 = vrot.slane %v10611, %v10624
  %v10626 = vcombine.low %v10618, %v10625
  %v10627 = vcombine.low %v9866, %v9880
  %v10628 = vcombine.low %v9888, %v9890
  %v10629 = vcombine.low %v9873, %v9887
  %v10630 = vcombine.low %v9889, %v9891
  %v10632 = vunpack.c.l.s4 1966171168
  %v10633 = vunpack.c.0.s8 %v10632
  %v10634 = vlaneseq
  %v10635 = vshrl.u32 %v10634, 7
  %v10636 = vsub.s32 %v10633, %v10635
  %v10637 = vrot.slane %v10627, %v10636
  %v10639 = vunpack.c.l.s4 1966171168
  %v10640 = vunpack.c.0.s8 %v10639
  %v10641 = vlaneseq
  %v10642 = vshrl.u32 %v10641, 7
  %v10643 = vsub.s32 %v10640, %v10642
  %v10644 = vrot.slane %v10628, %v10643
  %v10646 = vunpack.c.l.s4 1966171168
  %v10647 = vunpack.c.0.s8 %v10646
  %v10648 = vlaneseq
  %v10649 = vshrl.u32 %v10648, 7
  %v10650 = vsub.s32 %v10647, %v10649
  %v10651 = vrot.slane %v10629, %v10650
  %v10653 = vunpack.c.l.s4 1966171168
  %v10654 = vunpack.c.0.s8 %v10653
  %v10655 = vlaneseq
  %v10656 = vshrl.u32 %v10655, 7
  %v10657 = vsub.s32 %v10654, %v10656
  %v10658 = vrot.slane %v10630, %v10657
  %v10659 = vcombine.low %v10637, %v10644
  %v10660 = vcombine.low %v10651, %v10658
  %v10662 = vunpack.c.l.s4 1966171168
  %v10663 = vunpack.c.0.s8 %v10662
  %v10664 = vlaneseq
  %v10665 = vshrl.u32 %v10664, 7
  %v10666 = vsub.s32 %v10663, %v10665
  %v10667 = vrot.slane %v10659, %v10666
  %v10669 = vunpack.c.l.s4 1966171168
  %v10670 = vunpack.c.0.s8 %v10669
  %v10671 = vlaneseq
  %v10672 = vshrl.u32 %v10671, 7
  %v10673 = vsub.s32 %v10670, %v10672
  %v10674 = vrot.slane %v10660, %v10673
  %v10675 = vcombine.low %v10667, %v10674
  %v10676 = vcombine.low %v9915, %v9929
  %v10677 = vcombine.low %v9937, %v9939
  %v10678 = vcombine.low %v9922, %v9936
  %v10679 = vcombine.low %v9938, %v9940
  %v10681 = vunpack.c.l.s4 1966171168
  %v10682 = vunpack.c.0.s8 %v10681
  %v10683 = vlaneseq
  %v10684 = vshrl.u32 %v10683, 7
  %v10685 = vsub.s32 %v10682, %v10684
  %v10686 = vrot.slane %v10676, %v10685
  %v10688 = vunpack.c.l.s4 1966171168
  %v10689 = vunpack.c.0.s8 %v10688
  %v10690 = vlaneseq
  %v10691 = vshrl.u32 %v10690, 7
  %v10692 = vsub.s32 %v10689, %v10691
  %v10693 = vrot.slane %v10677, %v10692
  %v10695 = vunpack.c.l.s4 1966171168
  %v10696 = vunpack.c.0.s8 %v10695
  %v10697 = vlaneseq
  %v10698 = vshrl.u32 %v10697, 7
  %v10699 = vsub.s32 %v10696, %v10698
  %v10700 = vrot.slane %v10678, %v10699
  %v10702 = vunpack.c.l.s4 1966171168
  %v10703 = vunpack.c.0.s8 %v10702
  %v10704 = vlaneseq
  %v10705 = vshrl.u32 %v10704, 7
  %v10706 = vsub.s32 %v10703, %v10705
  %v10707 = vrot.slane %v10679, %v10706
  %v10708 = vcombine.low %v10686, %v10693
  %v10709 = vcombine.low %v10700, %v10707
  %v10711 = vunpack.c.l.s4 1966171168
  %v10712 = vunpack.c.0.s8 %v10711
  %v10713 = vlaneseq
  %v10714 = vshrl.u32 %v10713, 7
  %v10715 = vsub.s32 %v10712, %v10714
  %v10716 = vrot.slane %v10708, %v10715
  %v10718 = vunpack.c.l.s4 1966171168
  %v10719 = vunpack.c.0.s8 %v10718
  %v10720 = vlaneseq
  %v10721 = vshrl.u32 %v10720, 7
  %v10722 = vsub.s32 %v10719, %v10721
  %v10723 = vrot.slane %v10709, %v10722
  %v10724 = vcombine.low %v10716, %v10723
  %v10725 = vcombine.low %v9964, %v9978
  %v10726 = vcombine.low %v9986, %v9988
  %v10727 = vcombine.low %v9971, %v9985
  %v10728 = vcombine.low %v9987, %v9989
  %v10730 = vunpack.c.l.s4 1966171168
  %v10731 = vunpack.c.0.s8 %v10730
  %v10732 = vlaneseq
  %v10733 = vshrl.u32 %v10732, 7
  %v10734 = vsub.s32 %v10731, %v10733
  %v10735 = vrot.slane %v10725, %v10734
  %v10737 = vunpack.c.l.s4 1966171168
  %v10738 = vunpack.c.0.s8 %v10737
  %v10739 = vlaneseq
  %v10740 = vshrl.u32 %v10739, 7
  %v10741 = vsub.s32 %v10738, %v10740
  %v10742 = vrot.slane %v10726, %v10741
  %v10744 = vunpack.c.l.s4 1966171168
  %v10745 = vunpack.c.0.s8 %v10744
  %v10746 = vlaneseq
  %v10747 = vshrl.u32 %v10746, 7
  %v10748 = vsub.s32 %v10745, %v10747
  %v10749 = vrot.slane %v10727, %v10748
  %v10751 = vunpack.c.l.s4 1966171168
  %v10752 = vunpack.c.0.s8 %v10751
  %v10753 = vlaneseq
  %v10754 = vshrl.u32 %v10753, 7
  %v10755 = vsub.s32 %v10752, %v10754
  %v10756 = vrot.slane %v10728, %v10755
  %v10757 = vcombine.low %v10735, %v10742
  %v10758 = vcombine.low %v10749, %v10756
  %v10760 = vunpack.c.l.s4 1966171168
  %v10761 = vunpack.c.0.s8 %v10760
  %v10762 = vlaneseq
  %v10763 = vshrl.u32 %v10762, 7
  %v10764 = vsub.s32 %v10761, %v10763
  %v10765 = vrot.slane %v10757, %v10764
  %v10767 = vunpack.c.l.s4 1966171168
  %v10768 = vunpack.c.0.s8 %v10767
  %v10769 = vlaneseq
  %v10770 = vshrl.u32 %v10769, 7
  %v10771 = vsub.s32 %v10768, %v10770
  %v10772 = vrot.slane %v10758, %v10771
  %v10773 = vcombine.low %v10765, %v10772
  %v10774 = vcombine.low %v10013, %v10027
  %v10775 = vcombine.low %v10035, %v10037
  %v10776 = vcombine.low %v10020, %v10034
  %v10777 = vcombine.low %v10036, %v10038
  %v10779 = vunpack.c.l.s4 1966171168
  %v10780 = vunpack.c.0.s8 %v10779
  %v10781 = vlaneseq
  %v10782 = vshrl.u32 %v10781, 7
  %v10783 = vsub.s32 %v10780, %v10782
  %v10784 = vrot.slane %v10774, %v10783
  %v10786 = vunpack.c.l.s4 1966171168
  %v10787 = vunpack.c.0.s8 %v10786
  %v10788 = vlaneseq
  %v10789 = vshrl.u32 %v10788, 7
  %v10790 = vsub.s32 %v10787, %v10789
  %v10791 = vrot.slane %v10775, %v10790
  %v10793 = vunpack.c.l.s4 1966171168
  %v10794 = vunpack.c.0.s8 %v10793
  %v10795 = vlaneseq
  %v10796 = vshrl.u32 %v10795, 7
  %v10797 = vsub.s32 %v10794, %v10796
  %v10798 = vrot.slane %v10776, %v10797
  %v10800 = vunpack.c.l.s4 1966171168
  %v10801 = vunpack.c.0.s8 %v10800
  %v10802 = vlaneseq
  %v10803 = vshrl.u32 %v10802, 7
  %v10804 = vsub.s32 %v10801, %v10803
  %v10805 = vrot.slane %v10777, %v10804
  %v10806 = vcombine.low %v10784, %v10791
  %v10807 = vcombine.low %v10798, %v10805
  %v10809 = vunpack.c.l.s4 1966171168
  %v10810 = vunpack.c.0.s8 %v10809
  %v10811 = vlaneseq
  %v10812 = vshrl.u32 %v10811, 7
  %v10813 = vsub.s32 %v10810, %v10812
  %v10814 = vrot.slane %v10806, %v10813
  %v10816 = vunpack.c.l.s4 1966171168
  %v10817 = vunpack.c.0.s8 %v10816
  %v10818 = vlaneseq
  %v10819 = vshrl.u32 %v10818, 7
  %v10820 = vsub.s32 %v10817, %v10819
  %v10821 = vrot.slane %v10807, %v10820
  %v10822 = vcombine.low %v10814, %v10821
  %v10823 = vcombine.low %v10062, %v10076
  %v10824 = vcombine.low %v10084, %v10086
  %v10825 = vcombine.low %v10069, %v10083
  %v10826 = vcombine.low %v10085, %v10087
  %v10828 = vunpack.c.l.s4 1966171168
  %v10829 = vunpack.c.0.s8 %v10828
  %v10830 = vlaneseq
  %v10831 = vshrl.u32 %v10830, 7
  %v10832 = vsub.s32 %v10829, %v10831
  %v10833 = vrot.slane %v10823, %v10832
  %v10835 = vunpack.c.l.s4 1966171168
  %v10836 = vunpack.c.0.s8 %v10835
  %v10837 = vlaneseq
  %v10838 = vshrl.u32 %v10837, 7
  %v10839 = vsub.s32 %v10836, %v10838
  %v10840 = vrot.slane %v10824, %v10839
  %v10842 = vunpack.c.l.s4 1966171168
  %v10843 = vunpack.c.0.s8 %v10842
  %v10844 = vlaneseq
  %v10845 = vshrl.u32 %v10844, 7
  %v10846 = vsub.s32 %v10843, %v10845
  %v10847 = vrot.slane %v10825, %v10846
  %v10849 = vunpack.c.l.s4 1966171168
  %v10850 = vunpack.c.0.s8 %v10849
  %v10851 = vlaneseq
  %v10852 = vshrl.u32 %v10851, 7
  %v10853 = vsub.s32 %v10850, %v10852
  %v10854 = vrot.slane %v10826, %v10853
  %v10855 = vcombine.low %v10833, %v10840
  %v10856 = vcombine.low %v10847, %v10854
  %v10858 = vunpack.c.l.s4 1966171168
  %v10859 = vunpack.c.0.s8 %v10858
  %v10860 = vlaneseq
  %v10861 = vshrl.u32 %v10860, 7
  %v10862 = vsub.s32 %v10859, %v10861
  %v10863 = vrot.slane %v10855, %v10862
  %v10865 = vunpack.c.l.s4 1966171168
  %v10866 = vunpack.c.0.s8 %v10865
  %v10867 = vlaneseq
  %v10868 = vshrl.u32 %v10867, 7
  %v10869 = vsub.s32 %v10866, %v10868
  %v10870 = vrot.slane %v10856, %v10869
  %v10871 = vcombine.low %v10863, %v10870
  %10872 = vset.pattern.permute.xlu0 0
  %10873 = vperm.xlu0 %10872, %v10136
  %v10874 = vpop.permute.xlu0 %10873
  %10875 = vset.pattern.permute.xlu0 0
  %10876 = vperm.xlu0 %10875, %v10185
  %v10877 = vpop.permute.xlu0 %10876
  %10878 = vset.pattern.permute.xlu0 0
  %10879 = vperm.xlu0 %10878, %v10234
  %v10880 = vpop.permute.xlu0 %10879
  %10881 = vset.pattern.permute.xlu0 0
  %10882 = vperm.xlu0 %10881, %v10283
  %v10883 = vpop.permute.xlu0 %10882
  %10884 = vset.pattern.permute.xlu0 0
  %10885 = vperm.xlu0 %10884, %v10332
  %v10886 = vpop.permute.xlu0 %10885
  %10887 = vset.pattern.permute.xlu0 0
  %10888 = vperm.xlu0 %10887, %v10381
  %v10889 = vpop.permute.xlu0 %10888
  %10890 = vset.pattern.permute.xlu0 0
  %10891 = vperm.xlu0 %10890, %v10430
  %v10892 = vpop.permute.xlu0 %10891
  %10893 = vset.pattern.permute.xlu0 0
  %10894 = vperm.xlu0 %10893, %v10479
  %v10895 = vpop.permute.xlu0 %10894
  %10896 = vset.pattern.permute.xlu0 0
  %10897 = vperm.xlu0 %10896, %v10528
  %v10898 = vpop.permute.xlu0 %10897
  %10899 = vset.pattern.permute.xlu0 0
  %10900 = vperm.xlu0 %10899, %v10577
  %v10901 = vpop.permute.xlu0 %10900
  %10902 = vset.pattern.permute.xlu0 0
  %10903 = vperm.xlu0 %10902, %v10626
  %v10904 = vpop.permute.xlu0 %10903
  %10905 = vset.pattern.permute.xlu0 0
  %10906 = vperm.xlu0 %10905, %v10675
  %v10907 = vpop.permute.xlu0 %10906
  %10908 = vset.pattern.permute.xlu0 0
  %10909 = vperm.xlu0 %10908, %v10724
  %v10910 = vpop.permute.xlu0 %10909
  %10911 = vset.pattern.permute.xlu0 0
  %10912 = vperm.xlu0 %10911, %v10773
  %v10913 = vpop.permute.xlu0 %10912
  %10914 = vset.pattern.permute.xlu0 0
  %10915 = vperm.xlu0 %10914, %v10822
  %v10916 = vpop.permute.xlu0 %10915
  %10917 = vset.pattern.permute.xlu0 0
  %10918 = vperm.xlu0 %10917, %v10871
  %v10919 = vpop.permute.xlu0 %10918
  %v10920 = vlaneseq
  %v10921 = vshrl.u32 %v10920, 7
  %v10922 = vsub.s32 %v1617, %v10921
  %v10923 = vrot.slane %v10874, %v10922
  %v10924 = vlaneseq
  %v10925 = vshrl.u32 %v10924, 7
  %v10926 = vsub.s32 %v1622, %v10925
  %v10927 = vrot.slane %v10877, %v10926
  %v10928 = vsel %vm1627, %v10927, %v10923
  %v10929 = vlaneseq
  %v10930 = vshrl.u32 %v10929, 7
  %v10931 = vsub.s32 %v1629, %v10930
  %v10932 = vrot.slane %v10880, %v10931
  %v10933 = vsel %vm1634, %v10932, %v10928
  %v10934 = vlaneseq
  %v10935 = vshrl.u32 %v10934, 7
  %v10936 = vsub.s32 %v1636, %v10935
  %v10937 = vrot.slane %v10883, %v10936
  %v10938 = vsel %vm1641, %v10937, %v10933
  %v10939 = vlaneseq
  %v10940 = vshrl.u32 %v10939, 7
  %v10941 = vsub.s32 %v1643, %v10940
  %v10942 = vrot.slane %v10886, %v10941
  %v10943 = vsel %vm1648, %v10942, %v10938
  %v10944 = vlaneseq
  %v10945 = vshrl.u32 %v10944, 7
  %v10946 = vsub.s32 %v1650, %v10945
  %v10947 = vrot.slane %v10889, %v10946
  %v10948 = vsel %vm1655, %v10947, %v10943
  %v10949 = vlaneseq
  %v10950 = vshrl.u32 %v10949, 7
  %v10951 = vsub.s32 %v1657, %v10950
  %v10952 = vrot.slane %v10892, %v10951
  %v10953 = vsel %vm1662, %v10952, %v10948
  %v10954 = vlaneseq
  %v10955 = vshrl.u32 %v10954, 7
  %v10956 = vsub.s32 %v1664, %v10955
  %v10957 = vrot.slane %v10895, %v10956
  %v10958 = vsel %vm1669, %v10957, %v10953
  %v10959 = vlaneseq
  %v10960 = vshrl.u32 %v10959, 7
  %v10961 = vsub.s32 %v1671, %v10960
  %v10962 = vrot.slane %v10898, %v10961
  %v10963 = vsel %vm1676, %v10962, %v10958
  %v10964 = vlaneseq
  %v10965 = vshrl.u32 %v10964, 7
  %v10966 = vsub.s32 %v1678, %v10965
  %v10967 = vrot.slane %v10901, %v10966
  %v10968 = vsel %vm1683, %v10967, %v10963
  %v10969 = vlaneseq
  %v10970 = vshrl.u32 %v10969, 7
  %v10971 = vsub.s32 %v1685, %v10970
  %v10972 = vrot.slane %v10904, %v10971
  %v10973 = vsel %vm1690, %v10972, %v10968
  %v10974 = vlaneseq
  %v10975 = vshrl.u32 %v10974, 7
  %v10976 = vsub.s32 %v1692, %v10975
  %v10977 = vrot.slane %v10907, %v10976
  %v10978 = vsel %vm1697, %v10977, %v10973
  %v10979 = vlaneseq
  %v10980 = vshrl.u32 %v10979, 7
  %v10981 = vsub.s32 %v1699, %v10980
  %v10982 = vrot.slane %v10910, %v10981
  %v10983 = vsel %vm1704, %v10982, %v10978
  %v10984 = vlaneseq
  %v10985 = vshrl.u32 %v10984, 7
  %v10986 = vsub.s32 %v1706, %v10985
  %v10987 = vrot.slane %v10913, %v10986
  %v10988 = vsel %vm1711, %v10987, %v10983
  %v10989 = vlaneseq
  %v10990 = vshrl.u32 %v10989, 7
  %v10991 = vsub.s32 %v1713, %v10990
  %v10992 = vrot.slane %v10916, %v10991
  %v10993 = vsel %vm1718, %v10992, %v10988
  %v10994 = vlaneseq
  %v10995 = vshrl.u32 %v10994, 7
  %v10996 = vsub.s32 %v1720, %v10995
  %v10997 = vrot.slane %v10919, %v10996
  %v10998 = vsel %vm1725, %v10997, %v10993
  %v11000 = vunpack.c.l.s4 1966171168
  %v11001 = vunpack.c.0.s8 %v11000
  %v11002 = vlaneseq
  %v11003 = vshrl.u32 %v11002, 7
  %v11004 = vsub.s32 %v11001, %v11003
  %v11005 = vrot.slane %v10998, %v11004
  %v11007 = vunpack.c.l.s4 1966171168
  %v11008 = vunpack.c.0.s8 %v11007
  %v11009 = vlaneseq
  %v11010 = vshrl.u32 %v11009, 7
  %v11011 = vsub.s32 %v11008, %v11010
  %v11012 = vrot.slane %v11005, %v11011
  %v11014 = vsub.f32 %v9187, %v11012
  %v11015 = vlaneseq
  %v11016 = vshrl.u32 %v11015, 7
  %v11017 = vsub.s32 0, %v11016
  %v11018 = vrot.slane %v9186, %v11017
  %11020 = vbcast.lane.b32.xlu0 %v11018, 256
  %v11021 = vpop.permute.xlu0 %11020
  %s11023 = sor.u32 256, 8
  %11024 = vbcast.lane.b32.xlu0 %v11018, %s11023
  %v11025 = vpop.permute.xlu0 %11024
  %s11027 = sor.u32 256, 16
  %11028 = vbcast.lane.b32.xlu0 %v11018, %s11027
  %v11029 = vpop.permute.xlu0 %11028
  %s11031 = sor.u32 256, 24
  %11032 = vbcast.lane.b32.xlu0 %v11018, %s11031
  %v11033 = vpop.permute.xlu0 %11032
  %s11035 = sor.u32 256, 32
  %11036 = vbcast.lane.b32.xlu0 %v11018, %s11035
  %v11037 = vpop.permute.xlu0 %11036
  %s11039 = sor.u32 256, 40
  %11040 = vbcast.lane.b32.xlu0 %v11018, %s11039
  %v11041 = vpop.permute.xlu0 %11040
  %s11043 = sor.u32 256, 48
  %11044 = vbcast.lane.b32.xlu0 %v11018, %s11043
  %v11045 = vpop.permute.xlu0 %11044
  %s11047 = sor.u32 256, 56
  %11048 = vbcast.lane.b32.xlu0 %v11018, %s11047
  %v11049 = vpop.permute.xlu0 %11048
  %s11051 = sor.u32 256, 64
  %11052 = vbcast.lane.b32.xlu0 %v11018, %s11051
  %v11053 = vpop.permute.xlu0 %11052
  %s11055 = sor.u32 256, 72
  %11056 = vbcast.lane.b32.xlu0 %v11018, %s11055
  %v11057 = vpop.permute.xlu0 %11056
  %s11059 = sor.u32 256, 80
  %11060 = vbcast.lane.b32.xlu0 %v11018, %s11059
  %v11061 = vpop.permute.xlu0 %11060
  %s11063 = sor.u32 256, 88
  %11064 = vbcast.lane.b32.xlu0 %v11018, %s11063
  %v11065 = vpop.permute.xlu0 %11064
  %s11067 = sor.u32 256, 96
  %11068 = vbcast.lane.b32.xlu0 %v11018, %s11067
  %v11069 = vpop.permute.xlu0 %11068
  %s11071 = sor.u32 256, 104
  %11072 = vbcast.lane.b32.xlu0 %v11018, %s11071
  %v11073 = vpop.permute.xlu0 %11072
  %s11075 = sor.u32 256, 112
  %11076 = vbcast.lane.b32.xlu0 %v11018, %s11075
  %v11077 = vpop.permute.xlu0 %11076
  %s11079 = sor.u32 256, 120
  %11080 = vbcast.lane.b32.xlu0 %v11018, %s11079
  %v11081 = vpop.permute.xlu0 %11080
  %v11082 = vlaneseq
  %v11083 = vshrl.u32 %v11082, 7
  %v11084 = vsub.s32 0, %v11083
  %v11085 = vrot.slane %v11014, %v11084
  %11087 = vbcast.lane.b32.xlu0 %v11085, 256
  %v11088 = vpop.permute.xlu0 %11087
  %s11090 = sor.u32 256, 8
  %11091 = vbcast.lane.b32.xlu0 %v11085, %s11090
  %v11092 = vpop.permute.xlu0 %11091
  %s11094 = sor.u32 256, 16
  %11095 = vbcast.lane.b32.xlu0 %v11085, %s11094
  %v11096 = vpop.permute.xlu0 %11095
  %s11098 = sor.u32 256, 24
  %11099 = vbcast.lane.b32.xlu0 %v11085, %s11098
  %v11100 = vpop.permute.xlu0 %11099
  %s11102 = sor.u32 256, 32
  %11103 = vbcast.lane.b32.xlu0 %v11085, %s11102
  %v11104 = vpop.permute.xlu0 %11103
  %s11106 = sor.u32 256, 40
  %11107 = vbcast.lane.b32.xlu0 %v11085, %s11106
  %v11108 = vpop.permute.xlu0 %11107
  %s11110 = sor.u32 256, 48
  %11111 = vbcast.lane.b32.xlu0 %v11085, %s11110
  %v11112 = vpop.permute.xlu0 %11111
  %s11114 = sor.u32 256, 56
  %11115 = vbcast.lane.b32.xlu0 %v11085, %s11114
  %v11116 = vpop.permute.xlu0 %11115
  %s11118 = sor.u32 256, 64
  %11119 = vbcast.lane.b32.xlu0 %v11085, %s11118
  %v11120 = vpop.permute.xlu0 %11119
  %s11122 = sor.u32 256, 72
  %11123 = vbcast.lane.b32.xlu0 %v11085, %s11122
  %v11124 = vpop.permute.xlu0 %11123
  %s11126 = sor.u32 256, 80
  %11127 = vbcast.lane.b32.xlu0 %v11085, %s11126
  %v11128 = vpop.permute.xlu0 %11127
  %s11130 = sor.u32 256, 88
  %11131 = vbcast.lane.b32.xlu0 %v11085, %s11130
  %v11132 = vpop.permute.xlu0 %11131
  %s11134 = sor.u32 256, 96
  %11135 = vbcast.lane.b32.xlu0 %v11085, %s11134
  %v11136 = vpop.permute.xlu0 %11135
  %s11138 = sor.u32 256, 104
  %11139 = vbcast.lane.b32.xlu0 %v11085, %s11138
  %v11140 = vpop.permute.xlu0 %11139
  %s11142 = sor.u32 256, 112
  %11143 = vbcast.lane.b32.xlu0 %v11085, %s11142
  %v11144 = vpop.permute.xlu0 %11143
  %s11146 = sor.u32 256, 120
  %11147 = vbcast.lane.b32.xlu0 %v11085, %s11146
  %v11148 = vpop.permute.xlu0 %11147
  %v11149 = vmul.f32 %v7491, %v11021
  %v11150 = vmul.f32 %v7492, %v11025
  %v11151 = vmul.f32 %v7493, %v11029
  %v11152 = vmul.f32 %v7494, %v11033
  %v11153 = vmul.f32 %v7495, %v11037
  %v11154 = vmul.f32 %v7496, %v11041
  %v11155 = vmul.f32 %v7497, %v11045
  %v11156 = vmul.f32 %v7498, %v11049
  %v11157 = vmul.f32 %v7499, %v11053
  %v11158 = vmul.f32 %v7500, %v11057
  %v11159 = vmul.f32 %v7501, %v11061
  %v11160 = vmul.f32 %v7502, %v11065
  %v11161 = vmul.f32 %v7503, %v11069
  %v11162 = vmul.f32 %v7504, %v11073
  %v11163 = vmul.f32 %v7505, %v11077
  %v11164 = vmul.f32 %v7506, %v11081
  %v11165 = vadd.f32 %v11149, %v11088
  %v11166 = vadd.f32 %v11150, %v11092
  %v11167 = vadd.f32 %v11151, %v11096
  %v11168 = vadd.f32 %v11152, %v11100
  %v11169 = vadd.f32 %v11153, %v11104
  %v11170 = vadd.f32 %v11154, %v11108
  %v11171 = vadd.f32 %v11155, %v11112
  %v11172 = vadd.f32 %v11156, %v11116
  %v11173 = vadd.f32 %v11157, %v11120
  %v11174 = vadd.f32 %v11158, %v11124
  %v11175 = vadd.f32 %v11159, %v11128
  %v11176 = vadd.f32 %v11160, %v11132
  %v11177 = vadd.f32 %v11161, %v11136
  %v11178 = vadd.f32 %v11162, %v11140
  %v11179 = vadd.f32 %v11163, %v11144
  %v11180 = vadd.f32 %v11164, %v11148
  %v11181 = vmax.f32 %v11165, 0.0
  %v11182 = vmax.f32 %v11166, 0.0
  %v11183 = vmax.f32 %v11167, 0.0
  %v11184 = vmax.f32 %v11168, 0.0
  %v11185 = vmax.f32 %v11169, 0.0
  %v11186 = vmax.f32 %v11170, 0.0
  %v11187 = vmax.f32 %v11171, 0.0
  %v11188 = vmax.f32 %v11172, 0.0
  %v11189 = vmax.f32 %v11173, 0.0
  %v11190 = vmax.f32 %v11174, 0.0
  %v11191 = vmax.f32 %v11175, 0.0
  %v11192 = vmax.f32 %v11176, 0.0
  %v11193 = vmax.f32 %v11177, 0.0
  %v11194 = vmax.f32 %v11178, 0.0
  %v11195 = vmax.f32 %v11179, 0.0
  %v11196 = vmax.f32 %v11180, 0.0
  %11197 = vst.msk [vmem:[%s3 + $0x100] sm:$0xff] %vm30, %v11181
  %11198 = vst.msk [vmem:[%s3 + $0x108] sm:$0xff] %vm30, %v11182
  %11199 = vst.msk [vmem:[%s3 + $0x110] sm:$0xff] %vm30, %v11183
  %11200 = vst.msk [vmem:[%s3 + $0x118] sm:$0xff] %vm30, %v11184
  %11201 = vst.msk [vmem:[%s3 + $0x120] sm:$0xff] %vm30, %v11185
  %11202 = vst.msk [vmem:[%s3 + $0x128] sm:$0xff] %vm30, %v11186
  %11203 = vst.msk [vmem:[%s3 + $0x130] sm:$0xff] %vm30, %v11187
  %11204 = vst.msk [vmem:[%s3 + $0x138] sm:$0xff] %vm30, %v11188
  %11205 = vst.msk [vmem:[%s3 + $0x140] sm:$0xff] %vm30, %v11189
  %11206 = vst.msk [vmem:[%s3 + $0x148] sm:$0xff] %vm30, %v11190
  %11207 = vst.msk [vmem:[%s3 + $0x150] sm:$0xff] %vm30, %v11191
  %11208 = vst.msk [vmem:[%s3 + $0x158] sm:$0xff] %vm30, %v11192
  %11209 = vst.msk [vmem:[%s3 + $0x160] sm:$0xff] %vm30, %v11193
  %11210 = vst.msk [vmem:[%s3 + $0x168] sm:$0xff] %vm30, %v11194
  %11211 = vst.msk [vmem:[%s3 + $0x170] sm:$0xff] %vm30, %v11195
  %11212 = vst.msk [vmem:[%s3 + $0x178] sm:$0xff] %vm30, %v11196
  // Predicated region
  $region14: #{tpu_custom_call.1} parent=0 // pred_check
    _
  $region15: #{tpu_custom_call.1} parent=0 // pred_check_branch
    %11214 = sbr.rel (0) target = $region17
  $region16: #{tpu_custom_call.1} parent=0 // pred_region
    _
  $region17: #{tpu_custom_call.1} parent=0 // pred_fallthru
    _
  // Predicated region
  $region18: #{tpu_custom_call.1} parent=0 // pred_check
    _
  $region19: #{tpu_custom_call.1} parent=0 // pred_check_branch
    %11216 = sbr.rel (0) target = $region21
  $region20: #{tpu_custom_call.1} parent=0 // pred_region
    _
  $region21: #{tpu_custom_call.1} parent=0 // pred_fallthru
    _

</llo_original>
